<compile_context>
chip_gen: v7x
topology: tpu7x:2x2x1
jax: 0.10.0
libtpu: 0.0.40
codegen_flags: <defaults>
</compile_context>

<pallas_src>
import functools

import jax
import jax.numpy as jnp
from jax.experimental import pallas as pl
from jax.experimental.pallas import tpu as pltpu

LANE = 128


def _round_up(x, m):
    return (x + m - 1) // m * m


# ----------------------------------------------------------------------------
# Fused Bottleneck kernel.
# Layout: activations are flattened to (rows = padded pixels, lanes = channels),
# so a 3x3 tap is a constant row offset and each tap is one
# (rows, Cin) @ (Cin, Cout) MXU matmul.  BN scale is pre-folded into the
# weight columns; BN bias is a single add.
# ----------------------------------------------------------------------------
def _bottleneck_kernel(x_hbm, w1_ref, b1_ref, w2_ref, b2_ref, o_ref,
                       xwin_ref, xf32_ref, inter_ref, dma_sem,
                       *, tm, ti, win, we, offs, res_off, add, h, w):
    b = pl.program_id(0)
    i = pl.program_id(1)
    num_tiles = pl.num_programs(1)
    slot = i % 2

    # ---- manual, double-buffered DMA of the haloed x row-window ------------
    def window_copy(tile_idx, s):
        start = pl.multiple_of(tile_idx * tm, 8)
        return pltpu.make_async_copy(
            x_hbm.at[b, pl.ds(start, win), :], xwin_ref.at[s], dma_sem.at[s])

    @pl.when(i == 0)                      # prime pipeline per image (per core)
    def _():
        window_copy(0, 0).start()

    window_copy(i, slot).wait()           # wait for this tile's window

    @pl.when(i + 1 < num_tiles)           # prefetch next tile's window
    def _():
        window_copy(i + 1, 1 - slot).start()

    # One cheap widening pass: bf16 HBM window -> f32 working copy, so the
    # unaligned-sublane tap slices below stay on a robust unpacked dtype.
    xf32_ref[...] = xwin_ref[slot].astype(jnp.float32)

    # ---- cv1: 3x3 conv (+ folded BN scale), 9 row-shifted MXU matmuls ------
    acc = None
    for t in range(9):
        lhs = xf32_ref[pl.ds(offs[t], ti), :].astype(jnp.bfloat16)
        part = jnp.dot(lhs, w1_ref[t], preferred_element_type=jnp.float32)
        acc = part if acc is None else acc + part
    y1 = acc + b1_ref[...]                                      # folded BN bias
    y1 = y1 * pl.reciprocal(1.0 + jnp.exp(-y1), approx=True)    # SiLU (EUP)

    # Interior mask computed in-kernel (no mask input): zero the padding ring,
    # out-of-image halo rows and alignment rows so they act as cv2's zero-pad.
    row0 = i * tm
    l = jax.lax.broadcasted_iota(jnp.int32, (ti, 1), 0)
    g = row0 + l - (we + 1)               # extended-image flat row of inter row
    row_ok = (g >= we) & (g < (h + 1) * we)
    gf = g.astype(jnp.float32)
    q = jnp.floor((gf + 0.5) * jnp.float32(1.0 / we))
    col = gf - q * jnp.float32(we)        # g % we, division-free (exact here)
    col_ok = (col > 0.5) & (col < w + 0.5)
    inter_ref[...] = jnp.where(row_ok & col_ok, y1, 0.0)

    # ---- cv2: 3x3 conv over the VMEM-resident intermediate -----------------
    acc2 = None
    for t in range(9):
        lhs = inter_ref[pl.ds(offs[t], tm), :].astype(jnp.bfloat16)
        part = jnp.dot(lhs, w2_ref[t], preferred_element_type=jnp.float32)
        acc2 = part if acc2 is None else acc2 + part
    y2 = acc2 + b2_ref[...]
    y2 = y2 * pl.reciprocal(1.0 + jnp.exp(-y2), approx=True)    # SiLU
    if add:                                                     # shortcut
        y2 = y2 + xf32_ref[pl.ds(res_off, tm), :]
    o_ref[...] = y2.astype(o_ref.dtype)


# ----------------------------------------------------------------------------
# Public forward wrapper (NCHW in / NCHW out, like the PyTorch module)
# ----------------------------------------------------------------------------
def bottleneck_forward(params, x_nchw, *, c2, add, tm_override=None,
                       vmem_budget_bytes=24 * 1024 * 1024):
    n, c1, h, w = x_nchw.shape
    c1p, cmid_p = params["w1"].shape[1], params["w1"].shape[2]
    c2p = params["w2"].shape[2]
    if add:
        assert c1 == c2 and c1p == c2p, "shortcut requires c1 == c2"

    we, he = w + 2, h + 2               # extended (1-pixel zero-pad ring) dims
    me = he * we                        # extended rows per image (flattened)

    # Row-tile size: large enough to amortize the 2*(we+1)-row halo recompute
    # and per-step overhead, small enough that the VMEM working set
    # (2 bf16 window slots + f32 window copy + f32 intermediate + 2 out bufs)
    # stays inside the budget (v7x has 64 MiB / TensorCore).
    if tm_override is not None:
        tm = _round_up(tm_override, 16)
    else:
        bytes_per_row = 2 * 2 * c1p + 4 * c1p + 4 * cmid_p + 2 * 4 * c2p
        cap = max(256, (vmem_budget_bytes // bytes_per_row) // 16 * 16)
        tm = min(cap, _round_up(max(512, 8 * we), 16))
    tm = min(_round_up(me, 16), tm)
    num_tiles = -(-me // tm)
    me_pad = num_tiles * tm

    ti = tm + 2 * we + 2                 # intermediate rows (output tile + halo)
    win = _round_up(tm + 4 * we + 4, 16)  # x rows needed per tile (with halo)
    x0 = 2 * we + 2                      # leading zero rows in the flat layout
    m1 = (num_tiles - 1) * tm + win      # total flat x rows

    # static per-tap row offsets within the window / intermediate
    offs = tuple(dh * we + dw for dh in range(3) for dw in range(3))
    res_off = 2 * we + 2                 # window-local offset of the residual

    # ---- layout prep: NCHW -> channels-last, pad, flatten, bf16 ------------
    x_nhwc = jnp.transpose(x_nchw, (0, 2, 3, 1)).astype(jnp.bfloat16)
    x_ext = jnp.pad(x_nhwc, ((0, 0), (1, 1), (1, 1), (0, c1p - c1)))
    x_flat = x_ext.reshape(n, me, c1p)
    x_flat = jnp.pad(x_flat, ((0, 0), (x0, m1 - x0 - me), (0, 0)))

    kernel = functools.partial(_bottleneck_kernel, tm=tm, ti=ti, win=win, we=we,
                               offs=offs, res_off=res_off, add=add, h=h, w=w)

    out_flat = pl.pallas_call(
        kernel,
        out_shape=jax.ShapeDtypeStruct((n, me_pad, c2p), jnp.float32),
        grid_spec=pltpu.PrefetchScalarGridSpec(
            num_scalar_prefetch=0,
            grid=(n, num_tiles),
            in_specs=[
                pl.BlockSpec(memory_space=pl.ANY),                        # x (HBM)
                pl.BlockSpec((9, c1p, cmid_p), lambda b, i: (0, 0, 0)),   # W1 bf16
                pl.BlockSpec((1, cmid_p), lambda b, i: (0, 0)),           # b1
                pl.BlockSpec((9, cmid_p, c2p), lambda b, i: (0, 0, 0)),   # W2 bf16
                pl.BlockSpec((1, c2p), lambda b, i: (0, 0)),              # b2
            ],
            out_specs=pl.BlockSpec((None, tm, c2p), lambda b, i: (b, i, 0)),
            scratch_shapes=[
                pltpu.VMEM((2, win, c1p), jnp.bfloat16),   # double-buffered x window
                pltpu.VMEM((win, c1p), jnp.float32),       # widened working copy
                pltpu.VMEM((ti, cmid_p), jnp.float32),     # cv1 output (+ halo)
                pltpu.SemaphoreType.DMA((2,)),
            ],
        ),
        compiler_params=pltpu.CompilerParams(
            dimension_semantics=("parallel", "arbitrary"),
            vmem_limit_bytes=64 * 1024 * 1024,
        ),
    )(x_flat, params["w1"], params["b1"], params["w2"], params["b2"])

    out = out_flat[:, :me, :].reshape(n, he, we, c2p)[:, 1:h + 1, 1:w + 1, :c2]
    return jnp.transpose(out, (0, 3, 1, 2))


# ----------------------------------------------------------------------------
# Deterministic synthetic parameters (Conv no-bias + eval-mode BN, BN folded)
# ----------------------------------------------------------------------------
def _fold_bn(gamma, beta, mean, var, eps=1e-3):
    scale = gamma * jax.lax.rsqrt(var + eps)
    return scale, beta - mean * scale


def _init_conv_bn(key, cin, cout, cin_p, cout_p):
    """3x3 Conv2d(bias=False) + BatchNorm2d(eval).  Returns lane-dense padded
    (w: (9, cin_p, cout_p) bf16 with BN scale folded in, b: (1, cout_p) f32)."""
    k1, k2, k3, k4, k5 = jax.random.split(key, 5)
    w = 0.1 * jax.random.normal(k1, (3, 3, cin, cout), jnp.float32)
    gamma = 1.0 + 0.1 * jax.random.normal(k2, (cout,), jnp.float32)
    beta = 0.1 * jax.random.normal(k3, (cout,), jnp.float32)
    mean = 0.1 * jax.random.normal(k4, (cout,), jnp.float32)
    var = 0.5 + 0.2 * jnp.abs(jax.random.normal(k5, (cout,), jnp.float32))
    scale, bias = _fold_bn(gamma, beta, mean, var)
    w9 = (w * scale).reshape(9, cin, cout)          # fold BN scale into weights
    wp = jnp.zeros((9, cin_p, cout_p), jnp.float32).at[:, :cin, :cout].set(w9)
    bp = jnp.zeros((1, cout_p), jnp.float32).at[0, :cout].set(bias)
    return wp.astype(jnp.bfloat16), bp


def init_bottleneck_params(key, c1, c2, e=0.5):
    c_ = max(int(c2 * e), 1)
    c1p, cmid_p, c2p = (_round_up(c, LANE) for c in (c1, c_, c2))
    k1, k2 = jax.random.split(key)
    w1, b1 = _init_conv_bn(k1, c1, c_, c1p, cmid_p)
    w2, b2 = _init_conv_bn(k2, c_, c2, cmid_p, c2p)
    return {"w1": w1, "b1": b1, "w2": w2, "b2": b2}


# ----------------------------------------------------------------------------
# Pure-JAX reference (same folded eval-mode semantics) for correctness checks
# ----------------------------------------------------------------------------
def _ref_conv3x3_bn_silu(x_nhwc, w9, bias):
    cin = x_nhwc.shape[-1]
    w4 = w9.reshape(3, 3, cin, -1)
    y = jax.lax.conv_general_dilated(
        x_nhwc, w4, window_strides=(1, 1), padding="SAME",
        dimension_numbers=("NHWC", "HWIO", "NHWC")) + bias
    return y * jax.nn.sigmoid(y)


def _ref_bottleneck(params, x_nchw, c1, c2, c_, add):
    w1 = params["w1"][:, :c1, :c_].astype(jnp.float32)
    b1 = params["b1"][0, :c_]
    w2 = params["w2"][:, :c_, :c2].astype(jnp.float32)
    b2 = params["b2"][0, :c2]
    x = jnp.transpose(x_nchw, (0, 2, 3, 1))
    y = _ref_conv3x3_bn_silu(x, w1, b1)
    y = _ref_conv3x3_bn_silu(y, w2, b2)
    if add:
        y = y + x
    return jnp.transpose(y, (0, 3, 1, 2))


# ----------------------------------------------------------------------------
if __name__ == "__main__":
    key = jax.random.PRNGKey(0)
    kx, kp, kx2, kp2 = jax.random.split(key, 4)
    E = 0.5

    # ---- Case 1: Bottleneck(c1=4, c2=4, shortcut=True), default (single) tile
    N, C, H, W = 2, 4, 16, 16
    C_ = max(int(C * E), 1)
    x = jax.random.normal(kx, (N, C, H, W), jnp.float32)       # NCHW like PyTorch
    params = init_bottleneck_params(kp, C, C, e=E)

    fwd = jax.jit(functools.partial(bottleneck_forward, c2=C, add=True))
    out = jax.block_until_ready(fwd(params, x))
    assert out.shape == (N, C, H, W), out.shape
    assert bool(jnp.all(jnp.isfinite(out)))
    ref = _ref_bottleneck(params, x, C, C, C_, add=True)
    err = float(jnp.max(jnp.abs(out - ref)))
    assert err < 5e-2, err

    # ---- Case 2: same problem, forced multi-tile path (halo / DMA prefetch /
    #              per-tile mask / residual offset across tile boundaries)
    fwd_mt = jax.jit(functools.partial(bottleneck_forward, c2=C, add=True,
                                       tm_override=64))
    out_mt = jax.block_until_ready(fwd_mt(params, x))
    err_mt = float(jnp.max(jnp.abs(out_mt - ref)))
    assert err_mt < 5e-2, err_mt

    # ---- Case 3: no shortcut (c1 != c2), non-square spatial, multi-tile -----
    C1b, C2b, Hb, Wb = 4, 8, 12, 20
    C_b = max(int(C2b * E), 1)
    xb = jax.random.normal(kx2, (N, C1b, Hb, Wb), jnp.float32)
    params_b = init_bottleneck_params(kp2, C1b, C2b, e=E)
    fwd_b = jax.jit(functools.partial(bottleneck_forward, c2=C2b, add=False,
                                      tm_override=80))
    out_b = jax.block_until_ready(fwd_b(params_b, xb))
    assert out_b.shape == (N, C2b, Hb, Wb), out_b.shape
    ref_b = _ref_bottleneck(params_b, xb, C1b, C2b, C_b, add=False)
    err_b = float(jnp.max(jnp.abs(out_b - ref_b)))
    assert err_b < 5e-2, err_b

    print("KERNEL_OK")
</pallas_src>

<mosaic_0001>
module attributes {stable_mosaic.version = 11 : i64} {
  func.func @_bottleneck_kernel(%arg0: i32, %arg1: i32, %arg2: memref<2x416x128xbf16, #tpu.memory_space<any>>, %arg3: memref<9x128x128xbf16, #tpu.memory_space<vmem>>, %arg4: memref<1x128xf32, #tpu.memory_space<vmem>>, %arg5: memref<9x128x128xbf16, #tpu.memory_space<vmem>>, %arg6: memref<1x128xf32, #tpu.memory_space<vmem>>, %arg7: memref<1x336x128xf32, #tpu.memory_space<vmem>>, %arg8: memref<2x416x128xbf16, #tpu.memory_space<vmem>>, %arg9: memref<416x128xf32, #tpu.memory_space<vmem>>, %arg10: memref<374x128xf32, #tpu.memory_space<vmem>>, %arg11: memref<2x!tpu.dma_semaphore, #tpu.memory_space<semaphore_mem>>) attributes {dimension_semantics = [#tpu.dimension_semantics<parallel>, #tpu.dimension_semantics<arbitrary>], iteration_bounds = array<i64: 2, 1>, scalar_prefetch = 0 : i64, scratch_operands = 4 : i64, tpu.core_type = #tpu.core_type<tc>, window_params = [{}, {pipeline_mode = #tpu.pipeline_mode<synchronous>, transform_indices = @transform_1, window_bounds = array<i64: 9, 128, 128>}, {pipeline_mode = #tpu.pipeline_mode<synchronous>, transform_indices = @transform_2, window_bounds = array<i64: 1, 128>}, {pipeline_mode = #tpu.pipeline_mode<synchronous>, transform_indices = @transform_3, window_bounds = array<i64: 9, 128, 128>}, {pipeline_mode = #tpu.pipeline_mode<synchronous>, transform_indices = @transform_4, window_bounds = array<i64: 1, 128>}, {transform_indices = @transform_5, window_bounds = array<i64: 1, 336, 128>}]} {
    %c2_i32 = arith.constant 2 : i32
    %c0_i32 = arith.constant 0 : i32
    %0 = arith.cmpi eq, %c2_i32, %c0_i32 : i32
    %c1_i32 = arith.constant 1 : i32
    %1 = arith.select %0, %c1_i32, %c2_i32 : i32
    %2 = arith.remsi %arg1, %1 : i32
    %c0_i32_0 = arith.constant 0 : i32
    %3 = arith.cmpi ne, %2, %c0_i32_0 : i32
    %c0_i32_1 = arith.constant 0 : i32
    %4 = arith.cmpi slt, %2, %c0_i32_1 : i32
    %c0_i32_2 = arith.constant 0 : i32
    %5 = arith.cmpi slt, %1, %c0_i32_2 : i32
    %6 = arith.xori %4, %5 : i1
    %7 = arith.andi %6, %3 : i1
    %8 = arith.addi %2, %1 : i32
    %9 = arith.select %7, %8, %2 : i32
    %c0_i32_3 = arith.constant 0 : i32
    %10 = arith.cmpi eq, %arg1, %c0_i32_3 : i32
    %11 = arith.extui %10 : i1 to i32
    %c0_i32_4 = arith.constant 0 : i32
    %12 = arith.cmpi ne, %11, %c0_i32_4 : i32
    scf.if %12 {
      %c0_i32_129 = arith.constant 0 : i32
      %192 = tpu.assume_multiple %c0_i32_129, 8 : i32
      %c0_i32_130 = arith.constant 0 : i32
      %c0_i32_131 = arith.constant 0 : i32
      %c0_i32_132 = arith.constant 0 : i32
      %193 = tpu.memref_slice %arg2[%arg0, %192, %c0_i32_132] : memref<2x416x128xbf16, #tpu.memory_space<any>> -> memref<1x416x128xbf16, #tpu.memory_space<any>>
      %194 = tpu.memref_squeeze %193 : memref<1x416x128xbf16, #tpu.memory_space<any>> -> memref<416x128xbf16, #tpu.memory_space<any>>
      %c0_i32_133 = arith.constant 0 : i32
      %c0_i32_134 = arith.constant 0 : i32
      %195 = tpu.memref_slice %arg8[%c0_i32_130, %c0_i32_133, %c0_i32_134] : memref<2x416x128xbf16, #tpu.memory_space<vmem>> -> memref<1x416x128xbf16, #tpu.memory_space<vmem>>
      %196 = tpu.memref_squeeze %195 : memref<1x416x128xbf16, #tpu.memory_space<vmem>> -> memref<416x128xbf16, #tpu.memory_space<vmem>>
      %197 = tpu.memref_slice %arg11[%c0_i32_131] : memref<2x!tpu.dma_semaphore, #tpu.memory_space<semaphore_mem>> -> memref<1x!tpu.dma_semaphore, #tpu.memory_space<semaphore_mem>>
      %198 = tpu.memref_squeeze %197 : memref<1x!tpu.dma_semaphore, #tpu.memory_space<semaphore_mem>> -> memref<!tpu.dma_semaphore, #tpu.memory_space<semaphore_mem>>
      tpu.enqueue_dma source(%194 : memref<416x128xbf16, #tpu.memory_space<any>>) target(%196 : memref<416x128xbf16, #tpu.memory_space<vmem>>) target_semaphore(%198 : memref<!tpu.dma_semaphore, #tpu.memory_space<semaphore_mem>>)
    } else {
    }
    %c336_i32 = arith.constant 336 : i32
    %13 = arith.muli %arg1, %c336_i32 : i32
    %14 = tpu.assume_multiple %13, 8 : i32
    %c0_i32_5 = arith.constant 0 : i32
    %15 = tpu.memref_slice %arg2[%arg0, %14, %c0_i32_5] : memref<2x416x128xbf16, #tpu.memory_space<any>> -> memref<1x416x128xbf16, #tpu.memory_space<any>>
    %16 = tpu.memref_squeeze %15 : memref<1x416x128xbf16, #tpu.memory_space<any>> -> memref<416x128xbf16, #tpu.memory_space<any>>
    %c0_i32_6 = arith.constant 0 : i32
    %c0_i32_7 = arith.constant 0 : i32
    %17 = tpu.memref_slice %arg8[%9, %c0_i32_6, %c0_i32_7] : memref<2x416x128xbf16, #tpu.memory_space<vmem>> -> memref<1x416x128xbf16, #tpu.memory_space<vmem>>
    %18 = tpu.memref_squeeze %17 : memref<1x416x128xbf16, #tpu.memory_space<vmem>> -> memref<416x128xbf16, #tpu.memory_space<vmem>>
    %19 = tpu.memref_slice %arg11[%9] : memref<2x!tpu.dma_semaphore, #tpu.memory_space<semaphore_mem>> -> memref<1x!tpu.dma_semaphore, #tpu.memory_space<semaphore_mem>>
    %20 = tpu.memref_squeeze %19 : memref<1x!tpu.dma_semaphore, #tpu.memory_space<semaphore_mem>> -> memref<!tpu.dma_semaphore, #tpu.memory_space<semaphore_mem>>
    tpu.wait_dma2 semaphore(%20 : memref<!tpu.dma_semaphore, #tpu.memory_space<semaphore_mem>>) src(%16 : memref<416x128xbf16, #tpu.memory_space<any>>) dst(%18 : memref<416x128xbf16, #tpu.memory_space<vmem>>)
    %c1_i32_8 = arith.constant 1 : i32
    %21 = arith.addi %arg1, %c1_i32_8 : i32
    %c1_i32_9 = arith.constant 1 : i32
    %22 = arith.cmpi slt, %21, %c1_i32_9 : i32
    %23 = arith.extui %22 : i1 to i32
    %c0_i32_10 = arith.constant 0 : i32
    %24 = arith.cmpi ne, %23, %c0_i32_10 : i32
    scf.if %24 {
      %c1_i32_129 = arith.constant 1 : i32
      %192 = arith.addi %arg1, %c1_i32_129 : i32
      %c1_i32_130 = arith.constant 1 : i32
      %193 = arith.subi %c1_i32_130, %9 : i32
      %c336_i32_131 = arith.constant 336 : i32
      %194 = arith.muli %192, %c336_i32_131 : i32
      %195 = tpu.assume_multiple %194, 8 : i32
      %c0_i32_132 = arith.constant 0 : i32
      %196 = tpu.memref_slice %arg2[%arg0, %195, %c0_i32_132] : memref<2x416x128xbf16, #tpu.memory_space<any>> -> memref<1x416x128xbf16, #tpu.memory_space<any>>
      %197 = tpu.memref_squeeze %196 : memref<1x416x128xbf16, #tpu.memory_space<any>> -> memref<416x128xbf16, #tpu.memory_space<any>>
      %c0_i32_133 = arith.constant 0 : i32
      %c0_i32_134 = arith.constant 0 : i32
      %198 = tpu.memref_slice %arg8[%193, %c0_i32_133, %c0_i32_134] : memref<2x416x128xbf16, #tpu.memory_space<vmem>> -> memref<1x416x128xbf16, #tpu.memory_space<vmem>>
      %199 = tpu.memref_squeeze %198 : memref<1x416x128xbf16, #tpu.memory_space<vmem>> -> memref<416x128xbf16, #tpu.memory_space<vmem>>
      %200 = tpu.memref_slice %arg11[%193] : memref<2x!tpu.dma_semaphore, #tpu.memory_space<semaphore_mem>> -> memref<1x!tpu.dma_semaphore, #tpu.memory_space<semaphore_mem>>
      %201 = tpu.memref_squeeze %200 : memref<1x!tpu.dma_semaphore, #tpu.memory_space<semaphore_mem>> -> memref<!tpu.dma_semaphore, #tpu.memory_space<semaphore_mem>>
      tpu.enqueue_dma source(%197 : memref<416x128xbf16, #tpu.memory_space<any>>) target(%199 : memref<416x128xbf16, #tpu.memory_space<vmem>>) target_semaphore(%201 : memref<!tpu.dma_semaphore, #tpu.memory_space<semaphore_mem>>)
    } else {
    }
    %25 = arith.index_cast %9 : i32 to index
    %c0 = arith.constant 0 : index
    %c0_11 = arith.constant 0 : index
    %26 = vector.load %arg8[%25, %c0, %c0_11] : memref<2x416x128xbf16, #tpu.memory_space<vmem>>, vector<1x416x128xbf16>
    %27 = vector.shape_cast %26 : vector<1x416x128xbf16> to vector<416x128xbf16>
    %28 = arith.extf %27 : vector<416x128xbf16> to vector<416x128xf32>
    %c0_12 = arith.constant 0 : index
    %c0_13 = arith.constant 0 : index
    %29 = vector.load %arg9[%c0_12, %c0_13] : memref<416x128xf32, #tpu.memory_space<vmem>>, vector<416x128xf32>
    tpu.vector_store %arg9[%c0_12, %c0_13], %28 {strides = array<i32>} : memref<416x128xf32, #tpu.memory_space<vmem>>, vector<416x128xf32>,
    %c0_14 = arith.constant 0 : index
    %c0_15 = arith.constant 0 : index
    %30 = vector.load %arg9[%c0_14, %c0_15] : memref<416x128xf32, #tpu.memory_space<vmem>>, vector<374x128xf32>
    %31 = arith.truncf %30 : vector<374x128xf32> to vector<374x128xbf16>
    %c0_16 = arith.constant 0 : index
    %c0_17 = arith.constant 0 : index
    %c0_18 = arith.constant 0 : index
    %32 = vector.load %arg3[%c0_16, %c0_17, %c0_18] : memref<9x128x128xbf16, #tpu.memory_space<vmem>>, vector<1x128x128xbf16>
    %33 = vector.shape_cast %32 : vector<1x128x128xbf16> to vector<128x128xbf16>
    %cst = arith.constant dense<0.000000e+00> : vector<374x128xf32>
    %34 = tpu.matmul %31, %33, %cst {dimension_numbers = #tpu.dot_dimension_numbers<[1], [0], [0], [1], [0, 0, 1, 1], [], []>} : vector<374x128xbf16>, vector<128x128xbf16>, vector<374x128xf32> -> vector<374x128xf32>
    %c1 = arith.constant 1 : index
    %c0_19 = arith.constant 0 : index
    %35 = vector.load %arg9[%c1, %c0_19] : memref<416x128xf32, #tpu.memory_space<vmem>>, vector<374x128xf32>
    %36 = arith.truncf %35 : vector<374x128xf32> to vector<374x128xbf16>
    %c1_20 = arith.constant 1 : index
    %c0_21 = arith.constant 0 : index
    %c0_22 = arith.constant 0 : index
    %37 = vector.load %arg3[%c1_20, %c0_21, %c0_22] : memref<9x128x128xbf16, #tpu.memory_space<vmem>>, vector<1x128x128xbf16>
    %38 = vector.shape_cast %37 : vector<1x128x128xbf16> to vector<128x128xbf16>
    %cst_23 = arith.constant dense<0.000000e+00> : vector<374x128xf32>
    %39 = tpu.matmul %36, %38, %cst_23 {dimension_numbers = #tpu.dot_dimension_numbers<[1], [0], [0], [1], [0, 0, 1, 1], [], []>} : vector<374x128xbf16>, vector<128x128xbf16>, vector<374x128xf32> -> vector<374x128xf32>
    %40 = arith.addf %34, %39 : vector<374x128xf32>
    %c2 = arith.constant 2 : index
    %c0_24 = arith.constant 0 : index
    %41 = vector.load %arg9[%c2, %c0_24] : memref<416x128xf32, #tpu.memory_space<vmem>>, vector<374x128xf32>
    %42 = arith.truncf %41 : vector<374x128xf32> to vector<374x128xbf16>
    %c2_25 = arith.constant 2 : index
    %c0_26 = arith.constant 0 : index
    %c0_27 = arith.constant 0 : index
    %43 = vector.load %arg3[%c2_25, %c0_26, %c0_27] : memref<9x128x128xbf16, #tpu.memory_space<vmem>>, vector<1x128x128xbf16>
    %44 = vector.shape_cast %43 : vector<1x128x128xbf16> to vector<128x128xbf16>
    %cst_28 = arith.constant dense<0.000000e+00> : vector<374x128xf32>
    %45 = tpu.matmul %42, %44, %cst_28 {dimension_numbers = #tpu.dot_dimension_numbers<[1], [0], [0], [1], [0, 0, 1, 1], [], []>} : vector<374x128xbf16>, vector<128x128xbf16>, vector<374x128xf32> -> vector<374x128xf32>
    %46 = arith.addf %40, %45 : vector<374x128xf32>
    %c18 = arith.constant 18 : index
    %c0_29 = arith.constant 0 : index
    %47 = vector.load %arg9[%c18, %c0_29] : memref<416x128xf32, #tpu.memory_space<vmem>>, vector<374x128xf32>
    %48 = arith.truncf %47 : vector<374x128xf32> to vector<374x128xbf16>
    %c3 = arith.constant 3 : index
    %c0_30 = arith.constant 0 : index
    %c0_31 = arith.constant 0 : index
    %49 = vector.load %arg3[%c3, %c0_30, %c0_31] : memref<9x128x128xbf16, #tpu.memory_space<vmem>>, vector<1x128x128xbf16>
    %50 = vector.shape_cast %49 : vector<1x128x128xbf16> to vector<128x128xbf16>
    %cst_32 = arith.constant dense<0.000000e+00> : vector<374x128xf32>
    %51 = tpu.matmul %48, %50, %cst_32 {dimension_numbers = #tpu.dot_dimension_numbers<[1], [0], [0], [1], [0, 0, 1, 1], [], []>} : vector<374x128xbf16>, vector<128x128xbf16>, vector<374x128xf32> -> vector<374x128xf32>
    %52 = arith.addf %46, %51 : vector<374x128xf32>
    %c19 = arith.constant 19 : index
    %c0_33 = arith.constant 0 : index
    %53 = vector.load %arg9[%c19, %c0_33] : memref<416x128xf32, #tpu.memory_space<vmem>>, vector<374x128xf32>
    %54 = arith.truncf %53 : vector<374x128xf32> to vector<374x128xbf16>
    %c4 = arith.constant 4 : index
    %c0_34 = arith.constant 0 : index
    %c0_35 = arith.constant 0 : index
    %55 = vector.load %arg3[%c4, %c0_34, %c0_35] : memref<9x128x128xbf16, #tpu.memory_space<vmem>>, vector<1x128x128xbf16>
    %56 = vector.shape_cast %55 : vector<1x128x128xbf16> to vector<128x128xbf16>
    %cst_36 = arith.constant dense<0.000000e+00> : vector<374x128xf32>
    %57 = tpu.matmul %54, %56, %cst_36 {dimension_numbers = #tpu.dot_dimension_numbers<[1], [0], [0], [1], [0, 0, 1, 1], [], []>} : vector<374x128xbf16>, vector<128x128xbf16>, vector<374x128xf32> -> vector<374x128xf32>
    %58 = arith.addf %52, %57 : vector<374x128xf32>
    %c20 = arith.constant 20 : index
    %c0_37 = arith.constant 0 : index
    %59 = vector.load %arg9[%c20, %c0_37] : memref<416x128xf32, #tpu.memory_space<vmem>>, vector<374x128xf32>
    %60 = arith.truncf %59 : vector<374x128xf32> to vector<374x128xbf16>
    %c5 = arith.constant 5 : index
    %c0_38 = arith.constant 0 : index
    %c0_39 = arith.constant 0 : index
    %61 = vector.load %arg3[%c5, %c0_38, %c0_39] : memref<9x128x128xbf16, #tpu.memory_space<vmem>>, vector<1x128x128xbf16>
    %62 = vector.shape_cast %61 : vector<1x128x128xbf16> to vector<128x128xbf16>
    %cst_40 = arith.constant dense<0.000000e+00> : vector<374x128xf32>
    %63 = tpu.matmul %60, %62, %cst_40 {dimension_numbers = #tpu.dot_dimension_numbers<[1], [0], [0], [1], [0, 0, 1, 1], [], []>} : vector<374x128xbf16>, vector<128x128xbf16>, vector<374x128xf32> -> vector<374x128xf32>
    %64 = arith.addf %58, %63 : vector<374x128xf32>
    %c36 = arith.constant 36 : index
    %c0_41 = arith.constant 0 : index
    %65 = vector.load %arg9[%c36, %c0_41] : memref<416x128xf32, #tpu.memory_space<vmem>>, vector<374x128xf32>
    %66 = arith.truncf %65 : vector<374x128xf32> to vector<374x128xbf16>
    %c6 = arith.constant 6 : index
    %c0_42 = arith.constant 0 : index
    %c0_43 = arith.constant 0 : index
    %67 = vector.load %arg3[%c6, %c0_42, %c0_43] : memref<9x128x128xbf16, #tpu.memory_space<vmem>>, vector<1x128x128xbf16>
    %68 = vector.shape_cast %67 : vector<1x128x128xbf16> to vector<128x128xbf16>
    %cst_44 = arith.constant dense<0.000000e+00> : vector<374x128xf32>
    %69 = tpu.matmul %66, %68, %cst_44 {dimension_numbers = #tpu.dot_dimension_numbers<[1], [0], [0], [1], [0, 0, 1, 1], [], []>} : vector<374x128xbf16>, vector<128x128xbf16>, vector<374x128xf32> -> vector<374x128xf32>
    %70 = arith.addf %64, %69 : vector<374x128xf32>
    %c37 = arith.constant 37 : index
    %c0_45 = arith.constant 0 : index
    %71 = vector.load %arg9[%c37, %c0_45] : memref<416x128xf32, #tpu.memory_space<vmem>>, vector<374x128xf32>
    %72 = arith.truncf %71 : vector<374x128xf32> to vector<374x128xbf16>
    %c7 = arith.constant 7 : index
    %c0_46 = arith.constant 0 : index
    %c0_47 = arith.constant 0 : index
    %73 = vector.load %arg3[%c7, %c0_46, %c0_47] : memref<9x128x128xbf16, #tpu.memory_space<vmem>>, vector<1x128x128xbf16>
    %74 = vector.shape_cast %73 : vector<1x128x128xbf16> to vector<128x128xbf16>
    %cst_48 = arith.constant dense<0.000000e+00> : vector<374x128xf32>
    %75 = tpu.matmul %72, %74, %cst_48 {dimension_numbers = #tpu.dot_dimension_numbers<[1], [0], [0], [1], [0, 0, 1, 1], [], []>} : vector<374x128xbf16>, vector<128x128xbf16>, vector<374x128xf32> -> vector<374x128xf32>
    %76 = arith.addf %70, %75 : vector<374x128xf32>
    %c38 = arith.constant 38 : index
    %c0_49 = arith.constant 0 : index
    %77 = vector.load %arg9[%c38, %c0_49] : memref<416x128xf32, #tpu.memory_space<vmem>>, vector<374x128xf32>
    %78 = arith.truncf %77 : vector<374x128xf32> to vector<374x128xbf16>
    %c8 = arith.constant 8 : index
    %c0_50 = arith.constant 0 : index
    %c0_51 = arith.constant 0 : index
    %79 = vector.load %arg3[%c8, %c0_50, %c0_51] : memref<9x128x128xbf16, #tpu.memory_space<vmem>>, vector<1x128x128xbf16>
    %80 = vector.shape_cast %79 : vector<1x128x128xbf16> to vector<128x128xbf16>
    %cst_52 = arith.constant dense<0.000000e+00> : vector<374x128xf32>
    %81 = tpu.matmul %78, %80, %cst_52 {dimension_numbers = #tpu.dot_dimension_numbers<[1], [0], [0], [1], [0, 0, 1, 1], [], []>} : vector<374x128xbf16>, vector<128x128xbf16>, vector<374x128xf32> -> vector<374x128xf32>
    %82 = arith.addf %76, %81 : vector<374x128xf32>
    %c0_53 = arith.constant 0 : index
    %c0_54 = arith.constant 0 : index
    %83 = vector.load %arg4[%c0_53, %c0_54] : memref<1x128xf32, #tpu.memory_space<vmem>>, vector<1x128xf32>
    %84 = vector.broadcast %83 : vector<1x128xf32> to vector<374x128xf32>
    %85 = arith.addf %82, %84 : vector<374x128xf32>
    %cst_55 = arith.constant 0.000000e+00 : f32
    %86 = vector.broadcast %cst_55 : f32 to vector<374x128xf32>
    %87 = arith.subf %86, %85 : vector<374x128xf32>
    %88 = math.exp %87 : vector<374x128xf32>
    %cst_56 = arith.constant 1.000000e+00 : f32
    %89 = vector.broadcast %cst_56 : f32 to vector<374x128xf32>
    %90 = arith.addf %89, %88 : vector<374x128xf32>
    %91 = tpu.reciprocal %90 {approx = true} : vector<374x128xf32> -> vector<374x128xf32>
    %92 = arith.mulf %85, %91 : vector<374x128xf32>
    %c336_i32_57 = arith.constant 336 : i32
    %93 = arith.muli %arg1, %c336_i32_57 : i32
    %94 = tpu.iota {dimensions = array<i32: 0>} : vector<374x1xi32>
    %95 = vector.broadcast %93 : i32 to vector<374x1xi32>
    %96 = arith.addi %95, %94 : vector<374x1xi32>
    %c19_i32 = arith.constant 19 : i32
    %97 = vector.broadcast %c19_i32 : i32 to vector<374x1xi32>
    %98 = arith.subi %96, %97 : vector<374x1xi32>
    %c18_i32 = arith.constant 18 : i32
    %99 = vector.broadcast %c18_i32 : i32 to vector<374x1xi32>
    %100 = arith.cmpi sge, %98, %99 : vector<374x1xi32>
    %c306_i32 = arith.constant 306 : i32
    %101 = vector.broadcast %c306_i32 : i32 to vector<374x1xi32>
    %102 = arith.cmpi slt, %98, %101 : vector<374x1xi32>
    %103 = arith.andi %100, %102 : vector<374x1xi1>
    %104 = arith.sitofp %98 : vector<374x1xi32> to vector<374x1xf32>
    %cst_58 = arith.constant 5.000000e-01 : f32
    %105 = vector.broadcast %cst_58 : f32 to vector<374x1xf32>
    %106 = arith.addf %104, %105 : vector<374x1xf32>
    %cst_59 = arith.constant 0.055555556 : f32
    %107 = vector.broadcast %cst_59 : f32 to vector<374x1xf32>
    %108 = arith.mulf %106, %107 : vector<374x1xf32>
    %109 = math.floor %108 : vector<374x1xf32>
    %cst_60 = arith.constant 1.800000e+01 : f32
    %110 = vector.broadcast %cst_60 : f32 to vector<374x1xf32>
    %111 = arith.mulf %109, %110 : vector<374x1xf32>
    %112 = arith.subf %104, %111 : vector<374x1xf32>
    %cst_61 = arith.constant 5.000000e-01 : f32
    %113 = vector.broadcast %cst_61 : f32 to vector<374x1xf32>
    %114 = arith.cmpf ogt, %112, %113 : vector<374x1xf32>
    %cst_62 = arith.constant 1.650000e+01 : f32
    %115 = vector.broadcast %cst_62 : f32 to vector<374x1xf32>
    %116 = arith.cmpf olt, %112, %115 : vector<374x1xf32>
    %117 = arith.andi %114, %116 : vector<374x1xi1>
    %118 = arith.andi %103, %117 : vector<374x1xi1>
    %cst_63 = arith.constant 0.000000e+00 : f32
    %119 = vector.shape_cast %118 : vector<374x1xi1> to vector<374x1xi1>
    %120 = vector.broadcast %119 : vector<374x1xi1> to vector<374x128xi1>
    %121 = vector.broadcast %cst_63 : f32 to vector<374x128xf32>
    %122 = arith.select %120, %92, %121 : vector<374x128xi1>, vector<374x128xf32>
    %c0_64 = arith.constant 0 : index
    %c0_65 = arith.constant 0 : index
    %123 = vector.load %arg10[%c0_64, %c0_65] : memref<374x128xf32, #tpu.memory_space<vmem>>, vector<374x128xf32>
    tpu.vector_store %arg10[%c0_64, %c0_65], %122 {strides = array<i32>} : memref<374x128xf32, #tpu.memory_space<vmem>>, vector<374x128xf32>,
    %c0_66 = arith.constant 0 : index
    %c0_67 = arith.constant 0 : index
    %124 = vector.load %arg10[%c0_66, %c0_67] : memref<374x128xf32, #tpu.memory_space<vmem>>, vector<336x128xf32>
    %125 = arith.truncf %124 : vector<336x128xf32> to vector<336x128xbf16>
    %c0_68 = arith.constant 0 : index
    %c0_69 = arith.constant 0 : index
    %c0_70 = arith.constant 0 : index
    %126 = vector.load %arg5[%c0_68, %c0_69, %c0_70] : memref<9x128x128xbf16, #tpu.memory_space<vmem>>, vector<1x128x128xbf16>
    %127 = vector.shape_cast %126 : vector<1x128x128xbf16> to vector<128x128xbf16>
    %cst_71 = arith.constant dense<0.000000e+00> : vector<336x128xf32>
    %128 = tpu.matmul %125, %127, %cst_71 {dimension_numbers = #tpu.dot_dimension_numbers<[1], [0], [0], [1], [0, 0, 1, 1], [], []>} : vector<336x128xbf16>, vector<128x128xbf16>, vector<336x128xf32> -> vector<336x128xf32>
    %c1_72 = arith.constant 1 : index
    %c0_73 = arith.constant 0 : index
    %129 = vector.load %arg10[%c1_72, %c0_73] : memref<374x128xf32, #tpu.memory_space<vmem>>, vector<336x128xf32>
    %130 = arith.truncf %129 : vector<336x128xf32> to vector<336x128xbf16>
    %c1_74 = arith.constant 1 : index
    %c0_75 = arith.constant 0 : index
    %c0_76 = arith.constant 0 : index
    %131 = vector.load %arg5[%c1_74, %c0_75, %c0_76] : memref<9x128x128xbf16, #tpu.memory_space<vmem>>, vector<1x128x128xbf16>
    %132 = vector.shape_cast %131 : vector<1x128x128xbf16> to vector<128x128xbf16>
    %cst_77 = arith.constant dense<0.000000e+00> : vector<336x128xf32>
    %133 = tpu.matmul %130, %132, %cst_77 {dimension_numbers = #tpu.dot_dimension_numbers<[1], [0], [0], [1], [0, 0, 1, 1], [], []>} : vector<336x128xbf16>, vector<128x128xbf16>, vector<336x128xf32> -> vector<336x128xf32>
    %134 = arith.addf %128, %133 : vector<336x128xf32>
    %c2_78 = arith.constant 2 : index
    %c0_79 = arith.constant 0 : index
    %135 = vector.load %arg10[%c2_78, %c0_79] : memref<374x128xf32, #tpu.memory_space<vmem>>, vector<336x128xf32>
    %136 = arith.truncf %135 : vector<336x128xf32> to vector<336x128xbf16>
    %c2_80 = arith.constant 2 : index
    %c0_81 = arith.constant 0 : index
    %c0_82 = arith.constant 0 : index
    %137 = vector.load %arg5[%c2_80, %c0_81, %c0_82] : memref<9x128x128xbf16, #tpu.memory_space<vmem>>, vector<1x128x128xbf16>
    %138 = vector.shape_cast %137 : vector<1x128x128xbf16> to vector<128x128xbf16>
    %cst_83 = arith.constant dense<0.000000e+00> : vector<336x128xf32>
    %139 = tpu.matmul %136, %138, %cst_83 {dimension_numbers = #tpu.dot_dimension_numbers<[1], [0], [0], [1], [0, 0, 1, 1], [], []>} : vector<336x128xbf16>, vector<128x128xbf16>, vector<336x128xf32> -> vector<336x128xf32>
    %140 = arith.addf %134, %139 : vector<336x128xf32>
    %c18_84 = arith.constant 18 : index
    %c0_85 = arith.constant 0 : index
    %141 = vector.load %arg10[%c18_84, %c0_85] : memref<374x128xf32, #tpu.memory_space<vmem>>, vector<336x128xf32>
    %142 = arith.truncf %141 : vector<336x128xf32> to vector<336x128xbf16>
    %c3_86 = arith.constant 3 : index
    %c0_87 = arith.constant 0 : index
    %c0_88 = arith.constant 0 : index
    %143 = vector.load %arg5[%c3_86, %c0_87, %c0_88] : memref<9x128x128xbf16, #tpu.memory_space<vmem>>, vector<1x128x128xbf16>
    %144 = vector.shape_cast %143 : vector<1x128x128xbf16> to vector<128x128xbf16>
    %cst_89 = arith.constant dense<0.000000e+00> : vector<336x128xf32>
    %145 = tpu.matmul %142, %144, %cst_89 {dimension_numbers = #tpu.dot_dimension_numbers<[1], [0], [0], [1], [0, 0, 1, 1], [], []>} : vector<336x128xbf16>, vector<128x128xbf16>, vector<336x128xf32> -> vector<336x128xf32>
    %146 = arith.addf %140, %145 : vector<336x128xf32>
    %c19_90 = arith.constant 19 : index
    %c0_91 = arith.constant 0 : index
    %147 = vector.load %arg10[%c19_90, %c0_91] : memref<374x128xf32, #tpu.memory_space<vmem>>, vector<336x128xf32>
    %148 = arith.truncf %147 : vector<336x128xf32> to vector<336x128xbf16>
    %c4_92 = arith.constant 4 : index
    %c0_93 = arith.constant 0 : index
    %c0_94 = arith.constant 0 : index
    %149 = vector.load %arg5[%c4_92, %c0_93, %c0_94] : memref<9x128x128xbf16, #tpu.memory_space<vmem>>, vector<1x128x128xbf16>
    %150 = vector.shape_cast %149 : vector<1x128x128xbf16> to vector<128x128xbf16>
    %cst_95 = arith.constant dense<0.000000e+00> : vector<336x128xf32>
    %151 = tpu.matmul %148, %150, %cst_95 {dimension_numbers = #tpu.dot_dimension_numbers<[1], [0], [0], [1], [0, 0, 1, 1], [], []>} : vector<336x128xbf16>, vector<128x128xbf16>, vector<336x128xf32> -> vector<336x128xf32>
    %152 = arith.addf %146, %151 : vector<336x128xf32>
    %c20_96 = arith.constant 20 : index
    %c0_97 = arith.constant 0 : index
    %153 = vector.load %arg10[%c20_96, %c0_97] : memref<374x128xf32, #tpu.memory_space<vmem>>, vector<336x128xf32>
    %154 = arith.truncf %153 : vector<336x128xf32> to vector<336x128xbf16>
    %c5_98 = arith.constant 5 : index
    %c0_99 = arith.constant 0 : index
    %c0_100 = arith.constant 0 : index
    %155 = vector.load %arg5[%c5_98, %c0_99, %c0_100] : memref<9x128x128xbf16, #tpu.memory_space<vmem>>, vector<1x128x128xbf16>
    %156 = vector.shape_cast %155 : vector<1x128x128xbf16> to vector<128x128xbf16>
    %cst_101 = arith.constant dense<0.000000e+00> : vector<336x128xf32>
    %157 = tpu.matmul %154, %156, %cst_101 {dimension_numbers = #tpu.dot_dimension_numbers<[1], [0], [0], [1], [0, 0, 1, 1], [], []>} : vector<336x128xbf16>, vector<128x128xbf16>, vector<336x128xf32> -> vector<336x128xf32>
    %158 = arith.addf %152, %157 : vector<336x128xf32>
    %c36_102 = arith.constant 36 : index
    %c0_103 = arith.constant 0 : index
    %159 = vector.load %arg10[%c36_102, %c0_103] : memref<374x128xf32, #tpu.memory_space<vmem>>, vector<336x128xf32>
    %160 = arith.truncf %159 : vector<336x128xf32> to vector<336x128xbf16>
    %c6_104 = arith.constant 6 : index
    %c0_105 = arith.constant 0 : index
    %c0_106 = arith.constant 0 : index
    %161 = vector.load %arg5[%c6_104, %c0_105, %c0_106] : memref<9x128x128xbf16, #tpu.memory_space<vmem>>, vector<1x128x128xbf16>
    %162 = vector.shape_cast %161 : vector<1x128x128xbf16> to vector<128x128xbf16>
    %cst_107 = arith.constant dense<0.000000e+00> : vector<336x128xf32>
    %163 = tpu.matmul %160, %162, %cst_107 {dimension_numbers = #tpu.dot_dimension_numbers<[1], [0], [0], [1], [0, 0, 1, 1], [], []>} : vector<336x128xbf16>, vector<128x128xbf16>, vector<336x128xf32> -> vector<336x128xf32>
    %164 = arith.addf %158, %163 : vector<336x128xf32>
    %c37_108 = arith.constant 37 : index
    %c0_109 = arith.constant 0 : index
    %165 = vector.load %arg10[%c37_108, %c0_109] : memref<374x128xf32, #tpu.memory_space<vmem>>, vector<336x128xf32>
    %166 = arith.truncf %165 : vector<336x128xf32> to vector<336x128xbf16>
    %c7_110 = arith.constant 7 : index
    %c0_111 = arith.constant 0 : index
    %c0_112 = arith.constant 0 : index
    %167 = vector.load %arg5[%c7_110, %c0_111, %c0_112] : memref<9x128x128xbf16, #tpu.memory_space<vmem>>, vector<1x128x128xbf16>
    %168 = vector.shape_cast %167 : vector<1x128x128xbf16> to vector<128x128xbf16>
    %cst_113 = arith.constant dense<0.000000e+00> : vector<336x128xf32>
    %169 = tpu.matmul %166, %168, %cst_113 {dimension_numbers = #tpu.dot_dimension_numbers<[1], [0], [0], [1], [0, 0, 1, 1], [], []>} : vector<336x128xbf16>, vector<128x128xbf16>, vector<336x128xf32> -> vector<336x128xf32>
    %170 = arith.addf %164, %169 : vector<336x128xf32>
    %c38_114 = arith.constant 38 : index
    %c0_115 = arith.constant 0 : index
    %171 = vector.load %arg10[%c38_114, %c0_115] : memref<374x128xf32, #tpu.memory_space<vmem>>, vector<336x128xf32>
    %172 = arith.truncf %171 : vector<336x128xf32> to vector<336x128xbf16>
    %c8_116 = arith.constant 8 : index
    %c0_117 = arith.constant 0 : index
    %c0_118 = arith.constant 0 : index
    %173 = vector.load %arg5[%c8_116, %c0_117, %c0_118] : memref<9x128x128xbf16, #tpu.memory_space<vmem>>, vector<1x128x128xbf16>
    %174 = vector.shape_cast %173 : vector<1x128x128xbf16> to vector<128x128xbf16>
    %cst_119 = arith.constant dense<0.000000e+00> : vector<336x128xf32>
    %175 = tpu.matmul %172, %174, %cst_119 {dimension_numbers = #tpu.dot_dimension_numbers<[1], [0], [0], [1], [0, 0, 1, 1], [], []>} : vector<336x128xbf16>, vector<128x128xbf16>, vector<336x128xf32> -> vector<336x128xf32>
    %176 = arith.addf %170, %175 : vector<336x128xf32>
    %c0_120 = arith.constant 0 : index
    %c0_121 = arith.constant 0 : index
    %177 = vector.load %arg6[%c0_120, %c0_121] : memref<1x128xf32, #tpu.memory_space<vmem>>, vector<1x128xf32>
    %178 = vector.broadcast %177 : vector<1x128xf32> to vector<336x128xf32>
    %179 = arith.addf %176, %178 : vector<336x128xf32>
    %cst_122 = arith.constant 0.000000e+00 : f32
    %180 = vector.broadcast %cst_122 : f32 to vector<336x128xf32>
    %181 = arith.subf %180, %179 : vector<336x128xf32>
    %182 = math.exp %181 : vector<336x128xf32>
    %cst_123 = arith.constant 1.000000e+00 : f32
    %183 = vector.broadcast %cst_123 : f32 to vector<336x128xf32>
    %184 = arith.addf %183, %182 : vector<336x128xf32>
    %185 = tpu.reciprocal %184 {approx = true} : vector<336x128xf32> -> vector<336x128xf32>
    %186 = arith.mulf %179, %185 : vector<336x128xf32>
    %c38_124 = arith.constant 38 : index
    %c0_125 = arith.constant 0 : index
    %187 = vector.load %arg9[%c38_124, %c0_125] : memref<416x128xf32, #tpu.memory_space<vmem>>, vector<336x128xf32>
    %188 = arith.addf %186, %187 : vector<336x128xf32>
    %c0_126 = arith.constant 0 : index
    %c0_127 = arith.constant 0 : index
    %c0_128 = arith.constant 0 : index
    %189 = vector.load %arg7[%c0_126, %c0_127, %c0_128] : memref<1x336x128xf32, #tpu.memory_space<vmem>>, vector<1x336x128xf32>
    %190 = vector.shape_cast %189 : vector<1x336x128xf32> to vector<336x128xf32>
    %191 = vector.shape_cast %188 : vector<336x128xf32> to vector<1x336x128xf32>
    tpu.vector_store %arg7[%c0_126, %c0_127, %c0_128], %191 {strides = array<i32>} : memref<1x336x128xf32, #tpu.memory_space<vmem>>, vector<1x336x128xf32>,
    return
  }
  func.func @transform_1(%arg0: i32, %arg1: i32) -> (i32, i32, i32) {
    %c0_i32 = arith.constant 0 : i32
    %c0_i32_0 = arith.constant 0 : i32
    %c0_i32_1 = arith.constant 0 : i32
    %c0_i32_2 = arith.constant 0 : i32
    return %c0_i32, %c0_i32_0, %c0_i32_1 : i32, i32, i32
  }
  func.func @transform_2(%arg0: i32, %arg1: i32) -> (i32, i32) {
    %c0_i32 = arith.constant 0 : i32
    %c0_i32_0 = arith.constant 0 : i32
    %c0_i32_1 = arith.constant 0 : i32
    return %c0_i32, %c0_i32_0 : i32, i32
  }
  func.func @transform_3(%arg0: i32, %arg1: i32) -> (i32, i32, i32) {
    %c0_i32 = arith.constant 0 : i32
    %c0_i32_0 = arith.constant 0 : i32
    %c0_i32_1 = arith.constant 0 : i32
    %c0_i32_2 = arith.constant 0 : i32
    return %c0_i32, %c0_i32_0, %c0_i32_1 : i32, i32, i32
  }
  func.func @transform_4(%arg0: i32, %arg1: i32) -> (i32, i32) {
    %c0_i32 = arith.constant 0 : i32
    %c0_i32_0 = arith.constant 0 : i32
    %c0_i32_1 = arith.constant 0 : i32
    return %c0_i32, %c0_i32_0 : i32, i32
  }
  func.func @transform_5(%arg0: i32, %arg1: i32) -> (i32, i32, i32) {
    %c0_i32 = arith.constant 0 : i32
    %c0_i32_0 = arith.constant 0 : i32
    return %arg0, %arg1, %c0_i32 : i32, i32, i32
  }
}

</mosaic_0001>

<llo_original>
// kernel: bottleneck_forward.1
$region0: #{bottleneck_forward.1}
  #allocation0 [shape = 'u32[]', space=smem, size = 0x4, offset = 0x4, fixed_abs, tag = 'smem constant byte address 0x4 - core index']
  #allocation1 [shape = 'u32[144,128]{1,0:T(1,128)}', space=vmem, size = 0x12000, scoped, tag = 'internal scratch']
  #allocation2 [shape = 'bf16[2,416,128]{2,1,0:T(16,128)(2,1)}', space=vmem, size = 0x34000, scoped, tag = 'scratch operand']
  #allocation3 [shape = 'f32[416,128]{1,0:T(8,128)}', space=vmem, size = 0x34000, scoped, tag = 'scratch operand']
  #allocation4 [shape = 'f32[374,128]{1,0:T(8,128)}', space=vmem, size = 0x2f000, scoped, tag = 'scratch operand']
  #allocation5 [shape = 's32[2]{0}', space=sflag, size = 0x8, scoped, tag = 'scratch operand']
  #allocation15 [shape = 's32[]', space=sflag, size = 0x4, offset = 0, fixed_abs, tag = 'sflag constant byte address 0x0 - dummy sync flag']
  #allocation16 [shape = 's32[]', space=sflag, size = 0x4, offset = 0, fixed_abs, tag = 'sflag constant byte address 0x0 - dummy sync flag']
  #allocation17 [shape = 'u32[]', space=smem, size = 0x4, offset = 0x44, fixed_abs, tag = 'smem constant byte address 0x44 - assertion arg 0']
  #allocation18 [shape = 'u32[]', space=smem, size = 0x4, offset = 0x48, fixed_abs, tag = 'smem constant byte address 0x48 - assertion arg 1']
  #allocation19 [shape = 's32[]', space=sflag, size = 0x4, offset = 0, fixed_abs, tag = 'sflag constant byte address 0x0 - dummy sync flag']
  #allocation20 [shape = 's32[]', space=sflag, size = 0x4, offset = 0, fixed_abs, tag = 'sflag constant byte address 0x0 - dummy sync flag']
  %s0 = inlined_call_operand.hbm [shape: bf16[2,416,128], index: 0, kind: input, shape index: {}]
  %s1 = inlined_call_operand.hbm [shape: bf16[9,128,128], index: 1, kind: input, shape index: {}]
  %s2 = inlined_call_operand.hbm [shape: f32[1,128], index: 2, kind: input, shape index: {}]
  %s3 = inlined_call_operand.hbm [shape: bf16[9,128,128], index: 3, kind: input, shape index: {}]
  %s4 = inlined_call_operand.hbm [shape: f32[1,128], index: 4, kind: input, shape index: {}]
  %s5 = inlined_call_operand.hbm [shape: f32[2,336,128], index: 5, kind: output, shape index: {}]
  %s6 = sld [smem:[#allocation0]]
  $region81: #{bottleneck_forward.1} parent=0
    _
  %s8 = ssub.s32 1, %s6
  %s9 = scalar_select 0, %s8, %s6
  $region1: #{bottleneck_forward.1} parent=0
    #allocation6 [shape = 'u8[294912]{0}', space=vmem, size = 0x48000, scoped, tag = 'input window, operand 1, single buffered']
    #allocation7 [shape = 's32[2]{0}', space=sflag, size = 0x8, scoped, tag = 'scoped memory for bottleneck_forward.1']
    #allocation8 [shape = 's32[2]{0}', space=sflag, size = 0x8, scoped, tag = 'scoped memory for bottleneck_forward.1']
    #allocation9 [shape = 'u8[512]{0}', space=vmem, size = 0x400, scoped, tag = 'input window, operand 2, single buffered']
    #allocation10 [shape = 's32[1]{0}', space=sflag, size = 0x4, scoped, tag = 'scoped memory for bottleneck_forward.1']
    #allocation11 [shape = 'u8[294912]{0}', space=vmem, size = 0x48000, scoped, tag = 'input window, operand 3, single buffered']
    #allocation12 [shape = 'u8[512]{0}', space=vmem, size = 0x400, scoped, tag = 'input window, operand 4, single buffered']
    #allocation13 [shape = 's32[1]{0}', space=sflag, size = 0x4, scoped, tag = 'scoped memory for bottleneck_forward.1']
    #allocation14 [shape = 'u8[344064]{0}', space=vmem, size = 0x54000, scoped, tag = 'output window, operand 0']
    %10 = vsyncpa [#allocation7], 0
    %11 = vsyncpa [#allocation10], 0
    %12 = vsyncpa [#allocation13], 0
    %13 = vsyncpa [#allocation8], 0
    %s14 = scalar_lea.sflag [#allocation8], 1
    %15 = vsyncpa %s14, 0
    loop: start=0, step=1, limit=4
    $region2: #{bottleneck_forward.1} parent=1 // loop_pre_header
      _
    $region3: #{bottleneck_forward.1} parent=1 // loop_header
      %s17 = sphi 0, %s21
      %p18 = scmp.ge.s32.totalorder %s17, 4
      %s24 = sphi 0, %s36
      %s25 = sphi 0, %s32
      %s26 = sphi 0, %s24
      %s27 = sphi 0, %s25
      %s28 = sphi 0, %s26
      %s29 = sphi 0, %s27
      %s37 = sphi 0, %s37
      %s39 = sphi 0, %s37
      %s40 = sphi 0, %s39
      %s54 = sphi 0, %s40
      %s58 = sphi 0, %s58
      %s60 = sphi 0, %s58
      %s61 = sphi 0, %s60
      %s75 = sphi 0, %s61
      %s79 = sphi 0, %s79
      %s81 = sphi 0, %s79
      %s82 = sphi 0, %s81
      %s96 = sphi 0, %s82
      %s100 = sphi 0, %s100
      %s102 = sphi 0, %s100
      %s103 = sphi 0, %s102
      %s117 = sphi 0, %s103
      %s125 = sphi 0, %s127
      %s128 = sphi 0, %s125
      %s129 = sphi 0, %s128
      %s145 = sphi 0, %s129
    $region4: #{bottleneck_forward.1} parent=1 // loop_header_branch
      %20 = sbr.rel (%p18) target = $region8
    $region5: #{bottleneck_forward.1} parent=1 // loop_body
      %s22 = ssub.s32 %s17, 1
      %s23 = ssub.s32 %s17, 2
      %s30 = sadd.s32 1, %s25
      %p31 = scmp.ge.s32.totalorder %s30, 1
      %s32 = scalar_select %p31, 0, %s30
      %s33 = sadd.s32 1, %s24
      %s34 = scalar_select %p31, %s33, %s24
      %p35 = scmp.ge.s32.totalorder %s34, 2
      %s36 = scalar_select %p35, 0, %s34
      %s38 = sadd.s32 %s37, 1
      %p41 = scmp.eq.s32.totalorder %s17, 1
      %p42 = scmp.ne.s32.totalorder %s37, %s39
      %p43 = scmp.eq.s32.totalorder %s17, 0
      %p44 = por %p42, %p43
      %p45 = scmp.ne.s32.totalorder %s37, %s39
      %p46 = scmp.eq.s32.totalorder %s22, 1
      %p47 = por %p45, %p46
      %p48 = scmp.ne.s32.totalorder %s39, %s40
      %p49 = scmp.eq.s32.totalorder %s22, 0
      %p50 = por %p48, %p49
      %p51 = scmp.ne.s32.totalorder %s39, %s40
      %p52 = scmp.eq.s32.totalorder %s23, 1
      %p53 = por %p51, %p52
      %p55 = scmp.ne.s32.totalorder %s40, %s54
      %p56 = scmp.eq.s32.totalorder %s23, 0
      %p57 = por %p55, %p56
      %s59 = sadd.s32 %s58, 1
      %p62 = scmp.eq.s32.totalorder %s17, 1
      %p63 = scmp.ne.s32.totalorder %s58, %s60
      %p64 = scmp.eq.s32.totalorder %s17, 0
      %p65 = por %p63, %p64
      %p66 = scmp.ne.s32.totalorder %s58, %s60
      %p67 = scmp.eq.s32.totalorder %s22, 1
      %p68 = por %p66, %p67
      %p69 = scmp.ne.s32.totalorder %s60, %s61
      %p70 = scmp.eq.s32.totalorder %s22, 0
      %p71 = por %p69, %p70
      %p72 = scmp.ne.s32.totalorder %s60, %s61
      %p73 = scmp.eq.s32.totalorder %s23, 1
      %p74 = por %p72, %p73
      %p76 = scmp.ne.s32.totalorder %s61, %s75
      %p77 = scmp.eq.s32.totalorder %s23, 0
      %p78 = por %p76, %p77
      %s80 = sadd.s32 %s79, 1
      %p83 = scmp.eq.s32.totalorder %s17, 1
      %p84 = scmp.ne.s32.totalorder %s79, %s81
      %p85 = scmp.eq.s32.totalorder %s17, 0
      %p86 = por %p84, %p85
      %p87 = scmp.ne.s32.totalorder %s79, %s81
      %p88 = scmp.eq.s32.totalorder %s22, 1
      %p89 = por %p87, %p88
      %p90 = scmp.ne.s32.totalorder %s81, %s82
      %p91 = scmp.eq.s32.totalorder %s22, 0
      %p92 = por %p90, %p91
      %p93 = scmp.ne.s32.totalorder %s81, %s82
      %p94 = scmp.eq.s32.totalorder %s23, 1
      %p95 = por %p93, %p94
      %p97 = scmp.ne.s32.totalorder %s82, %s96
      %p98 = scmp.eq.s32.totalorder %s23, 0
      %p99 = por %p97, %p98
      %s101 = sadd.s32 %s100, 1
      %p104 = scmp.eq.s32.totalorder %s17, 1
      %p105 = scmp.ne.s32.totalorder %s100, %s102
      %p106 = scmp.eq.s32.totalorder %s17, 0
      %p107 = por %p105, %p106
      %p108 = scmp.ne.s32.totalorder %s100, %s102
      %p109 = scmp.eq.s32.totalorder %s22, 1
      %p110 = por %p108, %p109
      %p111 = scmp.ne.s32.totalorder %s102, %s103
      %p112 = scmp.eq.s32.totalorder %s22, 0
      %p113 = por %p111, %p112
      %p114 = scmp.ne.s32.totalorder %s102, %s103
      %p115 = scmp.eq.s32.totalorder %s23, 1
      %p116 = por %p114, %p115
      %p118 = scmp.ne.s32.totalorder %s103, %s117
      %p119 = scmp.eq.s32.totalorder %s23, 0
      %p120 = por %p118, %p119
      %s121 = ssub.s32 %s24, %s36
      %s122 = ssub.s32 %s25, %s32
      %s123 = sor.u32 %s121, %s122
      %p124 = scmp.eq.s32.totalorder %s123, 0
      %s126 = sadd.s32 %s125, 1
      %s127 = scalar_select %p124, %s125, %s126
      %p130 = pneg %p124
      %p131 = scmp.eq.s32.totalorder %s17, 1
      %p132 = por %p130, %p131
      %p133 = scmp.ne.s32.totalorder %s125, %s128
      %p134 = scmp.eq.s32.totalorder %s17, 0
      %p135 = por %p133, %p134
      %p136 = scmp.ne.s32.totalorder %s125, %s128
      %p137 = scmp.eq.s32.totalorder %s22, 1
      %p138 = por %p136, %p137
      %p139 = scmp.ne.s32.totalorder %s128, %s129
      %p140 = scmp.eq.s32.totalorder %s22, 0
      %p141 = por %p139, %p140
      %p142 = scmp.ne.s32.totalorder %s128, %s129
      %p143 = scmp.eq.s32.totalorder %s23, 1
      %p144 = por %p142, %p143
      %p146 = scmp.ne.s32.totalorder %s129, %s145
      %p147 = scmp.eq.s32.totalorder %s23, 0
      %p148 = por %p146, %p147
      %p149 = scmp.le.s32.totalorder 1, %s17
      %p150 = scmp.lt.s32.totalorder %s17, 3
      %p151 = pnand %p149, %p150
      %p152 = pneg %p151
      // Predicated region
      $region9: #{bottleneck_forward.1} parent=5 // pred_check
        _
      $region10: #{bottleneck_forward.1} parent=5 // pred_check_branch
        %154 = sbr.rel (%p151) target = $region12
      $region11: #{bottleneck_forward.1} parent=5 // pred_region
        %s155 = ssub.s32 %s17, 1
        // Predicated region
        $region13: #{bottleneck_forward.1} parent=11 // pred_check
          %p156 = pneg %p50
        $region14: #{bottleneck_forward.1} parent=11 // pred_check_branch
          %158 = sbr.rel (%p156) target = $region16
        $region15: #{bottleneck_forward.1} parent=11 // pred_region
          %s160 = ssub.s32 9216, 9216
          %161 = vsyncadd [#allocation7], %s160
          %s162 = sshll.u32 [#allocation6], 4
          %s163 = int_to_ptr.vmem [resolvable:$true] %s162
          %168 = dma.hbm_to_vmem [thread:$0]  %s1, 9216, %s163, [#allocation7], 64, 64, 4
        $region16: #{bottleneck_forward.1} parent=11 // pred_fallthru
          _
        // Predicated region
        $region17: #{bottleneck_forward.1} parent=11 // pred_check
          %p169 = pneg %p71
        $region18: #{bottleneck_forward.1} parent=11 // pred_check_branch
          %171 = sbr.rel (%p169) target = $region20
        $region19: #{bottleneck_forward.1} parent=11 // pred_region
          %s173 = ssub.s32 16, 16
          %174 = vsyncadd [#allocation10], %s173
          %s176 = sshll.u32 [#allocation9], 4
          %s177 = int_to_ptr.vmem [resolvable:$true] %s176
          %179 = dma.hbm_to_vmem [thread:$0]  %s2, 16, %s177, [#allocation10]
        $region20: #{bottleneck_forward.1} parent=11 // pred_fallthru
          _
        // Predicated region
        $region21: #{bottleneck_forward.1} parent=11 // pred_check
          %p180 = pneg %p92
        $region22: #{bottleneck_forward.1} parent=11 // pred_check_branch
          %182 = sbr.rel (%p180) target = $region24
        $region23: #{bottleneck_forward.1} parent=11 // pred_region
          %s184 = ssub.s32 9216, 9216
          %185 = vsyncadd [#allocation10], %s184
          %s186 = sshll.u32 [#allocation11], 4
          %s187 = int_to_ptr.vmem [resolvable:$true] %s186
          %192 = dma.hbm_to_vmem [thread:$0]  %s3, 9216, %s187, [#allocation10], 64, 64, 4
        $region24: #{bottleneck_forward.1} parent=11 // pred_fallthru
          _
        // Predicated region
        $region25: #{bottleneck_forward.1} parent=11 // pred_check
          %p193 = pneg %p113
        $region26: #{bottleneck_forward.1} parent=11 // pred_check_branch
          %195 = sbr.rel (%p193) target = $region28
        $region27: #{bottleneck_forward.1} parent=11 // pred_region
          %s197 = ssub.s32 16, 16
          %198 = vsyncadd [#allocation13], %s197
          %s200 = sshll.u32 [#allocation12], 4
          %s201 = int_to_ptr.vmem [resolvable:$true] %s200
          %203 = dma.hbm_to_vmem [thread:$0]  %s4, 16, %s201, [#allocation13]
        $region28: #{bottleneck_forward.1} parent=11 // pred_fallthru
          _
      $region12: #{bottleneck_forward.1} parent=5 // pred_fallthru
        _
      %p204 = scmp.lt.s32.totalorder %s17, 2
      // Predicated region
      $region29: #{bottleneck_forward.1} parent=5 // pred_check
        %p205 = pneg %p204
      $region30: #{bottleneck_forward.1} parent=5 // pred_check_branch
        %207 = sbr.rel (%p205) target = $region32
      $region31: #{bottleneck_forward.1} parent=5 // pred_region
        _
      $region32: #{bottleneck_forward.1} parent=5 // pred_fallthru
        _
      %p208 = scmp.le.s32.totalorder 1, %s17
      %p209 = scmp.lt.s32.totalorder %s17, 3
      %p210 = pnand %p208, %p209
      %p211 = pneg %p210
      // Predicated region
      $region33: #{bottleneck_forward.1} parent=5 // pred_check
        _
      $region34: #{bottleneck_forward.1} parent=5 // pred_check_branch
        %213 = sbr.rel (%p210) target = $region36
      $region35: #{bottleneck_forward.1} parent=5 // pred_region
        %s214 = ssub.s32 %s17, 1
        // Predicated region
        $region37: #{bottleneck_forward.1} parent=35 // pred_check
          %p215 = pneg %p50
        $region38: #{bottleneck_forward.1} parent=35 // pred_check_branch
          %217 = sbr.rel (%p215) target = $region40
        $region39: #{bottleneck_forward.1} parent=35 // pred_region
          %218 = dma.done [#allocation7], 9216
        $region40: #{bottleneck_forward.1} parent=35 // pred_fallthru
          _
        // Predicated region
        $region41: #{bottleneck_forward.1} parent=35 // pred_check
          %p219 = pneg %p71
        $region42: #{bottleneck_forward.1} parent=35 // pred_check_branch
          %221 = sbr.rel (%p219) target = $region44
        $region43: #{bottleneck_forward.1} parent=35 // pred_region
          %222 = dma.done [#allocation10], 16
        $region44: #{bottleneck_forward.1} parent=35 // pred_fallthru
          _
        // Predicated region
        $region45: #{bottleneck_forward.1} parent=35 // pred_check
          %p223 = pneg %p92
        $region46: #{bottleneck_forward.1} parent=35 // pred_check_branch
          %225 = sbr.rel (%p223) target = $region48
        $region47: #{bottleneck_forward.1} parent=35 // pred_region
          %226 = dma.done [#allocation10], 9216
        $region48: #{bottleneck_forward.1} parent=35 // pred_fallthru
          _
        // Predicated region
        $region49: #{bottleneck_forward.1} parent=35 // pred_check
          %p227 = pneg %p113
        $region50: #{bottleneck_forward.1} parent=35 // pred_check_branch
          %229 = sbr.rel (%p227) target = $region52
        $region51: #{bottleneck_forward.1} parent=35 // pred_region
          %230 = dma.done [#allocation13], 16
        $region52: #{bottleneck_forward.1} parent=35 // pred_fallthru
          _
        %p231 = pneg %p50
        %p232 = pneg %p47
        %p233 = pneg %p71
        %p234 = pneg %p68
        %p235 = pneg %p92
        %p236 = pneg %p89
        %p237 = pneg %p113
        %p238 = pneg %p110
        %p239 = pneg %p141
        %p240 = pneg %p138
        %s241 = sand.u32 %s128, 1
        %s242 = scalar_lea.sflag [#allocation8], %s241
        %s243 = sand.u32 %s128, 1
        %s244 = smul.addr %s243, 336
        %s245 = scalar_lea.vmem [#allocation14], %s244
        %s246 = smul.u32 42, %s27
        %p248 = scmp.lt.s32.totalorder %s27, 0
        %s249 = ssub.s32 0, %s27
        %s250 = scalar_select %p248, %s249, %s27
        %s251 = sand.u32 %s250, 1
        %s252 = ssub.s32 0, %s251
        %s253 = scalar_select %p248, %s252, %s251
        %p254 = scmp.ne.s32.totalorder %s253, 0
        %p255 = scmp.lt.s32.totalorder %s253, 0
        %p256 = pnand %p255, %p254
        %p257 = pneg %p256
        %s258 = sadd.s32 %s253, 2
        %s259 = scalar_select %p257, %s258, %s253
        %p260 = scmp.eq.s32.totalorder %s27, 0
        // Predicated region
        $region53: #{bottleneck_forward.1} parent=35 // pred_check
          %p261 = pneg %p260
        $region54: #{bottleneck_forward.1} parent=35 // pred_check_branch
          %263 = sbr.rel (%p261) target = $region56
        $region55: #{bottleneck_forward.1} parent=35 // pred_region
          %s264 = smul.u32 %s26, 52
          %s265 = sadd.s32 0, %s264
          %s266 = smul.addr %s265, 64
          %s267 = scalar_lea.hbm %s0, %s266
          // Predicated region
          $region57: #{bottleneck_forward.1} parent=55 // pred_check
            _
          $region58: #{bottleneck_forward.1} parent=55 // pred_check_branch
            %269 = sbr.rel target = $region60
          $region59: #{bottleneck_forward.1} parent=55 // pred_region
            %270 = sst [smem:[#allocation17]] [#allocation16]
            %271 = sst [smem:[#allocation18]] [#allocation15]
          $region60: #{bottleneck_forward.1} parent=55 // pred_fallthru
            _
          %273 = shalt.err (0)
          %s275 = sshll.u32 [#allocation2], 4
          %s276 = int_to_ptr.vmem [resolvable:$true] %s275
          %278 = dma.hbm_to_vmem [thread:$0]  %s267, 3328, %s276, [#allocation5]
        $region56: #{bottleneck_forward.1} parent=35 // pred_fallthru
          _
        %s279 = smul.u32 %s27, 336
        %s280 = smul.u32 %s259, 26
        %s281 = smul.addr %s280, 8
        %s282 = scalar_lea.vmem [#allocation2], %s281
        %s283 = scalar_lea.sflag [#allocation5], %s259
        %s284 = smul.u32 4, 52
        %s285 = smul.u32 %s284, 1
        %s286 = sshll.u32 %s285, 4
        %287 = dma.done %s283, %s286
        %s288 = sadd.s32 %s27, 1
        %p289 = scmp.lt.s32.totalorder %s288, 1
        // Predicated region
        $region61: #{bottleneck_forward.1} parent=35 // pred_check
          %p290 = pneg %p289
        $region62: #{bottleneck_forward.1} parent=35 // pred_check_branch
          %292 = sbr.rel (%p290) target = $region64
        $region63: #{bottleneck_forward.1} parent=35 // pred_region
          %s293 = ssub.s32 1, %s259
          %s294 = smul.u32 %s288, 336
          %s295 = sshra.s32 %s294, 3
          %s296 = sand.u32 %s294, 7
          %s297 = smul.u32 %s26, 52
          %s298 = sadd.s32 %s295, %s297
          %s299 = smul.addr %s298, 64
          %s300 = scalar_lea.hbm %s0, %s299
          %s301 = smul.u32 %s293, 26
          %s302 = smul.addr %s301, 8
          %s303 = scalar_lea.vmem [#allocation2], %s302
          %s304 = scalar_lea.sflag [#allocation5], %s293
          // Predicated region
          $region65: #{bottleneck_forward.1} parent=63 // pred_check
            _
          $region66: #{bottleneck_forward.1} parent=63 // pred_check_branch
            %306 = sbr.rel target = $region68
          $region67: #{bottleneck_forward.1} parent=63 // pred_region
            %307 = sst [smem:[#allocation17]] [#allocation20]
            %308 = sst [smem:[#allocation18]] [#allocation19]
          $region68: #{bottleneck_forward.1} parent=63 // pred_fallthru
            _
          %310 = shalt.err (0)
          %s312 = sshll.u32 %s303, 4
          %s313 = int_to_ptr.vmem [resolvable:$true] %s312
          %315 = dma.hbm_to_vmem [thread:$0]  %s300, 3328, %s313, %s304
        $region64: #{bottleneck_forward.1} parent=35 // pred_fallthru
          _
        %v316 = vld [vmem:[%s282] sm:$0xff]
        %v317 = vld [vmem:[%s282 + $0x8] sm:$0xff]
        %v318 = vld [vmem:[%s282 + $0x10] sm:$0xff]
        %v319 = vld [vmem:[%s282 + $0x18] sm:$0xff]
        %v320 = vld [vmem:[%s282 + $0x20] sm:$0xff]
        %v321 = vld [vmem:[%s282 + $0x28] sm:$0xff]
        %v322 = vld [vmem:[%s282 + $0x30] sm:$0xff]
        %v323 = vld [vmem:[%s282 + $0x38] sm:$0xff]
        %v324 = vld [vmem:[%s282 + $0x40] sm:$0xff]
        %v325 = vld [vmem:[%s282 + $0x48] sm:$0xff]
        %v326 = vld [vmem:[%s282 + $0x50] sm:$0xff]
        %v327 = vld [vmem:[%s282 + $0x58] sm:$0xff]
        %v328 = vld [vmem:[%s282 + $0x60] sm:$0xff]
        %v329 = vld [vmem:[%s282 + $0x68] sm:$0xff]
        %v330 = vld [vmem:[%s282 + $0x70] sm:$0xff]
        %v331 = vld [vmem:[%s282 + $0x78] sm:$0xff]
        %v332 = vld [vmem:[%s282 + $0x80] sm:$0xff]
        %v333 = vld [vmem:[%s282 + $0x88] sm:$0xff]
        %v334 = vld [vmem:[%s282 + $0x90] sm:$0xff]
        %v335 = vld [vmem:[%s282 + $0x98] sm:$0xff]
        %v336 = vld [vmem:[%s282 + $0xa0] sm:$0xff]
        %v337 = vld [vmem:[%s282 + $0xa8] sm:$0xff]
        %v338 = vld [vmem:[%s282 + $0xb0] sm:$0xff]
        %v339 = vld [vmem:[%s282 + $0xb8] sm:$0xff]
        %v340 = vld [vmem:[%s282 + $0xc0] sm:$0xff]
        %v341 = vld [vmem:[%s282 + $0xc8] sm:$0xff]
        %v342 = vunpack.c.l.bf16 %v316
        %v343 = vunpack.c.h.bf16 %v316
        %v344 = vunpack.c.l.bf16 %v317
        %v345 = vunpack.c.h.bf16 %v317
        %v346 = vunpack.c.l.bf16 %v318
        %v347 = vunpack.c.h.bf16 %v318
        %v348 = vunpack.c.l.bf16 %v319
        %v349 = vunpack.c.h.bf16 %v319
        %v350 = vunpack.c.l.bf16 %v320
        %v351 = vunpack.c.h.bf16 %v320
        %v352 = vunpack.c.l.bf16 %v321
        %v353 = vunpack.c.h.bf16 %v321
        %v354 = vunpack.c.l.bf16 %v322
        %v355 = vunpack.c.h.bf16 %v322
        %v356 = vunpack.c.l.bf16 %v323
        %v357 = vunpack.c.h.bf16 %v323
        %v358 = vunpack.c.l.bf16 %v324
        %v359 = vunpack.c.h.bf16 %v324
        %v360 = vunpack.c.l.bf16 %v325
        %v361 = vunpack.c.h.bf16 %v325
        %v362 = vunpack.c.l.bf16 %v326
        %v363 = vunpack.c.h.bf16 %v326
        %v364 = vunpack.c.l.bf16 %v327
        %v365 = vunpack.c.h.bf16 %v327
        %v366 = vunpack.c.l.bf16 %v328
        %v367 = vunpack.c.h.bf16 %v328
        %v368 = vunpack.c.l.bf16 %v329
        %v369 = vunpack.c.h.bf16 %v329
        %v370 = vunpack.c.l.bf16 %v330
        %v371 = vunpack.c.h.bf16 %v330
        %v372 = vunpack.c.l.bf16 %v331
        %v373 = vunpack.c.h.bf16 %v331
        %v374 = vunpack.c.l.bf16 %v332
        %v375 = vunpack.c.h.bf16 %v332
        %v376 = vunpack.c.l.bf16 %v333
        %v377 = vunpack.c.h.bf16 %v333
        %v378 = vunpack.c.l.bf16 %v334
        %v379 = vunpack.c.h.bf16 %v334
        %v380 = vunpack.c.l.bf16 %v335
        %v381 = vunpack.c.h.bf16 %v335
        %v382 = vunpack.c.l.bf16 %v336
        %v383 = vunpack.c.h.bf16 %v336
        %v384 = vunpack.c.l.bf16 %v337
        %v385 = vunpack.c.h.bf16 %v337
        %v386 = vunpack.c.l.bf16 %v338
        %v387 = vunpack.c.h.bf16 %v338
        %v388 = vunpack.c.l.bf16 %v339
        %v389 = vunpack.c.h.bf16 %v339
        %v390 = vunpack.c.l.bf16 %v340
        %v391 = vunpack.c.h.bf16 %v340
        %v392 = vunpack.c.l.bf16 %v341
        %v393 = vunpack.c.h.bf16 %v341
        %394 = vst [vmem:[#allocation3] sm:$0xff] %v342
        %395 = vst [vmem:[#allocation3 + $0x8] sm:$0xff] %v343
        %396 = vst [vmem:[#allocation3 + $0x10] sm:$0xff] %v344
        %397 = vst [vmem:[#allocation3 + $0x18] sm:$0xff] %v345
        %398 = vst [vmem:[#allocation3 + $0x20] sm:$0xff] %v346
        %399 = vst [vmem:[#allocation3 + $0x28] sm:$0xff] %v347
        %400 = vst [vmem:[#allocation3 + $0x30] sm:$0xff] %v348
        %401 = vst [vmem:[#allocation3 + $0x38] sm:$0xff] %v349
        %402 = vst [vmem:[#allocation3 + $0x40] sm:$0xff] %v350
        %403 = vst [vmem:[#allocation3 + $0x48] sm:$0xff] %v351
        %404 = vst [vmem:[#allocation3 + $0x50] sm:$0xff] %v352
        %405 = vst [vmem:[#allocation3 + $0x58] sm:$0xff] %v353
        %406 = vst [vmem:[#allocation3 + $0x60] sm:$0xff] %v354
        %407 = vst [vmem:[#allocation3 + $0x68] sm:$0xff] %v355
        %408 = vst [vmem:[#allocation3 + $0x70] sm:$0xff] %v356
        %409 = vst [vmem:[#allocation3 + $0x78] sm:$0xff] %v357
        %410 = vst [vmem:[#allocation3 + $0x80] sm:$0xff] %v358
        %411 = vst [vmem:[#allocation3 + $0x88] sm:$0xff] %v359
        %412 = vst [vmem:[#allocation3 + $0x90] sm:$0xff] %v360
        %413 = vst [vmem:[#allocation3 + $0x98] sm:$0xff] %v361
        %414 = vst [vmem:[#allocation3 + $0xa0] sm:$0xff] %v362
        %415 = vst [vmem:[#allocation3 + $0xa8] sm:$0xff] %v363
        %416 = vst [vmem:[#allocation3 + $0xb0] sm:$0xff] %v364
        %417 = vst [vmem:[#allocation3 + $0xb8] sm:$0xff] %v365
        %418 = vst [vmem:[#allocation3 + $0xc0] sm:$0xff] %v366
        %419 = vst [vmem:[#allocation3 + $0xc8] sm:$0xff] %v367
        %420 = vst [vmem:[#allocation3 + $0xd0] sm:$0xff] %v368
        %421 = vst [vmem:[#allocation3 + $0xd8] sm:$0xff] %v369
        %422 = vst [vmem:[#allocation3 + $0xe0] sm:$0xff] %v370
        %423 = vst [vmem:[#allocation3 + $0xe8] sm:$0xff] %v371
        %424 = vst [vmem:[#allocation3 + $0xf0] sm:$0xff] %v372
        %425 = vst [vmem:[#allocation3 + $0xf8] sm:$0xff] %v373
        %426 = vst [vmem:[#allocation3 + $0x100] sm:$0xff] %v374
        %427 = vst [vmem:[#allocation3 + $0x108] sm:$0xff] %v375
        %428 = vst [vmem:[#allocation3 + $0x110] sm:$0xff] %v376
        %429 = vst [vmem:[#allocation3 + $0x118] sm:$0xff] %v377
        %430 = vst [vmem:[#allocation3 + $0x120] sm:$0xff] %v378
        %431 = vst [vmem:[#allocation3 + $0x128] sm:$0xff] %v379
        %432 = vst [vmem:[#allocation3 + $0x130] sm:$0xff] %v380
        %433 = vst [vmem:[#allocation3 + $0x138] sm:$0xff] %v381
        %434 = vst [vmem:[#allocation3 + $0x140] sm:$0xff] %v382
        %435 = vst [vmem:[#allocation3 + $0x148] sm:$0xff] %v383
        %436 = vst [vmem:[#allocation3 + $0x150] sm:$0xff] %v384
        %437 = vst [vmem:[#allocation3 + $0x158] sm:$0xff] %v385
        %438 = vst [vmem:[#allocation3 + $0x160] sm:$0xff] %v386
        %439 = vst [vmem:[#allocation3 + $0x168] sm:$0xff] %v387
        %440 = vst [vmem:[#allocation3 + $0x170] sm:$0xff] %v388
        %441 = vst [vmem:[#allocation3 + $0x178] sm:$0xff] %v389
        %442 = vst [vmem:[#allocation3 + $0x180] sm:$0xff] %v390
        %443 = vst [vmem:[#allocation3 + $0x188] sm:$0xff] %v391
        %444 = vst [vmem:[#allocation3 + $0x190] sm:$0xff] %v392
        %445 = vst [vmem:[#allocation3 + $0x198] sm:$0xff] %v393
        %v446 = vld [vmem:[#allocation3] sm:$0xff]
        %v447 = vld [vmem:[#allocation3 + $0x8] sm:$0xff]
        %v448 = vld [vmem:[#allocation3 + $0x10] sm:$0xff]
        %v449 = vld [vmem:[#allocation3 + $0x18] sm:$0xff]
        %v450 = vld [vmem:[#allocation3 + $0x20] sm:$0xff]
        %v451 = vld [vmem:[#allocation3 + $0x28] sm:$0xff]
        %v452 = vld [vmem:[#allocation3 + $0x30] sm:$0xff]
        %v453 = vld [vmem:[#allocation3 + $0x38] sm:$0xff]
        %v454 = vld [vmem:[#allocation3 + $0x40] sm:$0xff]
        %v455 = vld [vmem:[#allocation3 + $0x48] sm:$0xff]
        %v456 = vld [vmem:[#allocation3 + $0x50] sm:$0xff]
        %v457 = vld [vmem:[#allocation3 + $0x58] sm:$0xff]
        %v458 = vld [vmem:[#allocation3 + $0x60] sm:$0xff]
        %v459 = vld [vmem:[#allocation3 + $0x68] sm:$0xff]
        %v460 = vld [vmem:[#allocation3 + $0x70] sm:$0xff]
        %v461 = vld [vmem:[#allocation3 + $0x78] sm:$0xff]
        %v462 = vld [vmem:[#allocation3 + $0x80] sm:$0xff]
        %v463 = vld [vmem:[#allocation3 + $0x88] sm:$0xff]
        %v464 = vld [vmem:[#allocation3 + $0x90] sm:$0xff]
        %v465 = vld [vmem:[#allocation3 + $0x98] sm:$0xff]
        %v466 = vld [vmem:[#allocation3 + $0xa0] sm:$0xff]
        %v467 = vld [vmem:[#allocation3 + $0xa8] sm:$0xff]
        %v468 = vld [vmem:[#allocation3 + $0xb0] sm:$0xff]
        %v469 = vld [vmem:[#allocation3 + $0xb8] sm:$0xff]
        %v470 = vld [vmem:[#allocation3 + $0xc0] sm:$0xff]
        %v471 = vld [vmem:[#allocation3 + $0xc8] sm:$0xff]
        %v472 = vld [vmem:[#allocation3 + $0xd0] sm:$0xff]
        %v473 = vld [vmem:[#allocation3 + $0xd8] sm:$0xff]
        %v474 = vld [vmem:[#allocation3 + $0xe0] sm:$0xff]
        %v475 = vld [vmem:[#allocation3 + $0xe8] sm:$0xff]
        %v476 = vld [vmem:[#allocation3 + $0xf0] sm:$0xff]
        %v477 = vld [vmem:[#allocation3 + $0xf8] sm:$0xff]
        %v478 = vld [vmem:[#allocation3 + $0x100] sm:$0xff]
        %v479 = vld [vmem:[#allocation3 + $0x108] sm:$0xff]
        %v480 = vld [vmem:[#allocation3 + $0x110] sm:$0xff]
        %v481 = vld [vmem:[#allocation3 + $0x118] sm:$0xff]
        %v482 = vld [vmem:[#allocation3 + $0x120] sm:$0xff]
        %v483 = vld [vmem:[#allocation3 + $0x128] sm:$0xff]
        %v484 = vld [vmem:[#allocation3 + $0x130] sm:$0xff]
        %v485 = vld [vmem:[#allocation3 + $0x138] sm:$0xff]
        %v486 = vld [vmem:[#allocation3 + $0x140] sm:$0xff]
        %v487 = vld [vmem:[#allocation3 + $0x148] sm:$0xff]
        %v488 = vld [vmem:[#allocation3 + $0x150] sm:$0xff]
        %v489 = vld [vmem:[#allocation3 + $0x158] sm:$0xff]
        %v490 = vld [vmem:[#allocation3 + $0x160] sm:$0xff]
        %v491 = vld [vmem:[#allocation3 + $0x168] sm:$0xff]
        %v492 = vld [vmem:[#allocation3 + $0x170] sm:$0x3f]
        %v493 = vpack.c.bf16 %v447, %v446
        %v494 = vpack.c.bf16 %v449, %v448
        %v495 = vpack.c.bf16 %v451, %v450
        %v496 = vpack.c.bf16 %v453, %v452
        %v497 = vpack.c.bf16 %v455, %v454
        %v498 = vpack.c.bf16 %v457, %v456
        %v499 = vpack.c.bf16 %v459, %v458
        %v500 = vpack.c.bf16 %v461, %v460
        %v501 = vpack.c.bf16 %v463, %v462
        %v502 = vpack.c.bf16 %v465, %v464
        %v503 = vpack.c.bf16 %v467, %v466
        %v504 = vpack.c.bf16 %v469, %v468
        %v505 = vpack.c.bf16 %v471, %v470
        %v506 = vpack.c.bf16 %v473, %v472
        %v507 = vpack.c.bf16 %v475, %v474
        %v508 = vpack.c.bf16 %v477, %v476
        %v509 = vpack.c.bf16 %v479, %v478
        %v510 = vpack.c.bf16 %v481, %v480
        %v511 = vpack.c.bf16 %v483, %v482
        %v512 = vpack.c.bf16 %v485, %v484
        %v513 = vpack.c.bf16 %v487, %v486
        %v514 = vpack.c.bf16 %v489, %v488
        %v515 = vpack.c.bf16 %v491, %v490
        %v516 = vpack.c.bf16 %v492, %v492
        %v517 = vld [vmem:[#allocation6] sm:$0xf]
        %v518 = vld [vmem:[#allocation6 + $0x4] sm:$0xf]
        %v519 = vld [vmem:[#allocation6 + $0x8] sm:$0xf]
        %v520 = vld [vmem:[#allocation6 + $0xc] sm:$0xf]
        %v521 = vld [vmem:[#allocation6 + $0x10] sm:$0xf]
        %v522 = vld [vmem:[#allocation6 + $0x14] sm:$0xf]
        %v523 = vld [vmem:[#allocation6 + $0x18] sm:$0xf]
        %v524 = vld [vmem:[#allocation6 + $0x1c] sm:$0xf]
        %v525 = vld [vmem:[#allocation6 + $0x20] sm:$0xf]
        %v526 = vld [vmem:[#allocation6 + $0x24] sm:$0xf]
        %v527 = vld [vmem:[#allocation6 + $0x28] sm:$0xf]
        %v528 = vld [vmem:[#allocation6 + $0x2c] sm:$0xf]
        %v529 = vld [vmem:[#allocation6 + $0x30] sm:$0xf]
        %v530 = vld [vmem:[#allocation6 + $0x34] sm:$0xf]
        %v531 = vld [vmem:[#allocation6 + $0x38] sm:$0xf]
        %v532 = vld [vmem:[#allocation6 + $0x3c] sm:$0xf]
        %v533 = vld [vmem:[#allocation3 + $0x1] sm:$0xff]
        %v534 = vld [vmem:[#allocation3 + $0x9] sm:$0xff]
        %v535 = vld [vmem:[#allocation3 + $0x11] sm:$0xff]
        %v536 = vld [vmem:[#allocation3 + $0x19] sm:$0xff]
        %v537 = vld [vmem:[#allocation3 + $0x21] sm:$0xff]
        %v538 = vld [vmem:[#allocation3 + $0x29] sm:$0xff]
        %v539 = vld [vmem:[#allocation3 + $0x31] sm:$0xff]
        %v540 = vld [vmem:[#allocation3 + $0x39] sm:$0xff]
        %v541 = vld [vmem:[#allocation3 + $0x41] sm:$0xff]
        %v542 = vld [vmem:[#allocation3 + $0x49] sm:$0xff]
        %v543 = vld [vmem:[#allocation3 + $0x51] sm:$0xff]
        %v544 = vld [vmem:[#allocation3 + $0x59] sm:$0xff]
        %v545 = vld [vmem:[#allocation3 + $0x61] sm:$0xff]
        %v546 = vld [vmem:[#allocation3 + $0x69] sm:$0xff]
        %v547 = vld [vmem:[#allocation3 + $0x71] sm:$0xff]
        %v548 = vld [vmem:[#allocation3 + $0x79] sm:$0xff]
        %v549 = vld [vmem:[#allocation3 + $0x81] sm:$0xff]
        %v550 = vld [vmem:[#allocation3 + $0x89] sm:$0xff]
        %v551 = vld [vmem:[#allocation3 + $0x91] sm:$0xff]
        %v552 = vld [vmem:[#allocation3 + $0x99] sm:$0xff]
        %v553 = vld [vmem:[#allocation3 + $0xa1] sm:$0xff]
        %v554 = vld [vmem:[#allocation3 + $0xa9] sm:$0xff]
        %v555 = vld [vmem:[#allocation3 + $0xb1] sm:$0xff]
        %v556 = vld [vmem:[#allocation3 + $0xb9] sm:$0xff]
        %v557 = vld [vmem:[#allocation3 + $0xc1] sm:$0xff]
        %v558 = vld [vmem:[#allocation3 + $0xc9] sm:$0xff]
        %v559 = vld [vmem:[#allocation3 + $0xd1] sm:$0xff]
        %v560 = vld [vmem:[#allocation3 + $0xd9] sm:$0xff]
        %v561 = vld [vmem:[#allocation3 + $0xe1] sm:$0xff]
        %v562 = vld [vmem:[#allocation3 + $0xe9] sm:$0xff]
        %v563 = vld [vmem:[#allocation3 + $0xf1] sm:$0xff]
        %v564 = vld [vmem:[#allocation3 + $0xf9] sm:$0xff]
        %v565 = vld [vmem:[#allocation3 + $0x101] sm:$0xff]
        %v566 = vld [vmem:[#allocation3 + $0x109] sm:$0xff]
        %v567 = vld [vmem:[#allocation3 + $0x111] sm:$0xff]
        %v568 = vld [vmem:[#allocation3 + $0x119] sm:$0xff]
        %v569 = vld [vmem:[#allocation3 + $0x121] sm:$0xff]
        %v570 = vld [vmem:[#allocation3 + $0x129] sm:$0xff]
        %v571 = vld [vmem:[#allocation3 + $0x131] sm:$0xff]
        %v572 = vld [vmem:[#allocation3 + $0x139] sm:$0xff]
        %v573 = vld [vmem:[#allocation3 + $0x141] sm:$0xff]
        %v574 = vld [vmem:[#allocation3 + $0x149] sm:$0xff]
        %v575 = vld [vmem:[#allocation3 + $0x151] sm:$0xff]
        %v576 = vld [vmem:[#allocation3 + $0x159] sm:$0xff]
        %v577 = vld [vmem:[#allocation3 + $0x161] sm:$0xff]
        %v578 = vld [vmem:[#allocation3 + $0x169] sm:$0xff]
        %v579 = vld [vmem:[#allocation3 + $0x171] sm:$0x3f]
        %v580 = vpack.c.bf16 %v534, %v533
        %v581 = vpack.c.bf16 %v536, %v535
        %v582 = vpack.c.bf16 %v538, %v537
        %v583 = vpack.c.bf16 %v540, %v539
        %v584 = vpack.c.bf16 %v542, %v541
        %v585 = vpack.c.bf16 %v544, %v543
        %v586 = vpack.c.bf16 %v546, %v545
        %v587 = vpack.c.bf16 %v548, %v547
        %v588 = vpack.c.bf16 %v550, %v549
        %v589 = vpack.c.bf16 %v552, %v551
        %v590 = vpack.c.bf16 %v554, %v553
        %v591 = vpack.c.bf16 %v556, %v555
        %v592 = vpack.c.bf16 %v558, %v557
        %v593 = vpack.c.bf16 %v560, %v559
        %v594 = vpack.c.bf16 %v562, %v561
        %v595 = vpack.c.bf16 %v564, %v563
        %v596 = vpack.c.bf16 %v566, %v565
        %v597 = vpack.c.bf16 %v568, %v567
        %v598 = vpack.c.bf16 %v570, %v569
        %v599 = vpack.c.bf16 %v572, %v571
        %v600 = vpack.c.bf16 %v574, %v573
        %v601 = vpack.c.bf16 %v576, %v575
        %v602 = vpack.c.bf16 %v578, %v577
        %v603 = vpack.c.bf16 %v579, %v579
        %s604 = scalar_lea.vmem [#allocation6], 64
        %v605 = vld [vmem:[%s604] sm:$0xf]
        %v606 = vld [vmem:[%s604 + $0x4] sm:$0xf]
        %v607 = vld [vmem:[%s604 + $0x8] sm:$0xf]
        %v608 = vld [vmem:[%s604 + $0xc] sm:$0xf]
        %v609 = vld [vmem:[%s604 + $0x10] sm:$0xf]
        %v610 = vld [vmem:[%s604 + $0x14] sm:$0xf]
        %v611 = vld [vmem:[%s604 + $0x18] sm:$0xf]
        %v612 = vld [vmem:[%s604 + $0x1c] sm:$0xf]
        %v613 = vld [vmem:[%s604 + $0x20] sm:$0xf]
        %v614 = vld [vmem:[%s604 + $0x24] sm:$0xf]
        %v615 = vld [vmem:[%s604 + $0x28] sm:$0xf]
        %v616 = vld [vmem:[%s604 + $0x2c] sm:$0xf]
        %v617 = vld [vmem:[%s604 + $0x30] sm:$0xf]
        %v618 = vld [vmem:[%s604 + $0x34] sm:$0xf]
        %v619 = vld [vmem:[%s604 + $0x38] sm:$0xf]
        %v620 = vld [vmem:[%s604 + $0x3c] sm:$0xf]
        %v637 = vunpack.c.l.b16 %v605
        %v638 = vunpack.c.l.b16 %v606
        %v639 = vunpack.c.l.b16 %v607
        %v640 = vunpack.c.l.b16 %v608
        %v641 = vunpack.c.l.b16 %v609
        %v642 = vunpack.c.l.b16 %v610
        %v643 = vunpack.c.l.b16 %v611
        %v644 = vunpack.c.l.b16 %v612
        %v645 = vunpack.c.l.b16 %v613
        %v646 = vunpack.c.l.b16 %v614
        %v647 = vunpack.c.l.b16 %v615
        %v648 = vunpack.c.l.b16 %v616
        %v649 = vunpack.c.l.b16 %v617
        %v650 = vunpack.c.l.b16 %v618
        %v651 = vunpack.c.l.b16 %v619
        %v652 = vunpack.c.l.b16 %v620
        %v653 = vpack.c.b16 %v638, %v637
        %v654 = vpack.c.b16 %v640, %v639
        %v655 = vpack.c.b16 %v642, %v641
        %v656 = vpack.c.b16 %v644, %v643
        %v657 = vpack.c.b16 %v646, %v645
        %v658 = vpack.c.b16 %v648, %v647
        %v659 = vpack.c.b16 %v650, %v649
        %v660 = vpack.c.b16 %v652, %v651
        %669 = vmatprep.subr.bf16.mxu0 0
        %670 = vmatpush1.bf16.msra.mxu0 %v653
        %671 = vmatprep.subr.bf16.mxu0 0
        %672 = vmatpush1.bf16.msra.mxu0 %v654
        %673 = vmatprep.subr.bf16.mxu0 0
        %674 = vmatpush1.bf16.msra.mxu0 %v655
        %675 = vmatprep.subr.bf16.mxu0 0
        %676 = vmatpush1.bf16.msra.mxu0 %v656
        %677 = vmatprep.subr.bf16.mxu0 0
        %678 = vmatpush1.bf16.msra.mxu0 %v657
        %679 = vmatprep.subr.bf16.mxu0 0
        %680 = vmatpush1.bf16.msra.mxu0 %v658
        %681 = vmatprep.subr.bf16.mxu0 0
        %682 = vmatpush1.bf16.msra.mxu0 %v659
        %683 = vmatprep.subr.bf16.mxu0 0
        %684 = vmatpush1.bf16.msra.mxu0 %v660
        %685 = vmatprep.subr.bf16.mxu0 0
        %686 = vmatpush1.bf16.msra.mxu0 0
        %687 = vmatprep.subr.bf16.mxu0 0
        %688 = vmatpush1.bf16.msra.mxu0 0
        %689 = vmatprep.subr.bf16.mxu0 0
        %690 = vmatpush1.bf16.msra.mxu0 0
        %691 = vmatprep.subr.bf16.mxu0 0
        %692 = vmatpush1.bf16.msra.mxu0 0
        %693 = vmatprep.subr.bf16.mxu0 0
        %694 = vmatpush1.bf16.msra.mxu0 0
        %695 = vmatprep.subr.bf16.mxu0 0
        %696 = vmatpush1.bf16.msra.mxu0 0
        %697 = vmatprep.subr.bf16.mxu0 0
        %698 = vmatpush1.bf16.msra.mxu0 0
        %699 = vmatprep.subr.bf16.mxu0 0
        %700 = vmatpush1.bf16.msra.mxu0 0
        %701 = vmatprep.mubr.bf16.mxu0 0
        %702 = vmatmul.mubr.bf16.gmra.mrb[0].mxu0 %v580
        %v703 = vpop.f32.mrb[0].mxu0
        %v704 = vadd.f32 0.0, %v703
        %v705 = vpop.f32.mrb[0].mxu0
        %v706 = vpop.f32.mrb[0].mxu0
        %v707 = vadd.f32 0.0, %v706
        %v708 = vpop.f32.mrb[0].mxu0
        %709 = vmatprep.mubr.bf16.mxu0 0
        %710 = vmatmul.mubr.bf16.gmra.mrb[0].mxu0 %v581
        %v711 = vpop.f32.mrb[0].mxu0
        %v712 = vadd.f32 0.0, %v711
        %v713 = vpop.f32.mrb[0].mxu0
        %v714 = vpop.f32.mrb[0].mxu0
        %v715 = vadd.f32 0.0, %v714
        %v716 = vpop.f32.mrb[0].mxu0
        %717 = vmatprep.mubr.bf16.mxu0 0
        %718 = vmatmul.mubr.bf16.gmra.mrb[0].mxu0 %v582
        %v719 = vpop.f32.mrb[0].mxu0
        %v720 = vadd.f32 0.0, %v719
        %v721 = vpop.f32.mrb[0].mxu0
        %v722 = vpop.f32.mrb[0].mxu0
        %v723 = vadd.f32 0.0, %v722
        %v724 = vpop.f32.mrb[0].mxu0
        %725 = vmatprep.mubr.bf16.mxu0 0
        %726 = vmatmul.mubr.bf16.gmra.mrb[0].mxu0 %v583
        %v727 = vpop.f32.mrb[0].mxu0
        %v728 = vadd.f32 0.0, %v727
        %v729 = vpop.f32.mrb[0].mxu0
        %v730 = vpop.f32.mrb[0].mxu0
        %v731 = vadd.f32 0.0, %v730
        %v732 = vpop.f32.mrb[0].mxu0
        %733 = vmatprep.mubr.bf16.mxu0 0
        %734 = vmatmul.mubr.bf16.gmra.mrb[0].mxu0 %v584
        %v735 = vpop.f32.mrb[0].mxu0
        %v736 = vadd.f32 0.0, %v735
        %v737 = vpop.f32.mrb[0].mxu0
        %v738 = vpop.f32.mrb[0].mxu0
        %v739 = vadd.f32 0.0, %v738
        %v740 = vpop.f32.mrb[0].mxu0
        %741 = vmatprep.mubr.bf16.mxu0 0
        %742 = vmatmul.mubr.bf16.gmra.mrb[0].mxu0 %v585
        %v743 = vpop.f32.mrb[0].mxu0
        %v744 = vadd.f32 0.0, %v743
        %v745 = vpop.f32.mrb[0].mxu0
        %v746 = vpop.f32.mrb[0].mxu0
        %v747 = vadd.f32 0.0, %v746
        %v748 = vpop.f32.mrb[0].mxu0
        %749 = vmatprep.mubr.bf16.mxu0 0
        %750 = vmatmul.mubr.bf16.gmra.mrb[0].mxu0 %v586
        %v751 = vpop.f32.mrb[0].mxu0
        %v752 = vadd.f32 0.0, %v751
        %v753 = vpop.f32.mrb[0].mxu0
        %v754 = vpop.f32.mrb[0].mxu0
        %v755 = vadd.f32 0.0, %v754
        %v756 = vpop.f32.mrb[0].mxu0
        %757 = vmatprep.mubr.bf16.mxu0 0
        %758 = vmatmul.mubr.bf16.gmra.mrb[0].mxu0 %v587
        %v759 = vpop.f32.mrb[0].mxu0
        %v760 = vadd.f32 0.0, %v759
        %v761 = vpop.f32.mrb[0].mxu0
        %v762 = vpop.f32.mrb[0].mxu0
        %v763 = vadd.f32 0.0, %v762
        %v764 = vpop.f32.mrb[0].mxu0
        %765 = vmatprep.mubr.bf16.mxu0 0
        %766 = vmatmul.mubr.bf16.gmra.mrb[0].mxu0 %v588
        %v767 = vpop.f32.mrb[0].mxu0
        %v768 = vadd.f32 0.0, %v767
        %v769 = vpop.f32.mrb[0].mxu0
        %v770 = vpop.f32.mrb[0].mxu0
        %v771 = vadd.f32 0.0, %v770
        %v772 = vpop.f32.mrb[0].mxu0
        %773 = vmatprep.mubr.bf16.mxu0 0
        %774 = vmatmul.mubr.bf16.gmra.mrb[0].mxu0 %v589
        %v775 = vpop.f32.mrb[0].mxu0
        %v776 = vadd.f32 0.0, %v775
        %v777 = vpop.f32.mrb[0].mxu0
        %v778 = vpop.f32.mrb[0].mxu0
        %v779 = vadd.f32 0.0, %v778
        %v780 = vpop.f32.mrb[0].mxu0
        %781 = vmatprep.mubr.bf16.mxu0 0
        %782 = vmatmul.mubr.bf16.gmra.mrb[0].mxu0 %v590
        %v783 = vpop.f32.mrb[0].mxu0
        %v784 = vadd.f32 0.0, %v783
        %v785 = vpop.f32.mrb[0].mxu0
        %v786 = vpop.f32.mrb[0].mxu0
        %v787 = vadd.f32 0.0, %v786
        %v788 = vpop.f32.mrb[0].mxu0
        %789 = vmatprep.mubr.bf16.mxu0 0
        %790 = vmatmul.mubr.bf16.gmra.mrb[0].mxu0 %v591
        %v791 = vpop.f32.mrb[0].mxu0
        %v792 = vadd.f32 0.0, %v791
        %v793 = vpop.f32.mrb[0].mxu0
        %v794 = vpop.f32.mrb[0].mxu0
        %v795 = vadd.f32 0.0, %v794
        %v796 = vpop.f32.mrb[0].mxu0
        %797 = vmatprep.mubr.bf16.mxu0 0
        %798 = vmatmul.mubr.bf16.gmra.mrb[0].mxu0 %v592
        %v799 = vpop.f32.mrb[0].mxu0
        %v800 = vadd.f32 0.0, %v799
        %v801 = vpop.f32.mrb[0].mxu0
        %v802 = vpop.f32.mrb[0].mxu0
        %v803 = vadd.f32 0.0, %v802
        %v804 = vpop.f32.mrb[0].mxu0
        %805 = vmatprep.mubr.bf16.mxu0 0
        %806 = vmatmul.mubr.bf16.gmra.mrb[0].mxu0 %v593
        %v807 = vpop.f32.mrb[0].mxu0
        %v808 = vadd.f32 0.0, %v807
        %v809 = vpop.f32.mrb[0].mxu0
        %v810 = vpop.f32.mrb[0].mxu0
        %v811 = vadd.f32 0.0, %v810
        %v812 = vpop.f32.mrb[0].mxu0
        %813 = vmatprep.mubr.bf16.mxu0 0
        %814 = vmatmul.mubr.bf16.gmra.mrb[0].mxu0 %v594
        %v815 = vpop.f32.mrb[0].mxu0
        %v816 = vadd.f32 0.0, %v815
        %v817 = vpop.f32.mrb[0].mxu0
        %v818 = vpop.f32.mrb[0].mxu0
        %v819 = vadd.f32 0.0, %v818
        %v820 = vpop.f32.mrb[0].mxu0
        %821 = vmatprep.mubr.bf16.mxu0 0
        %822 = vmatmul.mubr.bf16.gmra.mrb[0].mxu0 %v595
        %v823 = vpop.f32.mrb[0].mxu0
        %v824 = vadd.f32 0.0, %v823
        %v825 = vpop.f32.mrb[0].mxu0
        %v826 = vpop.f32.mrb[0].mxu0
        %v827 = vadd.f32 0.0, %v826
        %v828 = vpop.f32.mrb[0].mxu0
        %829 = vmatprep.mubr.bf16.mxu0 0
        %830 = vmatmul.mubr.bf16.gmra.mrb[0].mxu0 %v596
        %v831 = vpop.f32.mrb[0].mxu0
        %v832 = vadd.f32 0.0, %v831
        %v833 = vpop.f32.mrb[0].mxu0
        %v834 = vpop.f32.mrb[0].mxu0
        %v835 = vadd.f32 0.0, %v834
        %v836 = vpop.f32.mrb[0].mxu0
        %837 = vmatprep.mubr.bf16.mxu0 0
        %838 = vmatmul.mubr.bf16.gmra.mrb[0].mxu0 %v597
        %v839 = vpop.f32.mrb[0].mxu0
        %v840 = vadd.f32 0.0, %v839
        %v841 = vpop.f32.mrb[0].mxu0
        %v842 = vpop.f32.mrb[0].mxu0
        %v843 = vadd.f32 0.0, %v842
        %v844 = vpop.f32.mrb[0].mxu0
        %845 = vmatprep.mubr.bf16.mxu0 0
        %846 = vmatmul.mubr.bf16.gmra.mrb[0].mxu0 %v598
        %v847 = vpop.f32.mrb[0].mxu0
        %v848 = vadd.f32 0.0, %v847
        %v849 = vpop.f32.mrb[0].mxu0
        %v850 = vpop.f32.mrb[0].mxu0
        %v851 = vadd.f32 0.0, %v850
        %v852 = vpop.f32.mrb[0].mxu0
        %853 = vmatprep.mubr.bf16.mxu0 0
        %854 = vmatmul.mubr.bf16.gmra.mrb[0].mxu0 %v599
        %v855 = vpop.f32.mrb[0].mxu0
        %v856 = vadd.f32 0.0, %v855
        %v857 = vpop.f32.mrb[0].mxu0
        %v858 = vpop.f32.mrb[0].mxu0
        %v859 = vadd.f32 0.0, %v858
        %v860 = vpop.f32.mrb[0].mxu0
        %861 = vmatprep.mubr.bf16.mxu0 0
        %862 = vmatmul.mubr.bf16.gmra.mrb[0].mxu0 %v600
        %v863 = vpop.f32.mrb[0].mxu0
        %v864 = vadd.f32 0.0, %v863
        %v865 = vpop.f32.mrb[0].mxu0
        %v866 = vpop.f32.mrb[0].mxu0
        %v867 = vadd.f32 0.0, %v866
        %v868 = vpop.f32.mrb[0].mxu0
        %869 = vmatprep.mubr.bf16.mxu0 0
        %870 = vmatmul.mubr.bf16.gmra.mrb[0].mxu0 %v601
        %v871 = vpop.f32.mrb[0].mxu0
        %v872 = vadd.f32 0.0, %v871
        %v873 = vpop.f32.mrb[0].mxu0
        %v874 = vpop.f32.mrb[0].mxu0
        %v875 = vadd.f32 0.0, %v874
        %v876 = vpop.f32.mrb[0].mxu0
        %877 = vmatprep.mubr.bf16.mxu0 0
        %878 = vmatmul.mubr.bf16.gmra.mrb[0].mxu0 %v602
        %v879 = vpop.f32.mrb[0].mxu0
        %v880 = vadd.f32 0.0, %v879
        %v881 = vpop.f32.mrb[0].mxu0
        %v882 = vpop.f32.mrb[0].mxu0
        %v883 = vadd.f32 0.0, %v882
        %v884 = vpop.f32.mrb[0].mxu0
        %885 = vmatprep.mubr.bf16.mxu0 0
        %886 = vmatmul.mubr.bf16.gmra.mrb[0].mxu0 %v603
        %v887 = vpop.f32.mrb[0].mxu0
        %v888 = vadd.f32 0.0, %v887
        %v889 = vpop.f32.mrb[0].mxu0
        %v890 = vpop.f32.mrb[0].mxu0
        %v891 = vpop.f32.mrb[0].mxu0
        %892 = vdwg.mxu0
        %v909 = vunpack.c.l.b16 %v517
        %v910 = vunpack.c.l.b16 %v518
        %v911 = vunpack.c.l.b16 %v519
        %v912 = vunpack.c.l.b16 %v520
        %v913 = vunpack.c.l.b16 %v521
        %v914 = vunpack.c.l.b16 %v522
        %v915 = vunpack.c.l.b16 %v523
        %v916 = vunpack.c.l.b16 %v524
        %v917 = vunpack.c.l.b16 %v525
        %v918 = vunpack.c.l.b16 %v526
        %v919 = vunpack.c.l.b16 %v527
        %v920 = vunpack.c.l.b16 %v528
        %v921 = vunpack.c.l.b16 %v529
        %v922 = vunpack.c.l.b16 %v530
        %v923 = vunpack.c.l.b16 %v531
        %v924 = vunpack.c.l.b16 %v532
        %v925 = vpack.c.b16 %v910, %v909
        %v926 = vpack.c.b16 %v912, %v911
        %v927 = vpack.c.b16 %v914, %v913
        %v928 = vpack.c.b16 %v916, %v915
        %v929 = vpack.c.b16 %v918, %v917
        %v930 = vpack.c.b16 %v920, %v919
        %v931 = vpack.c.b16 %v922, %v921
        %v932 = vpack.c.b16 %v924, %v923
        %941 = vmatprep.subr.bf16.mxu0 0
        %942 = vmatpush1.bf16.msra.mxu0 %v925
        %943 = vmatprep.subr.bf16.mxu0 0
        %944 = vmatpush1.bf16.msra.mxu0 %v926
        %945 = vmatprep.subr.bf16.mxu0 0
        %946 = vmatpush1.bf16.msra.mxu0 %v927
        %947 = vmatprep.subr.bf16.mxu0 0
        %948 = vmatpush1.bf16.msra.mxu0 %v928
        %949 = vmatprep.subr.bf16.mxu0 0
        %950 = vmatpush1.bf16.msra.mxu0 %v929
        %951 = vmatprep.subr.bf16.mxu0 0
        %952 = vmatpush1.bf16.msra.mxu0 %v930
        %953 = vmatprep.subr.bf16.mxu0 0
        %954 = vmatpush1.bf16.msra.mxu0 %v931
        %955 = vmatprep.subr.bf16.mxu0 0
        %956 = vmatpush1.bf16.msra.mxu0 %v932
        %957 = vmatprep.subr.bf16.mxu0 0
        %958 = vmatpush1.bf16.msra.mxu0 0
        %959 = vmatprep.subr.bf16.mxu0 0
        %960 = vmatpush1.bf16.msra.mxu0 0
        %961 = vmatprep.subr.bf16.mxu0 0
        %962 = vmatpush1.bf16.msra.mxu0 0
        %963 = vmatprep.subr.bf16.mxu0 0
        %964 = vmatpush1.bf16.msra.mxu0 0
        %965 = vmatprep.subr.bf16.mxu0 0
        %966 = vmatpush1.bf16.msra.mxu0 0
        %967 = vmatprep.subr.bf16.mxu0 0
        %968 = vmatpush1.bf16.msra.mxu0 0
        %969 = vmatprep.subr.bf16.mxu0 0
        %970 = vmatpush1.bf16.msra.mxu0 0
        %971 = vmatprep.subr.bf16.mxu0 0
        %972 = vmatpush1.bf16.msra.mxu0 0
        %973 = vmatprep.mubr.bf16.mxu0 0
        %974 = vmatmul.mubr.bf16.gmra.mrb[0].mxu0 %v493
        %v975 = vpop.f32.mrb[0].mxu0
        %v976 = vadd.f32 %v704, %v975
        %v977 = vpop.f32.mrb[0].mxu0
        %v978 = vpop.f32.mrb[0].mxu0
        %v979 = vadd.f32 %v707, %v978
        %v980 = vpop.f32.mrb[0].mxu0
        %981 = vmatprep.mubr.bf16.mxu0 0
        %982 = vmatmul.mubr.bf16.gmra.mrb[0].mxu0 %v494
        %v983 = vpop.f32.mrb[0].mxu0
        %v984 = vadd.f32 %v712, %v983
        %v985 = vpop.f32.mrb[0].mxu0
        %v986 = vpop.f32.mrb[0].mxu0
        %v987 = vadd.f32 %v715, %v986
        %v988 = vpop.f32.mrb[0].mxu0
        %989 = vmatprep.mubr.bf16.mxu0 0
        %990 = vmatmul.mubr.bf16.gmra.mrb[0].mxu0 %v495
        %v991 = vpop.f32.mrb[0].mxu0
        %v992 = vadd.f32 %v720, %v991
        %v993 = vpop.f32.mrb[0].mxu0
        %v994 = vpop.f32.mrb[0].mxu0
        %v995 = vadd.f32 %v723, %v994
        %v996 = vpop.f32.mrb[0].mxu0
        %997 = vmatprep.mubr.bf16.mxu0 0
        %998 = vmatmul.mubr.bf16.gmra.mrb[0].mxu0 %v496
        %v999 = vpop.f32.mrb[0].mxu0
        %v1000 = vadd.f32 %v728, %v999
        %v1001 = vpop.f32.mrb[0].mxu0
        %v1002 = vpop.f32.mrb[0].mxu0
        %v1003 = vadd.f32 %v731, %v1002
        %v1004 = vpop.f32.mrb[0].mxu0
        %1005 = vmatprep.mubr.bf16.mxu0 0
        %1006 = vmatmul.mubr.bf16.gmra.mrb[0].mxu0 %v497
        %v1007 = vpop.f32.mrb[0].mxu0
        %v1008 = vadd.f32 %v736, %v1007
        %v1009 = vpop.f32.mrb[0].mxu0
        %v1010 = vpop.f32.mrb[0].mxu0
        %v1011 = vadd.f32 %v739, %v1010
        %v1012 = vpop.f32.mrb[0].mxu0
        %1013 = vmatprep.mubr.bf16.mxu0 0
        %1014 = vmatmul.mubr.bf16.gmra.mrb[0].mxu0 %v498
        %v1015 = vpop.f32.mrb[0].mxu0
        %v1016 = vadd.f32 %v744, %v1015
        %v1017 = vpop.f32.mrb[0].mxu0
        %v1018 = vpop.f32.mrb[0].mxu0
        %v1019 = vadd.f32 %v747, %v1018
        %v1020 = vpop.f32.mrb[0].mxu0
        %1021 = vmatprep.mubr.bf16.mxu0 0
        %1022 = vmatmul.mubr.bf16.gmra.mrb[0].mxu0 %v499
        %v1023 = vpop.f32.mrb[0].mxu0
        %v1024 = vadd.f32 %v752, %v1023
        %v1025 = vpop.f32.mrb[0].mxu0
        %v1026 = vpop.f32.mrb[0].mxu0
        %v1027 = vadd.f32 %v755, %v1026
        %v1028 = vpop.f32.mrb[0].mxu0
        %1029 = vmatprep.mubr.bf16.mxu0 0
        %1030 = vmatmul.mubr.bf16.gmra.mrb[0].mxu0 %v500
        %v1031 = vpop.f32.mrb[0].mxu0
        %v1032 = vadd.f32 %v760, %v1031
        %v1033 = vpop.f32.mrb[0].mxu0
        %v1034 = vpop.f32.mrb[0].mxu0
        %v1035 = vadd.f32 %v763, %v1034
        %v1036 = vpop.f32.mrb[0].mxu0
        %1037 = vmatprep.mubr.bf16.mxu0 0
        %1038 = vmatmul.mubr.bf16.gmra.mrb[0].mxu0 %v501
        %v1039 = vpop.f32.mrb[0].mxu0
        %v1040 = vadd.f32 %v768, %v1039
        %v1041 = vpop.f32.mrb[0].mxu0
        %v1042 = vpop.f32.mrb[0].mxu0
        %v1043 = vadd.f32 %v771, %v1042
        %v1044 = vpop.f32.mrb[0].mxu0
        %1045 = vmatprep.mubr.bf16.mxu0 0
        %1046 = vmatmul.mubr.bf16.gmra.mrb[0].mxu0 %v502
        %v1047 = vpop.f32.mrb[0].mxu0
        %v1048 = vadd.f32 %v776, %v1047
        %v1049 = vpop.f32.mrb[0].mxu0
        %v1050 = vpop.f32.mrb[0].mxu0
        %v1051 = vadd.f32 %v779, %v1050
        %v1052 = vpop.f32.mrb[0].mxu0
        %1053 = vmatprep.mubr.bf16.mxu0 0
        %1054 = vmatmul.mubr.bf16.gmra.mrb[0].mxu0 %v503
        %v1055 = vpop.f32.mrb[0].mxu0
        %v1056 = vadd.f32 %v784, %v1055
        %v1057 = vpop.f32.mrb[0].mxu0
        %v1058 = vpop.f32.mrb[0].mxu0
        %v1059 = vadd.f32 %v787, %v1058
        %v1060 = vpop.f32.mrb[0].mxu0
        %1061 = vmatprep.mubr.bf16.mxu0 0
        %1062 = vmatmul.mubr.bf16.gmra.mrb[0].mxu0 %v504
        %v1063 = vpop.f32.mrb[0].mxu0
        %v1064 = vadd.f32 %v792, %v1063
        %v1065 = vpop.f32.mrb[0].mxu0
        %v1066 = vpop.f32.mrb[0].mxu0
        %v1067 = vadd.f32 %v795, %v1066
        %v1068 = vpop.f32.mrb[0].mxu0
        %1069 = vmatprep.mubr.bf16.mxu0 0
        %1070 = vmatmul.mubr.bf16.gmra.mrb[0].mxu0 %v505
        %v1071 = vpop.f32.mrb[0].mxu0
        %v1072 = vadd.f32 %v800, %v1071
        %v1073 = vpop.f32.mrb[0].mxu0
        %v1074 = vpop.f32.mrb[0].mxu0
        %v1075 = vadd.f32 %v803, %v1074
        %v1076 = vpop.f32.mrb[0].mxu0
        %1077 = vmatprep.mubr.bf16.mxu0 0
        %1078 = vmatmul.mubr.bf16.gmra.mrb[0].mxu0 %v506
        %v1079 = vpop.f32.mrb[0].mxu0
        %v1080 = vadd.f32 %v808, %v1079
        %v1081 = vpop.f32.mrb[0].mxu0
        %v1082 = vpop.f32.mrb[0].mxu0
        %v1083 = vadd.f32 %v811, %v1082
        %v1084 = vpop.f32.mrb[0].mxu0
        %1085 = vmatprep.mubr.bf16.mxu0 0
        %1086 = vmatmul.mubr.bf16.gmra.mrb[0].mxu0 %v507
        %v1087 = vpop.f32.mrb[0].mxu0
        %v1088 = vadd.f32 %v816, %v1087
        %v1089 = vpop.f32.mrb[0].mxu0
        %v1090 = vpop.f32.mrb[0].mxu0
        %v1091 = vadd.f32 %v819, %v1090
        %v1092 = vpop.f32.mrb[0].mxu0
        %1093 = vmatprep.mubr.bf16.mxu0 0
        %1094 = vmatmul.mubr.bf16.gmra.mrb[0].mxu0 %v508
        %v1095 = vpop.f32.mrb[0].mxu0
        %v1096 = vadd.f32 %v824, %v1095
        %v1097 = vpop.f32.mrb[0].mxu0
        %v1098 = vpop.f32.mrb[0].mxu0
        %v1099 = vadd.f32 %v827, %v1098
        %v1100 = vpop.f32.mrb[0].mxu0
        %1101 = vmatprep.mubr.bf16.mxu0 0
        %1102 = vmatmul.mubr.bf16.gmra.mrb[0].mxu0 %v509
        %v1103 = vpop.f32.mrb[0].mxu0
        %v1104 = vadd.f32 %v832, %v1103
        %v1105 = vpop.f32.mrb[0].mxu0
        %v1106 = vpop.f32.mrb[0].mxu0
        %v1107 = vadd.f32 %v835, %v1106
        %v1108 = vpop.f32.mrb[0].mxu0
        %1109 = vmatprep.mubr.bf16.mxu0 0
        %1110 = vmatmul.mubr.bf16.gmra.mrb[0].mxu0 %v510
        %v1111 = vpop.f32.mrb[0].mxu0
        %v1112 = vadd.f32 %v840, %v1111
        %v1113 = vpop.f32.mrb[0].mxu0
        %v1114 = vpop.f32.mrb[0].mxu0
        %v1115 = vadd.f32 %v843, %v1114
        %v1116 = vpop.f32.mrb[0].mxu0
        %1117 = vmatprep.mubr.bf16.mxu0 0
        %1118 = vmatmul.mubr.bf16.gmra.mrb[0].mxu0 %v511
        %v1119 = vpop.f32.mrb[0].mxu0
        %v1120 = vadd.f32 %v848, %v1119
        %v1121 = vpop.f32.mrb[0].mxu0
        %v1122 = vpop.f32.mrb[0].mxu0
        %v1123 = vadd.f32 %v851, %v1122
        %v1124 = vpop.f32.mrb[0].mxu0
        %1125 = vmatprep.mubr.bf16.mxu0 0
        %1126 = vmatmul.mubr.bf16.gmra.mrb[0].mxu0 %v512
        %v1127 = vpop.f32.mrb[0].mxu0
        %v1128 = vadd.f32 %v856, %v1127
        %v1129 = vpop.f32.mrb[0].mxu0
        %v1130 = vpop.f32.mrb[0].mxu0
        %v1131 = vadd.f32 %v859, %v1130
        %v1132 = vpop.f32.mrb[0].mxu0
        %1133 = vmatprep.mubr.bf16.mxu0 0
        %1134 = vmatmul.mubr.bf16.gmra.mrb[0].mxu0 %v513
        %v1135 = vpop.f32.mrb[0].mxu0
        %v1136 = vadd.f32 %v864, %v1135
        %v1137 = vpop.f32.mrb[0].mxu0
        %v1138 = vpop.f32.mrb[0].mxu0
        %v1139 = vadd.f32 %v867, %v1138
        %v1140 = vpop.f32.mrb[0].mxu0
        %1141 = vmatprep.mubr.bf16.mxu0 0
        %1142 = vmatmul.mubr.bf16.gmra.mrb[0].mxu0 %v514
        %v1143 = vpop.f32.mrb[0].mxu0
        %v1144 = vadd.f32 %v872, %v1143
        %v1145 = vpop.f32.mrb[0].mxu0
        %v1146 = vpop.f32.mrb[0].mxu0
        %v1147 = vadd.f32 %v875, %v1146
        %v1148 = vpop.f32.mrb[0].mxu0
        %1149 = vmatprep.mubr.bf16.mxu0 0
        %1150 = vmatmul.mubr.bf16.gmra.mrb[0].mxu0 %v515
        %v1151 = vpop.f32.mrb[0].mxu0
        %v1152 = vadd.f32 %v880, %v1151
        %v1153 = vpop.f32.mrb[0].mxu0
        %v1154 = vpop.f32.mrb[0].mxu0
        %v1155 = vadd.f32 %v883, %v1154
        %v1156 = vpop.f32.mrb[0].mxu0
        %1157 = vmatprep.mubr.bf16.mxu0 0
        %1158 = vmatmul.mubr.bf16.gmra.mrb[0].mxu0 %v516
        %v1159 = vpop.f32.mrb[0].mxu0
        %v1160 = vadd.f32 %v888, %v1159
        %v1161 = vpop.f32.mrb[0].mxu0
        %v1162 = vpop.f32.mrb[0].mxu0
        %v1163 = vpop.f32.mrb[0].mxu0
        %1164 = vdwg.mxu0
        %v1165 = vld [vmem:[#allocation3 + $0x2] sm:$0xff]
        %v1166 = vld [vmem:[#allocation3 + $0xa] sm:$0xff]
        %v1167 = vld [vmem:[#allocation3 + $0x12] sm:$0xff]
        %v1168 = vld [vmem:[#allocation3 + $0x1a] sm:$0xff]
        %v1169 = vld [vmem:[#allocation3 + $0x22] sm:$0xff]
        %v1170 = vld [vmem:[#allocation3 + $0x2a] sm:$0xff]
        %v1171 = vld [vmem:[#allocation3 + $0x32] sm:$0xff]
        %v1172 = vld [vmem:[#allocation3 + $0x3a] sm:$0xff]
        %v1173 = vld [vmem:[#allocation3 + $0x42] sm:$0xff]
        %v1174 = vld [vmem:[#allocation3 + $0x4a] sm:$0xff]
        %v1175 = vld [vmem:[#allocation3 + $0x52] sm:$0xff]
        %v1176 = vld [vmem:[#allocation3 + $0x5a] sm:$0xff]
        %v1177 = vld [vmem:[#allocation3 + $0x62] sm:$0xff]
        %v1178 = vld [vmem:[#allocation3 + $0x6a] sm:$0xff]
        %v1179 = vld [vmem:[#allocation3 + $0x72] sm:$0xff]
        %v1180 = vld [vmem:[#allocation3 + $0x7a] sm:$0xff]
        %v1181 = vld [vmem:[#allocation3 + $0x82] sm:$0xff]
        %v1182 = vld [vmem:[#allocation3 + $0x8a] sm:$0xff]
        %v1183 = vld [vmem:[#allocation3 + $0x92] sm:$0xff]
        %v1184 = vld [vmem:[#allocation3 + $0x9a] sm:$0xff]
        %v1185 = vld [vmem:[#allocation3 + $0xa2] sm:$0xff]
        %v1186 = vld [vmem:[#allocation3 + $0xaa] sm:$0xff]
        %v1187 = vld [vmem:[#allocation3 + $0xb2] sm:$0xff]
        %v1188 = vld [vmem:[#allocation3 + $0xba] sm:$0xff]
        %v1189 = vld [vmem:[#allocation3 + $0xc2] sm:$0xff]
        %v1190 = vld [vmem:[#allocation3 + $0xca] sm:$0xff]
        %v1191 = vld [vmem:[#allocation3 + $0xd2] sm:$0xff]
        %v1192 = vld [vmem:[#allocation3 + $0xda] sm:$0xff]
        %v1193 = vld [vmem:[#allocation3 + $0xe2] sm:$0xff]
        %v1194 = vld [vmem:[#allocation3 + $0xea] sm:$0xff]
        %v1195 = vld [vmem:[#allocation3 + $0xf2] sm:$0xff]
        %v1196 = vld [vmem:[#allocation3 + $0xfa] sm:$0xff]
        %v1197 = vld [vmem:[#allocation3 + $0x102] sm:$0xff]
        %v1198 = vld [vmem:[#allocation3 + $0x10a] sm:$0xff]
        %v1199 = vld [vmem:[#allocation3 + $0x112] sm:$0xff]
        %v1200 = vld [vmem:[#allocation3 + $0x11a] sm:$0xff]
        %v1201 = vld [vmem:[#allocation3 + $0x122] sm:$0xff]
        %v1202 = vld [vmem:[#allocation3 + $0x12a] sm:$0xff]
        %v1203 = vld [vmem:[#allocation3 + $0x132] sm:$0xff]
        %v1204 = vld [vmem:[#allocation3 + $0x13a] sm:$0xff]
        %v1205 = vld [vmem:[#allocation3 + $0x142] sm:$0xff]
        %v1206 = vld [vmem:[#allocation3 + $0x14a] sm:$0xff]
        %v1207 = vld [vmem:[#allocation3 + $0x152] sm:$0xff]
        %v1208 = vld [vmem:[#allocation3 + $0x15a] sm:$0xff]
        %v1209 = vld [vmem:[#allocation3 + $0x162] sm:$0xff]
        %v1210 = vld [vmem:[#allocation3 + $0x16a] sm:$0xff]
        %v1211 = vld [vmem:[#allocation3 + $0x172] sm:$0x3f]
        %v1212 = vpack.c.bf16 %v1166, %v1165
        %v1213 = vpack.c.bf16 %v1168, %v1167
        %v1214 = vpack.c.bf16 %v1170, %v1169
        %v1215 = vpack.c.bf16 %v1172, %v1171
        %v1216 = vpack.c.bf16 %v1174, %v1173
        %v1217 = vpack.c.bf16 %v1176, %v1175
        %v1218 = vpack.c.bf16 %v1178, %v1177
        %v1219 = vpack.c.bf16 %v1180, %v1179
        %v1220 = vpack.c.bf16 %v1182, %v1181
        %v1221 = vpack.c.bf16 %v1184, %v1183
        %v1222 = vpack.c.bf16 %v1186, %v1185
        %v1223 = vpack.c.bf16 %v1188, %v1187
        %v1224 = vpack.c.bf16 %v1190, %v1189
        %v1225 = vpack.c.bf16 %v1192, %v1191
        %v1226 = vpack.c.bf16 %v1194, %v1193
        %v1227 = vpack.c.bf16 %v1196, %v1195
        %v1228 = vpack.c.bf16 %v1198, %v1197
        %v1229 = vpack.c.bf16 %v1200, %v1199
        %v1230 = vpack.c.bf16 %v1202, %v1201
        %v1231 = vpack.c.bf16 %v1204, %v1203
        %v1232 = vpack.c.bf16 %v1206, %v1205
        %v1233 = vpack.c.bf16 %v1208, %v1207
        %v1234 = vpack.c.bf16 %v1210, %v1209
        %v1235 = vpack.c.bf16 %v1211, %v1211
        %s1236 = scalar_lea.vmem [#allocation6], 128
        %v1237 = vld [vmem:[%s1236] sm:$0xf]
        %v1238 = vld [vmem:[%s1236 + $0x4] sm:$0xf]
        %v1239 = vld [vmem:[%s1236 + $0x8] sm:$0xf]
        %v1240 = vld [vmem:[%s1236 + $0xc] sm:$0xf]
        %v1241 = vld [vmem:[%s1236 + $0x10] sm:$0xf]
        %v1242 = vld [vmem:[%s1236 + $0x14] sm:$0xf]
        %v1243 = vld [vmem:[%s1236 + $0x18] sm:$0xf]
        %v1244 = vld [vmem:[%s1236 + $0x1c] sm:$0xf]
        %v1245 = vld [vmem:[%s1236 + $0x20] sm:$0xf]
        %v1246 = vld [vmem:[%s1236 + $0x24] sm:$0xf]
        %v1247 = vld [vmem:[%s1236 + $0x28] sm:$0xf]
        %v1248 = vld [vmem:[%s1236 + $0x2c] sm:$0xf]
        %v1249 = vld [vmem:[%s1236 + $0x30] sm:$0xf]
        %v1250 = vld [vmem:[%s1236 + $0x34] sm:$0xf]
        %v1251 = vld [vmem:[%s1236 + $0x38] sm:$0xf]
        %v1252 = vld [vmem:[%s1236 + $0x3c] sm:$0xf]
        %v1269 = vunpack.c.l.b16 %v1237
        %v1270 = vunpack.c.l.b16 %v1238
        %v1271 = vunpack.c.l.b16 %v1239
        %v1272 = vunpack.c.l.b16 %v1240
        %v1273 = vunpack.c.l.b16 %v1241
        %v1274 = vunpack.c.l.b16 %v1242
        %v1275 = vunpack.c.l.b16 %v1243
        %v1276 = vunpack.c.l.b16 %v1244
        %v1277 = vunpack.c.l.b16 %v1245
        %v1278 = vunpack.c.l.b16 %v1246
        %v1279 = vunpack.c.l.b16 %v1247
        %v1280 = vunpack.c.l.b16 %v1248
        %v1281 = vunpack.c.l.b16 %v1249
        %v1282 = vunpack.c.l.b16 %v1250
        %v1283 = vunpack.c.l.b16 %v1251
        %v1284 = vunpack.c.l.b16 %v1252
        %v1285 = vpack.c.b16 %v1270, %v1269
        %v1286 = vpack.c.b16 %v1272, %v1271
        %v1287 = vpack.c.b16 %v1274, %v1273
        %v1288 = vpack.c.b16 %v1276, %v1275
        %v1289 = vpack.c.b16 %v1278, %v1277
        %v1290 = vpack.c.b16 %v1280, %v1279
        %v1291 = vpack.c.b16 %v1282, %v1281
        %v1292 = vpack.c.b16 %v1284, %v1283
        %1301 = vmatprep.subr.bf16.mxu0 0
        %1302 = vmatpush1.bf16.msra.mxu0 %v1285
        %1303 = vmatprep.subr.bf16.mxu0 0
        %1304 = vmatpush1.bf16.msra.mxu0 %v1286
        %1305 = vmatprep.subr.bf16.mxu0 0
        %1306 = vmatpush1.bf16.msra.mxu0 %v1287
        %1307 = vmatprep.subr.bf16.mxu0 0
        %1308 = vmatpush1.bf16.msra.mxu0 %v1288
        %1309 = vmatprep.subr.bf16.mxu0 0
        %1310 = vmatpush1.bf16.msra.mxu0 %v1289
        %1311 = vmatprep.subr.bf16.mxu0 0
        %1312 = vmatpush1.bf16.msra.mxu0 %v1290
        %1313 = vmatprep.subr.bf16.mxu0 0
        %1314 = vmatpush1.bf16.msra.mxu0 %v1291
        %1315 = vmatprep.subr.bf16.mxu0 0
        %1316 = vmatpush1.bf16.msra.mxu0 %v1292
        %1317 = vmatprep.subr.bf16.mxu0 0
        %1318 = vmatpush1.bf16.msra.mxu0 0
        %1319 = vmatprep.subr.bf16.mxu0 0
        %1320 = vmatpush1.bf16.msra.mxu0 0
        %1321 = vmatprep.subr.bf16.mxu0 0
        %1322 = vmatpush1.bf16.msra.mxu0 0
        %1323 = vmatprep.subr.bf16.mxu0 0
        %1324 = vmatpush1.bf16.msra.mxu0 0
        %1325 = vmatprep.subr.bf16.mxu0 0
        %1326 = vmatpush1.bf16.msra.mxu0 0
        %1327 = vmatprep.subr.bf16.mxu0 0
        %1328 = vmatpush1.bf16.msra.mxu0 0
        %1329 = vmatprep.subr.bf16.mxu0 0
        %1330 = vmatpush1.bf16.msra.mxu0 0
        %1331 = vmatprep.subr.bf16.mxu0 0
        %1332 = vmatpush1.bf16.msra.mxu0 0
        %1333 = vmatprep.mubr.bf16.mxu0 0
        %1334 = vmatmul.mubr.bf16.gmra.mrb[0].mxu0 %v1212
        %v1335 = vpop.f32.mrb[0].mxu0
        %v1336 = vadd.f32 0.0, %v1335
        %v1337 = vpop.f32.mrb[0].mxu0
        %v1338 = vpop.f32.mrb[0].mxu0
        %v1339 = vadd.f32 0.0, %v1338
        %v1340 = vpop.f32.mrb[0].mxu0
        %1341 = vmatprep.mubr.bf16.mxu0 0
        %1342 = vmatmul.mubr.bf16.gmra.mrb[0].mxu0 %v1213
        %v1343 = vpop.f32.mrb[0].mxu0
        %v1344 = vadd.f32 0.0, %v1343
        %v1345 = vpop.f32.mrb[0].mxu0
        %v1346 = vpop.f32.mrb[0].mxu0
        %v1347 = vadd.f32 0.0, %v1346
        %v1348 = vpop.f32.mrb[0].mxu0
        %1349 = vmatprep.mubr.bf16.mxu0 0
        %1350 = vmatmul.mubr.bf16.gmra.mrb[0].mxu0 %v1214
        %v1351 = vpop.f32.mrb[0].mxu0
        %v1352 = vadd.f32 0.0, %v1351
        %v1353 = vpop.f32.mrb[0].mxu0
        %v1354 = vpop.f32.mrb[0].mxu0
        %v1355 = vadd.f32 0.0, %v1354
        %v1356 = vpop.f32.mrb[0].mxu0
        %1357 = vmatprep.mubr.bf16.mxu0 0
        %1358 = vmatmul.mubr.bf16.gmra.mrb[0].mxu0 %v1215
        %v1359 = vpop.f32.mrb[0].mxu0
        %v1360 = vadd.f32 0.0, %v1359
        %v1361 = vpop.f32.mrb[0].mxu0
        %v1362 = vpop.f32.mrb[0].mxu0
        %v1363 = vadd.f32 0.0, %v1362
        %v1364 = vpop.f32.mrb[0].mxu0
        %1365 = vmatprep.mubr.bf16.mxu0 0
        %1366 = vmatmul.mubr.bf16.gmra.mrb[0].mxu0 %v1216
        %v1367 = vpop.f32.mrb[0].mxu0
        %v1368 = vadd.f32 0.0, %v1367
        %v1369 = vpop.f32.mrb[0].mxu0
        %v1370 = vpop.f32.mrb[0].mxu0
        %v1371 = vadd.f32 0.0, %v1370
        %v1372 = vpop.f32.mrb[0].mxu0
        %1373 = vmatprep.mubr.bf16.mxu0 0
        %1374 = vmatmul.mubr.bf16.gmra.mrb[0].mxu0 %v1217
        %v1375 = vpop.f32.mrb[0].mxu0
        %v1376 = vadd.f32 0.0, %v1375
        %v1377 = vpop.f32.mrb[0].mxu0
        %v1378 = vpop.f32.mrb[0].mxu0
        %v1379 = vadd.f32 0.0, %v1378
        %v1380 = vpop.f32.mrb[0].mxu0
        %1381 = vmatprep.mubr.bf16.mxu0 0
        %1382 = vmatmul.mubr.bf16.gmra.mrb[0].mxu0 %v1218
        %v1383 = vpop.f32.mrb[0].mxu0
        %v1384 = vadd.f32 0.0, %v1383
        %v1385 = vpop.f32.mrb[0].mxu0
        %v1386 = vpop.f32.mrb[0].mxu0
        %v1387 = vadd.f32 0.0, %v1386
        %v1388 = vpop.f32.mrb[0].mxu0
        %1389 = vmatprep.mubr.bf16.mxu0 0
        %1390 = vmatmul.mubr.bf16.gmra.mrb[0].mxu0 %v1219
        %v1391 = vpop.f32.mrb[0].mxu0
        %v1392 = vadd.f32 0.0, %v1391
        %v1393 = vpop.f32.mrb[0].mxu0
        %v1394 = vpop.f32.mrb[0].mxu0
        %v1395 = vadd.f32 0.0, %v1394
        %v1396 = vpop.f32.mrb[0].mxu0
        %1397 = vmatprep.mubr.bf16.mxu0 0
        %1398 = vmatmul.mubr.bf16.gmra.mrb[0].mxu0 %v1220
        %v1399 = vpop.f32.mrb[0].mxu0
        %v1400 = vadd.f32 0.0, %v1399
        %v1401 = vpop.f32.mrb[0].mxu0
        %v1402 = vpop.f32.mrb[0].mxu0
        %v1403 = vadd.f32 0.0, %v1402
        %v1404 = vpop.f32.mrb[0].mxu0
        %1405 = vmatprep.mubr.bf16.mxu0 0
        %1406 = vmatmul.mubr.bf16.gmra.mrb[0].mxu0 %v1221
        %v1407 = vpop.f32.mrb[0].mxu0
        %v1408 = vadd.f32 0.0, %v1407
        %v1409 = vpop.f32.mrb[0].mxu0
        %v1410 = vpop.f32.mrb[0].mxu0
        %v1411 = vadd.f32 0.0, %v1410
        %v1412 = vpop.f32.mrb[0].mxu0
        %1413 = vmatprep.mubr.bf16.mxu0 0
        %1414 = vmatmul.mubr.bf16.gmra.mrb[0].mxu0 %v1222
        %v1415 = vpop.f32.mrb[0].mxu0
        %v1416 = vadd.f32 0.0, %v1415
        %v1417 = vpop.f32.mrb[0].mxu0
        %v1418 = vpop.f32.mrb[0].mxu0
        %v1419 = vadd.f32 0.0, %v1418
        %v1420 = vpop.f32.mrb[0].mxu0
        %1421 = vmatprep.mubr.bf16.mxu0 0
        %1422 = vmatmul.mubr.bf16.gmra.mrb[0].mxu0 %v1223
        %v1423 = vpop.f32.mrb[0].mxu0
        %v1424 = vadd.f32 0.0, %v1423
        %v1425 = vpop.f32.mrb[0].mxu0
        %v1426 = vpop.f32.mrb[0].mxu0
        %v1427 = vadd.f32 0.0, %v1426
        %v1428 = vpop.f32.mrb[0].mxu0
        %1429 = vmatprep.mubr.bf16.mxu0 0
        %1430 = vmatmul.mubr.bf16.gmra.mrb[0].mxu0 %v1224
        %v1431 = vpop.f32.mrb[0].mxu0
        %v1432 = vadd.f32 0.0, %v1431
        %v1433 = vpop.f32.mrb[0].mxu0
        %v1434 = vpop.f32.mrb[0].mxu0
        %v1435 = vadd.f32 0.0, %v1434
        %v1436 = vpop.f32.mrb[0].mxu0
        %1437 = vmatprep.mubr.bf16.mxu0 0
        %1438 = vmatmul.mubr.bf16.gmra.mrb[0].mxu0 %v1225
        %v1439 = vpop.f32.mrb[0].mxu0
        %v1440 = vadd.f32 0.0, %v1439
        %v1441 = vpop.f32.mrb[0].mxu0
        %v1442 = vpop.f32.mrb[0].mxu0
        %v1443 = vadd.f32 0.0, %v1442
        %v1444 = vpop.f32.mrb[0].mxu0
        %1445 = vmatprep.mubr.bf16.mxu0 0
        %1446 = vmatmul.mubr.bf16.gmra.mrb[0].mxu0 %v1226
        %v1447 = vpop.f32.mrb[0].mxu0
        %v1448 = vadd.f32 0.0, %v1447
        %v1449 = vpop.f32.mrb[0].mxu0
        %v1450 = vpop.f32.mrb[0].mxu0
        %v1451 = vadd.f32 0.0, %v1450
        %v1452 = vpop.f32.mrb[0].mxu0
        %1453 = vmatprep.mubr.bf16.mxu0 0
        %1454 = vmatmul.mubr.bf16.gmra.mrb[0].mxu0 %v1227
        %v1455 = vpop.f32.mrb[0].mxu0
        %v1456 = vadd.f32 0.0, %v1455
        %v1457 = vpop.f32.mrb[0].mxu0
        %v1458 = vpop.f32.mrb[0].mxu0
        %v1459 = vadd.f32 0.0, %v1458
        %v1460 = vpop.f32.mrb[0].mxu0
        %1461 = vmatprep.mubr.bf16.mxu0 0
        %1462 = vmatmul.mubr.bf16.gmra.mrb[0].mxu0 %v1228
        %v1463 = vpop.f32.mrb[0].mxu0
        %v1464 = vadd.f32 0.0, %v1463
        %v1465 = vpop.f32.mrb[0].mxu0
        %v1466 = vpop.f32.mrb[0].mxu0
        %v1467 = vadd.f32 0.0, %v1466
        %v1468 = vpop.f32.mrb[0].mxu0
        %1469 = vmatprep.mubr.bf16.mxu0 0
        %1470 = vmatmul.mubr.bf16.gmra.mrb[0].mxu0 %v1229
        %v1471 = vpop.f32.mrb[0].mxu0
        %v1472 = vadd.f32 0.0, %v1471
        %v1473 = vpop.f32.mrb[0].mxu0
        %v1474 = vpop.f32.mrb[0].mxu0
        %v1475 = vadd.f32 0.0, %v1474
        %v1476 = vpop.f32.mrb[0].mxu0
        %1477 = vmatprep.mubr.bf16.mxu0 0
        %1478 = vmatmul.mubr.bf16.gmra.mrb[0].mxu0 %v1230
        %v1479 = vpop.f32.mrb[0].mxu0
        %v1480 = vadd.f32 0.0, %v1479
        %v1481 = vpop.f32.mrb[0].mxu0
        %v1482 = vpop.f32.mrb[0].mxu0
        %v1483 = vadd.f32 0.0, %v1482
        %v1484 = vpop.f32.mrb[0].mxu0
        %1485 = vmatprep.mubr.bf16.mxu0 0
        %1486 = vmatmul.mubr.bf16.gmra.mrb[0].mxu0 %v1231
        %v1487 = vpop.f32.mrb[0].mxu0
        %v1488 = vadd.f32 0.0, %v1487
        %v1489 = vpop.f32.mrb[0].mxu0
        %v1490 = vpop.f32.mrb[0].mxu0
        %v1491 = vadd.f32 0.0, %v1490
        %v1492 = vpop.f32.mrb[0].mxu0
        %1493 = vmatprep.mubr.bf16.mxu0 0
        %1494 = vmatmul.mubr.bf16.gmra.mrb[0].mxu0 %v1232
        %v1495 = vpop.f32.mrb[0].mxu0
        %v1496 = vadd.f32 0.0, %v1495
        %v1497 = vpop.f32.mrb[0].mxu0
        %v1498 = vpop.f32.mrb[0].mxu0
        %v1499 = vadd.f32 0.0, %v1498
        %v1500 = vpop.f32.mrb[0].mxu0
        %1501 = vmatprep.mubr.bf16.mxu0 0
        %1502 = vmatmul.mubr.bf16.gmra.mrb[0].mxu0 %v1233
        %v1503 = vpop.f32.mrb[0].mxu0
        %v1504 = vadd.f32 0.0, %v1503
        %v1505 = vpop.f32.mrb[0].mxu0
        %v1506 = vpop.f32.mrb[0].mxu0
        %v1507 = vadd.f32 0.0, %v1506
        %v1508 = vpop.f32.mrb[0].mxu0
        %1509 = vmatprep.mubr.bf16.mxu0 0
        %1510 = vmatmul.mubr.bf16.gmra.mrb[0].mxu0 %v1234
        %v1511 = vpop.f32.mrb[0].mxu0
        %v1512 = vadd.f32 0.0, %v1511
        %v1513 = vpop.f32.mrb[0].mxu0
        %v1514 = vpop.f32.mrb[0].mxu0
        %v1515 = vadd.f32 0.0, %v1514
        %v1516 = vpop.f32.mrb[0].mxu0
        %1517 = vmatprep.mubr.bf16.mxu0 0
        %1518 = vmatmul.mubr.bf16.gmra.mrb[0].mxu0 %v1235
        %v1519 = vpop.f32.mrb[0].mxu0
        %v1520 = vadd.f32 0.0, %v1519
        %v1521 = vpop.f32.mrb[0].mxu0
        %v1522 = vpop.f32.mrb[0].mxu0
        %v1523 = vpop.f32.mrb[0].mxu0
        %1524 = vdwg.mxu0
        %v1525 = vadd.f32 %v976, %v1336
        %v1526 = vadd.f32 %v979, %v1339
        %v1527 = vadd.f32 %v984, %v1344
        %v1528 = vadd.f32 %v987, %v1347
        %v1529 = vadd.f32 %v992, %v1352
        %v1530 = vadd.f32 %v995, %v1355
        %v1531 = vadd.f32 %v1000, %v1360
        %v1532 = vadd.f32 %v1003, %v1363
        %v1533 = vadd.f32 %v1008, %v1368
        %v1534 = vadd.f32 %v1011, %v1371
        %v1535 = vadd.f32 %v1016, %v1376
        %v1536 = vadd.f32 %v1019, %v1379
        %v1537 = vadd.f32 %v1024, %v1384
        %v1538 = vadd.f32 %v1027, %v1387
        %v1539 = vadd.f32 %v1032, %v1392
        %v1540 = vadd.f32 %v1035, %v1395
        %v1541 = vadd.f32 %v1040, %v1400
        %v1542 = vadd.f32 %v1043, %v1403
        %v1543 = vadd.f32 %v1048, %v1408
        %v1544 = vadd.f32 %v1051, %v1411
        %v1545 = vadd.f32 %v1056, %v1416
        %v1546 = vadd.f32 %v1059, %v1419
        %v1547 = vadd.f32 %v1064, %v1424
        %v1548 = vadd.f32 %v1067, %v1427
        %v1549 = vadd.f32 %v1072, %v1432
        %v1550 = vadd.f32 %v1075, %v1435
        %v1551 = vadd.f32 %v1080, %v1440
        %v1552 = vadd.f32 %v1083, %v1443
        %v1553 = vadd.f32 %v1088, %v1448
        %v1554 = vadd.f32 %v1091, %v1451
        %v1555 = vadd.f32 %v1096, %v1456
        %v1556 = vadd.f32 %v1099, %v1459
        %v1557 = vadd.f32 %v1104, %v1464
        %v1558 = vadd.f32 %v1107, %v1467
        %v1559 = vadd.f32 %v1112, %v1472
        %v1560 = vadd.f32 %v1115, %v1475
        %v1561 = vadd.f32 %v1120, %v1480
        %v1562 = vadd.f32 %v1123, %v1483
        %v1563 = vadd.f32 %v1128, %v1488
        %v1564 = vadd.f32 %v1131, %v1491
        %v1565 = vadd.f32 %v1136, %v1496
        %v1566 = vadd.f32 %v1139, %v1499
        %v1567 = vadd.f32 %v1144, %v1504
        %v1568 = vadd.f32 %v1147, %v1507
        %v1569 = vadd.f32 %v1152, %v1512
        %v1570 = vadd.f32 %v1155, %v1515
        %v1571 = vadd.f32 %v1160, %v1520
        %v1572 = vld [vmem:[#allocation3 + $0x12] sm:$0xff]
        %v1573 = vld [vmem:[#allocation3 + $0x1a] sm:$0xff]
        %v1574 = vld [vmem:[#allocation3 + $0x22] sm:$0xff]
        %v1575 = vld [vmem:[#allocation3 + $0x2a] sm:$0xff]
        %v1576 = vld [vmem:[#allocation3 + $0x32] sm:$0xff]
        %v1577 = vld [vmem:[#allocation3 + $0x3a] sm:$0xff]
        %v1578 = vld [vmem:[#allocation3 + $0x42] sm:$0xff]
        %v1579 = vld [vmem:[#allocation3 + $0x4a] sm:$0xff]
        %v1580 = vld [vmem:[#allocation3 + $0x52] sm:$0xff]
        %v1581 = vld [vmem:[#allocation3 + $0x5a] sm:$0xff]
        %v1582 = vld [vmem:[#allocation3 + $0x62] sm:$0xff]
        %v1583 = vld [vmem:[#allocation3 + $0x6a] sm:$0xff]
        %v1584 = vld [vmem:[#allocation3 + $0x72] sm:$0xff]
        %v1585 = vld [vmem:[#allocation3 + $0x7a] sm:$0xff]
        %v1586 = vld [vmem:[#allocation3 + $0x82] sm:$0xff]
        %v1587 = vld [vmem:[#allocation3 + $0x8a] sm:$0xff]
        %v1588 = vld [vmem:[#allocation3 + $0x92] sm:$0xff]
        %v1589 = vld [vmem:[#allocation3 + $0x9a] sm:$0xff]
        %v1590 = vld [vmem:[#allocation3 + $0xa2] sm:$0xff]
        %v1591 = vld [vmem:[#allocation3 + $0xaa] sm:$0xff]
        %v1592 = vld [vmem:[#allocation3 + $0xb2] sm:$0xff]
        %v1593 = vld [vmem:[#allocation3 + $0xba] sm:$0xff]
        %v1594 = vld [vmem:[#allocation3 + $0xc2] sm:$0xff]
        %v1595 = vld [vmem:[#allocation3 + $0xca] sm:$0xff]
        %v1596 = vld [vmem:[#allocation3 + $0xd2] sm:$0xff]
        %v1597 = vld [vmem:[#allocation3 + $0xda] sm:$0xff]
        %v1598 = vld [vmem:[#allocation3 + $0xe2] sm:$0xff]
        %v1599 = vld [vmem:[#allocation3 + $0xea] sm:$0xff]
        %v1600 = vld [vmem:[#allocation3 + $0xf2] sm:$0xff]
        %v1601 = vld [vmem:[#allocation3 + $0xfa] sm:$0xff]
        %v1602 = vld [vmem:[#allocation3 + $0x102] sm:$0xff]
        %v1603 = vld [vmem:[#allocation3 + $0x10a] sm:$0xff]
        %v1604 = vld [vmem:[#allocation3 + $0x112] sm:$0xff]
        %v1605 = vld [vmem:[#allocation3 + $0x11a] sm:$0xff]
        %v1606 = vld [vmem:[#allocation3 + $0x122] sm:$0xff]
        %v1607 = vld [vmem:[#allocation3 + $0x12a] sm:$0xff]
        %v1608 = vld [vmem:[#allocation3 + $0x132] sm:$0xff]
        %v1609 = vld [vmem:[#allocation3 + $0x13a] sm:$0xff]
        %v1610 = vld [vmem:[#allocation3 + $0x142] sm:$0xff]
        %v1611 = vld [vmem:[#allocation3 + $0x14a] sm:$0xff]
        %v1612 = vld [vmem:[#allocation3 + $0x152] sm:$0xff]
        %v1613 = vld [vmem:[#allocation3 + $0x15a] sm:$0xff]
        %v1614 = vld [vmem:[#allocation3 + $0x162] sm:$0xff]
        %v1615 = vld [vmem:[#allocation3 + $0x16a] sm:$0xff]
        %v1616 = vld [vmem:[#allocation3 + $0x172] sm:$0xff]
        %v1617 = vld [vmem:[#allocation3 + $0x17a] sm:$0xff]
        %v1618 = vld [vmem:[#allocation3 + $0x182] sm:$0x3f]
        %v1619 = vpack.c.bf16 %v1573, %v1572
        %v1620 = vpack.c.bf16 %v1575, %v1574
        %v1621 = vpack.c.bf16 %v1577, %v1576
        %v1622 = vpack.c.bf16 %v1579, %v1578
        %v1623 = vpack.c.bf16 %v1581, %v1580
        %v1624 = vpack.c.bf16 %v1583, %v1582
        %v1625 = vpack.c.bf16 %v1585, %v1584
        %v1626 = vpack.c.bf16 %v1587, %v1586
        %v1627 = vpack.c.bf16 %v1589, %v1588
        %v1628 = vpack.c.bf16 %v1591, %v1590
        %v1629 = vpack.c.bf16 %v1593, %v1592
        %v1630 = vpack.c.bf16 %v1595, %v1594
        %v1631 = vpack.c.bf16 %v1597, %v1596
        %v1632 = vpack.c.bf16 %v1599, %v1598
        %v1633 = vpack.c.bf16 %v1601, %v1600
        %v1634 = vpack.c.bf16 %v1603, %v1602
        %v1635 = vpack.c.bf16 %v1605, %v1604
        %v1636 = vpack.c.bf16 %v1607, %v1606
        %v1637 = vpack.c.bf16 %v1609, %v1608
        %v1638 = vpack.c.bf16 %v1611, %v1610
        %v1639 = vpack.c.bf16 %v1613, %v1612
        %v1640 = vpack.c.bf16 %v1615, %v1614
        %v1641 = vpack.c.bf16 %v1617, %v1616
        %v1642 = vpack.c.bf16 %v1618, %v1618
        %s1643 = scalar_lea.vmem [#allocation6], 192
        %v1644 = vld [vmem:[%s1643] sm:$0xf]
        %v1645 = vld [vmem:[%s1643 + $0x4] sm:$0xf]
        %v1646 = vld [vmem:[%s1643 + $0x8] sm:$0xf]
        %v1647 = vld [vmem:[%s1643 + $0xc] sm:$0xf]
        %v1648 = vld [vmem:[%s1643 + $0x10] sm:$0xf]
        %v1649 = vld [vmem:[%s1643 + $0x14] sm:$0xf]
        %v1650 = vld [vmem:[%s1643 + $0x18] sm:$0xf]
        %v1651 = vld [vmem:[%s1643 + $0x1c] sm:$0xf]
        %v1652 = vld [vmem:[%s1643 + $0x20] sm:$0xf]
        %v1653 = vld [vmem:[%s1643 + $0x24] sm:$0xf]
        %v1654 = vld [vmem:[%s1643 + $0x28] sm:$0xf]
        %v1655 = vld [vmem:[%s1643 + $0x2c] sm:$0xf]
        %v1656 = vld [vmem:[%s1643 + $0x30] sm:$0xf]
        %v1657 = vld [vmem:[%s1643 + $0x34] sm:$0xf]
        %v1658 = vld [vmem:[%s1643 + $0x38] sm:$0xf]
        %v1659 = vld [vmem:[%s1643 + $0x3c] sm:$0xf]
        %v1676 = vunpack.c.l.b16 %v1644
        %v1677 = vunpack.c.l.b16 %v1645
        %v1678 = vunpack.c.l.b16 %v1646
        %v1679 = vunpack.c.l.b16 %v1647
        %v1680 = vunpack.c.l.b16 %v1648
        %v1681 = vunpack.c.l.b16 %v1649
        %v1682 = vunpack.c.l.b16 %v1650
        %v1683 = vunpack.c.l.b16 %v1651
        %v1684 = vunpack.c.l.b16 %v1652
        %v1685 = vunpack.c.l.b16 %v1653
        %v1686 = vunpack.c.l.b16 %v1654
        %v1687 = vunpack.c.l.b16 %v1655
        %v1688 = vunpack.c.l.b16 %v1656
        %v1689 = vunpack.c.l.b16 %v1657
        %v1690 = vunpack.c.l.b16 %v1658
        %v1691 = vunpack.c.l.b16 %v1659
        %v1692 = vpack.c.b16 %v1677, %v1676
        %v1693 = vpack.c.b16 %v1679, %v1678
        %v1694 = vpack.c.b16 %v1681, %v1680
        %v1695 = vpack.c.b16 %v1683, %v1682
        %v1696 = vpack.c.b16 %v1685, %v1684
        %v1697 = vpack.c.b16 %v1687, %v1686
        %v1698 = vpack.c.b16 %v1689, %v1688
        %v1699 = vpack.c.b16 %v1691, %v1690
        %1708 = vmatprep.subr.bf16.mxu0 0
        %1709 = vmatpush1.bf16.msra.mxu0 %v1692
        %1710 = vmatprep.subr.bf16.mxu0 0
        %1711 = vmatpush1.bf16.msra.mxu0 %v1693
        %1712 = vmatprep.subr.bf16.mxu0 0
        %1713 = vmatpush1.bf16.msra.mxu0 %v1694
        %1714 = vmatprep.subr.bf16.mxu0 0
        %1715 = vmatpush1.bf16.msra.mxu0 %v1695
        %1716 = vmatprep.subr.bf16.mxu0 0
        %1717 = vmatpush1.bf16.msra.mxu0 %v1696
        %1718 = vmatprep.subr.bf16.mxu0 0
        %1719 = vmatpush1.bf16.msra.mxu0 %v1697
        %1720 = vmatprep.subr.bf16.mxu0 0
        %1721 = vmatpush1.bf16.msra.mxu0 %v1698
        %1722 = vmatprep.subr.bf16.mxu0 0
        %1723 = vmatpush1.bf16.msra.mxu0 %v1699
        %1724 = vmatprep.subr.bf16.mxu0 0
        %1725 = vmatpush1.bf16.msra.mxu0 0
        %1726 = vmatprep.subr.bf16.mxu0 0
        %1727 = vmatpush1.bf16.msra.mxu0 0
        %1728 = vmatprep.subr.bf16.mxu0 0
        %1729 = vmatpush1.bf16.msra.mxu0 0
        %1730 = vmatprep.subr.bf16.mxu0 0
        %1731 = vmatpush1.bf16.msra.mxu0 0
        %1732 = vmatprep.subr.bf16.mxu0 0
        %1733 = vmatpush1.bf16.msra.mxu0 0
        %1734 = vmatprep.subr.bf16.mxu0 0
        %1735 = vmatpush1.bf16.msra.mxu0 0
        %1736 = vmatprep.subr.bf16.mxu0 0
        %1737 = vmatpush1.bf16.msra.mxu0 0
        %1738 = vmatprep.subr.bf16.mxu0 0
        %1739 = vmatpush1.bf16.msra.mxu0 0
        %1740 = vmatprep.mubr.bf16.mxu0 0
        %1741 = vmatmul.mubr.bf16.gmra.mrb[0].mxu0 %v1619
        %v1742 = vpop.f32.mrb[0].mxu0
        %v1743 = vadd.f32 0.0, %v1742
        %v1744 = vpop.f32.mrb[0].mxu0
        %v1745 = vpop.f32.mrb[0].mxu0
        %v1746 = vadd.f32 0.0, %v1745
        %v1747 = vpop.f32.mrb[0].mxu0
        %1748 = vmatprep.mubr.bf16.mxu0 0
        %1749 = vmatmul.mubr.bf16.gmra.mrb[0].mxu0 %v1620
        %v1750 = vpop.f32.mrb[0].mxu0
        %v1751 = vadd.f32 0.0, %v1750
        %v1752 = vpop.f32.mrb[0].mxu0
        %v1753 = vpop.f32.mrb[0].mxu0
        %v1754 = vadd.f32 0.0, %v1753
        %v1755 = vpop.f32.mrb[0].mxu0
        %1756 = vmatprep.mubr.bf16.mxu0 0
        %1757 = vmatmul.mubr.bf16.gmra.mrb[0].mxu0 %v1621
        %v1758 = vpop.f32.mrb[0].mxu0
        %v1759 = vadd.f32 0.0, %v1758
        %v1760 = vpop.f32.mrb[0].mxu0
        %v1761 = vpop.f32.mrb[0].mxu0
        %v1762 = vadd.f32 0.0, %v1761
        %v1763 = vpop.f32.mrb[0].mxu0
        %1764 = vmatprep.mubr.bf16.mxu0 0
        %1765 = vmatmul.mubr.bf16.gmra.mrb[0].mxu0 %v1622
        %v1766 = vpop.f32.mrb[0].mxu0
        %v1767 = vadd.f32 0.0, %v1766
        %v1768 = vpop.f32.mrb[0].mxu0
        %v1769 = vpop.f32.mrb[0].mxu0
        %v1770 = vadd.f32 0.0, %v1769
        %v1771 = vpop.f32.mrb[0].mxu0
        %1772 = vmatprep.mubr.bf16.mxu0 0
        %1773 = vmatmul.mubr.bf16.gmra.mrb[0].mxu0 %v1623
        %v1774 = vpop.f32.mrb[0].mxu0
        %v1775 = vadd.f32 0.0, %v1774
        %v1776 = vpop.f32.mrb[0].mxu0
        %v1777 = vpop.f32.mrb[0].mxu0
        %v1778 = vadd.f32 0.0, %v1777
        %v1779 = vpop.f32.mrb[0].mxu0
        %1780 = vmatprep.mubr.bf16.mxu0 0
        %1781 = vmatmul.mubr.bf16.gmra.mrb[0].mxu0 %v1624
        %v1782 = vpop.f32.mrb[0].mxu0
        %v1783 = vadd.f32 0.0, %v1782
        %v1784 = vpop.f32.mrb[0].mxu0
        %v1785 = vpop.f32.mrb[0].mxu0
        %v1786 = vadd.f32 0.0, %v1785
        %v1787 = vpop.f32.mrb[0].mxu0
        %1788 = vmatprep.mubr.bf16.mxu0 0
        %1789 = vmatmul.mubr.bf16.gmra.mrb[0].mxu0 %v1625
        %v1790 = vpop.f32.mrb[0].mxu0
        %v1791 = vadd.f32 0.0, %v1790
        %v1792 = vpop.f32.mrb[0].mxu0
        %v1793 = vpop.f32.mrb[0].mxu0
        %v1794 = vadd.f32 0.0, %v1793
        %v1795 = vpop.f32.mrb[0].mxu0
        %1796 = vmatprep.mubr.bf16.mxu0 0
        %1797 = vmatmul.mubr.bf16.gmra.mrb[0].mxu0 %v1626
        %v1798 = vpop.f32.mrb[0].mxu0
        %v1799 = vadd.f32 0.0, %v1798
        %v1800 = vpop.f32.mrb[0].mxu0
        %v1801 = vpop.f32.mrb[0].mxu0
        %v1802 = vadd.f32 0.0, %v1801
        %v1803 = vpop.f32.mrb[0].mxu0
        %1804 = vmatprep.mubr.bf16.mxu0 0
        %1805 = vmatmul.mubr.bf16.gmra.mrb[0].mxu0 %v1627
        %v1806 = vpop.f32.mrb[0].mxu0
        %v1807 = vadd.f32 0.0, %v1806
        %v1808 = vpop.f32.mrb[0].mxu0
        %v1809 = vpop.f32.mrb[0].mxu0
        %v1810 = vadd.f32 0.0, %v1809
        %v1811 = vpop.f32.mrb[0].mxu0
        %1812 = vmatprep.mubr.bf16.mxu0 0
        %1813 = vmatmul.mubr.bf16.gmra.mrb[0].mxu0 %v1628
        %v1814 = vpop.f32.mrb[0].mxu0
        %v1815 = vadd.f32 0.0, %v1814
        %v1816 = vpop.f32.mrb[0].mxu0
        %v1817 = vpop.f32.mrb[0].mxu0
        %v1818 = vadd.f32 0.0, %v1817
        %v1819 = vpop.f32.mrb[0].mxu0
        %1820 = vmatprep.mubr.bf16.mxu0 0
        %1821 = vmatmul.mubr.bf16.gmra.mrb[0].mxu0 %v1629
        %v1822 = vpop.f32.mrb[0].mxu0
        %v1823 = vadd.f32 0.0, %v1822
        %v1824 = vpop.f32.mrb[0].mxu0
        %v1825 = vpop.f32.mrb[0].mxu0
        %v1826 = vadd.f32 0.0, %v1825
        %v1827 = vpop.f32.mrb[0].mxu0
        %1828 = vmatprep.mubr.bf16.mxu0 0
        %1829 = vmatmul.mubr.bf16.gmra.mrb[0].mxu0 %v1630
        %v1830 = vpop.f32.mrb[0].mxu0
        %v1831 = vadd.f32 0.0, %v1830
        %v1832 = vpop.f32.mrb[0].mxu0
        %v1833 = vpop.f32.mrb[0].mxu0
        %v1834 = vadd.f32 0.0, %v1833
        %v1835 = vpop.f32.mrb[0].mxu0
        %1836 = vmatprep.mubr.bf16.mxu0 0
        %1837 = vmatmul.mubr.bf16.gmra.mrb[0].mxu0 %v1631
        %v1838 = vpop.f32.mrb[0].mxu0
        %v1839 = vadd.f32 0.0, %v1838
        %v1840 = vpop.f32.mrb[0].mxu0
        %v1841 = vpop.f32.mrb[0].mxu0
        %v1842 = vadd.f32 0.0, %v1841
        %v1843 = vpop.f32.mrb[0].mxu0
        %1844 = vmatprep.mubr.bf16.mxu0 0
        %1845 = vmatmul.mubr.bf16.gmra.mrb[0].mxu0 %v1632
        %v1846 = vpop.f32.mrb[0].mxu0
        %v1847 = vadd.f32 0.0, %v1846
        %v1848 = vpop.f32.mrb[0].mxu0
        %v1849 = vpop.f32.mrb[0].mxu0
        %v1850 = vadd.f32 0.0, %v1849
        %v1851 = vpop.f32.mrb[0].mxu0
        %1852 = vmatprep.mubr.bf16.mxu0 0
        %1853 = vmatmul.mubr.bf16.gmra.mrb[0].mxu0 %v1633
        %v1854 = vpop.f32.mrb[0].mxu0
        %v1855 = vadd.f32 0.0, %v1854
        %v1856 = vpop.f32.mrb[0].mxu0
        %v1857 = vpop.f32.mrb[0].mxu0
        %v1858 = vadd.f32 0.0, %v1857
        %v1859 = vpop.f32.mrb[0].mxu0
        %1860 = vmatprep.mubr.bf16.mxu0 0
        %1861 = vmatmul.mubr.bf16.gmra.mrb[0].mxu0 %v1634
        %v1862 = vpop.f32.mrb[0].mxu0
        %v1863 = vadd.f32 0.0, %v1862
        %v1864 = vpop.f32.mrb[0].mxu0
        %v1865 = vpop.f32.mrb[0].mxu0
        %v1866 = vadd.f32 0.0, %v1865
        %v1867 = vpop.f32.mrb[0].mxu0
        %1868 = vmatprep.mubr.bf16.mxu0 0
        %1869 = vmatmul.mubr.bf16.gmra.mrb[0].mxu0 %v1635
        %v1870 = vpop.f32.mrb[0].mxu0
        %v1871 = vadd.f32 0.0, %v1870
        %v1872 = vpop.f32.mrb[0].mxu0
        %v1873 = vpop.f32.mrb[0].mxu0
        %v1874 = vadd.f32 0.0, %v1873
        %v1875 = vpop.f32.mrb[0].mxu0
        %1876 = vmatprep.mubr.bf16.mxu0 0
        %1877 = vmatmul.mubr.bf16.gmra.mrb[0].mxu0 %v1636
        %v1878 = vpop.f32.mrb[0].mxu0
        %v1879 = vadd.f32 0.0, %v1878
        %v1880 = vpop.f32.mrb[0].mxu0
        %v1881 = vpop.f32.mrb[0].mxu0
        %v1882 = vadd.f32 0.0, %v1881
        %v1883 = vpop.f32.mrb[0].mxu0
        %1884 = vmatprep.mubr.bf16.mxu0 0
        %1885 = vmatmul.mubr.bf16.gmra.mrb[0].mxu0 %v1637
        %v1886 = vpop.f32.mrb[0].mxu0
        %v1887 = vadd.f32 0.0, %v1886
        %v1888 = vpop.f32.mrb[0].mxu0
        %v1889 = vpop.f32.mrb[0].mxu0
        %v1890 = vadd.f32 0.0, %v1889
        %v1891 = vpop.f32.mrb[0].mxu0
        %1892 = vmatprep.mubr.bf16.mxu0 0
        %1893 = vmatmul.mubr.bf16.gmra.mrb[0].mxu0 %v1638
        %v1894 = vpop.f32.mrb[0].mxu0
        %v1895 = vadd.f32 0.0, %v1894
        %v1896 = vpop.f32.mrb[0].mxu0
        %v1897 = vpop.f32.mrb[0].mxu0
        %v1898 = vadd.f32 0.0, %v1897
        %v1899 = vpop.f32.mrb[0].mxu0
        %1900 = vmatprep.mubr.bf16.mxu0 0
        %1901 = vmatmul.mubr.bf16.gmra.mrb[0].mxu0 %v1639
        %v1902 = vpop.f32.mrb[0].mxu0
        %v1903 = vadd.f32 0.0, %v1902
        %v1904 = vpop.f32.mrb[0].mxu0
        %v1905 = vpop.f32.mrb[0].mxu0
        %v1906 = vadd.f32 0.0, %v1905
        %v1907 = vpop.f32.mrb[0].mxu0
        %1908 = vmatprep.mubr.bf16.mxu0 0
        %1909 = vmatmul.mubr.bf16.gmra.mrb[0].mxu0 %v1640
        %v1910 = vpop.f32.mrb[0].mxu0
        %v1911 = vadd.f32 0.0, %v1910
        %v1912 = vpop.f32.mrb[0].mxu0
        %v1913 = vpop.f32.mrb[0].mxu0
        %v1914 = vadd.f32 0.0, %v1913
        %v1915 = vpop.f32.mrb[0].mxu0
        %1916 = vmatprep.mubr.bf16.mxu0 0
        %1917 = vmatmul.mubr.bf16.gmra.mrb[0].mxu0 %v1641
        %v1918 = vpop.f32.mrb[0].mxu0
        %v1919 = vadd.f32 0.0, %v1918
        %v1920 = vpop.f32.mrb[0].mxu0
        %v1921 = vpop.f32.mrb[0].mxu0
        %v1922 = vadd.f32 0.0, %v1921
        %v1923 = vpop.f32.mrb[0].mxu0
        %1924 = vmatprep.mubr.bf16.mxu0 0
        %1925 = vmatmul.mubr.bf16.gmra.mrb[0].mxu0 %v1642
        %v1926 = vpop.f32.mrb[0].mxu0
        %v1927 = vadd.f32 0.0, %v1926
        %v1928 = vpop.f32.mrb[0].mxu0
        %v1929 = vpop.f32.mrb[0].mxu0
        %v1930 = vpop.f32.mrb[0].mxu0
        %1931 = vdwg.mxu0
        %v1932 = vadd.f32 %v1525, %v1743
        %v1933 = vadd.f32 %v1526, %v1746
        %v1934 = vadd.f32 %v1527, %v1751
        %v1935 = vadd.f32 %v1528, %v1754
        %v1936 = vadd.f32 %v1529, %v1759
        %v1937 = vadd.f32 %v1530, %v1762
        %v1938 = vadd.f32 %v1531, %v1767
        %v1939 = vadd.f32 %v1532, %v1770
        %v1940 = vadd.f32 %v1533, %v1775
        %v1941 = vadd.f32 %v1534, %v1778
        %v1942 = vadd.f32 %v1535, %v1783
        %v1943 = vadd.f32 %v1536, %v1786
        %v1944 = vadd.f32 %v1537, %v1791
        %v1945 = vadd.f32 %v1538, %v1794
        %v1946 = vadd.f32 %v1539, %v1799
        %v1947 = vadd.f32 %v1540, %v1802
        %v1948 = vadd.f32 %v1541, %v1807
        %v1949 = vadd.f32 %v1542, %v1810
        %v1950 = vadd.f32 %v1543, %v1815
        %v1951 = vadd.f32 %v1544, %v1818
        %v1952 = vadd.f32 %v1545, %v1823
        %v1953 = vadd.f32 %v1546, %v1826
        %v1954 = vadd.f32 %v1547, %v1831
        %v1955 = vadd.f32 %v1548, %v1834
        %v1956 = vadd.f32 %v1549, %v1839
        %v1957 = vadd.f32 %v1550, %v1842
        %v1958 = vadd.f32 %v1551, %v1847
        %v1959 = vadd.f32 %v1552, %v1850
        %v1960 = vadd.f32 %v1553, %v1855
        %v1961 = vadd.f32 %v1554, %v1858
        %v1962 = vadd.f32 %v1555, %v1863
        %v1963 = vadd.f32 %v1556, %v1866
        %v1964 = vadd.f32 %v1557, %v1871
        %v1965 = vadd.f32 %v1558, %v1874
        %v1966 = vadd.f32 %v1559, %v1879
        %v1967 = vadd.f32 %v1560, %v1882
        %v1968 = vadd.f32 %v1561, %v1887
        %v1969 = vadd.f32 %v1562, %v1890
        %v1970 = vadd.f32 %v1563, %v1895
        %v1971 = vadd.f32 %v1564, %v1898
        %v1972 = vadd.f32 %v1565, %v1903
        %v1973 = vadd.f32 %v1566, %v1906
        %v1974 = vadd.f32 %v1567, %v1911
        %v1975 = vadd.f32 %v1568, %v1914
        %v1976 = vadd.f32 %v1569, %v1919
        %v1977 = vadd.f32 %v1570, %v1922
        %v1978 = vadd.f32 %v1571, %v1927
        %v1979 = vld [vmem:[#allocation3 + $0x13] sm:$0xff]
        %v1980 = vld [vmem:[#allocation3 + $0x1b] sm:$0xff]
        %v1981 = vld [vmem:[#allocation3 + $0x23] sm:$0xff]
        %v1982 = vld [vmem:[#allocation3 + $0x2b] sm:$0xff]
        %v1983 = vld [vmem:[#allocation3 + $0x33] sm:$0xff]
        %v1984 = vld [vmem:[#allocation3 + $0x3b] sm:$0xff]
        %v1985 = vld [vmem:[#allocation3 + $0x43] sm:$0xff]
        %v1986 = vld [vmem:[#allocation3 + $0x4b] sm:$0xff]
        %v1987 = vld [vmem:[#allocation3 + $0x53] sm:$0xff]
        %v1988 = vld [vmem:[#allocation3 + $0x5b] sm:$0xff]
        %v1989 = vld [vmem:[#allocation3 + $0x63] sm:$0xff]
        %v1990 = vld [vmem:[#allocation3 + $0x6b] sm:$0xff]
        %v1991 = vld [vmem:[#allocation3 + $0x73] sm:$0xff]
        %v1992 = vld [vmem:[#allocation3 + $0x7b] sm:$0xff]
        %v1993 = vld [vmem:[#allocation3 + $0x83] sm:$0xff]
        %v1994 = vld [vmem:[#allocation3 + $0x8b] sm:$0xff]
        %v1995 = vld [vmem:[#allocation3 + $0x93] sm:$0xff]
        %v1996 = vld [vmem:[#allocation3 + $0x9b] sm:$0xff]
        %v1997 = vld [vmem:[#allocation3 + $0xa3] sm:$0xff]
        %v1998 = vld [vmem:[#allocation3 + $0xab] sm:$0xff]
        %v1999 = vld [vmem:[#allocation3 + $0xb3] sm:$0xff]
        %v2000 = vld [vmem:[#allocation3 + $0xbb] sm:$0xff]
        %v2001 = vld [vmem:[#allocation3 + $0xc3] sm:$0xff]
        %v2002 = vld [vmem:[#allocation3 + $0xcb] sm:$0xff]
        %v2003 = vld [vmem:[#allocation3 + $0xd3] sm:$0xff]
        %v2004 = vld [vmem:[#allocation3 + $0xdb] sm:$0xff]
        %v2005 = vld [vmem:[#allocation3 + $0xe3] sm:$0xff]
        %v2006 = vld [vmem:[#allocation3 + $0xeb] sm:$0xff]
        %v2007 = vld [vmem:[#allocation3 + $0xf3] sm:$0xff]
        %v2008 = vld [vmem:[#allocation3 + $0xfb] sm:$0xff]
        %v2009 = vld [vmem:[#allocation3 + $0x103] sm:$0xff]
        %v2010 = vld [vmem:[#allocation3 + $0x10b] sm:$0xff]
        %v2011 = vld [vmem:[#allocation3 + $0x113] sm:$0xff]
        %v2012 = vld [vmem:[#allocation3 + $0x11b] sm:$0xff]
        %v2013 = vld [vmem:[#allocation3 + $0x123] sm:$0xff]
        %v2014 = vld [vmem:[#allocation3 + $0x12b] sm:$0xff]
        %v2015 = vld [vmem:[#allocation3 + $0x133] sm:$0xff]
        %v2016 = vld [vmem:[#allocation3 + $0x13b] sm:$0xff]
        %v2017 = vld [vmem:[#allocation3 + $0x143] sm:$0xff]
        %v2018 = vld [vmem:[#allocation3 + $0x14b] sm:$0xff]
        %v2019 = vld [vmem:[#allocation3 + $0x153] sm:$0xff]
        %v2020 = vld [vmem:[#allocation3 + $0x15b] sm:$0xff]
        %v2021 = vld [vmem:[#allocation3 + $0x163] sm:$0xff]
        %v2022 = vld [vmem:[#allocation3 + $0x16b] sm:$0xff]
        %v2023 = vld [vmem:[#allocation3 + $0x173] sm:$0xff]
        %v2024 = vld [vmem:[#allocation3 + $0x17b] sm:$0xff]
        %v2025 = vld [vmem:[#allocation3 + $0x183] sm:$0x3f]
        %v2026 = vpack.c.bf16 %v1980, %v1979
        %v2027 = vpack.c.bf16 %v1982, %v1981
        %v2028 = vpack.c.bf16 %v1984, %v1983
        %v2029 = vpack.c.bf16 %v1986, %v1985
        %v2030 = vpack.c.bf16 %v1988, %v1987
        %v2031 = vpack.c.bf16 %v1990, %v1989
        %v2032 = vpack.c.bf16 %v1992, %v1991
        %v2033 = vpack.c.bf16 %v1994, %v1993
        %v2034 = vpack.c.bf16 %v1996, %v1995
        %v2035 = vpack.c.bf16 %v1998, %v1997
        %v2036 = vpack.c.bf16 %v2000, %v1999
        %v2037 = vpack.c.bf16 %v2002, %v2001
        %v2038 = vpack.c.bf16 %v2004, %v2003
        %v2039 = vpack.c.bf16 %v2006, %v2005
        %v2040 = vpack.c.bf16 %v2008, %v2007
        %v2041 = vpack.c.bf16 %v2010, %v2009
        %v2042 = vpack.c.bf16 %v2012, %v2011
        %v2043 = vpack.c.bf16 %v2014, %v2013
        %v2044 = vpack.c.bf16 %v2016, %v2015
        %v2045 = vpack.c.bf16 %v2018, %v2017
        %v2046 = vpack.c.bf16 %v2020, %v2019
        %v2047 = vpack.c.bf16 %v2022, %v2021
        %v2048 = vpack.c.bf16 %v2024, %v2023
        %v2049 = vpack.c.bf16 %v2025, %v2025
        %s2050 = scalar_lea.vmem [#allocation6], 256
        %v2051 = vld [vmem:[%s2050] sm:$0xf]
        %v2052 = vld [vmem:[%s2050 + $0x4] sm:$0xf]
        %v2053 = vld [vmem:[%s2050 + $0x8] sm:$0xf]
        %v2054 = vld [vmem:[%s2050 + $0xc] sm:$0xf]
        %v2055 = vld [vmem:[%s2050 + $0x10] sm:$0xf]
        %v2056 = vld [vmem:[%s2050 + $0x14] sm:$0xf]
        %v2057 = vld [vmem:[%s2050 + $0x18] sm:$0xf]
        %v2058 = vld [vmem:[%s2050 + $0x1c] sm:$0xf]
        %v2059 = vld [vmem:[%s2050 + $0x20] sm:$0xf]
        %v2060 = vld [vmem:[%s2050 + $0x24] sm:$0xf]
        %v2061 = vld [vmem:[%s2050 + $0x28] sm:$0xf]
        %v2062 = vld [vmem:[%s2050 + $0x2c] sm:$0xf]
        %v2063 = vld [vmem:[%s2050 + $0x30] sm:$0xf]
        %v2064 = vld [vmem:[%s2050 + $0x34] sm:$0xf]
        %v2065 = vld [vmem:[%s2050 + $0x38] sm:$0xf]
        %v2066 = vld [vmem:[%s2050 + $0x3c] sm:$0xf]
        %v2083 = vunpack.c.l.b16 %v2051
        %v2084 = vunpack.c.l.b16 %v2052
        %v2085 = vunpack.c.l.b16 %v2053
        %v2086 = vunpack.c.l.b16 %v2054
        %v2087 = vunpack.c.l.b16 %v2055
        %v2088 = vunpack.c.l.b16 %v2056
        %v2089 = vunpack.c.l.b16 %v2057
        %v2090 = vunpack.c.l.b16 %v2058
        %v2091 = vunpack.c.l.b16 %v2059
        %v2092 = vunpack.c.l.b16 %v2060
        %v2093 = vunpack.c.l.b16 %v2061
        %v2094 = vunpack.c.l.b16 %v2062
        %v2095 = vunpack.c.l.b16 %v2063
        %v2096 = vunpack.c.l.b16 %v2064
        %v2097 = vunpack.c.l.b16 %v2065
        %v2098 = vunpack.c.l.b16 %v2066
        %v2099 = vpack.c.b16 %v2084, %v2083
        %v2100 = vpack.c.b16 %v2086, %v2085
        %v2101 = vpack.c.b16 %v2088, %v2087
        %v2102 = vpack.c.b16 %v2090, %v2089
        %v2103 = vpack.c.b16 %v2092, %v2091
        %v2104 = vpack.c.b16 %v2094, %v2093
        %v2105 = vpack.c.b16 %v2096, %v2095
        %v2106 = vpack.c.b16 %v2098, %v2097
        %2115 = vmatprep.subr.bf16.mxu0 0
        %2116 = vmatpush1.bf16.msra.mxu0 %v2099
        %2117 = vmatprep.subr.bf16.mxu0 0
        %2118 = vmatpush1.bf16.msra.mxu0 %v2100
        %2119 = vmatprep.subr.bf16.mxu0 0
        %2120 = vmatpush1.bf16.msra.mxu0 %v2101
        %2121 = vmatprep.subr.bf16.mxu0 0
        %2122 = vmatpush1.bf16.msra.mxu0 %v2102
        %2123 = vmatprep.subr.bf16.mxu0 0
        %2124 = vmatpush1.bf16.msra.mxu0 %v2103
        %2125 = vmatprep.subr.bf16.mxu0 0
        %2126 = vmatpush1.bf16.msra.mxu0 %v2104
        %2127 = vmatprep.subr.bf16.mxu0 0
        %2128 = vmatpush1.bf16.msra.mxu0 %v2105
        %2129 = vmatprep.subr.bf16.mxu0 0
        %2130 = vmatpush1.bf16.msra.mxu0 %v2106
        %2131 = vmatprep.subr.bf16.mxu0 0
        %2132 = vmatpush1.bf16.msra.mxu0 0
        %2133 = vmatprep.subr.bf16.mxu0 0
        %2134 = vmatpush1.bf16.msra.mxu0 0
        %2135 = vmatprep.subr.bf16.mxu0 0
        %2136 = vmatpush1.bf16.msra.mxu0 0
        %2137 = vmatprep.subr.bf16.mxu0 0
        %2138 = vmatpush1.bf16.msra.mxu0 0
        %2139 = vmatprep.subr.bf16.mxu0 0
        %2140 = vmatpush1.bf16.msra.mxu0 0
        %2141 = vmatprep.subr.bf16.mxu0 0
        %2142 = vmatpush1.bf16.msra.mxu0 0
        %2143 = vmatprep.subr.bf16.mxu0 0
        %2144 = vmatpush1.bf16.msra.mxu0 0
        %2145 = vmatprep.subr.bf16.mxu0 0
        %2146 = vmatpush1.bf16.msra.mxu0 0
        %2147 = vmatprep.mubr.bf16.mxu0 0
        %2148 = vmatmul.mubr.bf16.gmra.mrb[0].mxu0 %v2026
        %v2149 = vpop.f32.mrb[0].mxu0
        %v2150 = vadd.f32 0.0, %v2149
        %v2151 = vpop.f32.mrb[0].mxu0
        %v2152 = vpop.f32.mrb[0].mxu0
        %v2153 = vadd.f32 0.0, %v2152
        %v2154 = vpop.f32.mrb[0].mxu0
        %2155 = vmatprep.mubr.bf16.mxu0 0
        %2156 = vmatmul.mubr.bf16.gmra.mrb[0].mxu0 %v2027
        %v2157 = vpop.f32.mrb[0].mxu0
        %v2158 = vadd.f32 0.0, %v2157
        %v2159 = vpop.f32.mrb[0].mxu0
        %v2160 = vpop.f32.mrb[0].mxu0
        %v2161 = vadd.f32 0.0, %v2160
        %v2162 = vpop.f32.mrb[0].mxu0
        %2163 = vmatprep.mubr.bf16.mxu0 0
        %2164 = vmatmul.mubr.bf16.gmra.mrb[0].mxu0 %v2028
        %v2165 = vpop.f32.mrb[0].mxu0
        %v2166 = vadd.f32 0.0, %v2165
        %v2167 = vpop.f32.mrb[0].mxu0
        %v2168 = vpop.f32.mrb[0].mxu0
        %v2169 = vadd.f32 0.0, %v2168
        %v2170 = vpop.f32.mrb[0].mxu0
        %2171 = vmatprep.mubr.bf16.mxu0 0
        %2172 = vmatmul.mubr.bf16.gmra.mrb[0].mxu0 %v2029
        %v2173 = vpop.f32.mrb[0].mxu0
        %v2174 = vadd.f32 0.0, %v2173
        %v2175 = vpop.f32.mrb[0].mxu0
        %v2176 = vpop.f32.mrb[0].mxu0
        %v2177 = vadd.f32 0.0, %v2176
        %v2178 = vpop.f32.mrb[0].mxu0
        %2179 = vmatprep.mubr.bf16.mxu0 0
        %2180 = vmatmul.mubr.bf16.gmra.mrb[0].mxu0 %v2030
        %v2181 = vpop.f32.mrb[0].mxu0
        %v2182 = vadd.f32 0.0, %v2181
        %v2183 = vpop.f32.mrb[0].mxu0
        %v2184 = vpop.f32.mrb[0].mxu0
        %v2185 = vadd.f32 0.0, %v2184
        %v2186 = vpop.f32.mrb[0].mxu0
        %2187 = vmatprep.mubr.bf16.mxu0 0
        %2188 = vmatmul.mubr.bf16.gmra.mrb[0].mxu0 %v2031
        %v2189 = vpop.f32.mrb[0].mxu0
        %v2190 = vadd.f32 0.0, %v2189
        %v2191 = vpop.f32.mrb[0].mxu0
        %v2192 = vpop.f32.mrb[0].mxu0
        %v2193 = vadd.f32 0.0, %v2192
        %v2194 = vpop.f32.mrb[0].mxu0
        %2195 = vmatprep.mubr.bf16.mxu0 0
        %2196 = vmatmul.mubr.bf16.gmra.mrb[0].mxu0 %v2032
        %v2197 = vpop.f32.mrb[0].mxu0
        %v2198 = vadd.f32 0.0, %v2197
        %v2199 = vpop.f32.mrb[0].mxu0
        %v2200 = vpop.f32.mrb[0].mxu0
        %v2201 = vadd.f32 0.0, %v2200
        %v2202 = vpop.f32.mrb[0].mxu0
        %2203 = vmatprep.mubr.bf16.mxu0 0
        %2204 = vmatmul.mubr.bf16.gmra.mrb[0].mxu0 %v2033
        %v2205 = vpop.f32.mrb[0].mxu0
        %v2206 = vadd.f32 0.0, %v2205
        %v2207 = vpop.f32.mrb[0].mxu0
        %v2208 = vpop.f32.mrb[0].mxu0
        %v2209 = vadd.f32 0.0, %v2208
        %v2210 = vpop.f32.mrb[0].mxu0
        %2211 = vmatprep.mubr.bf16.mxu0 0
        %2212 = vmatmul.mubr.bf16.gmra.mrb[0].mxu0 %v2034
        %v2213 = vpop.f32.mrb[0].mxu0
        %v2214 = vadd.f32 0.0, %v2213
        %v2215 = vpop.f32.mrb[0].mxu0
        %v2216 = vpop.f32.mrb[0].mxu0
        %v2217 = vadd.f32 0.0, %v2216
        %v2218 = vpop.f32.mrb[0].mxu0
        %2219 = vmatprep.mubr.bf16.mxu0 0
        %2220 = vmatmul.mubr.bf16.gmra.mrb[0].mxu0 %v2035
        %v2221 = vpop.f32.mrb[0].mxu0
        %v2222 = vadd.f32 0.0, %v2221
        %v2223 = vpop.f32.mrb[0].mxu0
        %v2224 = vpop.f32.mrb[0].mxu0
        %v2225 = vadd.f32 0.0, %v2224
        %v2226 = vpop.f32.mrb[0].mxu0
        %2227 = vmatprep.mubr.bf16.mxu0 0
        %2228 = vmatmul.mubr.bf16.gmra.mrb[0].mxu0 %v2036
        %v2229 = vpop.f32.mrb[0].mxu0
        %v2230 = vadd.f32 0.0, %v2229
        %v2231 = vpop.f32.mrb[0].mxu0
        %v2232 = vpop.f32.mrb[0].mxu0
        %v2233 = vadd.f32 0.0, %v2232
        %v2234 = vpop.f32.mrb[0].mxu0
        %2235 = vmatprep.mubr.bf16.mxu0 0
        %2236 = vmatmul.mubr.bf16.gmra.mrb[0].mxu0 %v2037
        %v2237 = vpop.f32.mrb[0].mxu0
        %v2238 = vadd.f32 0.0, %v2237
        %v2239 = vpop.f32.mrb[0].mxu0
        %v2240 = vpop.f32.mrb[0].mxu0
        %v2241 = vadd.f32 0.0, %v2240
        %v2242 = vpop.f32.mrb[0].mxu0
        %2243 = vmatprep.mubr.bf16.mxu0 0
        %2244 = vmatmul.mubr.bf16.gmra.mrb[0].mxu0 %v2038
        %v2245 = vpop.f32.mrb[0].mxu0
        %v2246 = vadd.f32 0.0, %v2245
        %v2247 = vpop.f32.mrb[0].mxu0
        %v2248 = vpop.f32.mrb[0].mxu0
        %v2249 = vadd.f32 0.0, %v2248
        %v2250 = vpop.f32.mrb[0].mxu0
        %2251 = vmatprep.mubr.bf16.mxu0 0
        %2252 = vmatmul.mubr.bf16.gmra.mrb[0].mxu0 %v2039
        %v2253 = vpop.f32.mrb[0].mxu0
        %v2254 = vadd.f32 0.0, %v2253
        %v2255 = vpop.f32.mrb[0].mxu0
        %v2256 = vpop.f32.mrb[0].mxu0
        %v2257 = vadd.f32 0.0, %v2256
        %v2258 = vpop.f32.mrb[0].mxu0
        %2259 = vmatprep.mubr.bf16.mxu0 0
        %2260 = vmatmul.mubr.bf16.gmra.mrb[0].mxu0 %v2040
        %v2261 = vpop.f32.mrb[0].mxu0
        %v2262 = vadd.f32 0.0, %v2261
        %v2263 = vpop.f32.mrb[0].mxu0
        %v2264 = vpop.f32.mrb[0].mxu0
        %v2265 = vadd.f32 0.0, %v2264
        %v2266 = vpop.f32.mrb[0].mxu0
        %2267 = vmatprep.mubr.bf16.mxu0 0
        %2268 = vmatmul.mubr.bf16.gmra.mrb[0].mxu0 %v2041
        %v2269 = vpop.f32.mrb[0].mxu0
        %v2270 = vadd.f32 0.0, %v2269
        %v2271 = vpop.f32.mrb[0].mxu0
        %v2272 = vpop.f32.mrb[0].mxu0
        %v2273 = vadd.f32 0.0, %v2272
        %v2274 = vpop.f32.mrb[0].mxu0
        %2275 = vmatprep.mubr.bf16.mxu0 0
        %2276 = vmatmul.mubr.bf16.gmra.mrb[0].mxu0 %v2042
        %v2277 = vpop.f32.mrb[0].mxu0
        %v2278 = vadd.f32 0.0, %v2277
        %v2279 = vpop.f32.mrb[0].mxu0
        %v2280 = vpop.f32.mrb[0].mxu0
        %v2281 = vadd.f32 0.0, %v2280
        %v2282 = vpop.f32.mrb[0].mxu0
        %2283 = vmatprep.mubr.bf16.mxu0 0
        %2284 = vmatmul.mubr.bf16.gmra.mrb[0].mxu0 %v2043
        %v2285 = vpop.f32.mrb[0].mxu0
        %v2286 = vadd.f32 0.0, %v2285
        %v2287 = vpop.f32.mrb[0].mxu0
        %v2288 = vpop.f32.mrb[0].mxu0
        %v2289 = vadd.f32 0.0, %v2288
        %v2290 = vpop.f32.mrb[0].mxu0
        %2291 = vmatprep.mubr.bf16.mxu0 0
        %2292 = vmatmul.mubr.bf16.gmra.mrb[0].mxu0 %v2044
        %v2293 = vpop.f32.mrb[0].mxu0
        %v2294 = vadd.f32 0.0, %v2293
        %v2295 = vpop.f32.mrb[0].mxu0
        %v2296 = vpop.f32.mrb[0].mxu0
        %v2297 = vadd.f32 0.0, %v2296
        %v2298 = vpop.f32.mrb[0].mxu0
        %2299 = vmatprep.mubr.bf16.mxu0 0
        %2300 = vmatmul.mubr.bf16.gmra.mrb[0].mxu0 %v2045
        %v2301 = vpop.f32.mrb[0].mxu0
        %v2302 = vadd.f32 0.0, %v2301
        %v2303 = vpop.f32.mrb[0].mxu0
        %v2304 = vpop.f32.mrb[0].mxu0
        %v2305 = vadd.f32 0.0, %v2304
        %v2306 = vpop.f32.mrb[0].mxu0
        %2307 = vmatprep.mubr.bf16.mxu0 0
        %2308 = vmatmul.mubr.bf16.gmra.mrb[0].mxu0 %v2046
        %v2309 = vpop.f32.mrb[0].mxu0
        %v2310 = vadd.f32 0.0, %v2309
        %v2311 = vpop.f32.mrb[0].mxu0
        %v2312 = vpop.f32.mrb[0].mxu0
        %v2313 = vadd.f32 0.0, %v2312
        %v2314 = vpop.f32.mrb[0].mxu0
        %2315 = vmatprep.mubr.bf16.mxu0 0
        %2316 = vmatmul.mubr.bf16.gmra.mrb[0].mxu0 %v2047
        %v2317 = vpop.f32.mrb[0].mxu0
        %v2318 = vadd.f32 0.0, %v2317
        %v2319 = vpop.f32.mrb[0].mxu0
        %v2320 = vpop.f32.mrb[0].mxu0
        %v2321 = vadd.f32 0.0, %v2320
        %v2322 = vpop.f32.mrb[0].mxu0
        %2323 = vmatprep.mubr.bf16.mxu0 0
        %2324 = vmatmul.mubr.bf16.gmra.mrb[0].mxu0 %v2048
        %v2325 = vpop.f32.mrb[0].mxu0
        %v2326 = vadd.f32 0.0, %v2325
        %v2327 = vpop.f32.mrb[0].mxu0
        %v2328 = vpop.f32.mrb[0].mxu0
        %v2329 = vadd.f32 0.0, %v2328
        %v2330 = vpop.f32.mrb[0].mxu0
        %2331 = vmatprep.mubr.bf16.mxu0 0
        %2332 = vmatmul.mubr.bf16.gmra.mrb[0].mxu0 %v2049
        %v2333 = vpop.f32.mrb[0].mxu0
        %v2334 = vadd.f32 0.0, %v2333
        %v2335 = vpop.f32.mrb[0].mxu0
        %v2336 = vpop.f32.mrb[0].mxu0
        %v2337 = vpop.f32.mrb[0].mxu0
        %2338 = vdwg.mxu0
        %v2339 = vadd.f32 %v1932, %v2150
        %v2340 = vadd.f32 %v1933, %v2153
        %v2341 = vadd.f32 %v1934, %v2158
        %v2342 = vadd.f32 %v1935, %v2161
        %v2343 = vadd.f32 %v1936, %v2166
        %v2344 = vadd.f32 %v1937, %v2169
        %v2345 = vadd.f32 %v1938, %v2174
        %v2346 = vadd.f32 %v1939, %v2177
        %v2347 = vadd.f32 %v1940, %v2182
        %v2348 = vadd.f32 %v1941, %v2185
        %v2349 = vadd.f32 %v1942, %v2190
        %v2350 = vadd.f32 %v1943, %v2193
        %v2351 = vadd.f32 %v1944, %v2198
        %v2352 = vadd.f32 %v1945, %v2201
        %v2353 = vadd.f32 %v1946, %v2206
        %v2354 = vadd.f32 %v1947, %v2209
        %v2355 = vadd.f32 %v1948, %v2214
        %v2356 = vadd.f32 %v1949, %v2217
        %v2357 = vadd.f32 %v1950, %v2222
        %v2358 = vadd.f32 %v1951, %v2225
        %v2359 = vadd.f32 %v1952, %v2230
        %v2360 = vadd.f32 %v1953, %v2233
        %v2361 = vadd.f32 %v1954, %v2238
        %v2362 = vadd.f32 %v1955, %v2241
        %v2363 = vadd.f32 %v1956, %v2246
        %v2364 = vadd.f32 %v1957, %v2249
        %v2365 = vadd.f32 %v1958, %v2254
        %v2366 = vadd.f32 %v1959, %v2257
        %v2367 = vadd.f32 %v1960, %v2262
        %v2368 = vadd.f32 %v1961, %v2265
        %v2369 = vadd.f32 %v1962, %v2270
        %v2370 = vadd.f32 %v1963, %v2273
        %v2371 = vadd.f32 %v1964, %v2278
        %v2372 = vadd.f32 %v1965, %v2281
        %v2373 = vadd.f32 %v1966, %v2286
        %v2374 = vadd.f32 %v1967, %v2289
        %v2375 = vadd.f32 %v1968, %v2294
        %v2376 = vadd.f32 %v1969, %v2297
        %v2377 = vadd.f32 %v1970, %v2302
        %v2378 = vadd.f32 %v1971, %v2305
        %v2379 = vadd.f32 %v1972, %v2310
        %v2380 = vadd.f32 %v1973, %v2313
        %v2381 = vadd.f32 %v1974, %v2318
        %v2382 = vadd.f32 %v1975, %v2321
        %v2383 = vadd.f32 %v1976, %v2326
        %v2384 = vadd.f32 %v1977, %v2329
        %v2385 = vadd.f32 %v1978, %v2334
        %v2386 = vld [vmem:[#allocation3 + $0x14] sm:$0xff]
        %v2387 = vld [vmem:[#allocation3 + $0x1c] sm:$0xff]
        %v2388 = vld [vmem:[#allocation3 + $0x24] sm:$0xff]
        %v2389 = vld [vmem:[#allocation3 + $0x2c] sm:$0xff]
        %v2390 = vld [vmem:[#allocation3 + $0x34] sm:$0xff]
        %v2391 = vld [vmem:[#allocation3 + $0x3c] sm:$0xff]
        %v2392 = vld [vmem:[#allocation3 + $0x44] sm:$0xff]
        %v2393 = vld [vmem:[#allocation3 + $0x4c] sm:$0xff]
        %v2394 = vld [vmem:[#allocation3 + $0x54] sm:$0xff]
        %v2395 = vld [vmem:[#allocation3 + $0x5c] sm:$0xff]
        %v2396 = vld [vmem:[#allocation3 + $0x64] sm:$0xff]
        %v2397 = vld [vmem:[#allocation3 + $0x6c] sm:$0xff]
        %v2398 = vld [vmem:[#allocation3 + $0x74] sm:$0xff]
        %v2399 = vld [vmem:[#allocation3 + $0x7c] sm:$0xff]
        %v2400 = vld [vmem:[#allocation3 + $0x84] sm:$0xff]
        %v2401 = vld [vmem:[#allocation3 + $0x8c] sm:$0xff]
        %v2402 = vld [vmem:[#allocation3 + $0x94] sm:$0xff]
        %v2403 = vld [vmem:[#allocation3 + $0x9c] sm:$0xff]
        %v2404 = vld [vmem:[#allocation3 + $0xa4] sm:$0xff]
        %v2405 = vld [vmem:[#allocation3 + $0xac] sm:$0xff]
        %v2406 = vld [vmem:[#allocation3 + $0xb4] sm:$0xff]
        %v2407 = vld [vmem:[#allocation3 + $0xbc] sm:$0xff]
        %v2408 = vld [vmem:[#allocation3 + $0xc4] sm:$0xff]
        %v2409 = vld [vmem:[#allocation3 + $0xcc] sm:$0xff]
        %v2410 = vld [vmem:[#allocation3 + $0xd4] sm:$0xff]
        %v2411 = vld [vmem:[#allocation3 + $0xdc] sm:$0xff]
        %v2412 = vld [vmem:[#allocation3 + $0xe4] sm:$0xff]
        %v2413 = vld [vmem:[#allocation3 + $0xec] sm:$0xff]
        %v2414 = vld [vmem:[#allocation3 + $0xf4] sm:$0xff]
        %v2415 = vld [vmem:[#allocation3 + $0xfc] sm:$0xff]
        %v2416 = vld [vmem:[#allocation3 + $0x104] sm:$0xff]
        %v2417 = vld [vmem:[#allocation3 + $0x10c] sm:$0xff]
        %v2418 = vld [vmem:[#allocation3 + $0x114] sm:$0xff]
        %v2419 = vld [vmem:[#allocation3 + $0x11c] sm:$0xff]
        %v2420 = vld [vmem:[#allocation3 + $0x124] sm:$0xff]
        %v2421 = vld [vmem:[#allocation3 + $0x12c] sm:$0xff]
        %v2422 = vld [vmem:[#allocation3 + $0x134] sm:$0xff]
        %v2423 = vld [vmem:[#allocation3 + $0x13c] sm:$0xff]
        %v2424 = vld [vmem:[#allocation3 + $0x144] sm:$0xff]
        %v2425 = vld [vmem:[#allocation3 + $0x14c] sm:$0xff]
        %v2426 = vld [vmem:[#allocation3 + $0x154] sm:$0xff]
        %v2427 = vld [vmem:[#allocation3 + $0x15c] sm:$0xff]
        %v2428 = vld [vmem:[#allocation3 + $0x164] sm:$0xff]
        %v2429 = vld [vmem:[#allocation3 + $0x16c] sm:$0xff]
        %v2430 = vld [vmem:[#allocation3 + $0x174] sm:$0xff]
        %v2431 = vld [vmem:[#allocation3 + $0x17c] sm:$0xff]
        %v2432 = vld [vmem:[#allocation3 + $0x184] sm:$0x3f]
        %v2433 = vpack.c.bf16 %v2387, %v2386
        %v2434 = vpack.c.bf16 %v2389, %v2388
        %v2435 = vpack.c.bf16 %v2391, %v2390
        %v2436 = vpack.c.bf16 %v2393, %v2392
        %v2437 = vpack.c.bf16 %v2395, %v2394
        %v2438 = vpack.c.bf16 %v2397, %v2396
        %v2439 = vpack.c.bf16 %v2399, %v2398
        %v2440 = vpack.c.bf16 %v2401, %v2400
        %v2441 = vpack.c.bf16 %v2403, %v2402
        %v2442 = vpack.c.bf16 %v2405, %v2404
        %v2443 = vpack.c.bf16 %v2407, %v2406
        %v2444 = vpack.c.bf16 %v2409, %v2408
        %v2445 = vpack.c.bf16 %v2411, %v2410
        %v2446 = vpack.c.bf16 %v2413, %v2412
        %v2447 = vpack.c.bf16 %v2415, %v2414
        %v2448 = vpack.c.bf16 %v2417, %v2416
        %v2449 = vpack.c.bf16 %v2419, %v2418
        %v2450 = vpack.c.bf16 %v2421, %v2420
        %v2451 = vpack.c.bf16 %v2423, %v2422
        %v2452 = vpack.c.bf16 %v2425, %v2424
        %v2453 = vpack.c.bf16 %v2427, %v2426
        %v2454 = vpack.c.bf16 %v2429, %v2428
        %v2455 = vpack.c.bf16 %v2431, %v2430
        %v2456 = vpack.c.bf16 %v2432, %v2432
        %s2457 = scalar_lea.vmem [#allocation6], 320
        %v2458 = vld [vmem:[%s2457] sm:$0xf]
        %v2459 = vld [vmem:[%s2457 + $0x4] sm:$0xf]
        %v2460 = vld [vmem:[%s2457 + $0x8] sm:$0xf]
        %v2461 = vld [vmem:[%s2457 + $0xc] sm:$0xf]
        %v2462 = vld [vmem:[%s2457 + $0x10] sm:$0xf]
        %v2463 = vld [vmem:[%s2457 + $0x14] sm:$0xf]
        %v2464 = vld [vmem:[%s2457 + $0x18] sm:$0xf]
        %v2465 = vld [vmem:[%s2457 + $0x1c] sm:$0xf]
        %v2466 = vld [vmem:[%s2457 + $0x20] sm:$0xf]
        %v2467 = vld [vmem:[%s2457 + $0x24] sm:$0xf]
        %v2468 = vld [vmem:[%s2457 + $0x28] sm:$0xf]
        %v2469 = vld [vmem:[%s2457 + $0x2c] sm:$0xf]
        %v2470 = vld [vmem:[%s2457 + $0x30] sm:$0xf]
        %v2471 = vld [vmem:[%s2457 + $0x34] sm:$0xf]
        %v2472 = vld [vmem:[%s2457 + $0x38] sm:$0xf]
        %v2473 = vld [vmem:[%s2457 + $0x3c] sm:$0xf]
        %v2490 = vunpack.c.l.b16 %v2458
        %v2491 = vunpack.c.l.b16 %v2459
        %v2492 = vunpack.c.l.b16 %v2460
        %v2493 = vunpack.c.l.b16 %v2461
        %v2494 = vunpack.c.l.b16 %v2462
        %v2495 = vunpack.c.l.b16 %v2463
        %v2496 = vunpack.c.l.b16 %v2464
        %v2497 = vunpack.c.l.b16 %v2465
        %v2498 = vunpack.c.l.b16 %v2466
        %v2499 = vunpack.c.l.b16 %v2467
        %v2500 = vunpack.c.l.b16 %v2468
        %v2501 = vunpack.c.l.b16 %v2469
        %v2502 = vunpack.c.l.b16 %v2470
        %v2503 = vunpack.c.l.b16 %v2471
        %v2504 = vunpack.c.l.b16 %v2472
        %v2505 = vunpack.c.l.b16 %v2473
        %v2506 = vpack.c.b16 %v2491, %v2490
        %v2507 = vpack.c.b16 %v2493, %v2492
        %v2508 = vpack.c.b16 %v2495, %v2494
        %v2509 = vpack.c.b16 %v2497, %v2496
        %v2510 = vpack.c.b16 %v2499, %v2498
        %v2511 = vpack.c.b16 %v2501, %v2500
        %v2512 = vpack.c.b16 %v2503, %v2502
        %v2513 = vpack.c.b16 %v2505, %v2504
        %2522 = vmatprep.subr.bf16.mxu0 0
        %2523 = vmatpush1.bf16.msra.mxu0 %v2506
        %2524 = vmatprep.subr.bf16.mxu0 0
        %2525 = vmatpush1.bf16.msra.mxu0 %v2507
        %2526 = vmatprep.subr.bf16.mxu0 0
        %2527 = vmatpush1.bf16.msra.mxu0 %v2508
        %2528 = vmatprep.subr.bf16.mxu0 0
        %2529 = vmatpush1.bf16.msra.mxu0 %v2509
        %2530 = vmatprep.subr.bf16.mxu0 0
        %2531 = vmatpush1.bf16.msra.mxu0 %v2510
        %2532 = vmatprep.subr.bf16.mxu0 0
        %2533 = vmatpush1.bf16.msra.mxu0 %v2511
        %2534 = vmatprep.subr.bf16.mxu0 0
        %2535 = vmatpush1.bf16.msra.mxu0 %v2512
        %2536 = vmatprep.subr.bf16.mxu0 0
        %2537 = vmatpush1.bf16.msra.mxu0 %v2513
        %2538 = vmatprep.subr.bf16.mxu0 0
        %2539 = vmatpush1.bf16.msra.mxu0 0
        %2540 = vmatprep.subr.bf16.mxu0 0
        %2541 = vmatpush1.bf16.msra.mxu0 0
        %2542 = vmatprep.subr.bf16.mxu0 0
        %2543 = vmatpush1.bf16.msra.mxu0 0
        %2544 = vmatprep.subr.bf16.mxu0 0
        %2545 = vmatpush1.bf16.msra.mxu0 0
        %2546 = vmatprep.subr.bf16.mxu0 0
        %2547 = vmatpush1.bf16.msra.mxu0 0
        %2548 = vmatprep.subr.bf16.mxu0 0
        %2549 = vmatpush1.bf16.msra.mxu0 0
        %2550 = vmatprep.subr.bf16.mxu0 0
        %2551 = vmatpush1.bf16.msra.mxu0 0
        %2552 = vmatprep.subr.bf16.mxu0 0
        %2553 = vmatpush1.bf16.msra.mxu0 0
        %2554 = vmatprep.mubr.bf16.mxu0 0
        %2555 = vmatmul.mubr.bf16.gmra.mrb[0].mxu0 %v2433
        %v2556 = vpop.f32.mrb[0].mxu0
        %v2557 = vadd.f32 0.0, %v2556
        %v2558 = vpop.f32.mrb[0].mxu0
        %v2559 = vpop.f32.mrb[0].mxu0
        %v2560 = vadd.f32 0.0, %v2559
        %v2561 = vpop.f32.mrb[0].mxu0
        %2562 = vmatprep.mubr.bf16.mxu0 0
        %2563 = vmatmul.mubr.bf16.gmra.mrb[0].mxu0 %v2434
        %v2564 = vpop.f32.mrb[0].mxu0
        %v2565 = vadd.f32 0.0, %v2564
        %v2566 = vpop.f32.mrb[0].mxu0
        %v2567 = vpop.f32.mrb[0].mxu0
        %v2568 = vadd.f32 0.0, %v2567
        %v2569 = vpop.f32.mrb[0].mxu0
        %2570 = vmatprep.mubr.bf16.mxu0 0
        %2571 = vmatmul.mubr.bf16.gmra.mrb[0].mxu0 %v2435
        %v2572 = vpop.f32.mrb[0].mxu0
        %v2573 = vadd.f32 0.0, %v2572
        %v2574 = vpop.f32.mrb[0].mxu0
        %v2575 = vpop.f32.mrb[0].mxu0
        %v2576 = vadd.f32 0.0, %v2575
        %v2577 = vpop.f32.mrb[0].mxu0
        %2578 = vmatprep.mubr.bf16.mxu0 0
        %2579 = vmatmul.mubr.bf16.gmra.mrb[0].mxu0 %v2436
        %v2580 = vpop.f32.mrb[0].mxu0
        %v2581 = vadd.f32 0.0, %v2580
        %v2582 = vpop.f32.mrb[0].mxu0
        %v2583 = vpop.f32.mrb[0].mxu0
        %v2584 = vadd.f32 0.0, %v2583
        %v2585 = vpop.f32.mrb[0].mxu0
        %2586 = vmatprep.mubr.bf16.mxu0 0
        %2587 = vmatmul.mubr.bf16.gmra.mrb[0].mxu0 %v2437
        %v2588 = vpop.f32.mrb[0].mxu0
        %v2589 = vadd.f32 0.0, %v2588
        %v2590 = vpop.f32.mrb[0].mxu0
        %v2591 = vpop.f32.mrb[0].mxu0
        %v2592 = vadd.f32 0.0, %v2591
        %v2593 = vpop.f32.mrb[0].mxu0
        %2594 = vmatprep.mubr.bf16.mxu0 0
        %2595 = vmatmul.mubr.bf16.gmra.mrb[0].mxu0 %v2438
        %v2596 = vpop.f32.mrb[0].mxu0
        %v2597 = vadd.f32 0.0, %v2596
        %v2598 = vpop.f32.mrb[0].mxu0
        %v2599 = vpop.f32.mrb[0].mxu0
        %v2600 = vadd.f32 0.0, %v2599
        %v2601 = vpop.f32.mrb[0].mxu0
        %2602 = vmatprep.mubr.bf16.mxu0 0
        %2603 = vmatmul.mubr.bf16.gmra.mrb[0].mxu0 %v2439
        %v2604 = vpop.f32.mrb[0].mxu0
        %v2605 = vadd.f32 0.0, %v2604
        %v2606 = vpop.f32.mrb[0].mxu0
        %v2607 = vpop.f32.mrb[0].mxu0
        %v2608 = vadd.f32 0.0, %v2607
        %v2609 = vpop.f32.mrb[0].mxu0
        %2610 = vmatprep.mubr.bf16.mxu0 0
        %2611 = vmatmul.mubr.bf16.gmra.mrb[0].mxu0 %v2440
        %v2612 = vpop.f32.mrb[0].mxu0
        %v2613 = vadd.f32 0.0, %v2612
        %v2614 = vpop.f32.mrb[0].mxu0
        %v2615 = vpop.f32.mrb[0].mxu0
        %v2616 = vadd.f32 0.0, %v2615
        %v2617 = vpop.f32.mrb[0].mxu0
        %2618 = vmatprep.mubr.bf16.mxu0 0
        %2619 = vmatmul.mubr.bf16.gmra.mrb[0].mxu0 %v2441
        %v2620 = vpop.f32.mrb[0].mxu0
        %v2621 = vadd.f32 0.0, %v2620
        %v2622 = vpop.f32.mrb[0].mxu0
        %v2623 = vpop.f32.mrb[0].mxu0
        %v2624 = vadd.f32 0.0, %v2623
        %v2625 = vpop.f32.mrb[0].mxu0
        %2626 = vmatprep.mubr.bf16.mxu0 0
        %2627 = vmatmul.mubr.bf16.gmra.mrb[0].mxu0 %v2442
        %v2628 = vpop.f32.mrb[0].mxu0
        %v2629 = vadd.f32 0.0, %v2628
        %v2630 = vpop.f32.mrb[0].mxu0
        %v2631 = vpop.f32.mrb[0].mxu0
        %v2632 = vadd.f32 0.0, %v2631
        %v2633 = vpop.f32.mrb[0].mxu0
        %2634 = vmatprep.mubr.bf16.mxu0 0
        %2635 = vmatmul.mubr.bf16.gmra.mrb[0].mxu0 %v2443
        %v2636 = vpop.f32.mrb[0].mxu0
        %v2637 = vadd.f32 0.0, %v2636
        %v2638 = vpop.f32.mrb[0].mxu0
        %v2639 = vpop.f32.mrb[0].mxu0
        %v2640 = vadd.f32 0.0, %v2639
        %v2641 = vpop.f32.mrb[0].mxu0
        %2642 = vmatprep.mubr.bf16.mxu0 0
        %2643 = vmatmul.mubr.bf16.gmra.mrb[0].mxu0 %v2444
        %v2644 = vpop.f32.mrb[0].mxu0
        %v2645 = vadd.f32 0.0, %v2644
        %v2646 = vpop.f32.mrb[0].mxu0
        %v2647 = vpop.f32.mrb[0].mxu0
        %v2648 = vadd.f32 0.0, %v2647
        %v2649 = vpop.f32.mrb[0].mxu0
        %2650 = vmatprep.mubr.bf16.mxu0 0
        %2651 = vmatmul.mubr.bf16.gmra.mrb[0].mxu0 %v2445
        %v2652 = vpop.f32.mrb[0].mxu0
        %v2653 = vadd.f32 0.0, %v2652
        %v2654 = vpop.f32.mrb[0].mxu0
        %v2655 = vpop.f32.mrb[0].mxu0
        %v2656 = vadd.f32 0.0, %v2655
        %v2657 = vpop.f32.mrb[0].mxu0
        %2658 = vmatprep.mubr.bf16.mxu0 0
        %2659 = vmatmul.mubr.bf16.gmra.mrb[0].mxu0 %v2446
        %v2660 = vpop.f32.mrb[0].mxu0
        %v2661 = vadd.f32 0.0, %v2660
        %v2662 = vpop.f32.mrb[0].mxu0
        %v2663 = vpop.f32.mrb[0].mxu0
        %v2664 = vadd.f32 0.0, %v2663
        %v2665 = vpop.f32.mrb[0].mxu0
        %2666 = vmatprep.mubr.bf16.mxu0 0
        %2667 = vmatmul.mubr.bf16.gmra.mrb[0].mxu0 %v2447
        %v2668 = vpop.f32.mrb[0].mxu0
        %v2669 = vadd.f32 0.0, %v2668
        %v2670 = vpop.f32.mrb[0].mxu0
        %v2671 = vpop.f32.mrb[0].mxu0
        %v2672 = vadd.f32 0.0, %v2671
        %v2673 = vpop.f32.mrb[0].mxu0
        %2674 = vmatprep.mubr.bf16.mxu0 0
        %2675 = vmatmul.mubr.bf16.gmra.mrb[0].mxu0 %v2448
        %v2676 = vpop.f32.mrb[0].mxu0
        %v2677 = vadd.f32 0.0, %v2676
        %v2678 = vpop.f32.mrb[0].mxu0
        %v2679 = vpop.f32.mrb[0].mxu0
        %v2680 = vadd.f32 0.0, %v2679
        %v2681 = vpop.f32.mrb[0].mxu0
        %2682 = vmatprep.mubr.bf16.mxu0 0
        %2683 = vmatmul.mubr.bf16.gmra.mrb[0].mxu0 %v2449
        %v2684 = vpop.f32.mrb[0].mxu0
        %v2685 = vadd.f32 0.0, %v2684
        %v2686 = vpop.f32.mrb[0].mxu0
        %v2687 = vpop.f32.mrb[0].mxu0
        %v2688 = vadd.f32 0.0, %v2687
        %v2689 = vpop.f32.mrb[0].mxu0
        %2690 = vmatprep.mubr.bf16.mxu0 0
        %2691 = vmatmul.mubr.bf16.gmra.mrb[0].mxu0 %v2450
        %v2692 = vpop.f32.mrb[0].mxu0
        %v2693 = vadd.f32 0.0, %v2692
        %v2694 = vpop.f32.mrb[0].mxu0
        %v2695 = vpop.f32.mrb[0].mxu0
        %v2696 = vadd.f32 0.0, %v2695
        %v2697 = vpop.f32.mrb[0].mxu0
        %2698 = vmatprep.mubr.bf16.mxu0 0
        %2699 = vmatmul.mubr.bf16.gmra.mrb[0].mxu0 %v2451
        %v2700 = vpop.f32.mrb[0].mxu0
        %v2701 = vadd.f32 0.0, %v2700
        %v2702 = vpop.f32.mrb[0].mxu0
        %v2703 = vpop.f32.mrb[0].mxu0
        %v2704 = vadd.f32 0.0, %v2703
        %v2705 = vpop.f32.mrb[0].mxu0
        %2706 = vmatprep.mubr.bf16.mxu0 0
        %2707 = vmatmul.mubr.bf16.gmra.mrb[0].mxu0 %v2452
        %v2708 = vpop.f32.mrb[0].mxu0
        %v2709 = vadd.f32 0.0, %v2708
        %v2710 = vpop.f32.mrb[0].mxu0
        %v2711 = vpop.f32.mrb[0].mxu0
        %v2712 = vadd.f32 0.0, %v2711
        %v2713 = vpop.f32.mrb[0].mxu0
        %2714 = vmatprep.mubr.bf16.mxu0 0
        %2715 = vmatmul.mubr.bf16.gmra.mrb[0].mxu0 %v2453
        %v2716 = vpop.f32.mrb[0].mxu0
        %v2717 = vadd.f32 0.0, %v2716
        %v2718 = vpop.f32.mrb[0].mxu0
        %v2719 = vpop.f32.mrb[0].mxu0
        %v2720 = vadd.f32 0.0, %v2719
        %v2721 = vpop.f32.mrb[0].mxu0
        %2722 = vmatprep.mubr.bf16.mxu0 0
        %2723 = vmatmul.mubr.bf16.gmra.mrb[0].mxu0 %v2454
        %v2724 = vpop.f32.mrb[0].mxu0
        %v2725 = vadd.f32 0.0, %v2724
        %v2726 = vpop.f32.mrb[0].mxu0
        %v2727 = vpop.f32.mrb[0].mxu0
        %v2728 = vadd.f32 0.0, %v2727
        %v2729 = vpop.f32.mrb[0].mxu0
        %2730 = vmatprep.mubr.bf16.mxu0 0
        %2731 = vmatmul.mubr.bf16.gmra.mrb[0].mxu0 %v2455
        %v2732 = vpop.f32.mrb[0].mxu0
        %v2733 = vadd.f32 0.0, %v2732
        %v2734 = vpop.f32.mrb[0].mxu0
        %v2735 = vpop.f32.mrb[0].mxu0
        %v2736 = vadd.f32 0.0, %v2735
        %v2737 = vpop.f32.mrb[0].mxu0
        %2738 = vmatprep.mubr.bf16.mxu0 0
        %2739 = vmatmul.mubr.bf16.gmra.mrb[0].mxu0 %v2456
        %v2740 = vpop.f32.mrb[0].mxu0
        %v2741 = vadd.f32 0.0, %v2740
        %v2742 = vpop.f32.mrb[0].mxu0
        %v2743 = vpop.f32.mrb[0].mxu0
        %v2744 = vpop.f32.mrb[0].mxu0
        %2745 = vdwg.mxu0
        %v2746 = vadd.f32 %v2339, %v2557
        %v2747 = vadd.f32 %v2340, %v2560
        %v2748 = vadd.f32 %v2341, %v2565
        %v2749 = vadd.f32 %v2342, %v2568
        %v2750 = vadd.f32 %v2343, %v2573
        %v2751 = vadd.f32 %v2344, %v2576
        %v2752 = vadd.f32 %v2345, %v2581
        %v2753 = vadd.f32 %v2346, %v2584
        %v2754 = vadd.f32 %v2347, %v2589
        %v2755 = vadd.f32 %v2348, %v2592
        %v2756 = vadd.f32 %v2349, %v2597
        %v2757 = vadd.f32 %v2350, %v2600
        %v2758 = vadd.f32 %v2351, %v2605
        %v2759 = vadd.f32 %v2352, %v2608
        %v2760 = vadd.f32 %v2353, %v2613
        %v2761 = vadd.f32 %v2354, %v2616
        %v2762 = vadd.f32 %v2355, %v2621
        %v2763 = vadd.f32 %v2356, %v2624
        %v2764 = vadd.f32 %v2357, %v2629
        %v2765 = vadd.f32 %v2358, %v2632
        %v2766 = vadd.f32 %v2359, %v2637
        %v2767 = vadd.f32 %v2360, %v2640
        %v2768 = vadd.f32 %v2361, %v2645
        %v2769 = vadd.f32 %v2362, %v2648
        %v2770 = vadd.f32 %v2363, %v2653
        %v2771 = vadd.f32 %v2364, %v2656
        %v2772 = vadd.f32 %v2365, %v2661
        %v2773 = vadd.f32 %v2366, %v2664
        %v2774 = vadd.f32 %v2367, %v2669
        %v2775 = vadd.f32 %v2368, %v2672
        %v2776 = vadd.f32 %v2369, %v2677
        %v2777 = vadd.f32 %v2370, %v2680
        %v2778 = vadd.f32 %v2371, %v2685
        %v2779 = vadd.f32 %v2372, %v2688
        %v2780 = vadd.f32 %v2373, %v2693
        %v2781 = vadd.f32 %v2374, %v2696
        %v2782 = vadd.f32 %v2375, %v2701
        %v2783 = vadd.f32 %v2376, %v2704
        %v2784 = vadd.f32 %v2377, %v2709
        %v2785 = vadd.f32 %v2378, %v2712
        %v2786 = vadd.f32 %v2379, %v2717
        %v2787 = vadd.f32 %v2380, %v2720
        %v2788 = vadd.f32 %v2381, %v2725
        %v2789 = vadd.f32 %v2382, %v2728
        %v2790 = vadd.f32 %v2383, %v2733
        %v2791 = vadd.f32 %v2384, %v2736
        %v2792 = vadd.f32 %v2385, %v2741
        %v2793 = vld [vmem:[#allocation3 + $0x24] sm:$0xff]
        %v2794 = vld [vmem:[#allocation3 + $0x2c] sm:$0xff]
        %v2795 = vld [vmem:[#allocation3 + $0x34] sm:$0xff]
        %v2796 = vld [vmem:[#allocation3 + $0x3c] sm:$0xff]
        %v2797 = vld [vmem:[#allocation3 + $0x44] sm:$0xff]
        %v2798 = vld [vmem:[#allocation3 + $0x4c] sm:$0xff]
        %v2799 = vld [vmem:[#allocation3 + $0x54] sm:$0xff]
        %v2800 = vld [vmem:[#allocation3 + $0x5c] sm:$0xff]
        %v2801 = vld [vmem:[#allocation3 + $0x64] sm:$0xff]
        %v2802 = vld [vmem:[#allocation3 + $0x6c] sm:$0xff]
        %v2803 = vld [vmem:[#allocation3 + $0x74] sm:$0xff]
        %v2804 = vld [vmem:[#allocation3 + $0x7c] sm:$0xff]
        %v2805 = vld [vmem:[#allocation3 + $0x84] sm:$0xff]
        %v2806 = vld [vmem:[#allocation3 + $0x8c] sm:$0xff]
        %v2807 = vld [vmem:[#allocation3 + $0x94] sm:$0xff]
        %v2808 = vld [vmem:[#allocation3 + $0x9c] sm:$0xff]
        %v2809 = vld [vmem:[#allocation3 + $0xa4] sm:$0xff]
        %v2810 = vld [vmem:[#allocation3 + $0xac] sm:$0xff]
        %v2811 = vld [vmem:[#allocation3 + $0xb4] sm:$0xff]
        %v2812 = vld [vmem:[#allocation3 + $0xbc] sm:$0xff]
        %v2813 = vld [vmem:[#allocation3 + $0xc4] sm:$0xff]
        %v2814 = vld [vmem:[#allocation3 + $0xcc] sm:$0xff]
        %v2815 = vld [vmem:[#allocation3 + $0xd4] sm:$0xff]
        %v2816 = vld [vmem:[#allocation3 + $0xdc] sm:$0xff]
        %v2817 = vld [vmem:[#allocation3 + $0xe4] sm:$0xff]
        %v2818 = vld [vmem:[#allocation3 + $0xec] sm:$0xff]
        %v2819 = vld [vmem:[#allocation3 + $0xf4] sm:$0xff]
        %v2820 = vld [vmem:[#allocation3 + $0xfc] sm:$0xff]
        %v2821 = vld [vmem:[#allocation3 + $0x104] sm:$0xff]
        %v2822 = vld [vmem:[#allocation3 + $0x10c] sm:$0xff]
        %v2823 = vld [vmem:[#allocation3 + $0x114] sm:$0xff]
        %v2824 = vld [vmem:[#allocation3 + $0x11c] sm:$0xff]
        %v2825 = vld [vmem:[#allocation3 + $0x124] sm:$0xff]
        %v2826 = vld [vmem:[#allocation3 + $0x12c] sm:$0xff]
        %v2827 = vld [vmem:[#allocation3 + $0x134] sm:$0xff]
        %v2828 = vld [vmem:[#allocation3 + $0x13c] sm:$0xff]
        %v2829 = vld [vmem:[#allocation3 + $0x144] sm:$0xff]
        %v2830 = vld [vmem:[#allocation3 + $0x14c] sm:$0xff]
        %v2831 = vld [vmem:[#allocation3 + $0x154] sm:$0xff]
        %v2832 = vld [vmem:[#allocation3 + $0x15c] sm:$0xff]
        %v2833 = vld [vmem:[#allocation3 + $0x164] sm:$0xff]
        %v2834 = vld [vmem:[#allocation3 + $0x16c] sm:$0xff]
        %v2835 = vld [vmem:[#allocation3 + $0x174] sm:$0xff]
        %v2836 = vld [vmem:[#allocation3 + $0x17c] sm:$0xff]
        %v2837 = vld [vmem:[#allocation3 + $0x184] sm:$0xff]
        %v2838 = vld [vmem:[#allocation3 + $0x18c] sm:$0xff]
        %v2839 = vld [vmem:[#allocation3 + $0x194] sm:$0x3f]
        %v2840 = vpack.c.bf16 %v2794, %v2793
        %v2841 = vpack.c.bf16 %v2796, %v2795
        %v2842 = vpack.c.bf16 %v2798, %v2797
        %v2843 = vpack.c.bf16 %v2800, %v2799
        %v2844 = vpack.c.bf16 %v2802, %v2801
        %v2845 = vpack.c.bf16 %v2804, %v2803
        %v2846 = vpack.c.bf16 %v2806, %v2805
        %v2847 = vpack.c.bf16 %v2808, %v2807
        %v2848 = vpack.c.bf16 %v2810, %v2809
        %v2849 = vpack.c.bf16 %v2812, %v2811
        %v2850 = vpack.c.bf16 %v2814, %v2813
        %v2851 = vpack.c.bf16 %v2816, %v2815
        %v2852 = vpack.c.bf16 %v2818, %v2817
        %v2853 = vpack.c.bf16 %v2820, %v2819
        %v2854 = vpack.c.bf16 %v2822, %v2821
        %v2855 = vpack.c.bf16 %v2824, %v2823
        %v2856 = vpack.c.bf16 %v2826, %v2825
        %v2857 = vpack.c.bf16 %v2828, %v2827
        %v2858 = vpack.c.bf16 %v2830, %v2829
        %v2859 = vpack.c.bf16 %v2832, %v2831
        %v2860 = vpack.c.bf16 %v2834, %v2833
        %v2861 = vpack.c.bf16 %v2836, %v2835
        %v2862 = vpack.c.bf16 %v2838, %v2837
        %v2863 = vpack.c.bf16 %v2839, %v2839
        %s2864 = scalar_lea.vmem [#allocation6], 384
        %v2865 = vld [vmem:[%s2864] sm:$0xf]
        %v2866 = vld [vmem:[%s2864 + $0x4] sm:$0xf]
        %v2867 = vld [vmem:[%s2864 + $0x8] sm:$0xf]
        %v2868 = vld [vmem:[%s2864 + $0xc] sm:$0xf]
        %v2869 = vld [vmem:[%s2864 + $0x10] sm:$0xf]
        %v2870 = vld [vmem:[%s2864 + $0x14] sm:$0xf]
        %v2871 = vld [vmem:[%s2864 + $0x18] sm:$0xf]
        %v2872 = vld [vmem:[%s2864 + $0x1c] sm:$0xf]
        %v2873 = vld [vmem:[%s2864 + $0x20] sm:$0xf]
        %v2874 = vld [vmem:[%s2864 + $0x24] sm:$0xf]
        %v2875 = vld [vmem:[%s2864 + $0x28] sm:$0xf]
        %v2876 = vld [vmem:[%s2864 + $0x2c] sm:$0xf]
        %v2877 = vld [vmem:[%s2864 + $0x30] sm:$0xf]
        %v2878 = vld [vmem:[%s2864 + $0x34] sm:$0xf]
        %v2879 = vld [vmem:[%s2864 + $0x38] sm:$0xf]
        %v2880 = vld [vmem:[%s2864 + $0x3c] sm:$0xf]
        %v2897 = vunpack.c.l.b16 %v2865
        %v2898 = vunpack.c.l.b16 %v2866
        %v2899 = vunpack.c.l.b16 %v2867
        %v2900 = vunpack.c.l.b16 %v2868
        %v2901 = vunpack.c.l.b16 %v2869
        %v2902 = vunpack.c.l.b16 %v2870
        %v2903 = vunpack.c.l.b16 %v2871
        %v2904 = vunpack.c.l.b16 %v2872
        %v2905 = vunpack.c.l.b16 %v2873
        %v2906 = vunpack.c.l.b16 %v2874
        %v2907 = vunpack.c.l.b16 %v2875
        %v2908 = vunpack.c.l.b16 %v2876
        %v2909 = vunpack.c.l.b16 %v2877
        %v2910 = vunpack.c.l.b16 %v2878
        %v2911 = vunpack.c.l.b16 %v2879
        %v2912 = vunpack.c.l.b16 %v2880
        %v2913 = vpack.c.b16 %v2898, %v2897
        %v2914 = vpack.c.b16 %v2900, %v2899
        %v2915 = vpack.c.b16 %v2902, %v2901
        %v2916 = vpack.c.b16 %v2904, %v2903
        %v2917 = vpack.c.b16 %v2906, %v2905
        %v2918 = vpack.c.b16 %v2908, %v2907
        %v2919 = vpack.c.b16 %v2910, %v2909
        %v2920 = vpack.c.b16 %v2912, %v2911
        %2929 = vmatprep.subr.bf16.mxu0 0
        %2930 = vmatpush1.bf16.msra.mxu0 %v2913
        %2931 = vmatprep.subr.bf16.mxu0 0
        %2932 = vmatpush1.bf16.msra.mxu0 %v2914
        %2933 = vmatprep.subr.bf16.mxu0 0
        %2934 = vmatpush1.bf16.msra.mxu0 %v2915
        %2935 = vmatprep.subr.bf16.mxu0 0
        %2936 = vmatpush1.bf16.msra.mxu0 %v2916
        %2937 = vmatprep.subr.bf16.mxu0 0
        %2938 = vmatpush1.bf16.msra.mxu0 %v2917
        %2939 = vmatprep.subr.bf16.mxu0 0
        %2940 = vmatpush1.bf16.msra.mxu0 %v2918
        %2941 = vmatprep.subr.bf16.mxu0 0
        %2942 = vmatpush1.bf16.msra.mxu0 %v2919
        %2943 = vmatprep.subr.bf16.mxu0 0
        %2944 = vmatpush1.bf16.msra.mxu0 %v2920
        %2945 = vmatprep.subr.bf16.mxu0 0
        %2946 = vmatpush1.bf16.msra.mxu0 0
        %2947 = vmatprep.subr.bf16.mxu0 0
        %2948 = vmatpush1.bf16.msra.mxu0 0
        %2949 = vmatprep.subr.bf16.mxu0 0
        %2950 = vmatpush1.bf16.msra.mxu0 0
        %2951 = vmatprep.subr.bf16.mxu0 0
        %2952 = vmatpush1.bf16.msra.mxu0 0
        %2953 = vmatprep.subr.bf16.mxu0 0
        %2954 = vmatpush1.bf16.msra.mxu0 0
        %2955 = vmatprep.subr.bf16.mxu0 0
        %2956 = vmatpush1.bf16.msra.mxu0 0
        %2957 = vmatprep.subr.bf16.mxu0 0
        %2958 = vmatpush1.bf16.msra.mxu0 0
        %2959 = vmatprep.subr.bf16.mxu0 0
        %2960 = vmatpush1.bf16.msra.mxu0 0
        %2961 = vmatprep.mubr.bf16.mxu0 0
        %2962 = vmatmul.mubr.bf16.gmra.mrb[0].mxu0 %v2840
        %v2963 = vpop.f32.mrb[0].mxu0
        %v2964 = vadd.f32 0.0, %v2963
        %v2965 = vpop.f32.mrb[0].mxu0
        %v2966 = vpop.f32.mrb[0].mxu0
        %v2967 = vadd.f32 0.0, %v2966
        %v2968 = vpop.f32.mrb[0].mxu0
        %2969 = vmatprep.mubr.bf16.mxu0 0
        %2970 = vmatmul.mubr.bf16.gmra.mrb[0].mxu0 %v2841
        %v2971 = vpop.f32.mrb[0].mxu0
        %v2972 = vadd.f32 0.0, %v2971
        %v2973 = vpop.f32.mrb[0].mxu0
        %v2974 = vpop.f32.mrb[0].mxu0
        %v2975 = vadd.f32 0.0, %v2974
        %v2976 = vpop.f32.mrb[0].mxu0
        %2977 = vmatprep.mubr.bf16.mxu0 0
        %2978 = vmatmul.mubr.bf16.gmra.mrb[0].mxu0 %v2842
        %v2979 = vpop.f32.mrb[0].mxu0
        %v2980 = vadd.f32 0.0, %v2979
        %v2981 = vpop.f32.mrb[0].mxu0
        %v2982 = vpop.f32.mrb[0].mxu0
        %v2983 = vadd.f32 0.0, %v2982
        %v2984 = vpop.f32.mrb[0].mxu0
        %2985 = vmatprep.mubr.bf16.mxu0 0
        %2986 = vmatmul.mubr.bf16.gmra.mrb[0].mxu0 %v2843
        %v2987 = vpop.f32.mrb[0].mxu0
        %v2988 = vadd.f32 0.0, %v2987
        %v2989 = vpop.f32.mrb[0].mxu0
        %v2990 = vpop.f32.mrb[0].mxu0
        %v2991 = vadd.f32 0.0, %v2990
        %v2992 = vpop.f32.mrb[0].mxu0
        %2993 = vmatprep.mubr.bf16.mxu0 0
        %2994 = vmatmul.mubr.bf16.gmra.mrb[0].mxu0 %v2844
        %v2995 = vpop.f32.mrb[0].mxu0
        %v2996 = vadd.f32 0.0, %v2995
        %v2997 = vpop.f32.mrb[0].mxu0
        %v2998 = vpop.f32.mrb[0].mxu0
        %v2999 = vadd.f32 0.0, %v2998
        %v3000 = vpop.f32.mrb[0].mxu0
        %3001 = vmatprep.mubr.bf16.mxu0 0
        %3002 = vmatmul.mubr.bf16.gmra.mrb[0].mxu0 %v2845
        %v3003 = vpop.f32.mrb[0].mxu0
        %v3004 = vadd.f32 0.0, %v3003
        %v3005 = vpop.f32.mrb[0].mxu0
        %v3006 = vpop.f32.mrb[0].mxu0
        %v3007 = vadd.f32 0.0, %v3006
        %v3008 = vpop.f32.mrb[0].mxu0
        %3009 = vmatprep.mubr.bf16.mxu0 0
        %3010 = vmatmul.mubr.bf16.gmra.mrb[0].mxu0 %v2846
        %v3011 = vpop.f32.mrb[0].mxu0
        %v3012 = vadd.f32 0.0, %v3011
        %v3013 = vpop.f32.mrb[0].mxu0
        %v3014 = vpop.f32.mrb[0].mxu0
        %v3015 = vadd.f32 0.0, %v3014
        %v3016 = vpop.f32.mrb[0].mxu0
        %3017 = vmatprep.mubr.bf16.mxu0 0
        %3018 = vmatmul.mubr.bf16.gmra.mrb[0].mxu0 %v2847
        %v3019 = vpop.f32.mrb[0].mxu0
        %v3020 = vadd.f32 0.0, %v3019
        %v3021 = vpop.f32.mrb[0].mxu0
        %v3022 = vpop.f32.mrb[0].mxu0
        %v3023 = vadd.f32 0.0, %v3022
        %v3024 = vpop.f32.mrb[0].mxu0
        %3025 = vmatprep.mubr.bf16.mxu0 0
        %3026 = vmatmul.mubr.bf16.gmra.mrb[0].mxu0 %v2848
        %v3027 = vpop.f32.mrb[0].mxu0
        %v3028 = vadd.f32 0.0, %v3027
        %v3029 = vpop.f32.mrb[0].mxu0
        %v3030 = vpop.f32.mrb[0].mxu0
        %v3031 = vadd.f32 0.0, %v3030
        %v3032 = vpop.f32.mrb[0].mxu0
        %3033 = vmatprep.mubr.bf16.mxu0 0
        %3034 = vmatmul.mubr.bf16.gmra.mrb[0].mxu0 %v2849
        %v3035 = vpop.f32.mrb[0].mxu0
        %v3036 = vadd.f32 0.0, %v3035
        %v3037 = vpop.f32.mrb[0].mxu0
        %v3038 = vpop.f32.mrb[0].mxu0
        %v3039 = vadd.f32 0.0, %v3038
        %v3040 = vpop.f32.mrb[0].mxu0
        %3041 = vmatprep.mubr.bf16.mxu0 0
        %3042 = vmatmul.mubr.bf16.gmra.mrb[0].mxu0 %v2850
        %v3043 = vpop.f32.mrb[0].mxu0
        %v3044 = vadd.f32 0.0, %v3043
        %v3045 = vpop.f32.mrb[0].mxu0
        %v3046 = vpop.f32.mrb[0].mxu0
        %v3047 = vadd.f32 0.0, %v3046
        %v3048 = vpop.f32.mrb[0].mxu0
        %3049 = vmatprep.mubr.bf16.mxu0 0
        %3050 = vmatmul.mubr.bf16.gmra.mrb[0].mxu0 %v2851
        %v3051 = vpop.f32.mrb[0].mxu0
        %v3052 = vadd.f32 0.0, %v3051
        %v3053 = vpop.f32.mrb[0].mxu0
        %v3054 = vpop.f32.mrb[0].mxu0
        %v3055 = vadd.f32 0.0, %v3054
        %v3056 = vpop.f32.mrb[0].mxu0
        %3057 = vmatprep.mubr.bf16.mxu0 0
        %3058 = vmatmul.mubr.bf16.gmra.mrb[0].mxu0 %v2852
        %v3059 = vpop.f32.mrb[0].mxu0
        %v3060 = vadd.f32 0.0, %v3059
        %v3061 = vpop.f32.mrb[0].mxu0
        %v3062 = vpop.f32.mrb[0].mxu0
        %v3063 = vadd.f32 0.0, %v3062
        %v3064 = vpop.f32.mrb[0].mxu0
        %3065 = vmatprep.mubr.bf16.mxu0 0
        %3066 = vmatmul.mubr.bf16.gmra.mrb[0].mxu0 %v2853
        %v3067 = vpop.f32.mrb[0].mxu0
        %v3068 = vadd.f32 0.0, %v3067
        %v3069 = vpop.f32.mrb[0].mxu0
        %v3070 = vpop.f32.mrb[0].mxu0
        %v3071 = vadd.f32 0.0, %v3070
        %v3072 = vpop.f32.mrb[0].mxu0
        %3073 = vmatprep.mubr.bf16.mxu0 0
        %3074 = vmatmul.mubr.bf16.gmra.mrb[0].mxu0 %v2854
        %v3075 = vpop.f32.mrb[0].mxu0
        %v3076 = vadd.f32 0.0, %v3075
        %v3077 = vpop.f32.mrb[0].mxu0
        %v3078 = vpop.f32.mrb[0].mxu0
        %v3079 = vadd.f32 0.0, %v3078
        %v3080 = vpop.f32.mrb[0].mxu0
        %3081 = vmatprep.mubr.bf16.mxu0 0
        %3082 = vmatmul.mubr.bf16.gmra.mrb[0].mxu0 %v2855
        %v3083 = vpop.f32.mrb[0].mxu0
        %v3084 = vadd.f32 0.0, %v3083
        %v3085 = vpop.f32.mrb[0].mxu0
        %v3086 = vpop.f32.mrb[0].mxu0
        %v3087 = vadd.f32 0.0, %v3086
        %v3088 = vpop.f32.mrb[0].mxu0
        %3089 = vmatprep.mubr.bf16.mxu0 0
        %3090 = vmatmul.mubr.bf16.gmra.mrb[0].mxu0 %v2856
        %v3091 = vpop.f32.mrb[0].mxu0
        %v3092 = vadd.f32 0.0, %v3091
        %v3093 = vpop.f32.mrb[0].mxu0
        %v3094 = vpop.f32.mrb[0].mxu0
        %v3095 = vadd.f32 0.0, %v3094
        %v3096 = vpop.f32.mrb[0].mxu0
        %3097 = vmatprep.mubr.bf16.mxu0 0
        %3098 = vmatmul.mubr.bf16.gmra.mrb[0].mxu0 %v2857
        %v3099 = vpop.f32.mrb[0].mxu0
        %v3100 = vadd.f32 0.0, %v3099
        %v3101 = vpop.f32.mrb[0].mxu0
        %v3102 = vpop.f32.mrb[0].mxu0
        %v3103 = vadd.f32 0.0, %v3102
        %v3104 = vpop.f32.mrb[0].mxu0
        %3105 = vmatprep.mubr.bf16.mxu0 0
        %3106 = vmatmul.mubr.bf16.gmra.mrb[0].mxu0 %v2858
        %v3107 = vpop.f32.mrb[0].mxu0
        %v3108 = vadd.f32 0.0, %v3107
        %v3109 = vpop.f32.mrb[0].mxu0
        %v3110 = vpop.f32.mrb[0].mxu0
        %v3111 = vadd.f32 0.0, %v3110
        %v3112 = vpop.f32.mrb[0].mxu0
        %3113 = vmatprep.mubr.bf16.mxu0 0
        %3114 = vmatmul.mubr.bf16.gmra.mrb[0].mxu0 %v2859
        %v3115 = vpop.f32.mrb[0].mxu0
        %v3116 = vadd.f32 0.0, %v3115
        %v3117 = vpop.f32.mrb[0].mxu0
        %v3118 = vpop.f32.mrb[0].mxu0
        %v3119 = vadd.f32 0.0, %v3118
        %v3120 = vpop.f32.mrb[0].mxu0
        %3121 = vmatprep.mubr.bf16.mxu0 0
        %3122 = vmatmul.mubr.bf16.gmra.mrb[0].mxu0 %v2860
        %v3123 = vpop.f32.mrb[0].mxu0
        %v3124 = vadd.f32 0.0, %v3123
        %v3125 = vpop.f32.mrb[0].mxu0
        %v3126 = vpop.f32.mrb[0].mxu0
        %v3127 = vadd.f32 0.0, %v3126
        %v3128 = vpop.f32.mrb[0].mxu0
        %3129 = vmatprep.mubr.bf16.mxu0 0
        %3130 = vmatmul.mubr.bf16.gmra.mrb[0].mxu0 %v2861
        %v3131 = vpop.f32.mrb[0].mxu0
        %v3132 = vadd.f32 0.0, %v3131
        %v3133 = vpop.f32.mrb[0].mxu0
        %v3134 = vpop.f32.mrb[0].mxu0
        %v3135 = vadd.f32 0.0, %v3134
        %v3136 = vpop.f32.mrb[0].mxu0
        %3137 = vmatprep.mubr.bf16.mxu0 0
        %3138 = vmatmul.mubr.bf16.gmra.mrb[0].mxu0 %v2862
        %v3139 = vpop.f32.mrb[0].mxu0
        %v3140 = vadd.f32 0.0, %v3139
        %v3141 = vpop.f32.mrb[0].mxu0
        %v3142 = vpop.f32.mrb[0].mxu0
        %v3143 = vadd.f32 0.0, %v3142
        %v3144 = vpop.f32.mrb[0].mxu0
        %3145 = vmatprep.mubr.bf16.mxu0 0
        %3146 = vmatmul.mubr.bf16.gmra.mrb[0].mxu0 %v2863
        %v3147 = vpop.f32.mrb[0].mxu0
        %v3148 = vadd.f32 0.0, %v3147
        %v3149 = vpop.f32.mrb[0].mxu0
        %v3150 = vpop.f32.mrb[0].mxu0
        %v3151 = vpop.f32.mrb[0].mxu0
        %3152 = vdwg.mxu0
        %v3153 = vadd.f32 %v2746, %v2964
        %v3154 = vadd.f32 %v2747, %v2967
        %v3155 = vadd.f32 %v2748, %v2972
        %v3156 = vadd.f32 %v2749, %v2975
        %v3157 = vadd.f32 %v2750, %v2980
        %v3158 = vadd.f32 %v2751, %v2983
        %v3159 = vadd.f32 %v2752, %v2988
        %v3160 = vadd.f32 %v2753, %v2991
        %v3161 = vadd.f32 %v2754, %v2996
        %v3162 = vadd.f32 %v2755, %v2999
        %v3163 = vadd.f32 %v2756, %v3004
        %v3164 = vadd.f32 %v2757, %v3007
        %v3165 = vadd.f32 %v2758, %v3012
        %v3166 = vadd.f32 %v2759, %v3015
        %v3167 = vadd.f32 %v2760, %v3020
        %v3168 = vadd.f32 %v2761, %v3023
        %v3169 = vadd.f32 %v2762, %v3028
        %v3170 = vadd.f32 %v2763, %v3031
        %v3171 = vadd.f32 %v2764, %v3036
        %v3172 = vadd.f32 %v2765, %v3039
        %v3173 = vadd.f32 %v2766, %v3044
        %v3174 = vadd.f32 %v2767, %v3047
        %v3175 = vadd.f32 %v2768, %v3052
        %v3176 = vadd.f32 %v2769, %v3055
        %v3177 = vadd.f32 %v2770, %v3060
        %v3178 = vadd.f32 %v2771, %v3063
        %v3179 = vadd.f32 %v2772, %v3068
        %v3180 = vadd.f32 %v2773, %v3071
        %v3181 = vadd.f32 %v2774, %v3076
        %v3182 = vadd.f32 %v2775, %v3079
        %v3183 = vadd.f32 %v2776, %v3084
        %v3184 = vadd.f32 %v2777, %v3087
        %v3185 = vadd.f32 %v2778, %v3092
        %v3186 = vadd.f32 %v2779, %v3095
        %v3187 = vadd.f32 %v2780, %v3100
        %v3188 = vadd.f32 %v2781, %v3103
        %v3189 = vadd.f32 %v2782, %v3108
        %v3190 = vadd.f32 %v2783, %v3111
        %v3191 = vadd.f32 %v2784, %v3116
        %v3192 = vadd.f32 %v2785, %v3119
        %v3193 = vadd.f32 %v2786, %v3124
        %v3194 = vadd.f32 %v2787, %v3127
        %v3195 = vadd.f32 %v2788, %v3132
        %v3196 = vadd.f32 %v2789, %v3135
        %v3197 = vadd.f32 %v2790, %v3140
        %v3198 = vadd.f32 %v2791, %v3143
        %v3199 = vadd.f32 %v2792, %v3148
        %v3200 = vld [vmem:[#allocation3 + $0x25] sm:$0xff]
        %v3201 = vld [vmem:[#allocation3 + $0x2d] sm:$0xff]
        %v3202 = vld [vmem:[#allocation3 + $0x35] sm:$0xff]
        %v3203 = vld [vmem:[#allocation3 + $0x3d] sm:$0xff]
        %v3204 = vld [vmem:[#allocation3 + $0x45] sm:$0xff]
        %v3205 = vld [vmem:[#allocation3 + $0x4d] sm:$0xff]
        %v3206 = vld [vmem:[#allocation3 + $0x55] sm:$0xff]
        %v3207 = vld [vmem:[#allocation3 + $0x5d] sm:$0xff]
        %v3208 = vld [vmem:[#allocation3 + $0x65] sm:$0xff]
        %v3209 = vld [vmem:[#allocation3 + $0x6d] sm:$0xff]
        %v3210 = vld [vmem:[#allocation3 + $0x75] sm:$0xff]
        %v3211 = vld [vmem:[#allocation3 + $0x7d] sm:$0xff]
        %v3212 = vld [vmem:[#allocation3 + $0x85] sm:$0xff]
        %v3213 = vld [vmem:[#allocation3 + $0x8d] sm:$0xff]
        %v3214 = vld [vmem:[#allocation3 + $0x95] sm:$0xff]
        %v3215 = vld [vmem:[#allocation3 + $0x9d] sm:$0xff]
        %v3216 = vld [vmem:[#allocation3 + $0xa5] sm:$0xff]
        %v3217 = vld [vmem:[#allocation3 + $0xad] sm:$0xff]
        %v3218 = vld [vmem:[#allocation3 + $0xb5] sm:$0xff]
        %v3219 = vld [vmem:[#allocation3 + $0xbd] sm:$0xff]
        %v3220 = vld [vmem:[#allocation3 + $0xc5] sm:$0xff]
        %v3221 = vld [vmem:[#allocation3 + $0xcd] sm:$0xff]
        %v3222 = vld [vmem:[#allocation3 + $0xd5] sm:$0xff]
        %v3223 = vld [vmem:[#allocation3 + $0xdd] sm:$0xff]
        %v3224 = vld [vmem:[#allocation3 + $0xe5] sm:$0xff]
        %v3225 = vld [vmem:[#allocation3 + $0xed] sm:$0xff]
        %v3226 = vld [vmem:[#allocation3 + $0xf5] sm:$0xff]
        %v3227 = vld [vmem:[#allocation3 + $0xfd] sm:$0xff]
        %v3228 = vld [vmem:[#allocation3 + $0x105] sm:$0xff]
        %v3229 = vld [vmem:[#allocation3 + $0x10d] sm:$0xff]
        %v3230 = vld [vmem:[#allocation3 + $0x115] sm:$0xff]
        %v3231 = vld [vmem:[#allocation3 + $0x11d] sm:$0xff]
        %v3232 = vld [vmem:[#allocation3 + $0x125] sm:$0xff]
        %v3233 = vld [vmem:[#allocation3 + $0x12d] sm:$0xff]
        %v3234 = vld [vmem:[#allocation3 + $0x135] sm:$0xff]
        %v3235 = vld [vmem:[#allocation3 + $0x13d] sm:$0xff]
        %v3236 = vld [vmem:[#allocation3 + $0x145] sm:$0xff]
        %v3237 = vld [vmem:[#allocation3 + $0x14d] sm:$0xff]
        %v3238 = vld [vmem:[#allocation3 + $0x155] sm:$0xff]
        %v3239 = vld [vmem:[#allocation3 + $0x15d] sm:$0xff]
        %v3240 = vld [vmem:[#allocation3 + $0x165] sm:$0xff]
        %v3241 = vld [vmem:[#allocation3 + $0x16d] sm:$0xff]
        %v3242 = vld [vmem:[#allocation3 + $0x175] sm:$0xff]
        %v3243 = vld [vmem:[#allocation3 + $0x17d] sm:$0xff]
        %v3244 = vld [vmem:[#allocation3 + $0x185] sm:$0xff]
        %v3245 = vld [vmem:[#allocation3 + $0x18d] sm:$0xff]
        %v3246 = vld [vmem:[#allocation3 + $0x195] sm:$0x3f]
        %v3247 = vpack.c.bf16 %v3201, %v3200
        %v3248 = vpack.c.bf16 %v3203, %v3202
        %v3249 = vpack.c.bf16 %v3205, %v3204
        %v3250 = vpack.c.bf16 %v3207, %v3206
        %v3251 = vpack.c.bf16 %v3209, %v3208
        %v3252 = vpack.c.bf16 %v3211, %v3210
        %v3253 = vpack.c.bf16 %v3213, %v3212
        %v3254 = vpack.c.bf16 %v3215, %v3214
        %v3255 = vpack.c.bf16 %v3217, %v3216
        %v3256 = vpack.c.bf16 %v3219, %v3218
        %v3257 = vpack.c.bf16 %v3221, %v3220
        %v3258 = vpack.c.bf16 %v3223, %v3222
        %v3259 = vpack.c.bf16 %v3225, %v3224
        %v3260 = vpack.c.bf16 %v3227, %v3226
        %v3261 = vpack.c.bf16 %v3229, %v3228
        %v3262 = vpack.c.bf16 %v3231, %v3230
        %v3263 = vpack.c.bf16 %v3233, %v3232
        %v3264 = vpack.c.bf16 %v3235, %v3234
        %v3265 = vpack.c.bf16 %v3237, %v3236
        %v3266 = vpack.c.bf16 %v3239, %v3238
        %v3267 = vpack.c.bf16 %v3241, %v3240
        %v3268 = vpack.c.bf16 %v3243, %v3242
        %v3269 = vpack.c.bf16 %v3245, %v3244
        %v3270 = vpack.c.bf16 %v3246, %v3246
        %s3271 = scalar_lea.vmem [#allocation6], 448
        %v3272 = vld [vmem:[%s3271] sm:$0xf]
        %v3273 = vld [vmem:[%s3271 + $0x4] sm:$0xf]
        %v3274 = vld [vmem:[%s3271 + $0x8] sm:$0xf]
        %v3275 = vld [vmem:[%s3271 + $0xc] sm:$0xf]
        %v3276 = vld [vmem:[%s3271 + $0x10] sm:$0xf]
        %v3277 = vld [vmem:[%s3271 + $0x14] sm:$0xf]
        %v3278 = vld [vmem:[%s3271 + $0x18] sm:$0xf]
        %v3279 = vld [vmem:[%s3271 + $0x1c] sm:$0xf]
        %v3280 = vld [vmem:[%s3271 + $0x20] sm:$0xf]
        %v3281 = vld [vmem:[%s3271 + $0x24] sm:$0xf]
        %v3282 = vld [vmem:[%s3271 + $0x28] sm:$0xf]
        %v3283 = vld [vmem:[%s3271 + $0x2c] sm:$0xf]
        %v3284 = vld [vmem:[%s3271 + $0x30] sm:$0xf]
        %v3285 = vld [vmem:[%s3271 + $0x34] sm:$0xf]
        %v3286 = vld [vmem:[%s3271 + $0x38] sm:$0xf]
        %v3287 = vld [vmem:[%s3271 + $0x3c] sm:$0xf]
        %v3304 = vunpack.c.l.b16 %v3272
        %v3305 = vunpack.c.l.b16 %v3273
        %v3306 = vunpack.c.l.b16 %v3274
        %v3307 = vunpack.c.l.b16 %v3275
        %v3308 = vunpack.c.l.b16 %v3276
        %v3309 = vunpack.c.l.b16 %v3277
        %v3310 = vunpack.c.l.b16 %v3278
        %v3311 = vunpack.c.l.b16 %v3279
        %v3312 = vunpack.c.l.b16 %v3280
        %v3313 = vunpack.c.l.b16 %v3281
        %v3314 = vunpack.c.l.b16 %v3282
        %v3315 = vunpack.c.l.b16 %v3283
        %v3316 = vunpack.c.l.b16 %v3284
        %v3317 = vunpack.c.l.b16 %v3285
        %v3318 = vunpack.c.l.b16 %v3286
        %v3319 = vunpack.c.l.b16 %v3287
        %v3320 = vpack.c.b16 %v3305, %v3304
        %v3321 = vpack.c.b16 %v3307, %v3306
        %v3322 = vpack.c.b16 %v3309, %v3308
        %v3323 = vpack.c.b16 %v3311, %v3310
        %v3324 = vpack.c.b16 %v3313, %v3312
        %v3325 = vpack.c.b16 %v3315, %v3314
        %v3326 = vpack.c.b16 %v3317, %v3316
        %v3327 = vpack.c.b16 %v3319, %v3318
        %3336 = vmatprep.subr.bf16.mxu0 0
        %3337 = vmatpush1.bf16.msra.mxu0 %v3320
        %3338 = vmatprep.subr.bf16.mxu0 0
        %3339 = vmatpush1.bf16.msra.mxu0 %v3321
        %3340 = vmatprep.subr.bf16.mxu0 0
        %3341 = vmatpush1.bf16.msra.mxu0 %v3322
        %3342 = vmatprep.subr.bf16.mxu0 0
        %3343 = vmatpush1.bf16.msra.mxu0 %v3323
        %3344 = vmatprep.subr.bf16.mxu0 0
        %3345 = vmatpush1.bf16.msra.mxu0 %v3324
        %3346 = vmatprep.subr.bf16.mxu0 0
        %3347 = vmatpush1.bf16.msra.mxu0 %v3325
        %3348 = vmatprep.subr.bf16.mxu0 0
        %3349 = vmatpush1.bf16.msra.mxu0 %v3326
        %3350 = vmatprep.subr.bf16.mxu0 0
        %3351 = vmatpush1.bf16.msra.mxu0 %v3327
        %3352 = vmatprep.subr.bf16.mxu0 0
        %3353 = vmatpush1.bf16.msra.mxu0 0
        %3354 = vmatprep.subr.bf16.mxu0 0
        %3355 = vmatpush1.bf16.msra.mxu0 0
        %3356 = vmatprep.subr.bf16.mxu0 0
        %3357 = vmatpush1.bf16.msra.mxu0 0
        %3358 = vmatprep.subr.bf16.mxu0 0
        %3359 = vmatpush1.bf16.msra.mxu0 0
        %3360 = vmatprep.subr.bf16.mxu0 0
        %3361 = vmatpush1.bf16.msra.mxu0 0
        %3362 = vmatprep.subr.bf16.mxu0 0
        %3363 = vmatpush1.bf16.msra.mxu0 0
        %3364 = vmatprep.subr.bf16.mxu0 0
        %3365 = vmatpush1.bf16.msra.mxu0 0
        %3366 = vmatprep.subr.bf16.mxu0 0
        %3367 = vmatpush1.bf16.msra.mxu0 0
        %3368 = vmatprep.mubr.bf16.mxu0 0
        %3369 = vmatmul.mubr.bf16.gmra.mrb[0].mxu0 %v3247
        %v3370 = vpop.f32.mrb[0].mxu0
        %v3371 = vadd.f32 0.0, %v3370
        %v3372 = vpop.f32.mrb[0].mxu0
        %v3373 = vpop.f32.mrb[0].mxu0
        %v3374 = vadd.f32 0.0, %v3373
        %v3375 = vpop.f32.mrb[0].mxu0
        %3376 = vmatprep.mubr.bf16.mxu0 0
        %3377 = vmatmul.mubr.bf16.gmra.mrb[0].mxu0 %v3248
        %v3378 = vpop.f32.mrb[0].mxu0
        %v3379 = vadd.f32 0.0, %v3378
        %v3380 = vpop.f32.mrb[0].mxu0
        %v3381 = vpop.f32.mrb[0].mxu0
        %v3382 = vadd.f32 0.0, %v3381
        %v3383 = vpop.f32.mrb[0].mxu0
        %3384 = vmatprep.mubr.bf16.mxu0 0
        %3385 = vmatmul.mubr.bf16.gmra.mrb[0].mxu0 %v3249
        %v3386 = vpop.f32.mrb[0].mxu0
        %v3387 = vadd.f32 0.0, %v3386
        %v3388 = vpop.f32.mrb[0].mxu0
        %v3389 = vpop.f32.mrb[0].mxu0
        %v3390 = vadd.f32 0.0, %v3389
        %v3391 = vpop.f32.mrb[0].mxu0
        %3392 = vmatprep.mubr.bf16.mxu0 0
        %3393 = vmatmul.mubr.bf16.gmra.mrb[0].mxu0 %v3250
        %v3394 = vpop.f32.mrb[0].mxu0
        %v3395 = vadd.f32 0.0, %v3394
        %v3396 = vpop.f32.mrb[0].mxu0
        %v3397 = vpop.f32.mrb[0].mxu0
        %v3398 = vadd.f32 0.0, %v3397
        %v3399 = vpop.f32.mrb[0].mxu0
        %3400 = vmatprep.mubr.bf16.mxu0 0
        %3401 = vmatmul.mubr.bf16.gmra.mrb[0].mxu0 %v3251
        %v3402 = vpop.f32.mrb[0].mxu0
        %v3403 = vadd.f32 0.0, %v3402
        %v3404 = vpop.f32.mrb[0].mxu0
        %v3405 = vpop.f32.mrb[0].mxu0
        %v3406 = vadd.f32 0.0, %v3405
        %v3407 = vpop.f32.mrb[0].mxu0
        %3408 = vmatprep.mubr.bf16.mxu0 0
        %3409 = vmatmul.mubr.bf16.gmra.mrb[0].mxu0 %v3252
        %v3410 = vpop.f32.mrb[0].mxu0
        %v3411 = vadd.f32 0.0, %v3410
        %v3412 = vpop.f32.mrb[0].mxu0
        %v3413 = vpop.f32.mrb[0].mxu0
        %v3414 = vadd.f32 0.0, %v3413
        %v3415 = vpop.f32.mrb[0].mxu0
        %3416 = vmatprep.mubr.bf16.mxu0 0
        %3417 = vmatmul.mubr.bf16.gmra.mrb[0].mxu0 %v3253
        %v3418 = vpop.f32.mrb[0].mxu0
        %v3419 = vadd.f32 0.0, %v3418
        %v3420 = vpop.f32.mrb[0].mxu0
        %v3421 = vpop.f32.mrb[0].mxu0
        %v3422 = vadd.f32 0.0, %v3421
        %v3423 = vpop.f32.mrb[0].mxu0
        %3424 = vmatprep.mubr.bf16.mxu0 0
        %3425 = vmatmul.mubr.bf16.gmra.mrb[0].mxu0 %v3254
        %v3426 = vpop.f32.mrb[0].mxu0
        %v3427 = vadd.f32 0.0, %v3426
        %v3428 = vpop.f32.mrb[0].mxu0
        %v3429 = vpop.f32.mrb[0].mxu0
        %v3430 = vadd.f32 0.0, %v3429
        %v3431 = vpop.f32.mrb[0].mxu0
        %3432 = vmatprep.mubr.bf16.mxu0 0
        %3433 = vmatmul.mubr.bf16.gmra.mrb[0].mxu0 %v3255
        %v3434 = vpop.f32.mrb[0].mxu0
        %v3435 = vadd.f32 0.0, %v3434
        %v3436 = vpop.f32.mrb[0].mxu0
        %v3437 = vpop.f32.mrb[0].mxu0
        %v3438 = vadd.f32 0.0, %v3437
        %v3439 = vpop.f32.mrb[0].mxu0
        %3440 = vmatprep.mubr.bf16.mxu0 0
        %3441 = vmatmul.mubr.bf16.gmra.mrb[0].mxu0 %v3256
        %v3442 = vpop.f32.mrb[0].mxu0
        %v3443 = vadd.f32 0.0, %v3442
        %v3444 = vpop.f32.mrb[0].mxu0
        %v3445 = vpop.f32.mrb[0].mxu0
        %v3446 = vadd.f32 0.0, %v3445
        %v3447 = vpop.f32.mrb[0].mxu0
        %3448 = vmatprep.mubr.bf16.mxu0 0
        %3449 = vmatmul.mubr.bf16.gmra.mrb[0].mxu0 %v3257
        %v3450 = vpop.f32.mrb[0].mxu0
        %v3451 = vadd.f32 0.0, %v3450
        %v3452 = vpop.f32.mrb[0].mxu0
        %v3453 = vpop.f32.mrb[0].mxu0
        %v3454 = vadd.f32 0.0, %v3453
        %v3455 = vpop.f32.mrb[0].mxu0
        %3456 = vmatprep.mubr.bf16.mxu0 0
        %3457 = vmatmul.mubr.bf16.gmra.mrb[0].mxu0 %v3258
        %v3458 = vpop.f32.mrb[0].mxu0
        %v3459 = vadd.f32 0.0, %v3458
        %v3460 = vpop.f32.mrb[0].mxu0
        %v3461 = vpop.f32.mrb[0].mxu0
        %v3462 = vadd.f32 0.0, %v3461
        %v3463 = vpop.f32.mrb[0].mxu0
        %3464 = vmatprep.mubr.bf16.mxu0 0
        %3465 = vmatmul.mubr.bf16.gmra.mrb[0].mxu0 %v3259
        %v3466 = vpop.f32.mrb[0].mxu0
        %v3467 = vadd.f32 0.0, %v3466
        %v3468 = vpop.f32.mrb[0].mxu0
        %v3469 = vpop.f32.mrb[0].mxu0
        %v3470 = vadd.f32 0.0, %v3469
        %v3471 = vpop.f32.mrb[0].mxu0
        %3472 = vmatprep.mubr.bf16.mxu0 0
        %3473 = vmatmul.mubr.bf16.gmra.mrb[0].mxu0 %v3260
        %v3474 = vpop.f32.mrb[0].mxu0
        %v3475 = vadd.f32 0.0, %v3474
        %v3476 = vpop.f32.mrb[0].mxu0
        %v3477 = vpop.f32.mrb[0].mxu0
        %v3478 = vadd.f32 0.0, %v3477
        %v3479 = vpop.f32.mrb[0].mxu0
        %3480 = vmatprep.mubr.bf16.mxu0 0
        %3481 = vmatmul.mubr.bf16.gmra.mrb[0].mxu0 %v3261
        %v3482 = vpop.f32.mrb[0].mxu0
        %v3483 = vadd.f32 0.0, %v3482
        %v3484 = vpop.f32.mrb[0].mxu0
        %v3485 = vpop.f32.mrb[0].mxu0
        %v3486 = vadd.f32 0.0, %v3485
        %v3487 = vpop.f32.mrb[0].mxu0
        %3488 = vmatprep.mubr.bf16.mxu0 0
        %3489 = vmatmul.mubr.bf16.gmra.mrb[0].mxu0 %v3262
        %v3490 = vpop.f32.mrb[0].mxu0
        %v3491 = vadd.f32 0.0, %v3490
        %v3492 = vpop.f32.mrb[0].mxu0
        %v3493 = vpop.f32.mrb[0].mxu0
        %v3494 = vadd.f32 0.0, %v3493
        %v3495 = vpop.f32.mrb[0].mxu0
        %3496 = vmatprep.mubr.bf16.mxu0 0
        %3497 = vmatmul.mubr.bf16.gmra.mrb[0].mxu0 %v3263
        %v3498 = vpop.f32.mrb[0].mxu0
        %v3499 = vadd.f32 0.0, %v3498
        %v3500 = vpop.f32.mrb[0].mxu0
        %v3501 = vpop.f32.mrb[0].mxu0
        %v3502 = vadd.f32 0.0, %v3501
        %v3503 = vpop.f32.mrb[0].mxu0
        %3504 = vmatprep.mubr.bf16.mxu0 0
        %3505 = vmatmul.mubr.bf16.gmra.mrb[0].mxu0 %v3264
        %v3506 = vpop.f32.mrb[0].mxu0
        %v3507 = vadd.f32 0.0, %v3506
        %v3508 = vpop.f32.mrb[0].mxu0
        %v3509 = vpop.f32.mrb[0].mxu0
        %v3510 = vadd.f32 0.0, %v3509
        %v3511 = vpop.f32.mrb[0].mxu0
        %3512 = vmatprep.mubr.bf16.mxu0 0
        %3513 = vmatmul.mubr.bf16.gmra.mrb[0].mxu0 %v3265
        %v3514 = vpop.f32.mrb[0].mxu0
        %v3515 = vadd.f32 0.0, %v3514
        %v3516 = vpop.f32.mrb[0].mxu0
        %v3517 = vpop.f32.mrb[0].mxu0
        %v3518 = vadd.f32 0.0, %v3517
        %v3519 = vpop.f32.mrb[0].mxu0
        %3520 = vmatprep.mubr.bf16.mxu0 0
        %3521 = vmatmul.mubr.bf16.gmra.mrb[0].mxu0 %v3266
        %v3522 = vpop.f32.mrb[0].mxu0
        %v3523 = vadd.f32 0.0, %v3522
        %v3524 = vpop.f32.mrb[0].mxu0
        %v3525 = vpop.f32.mrb[0].mxu0
        %v3526 = vadd.f32 0.0, %v3525
        %v3527 = vpop.f32.mrb[0].mxu0
        %3528 = vmatprep.mubr.bf16.mxu0 0
        %3529 = vmatmul.mubr.bf16.gmra.mrb[0].mxu0 %v3267
        %v3530 = vpop.f32.mrb[0].mxu0
        %v3531 = vadd.f32 0.0, %v3530
        %v3532 = vpop.f32.mrb[0].mxu0
        %v3533 = vpop.f32.mrb[0].mxu0
        %v3534 = vadd.f32 0.0, %v3533
        %v3535 = vpop.f32.mrb[0].mxu0
        %3536 = vmatprep.mubr.bf16.mxu0 0
        %3537 = vmatmul.mubr.bf16.gmra.mrb[0].mxu0 %v3268
        %v3538 = vpop.f32.mrb[0].mxu0
        %v3539 = vadd.f32 0.0, %v3538
        %v3540 = vpop.f32.mrb[0].mxu0
        %v3541 = vpop.f32.mrb[0].mxu0
        %v3542 = vadd.f32 0.0, %v3541
        %v3543 = vpop.f32.mrb[0].mxu0
        %3544 = vmatprep.mubr.bf16.mxu0 0
        %3545 = vmatmul.mubr.bf16.gmra.mrb[0].mxu0 %v3269
        %v3546 = vpop.f32.mrb[0].mxu0
        %v3547 = vadd.f32 0.0, %v3546
        %v3548 = vpop.f32.mrb[0].mxu0
        %v3549 = vpop.f32.mrb[0].mxu0
        %v3550 = vadd.f32 0.0, %v3549
        %v3551 = vpop.f32.mrb[0].mxu0
        %3552 = vmatprep.mubr.bf16.mxu0 0
        %3553 = vmatmul.mubr.bf16.gmra.mrb[0].mxu0 %v3270
        %v3554 = vpop.f32.mrb[0].mxu0
        %v3555 = vadd.f32 0.0, %v3554
        %v3556 = vpop.f32.mrb[0].mxu0
        %v3557 = vpop.f32.mrb[0].mxu0
        %v3558 = vpop.f32.mrb[0].mxu0
        %3559 = vdwg.mxu0
        %v3560 = vadd.f32 %v3153, %v3371
        %v3561 = vadd.f32 %v3154, %v3374
        %v3562 = vadd.f32 %v3155, %v3379
        %v3563 = vadd.f32 %v3156, %v3382
        %v3564 = vadd.f32 %v3157, %v3387
        %v3565 = vadd.f32 %v3158, %v3390
        %v3566 = vadd.f32 %v3159, %v3395
        %v3567 = vadd.f32 %v3160, %v3398
        %v3568 = vadd.f32 %v3161, %v3403
        %v3569 = vadd.f32 %v3162, %v3406
        %v3570 = vadd.f32 %v3163, %v3411
        %v3571 = vadd.f32 %v3164, %v3414
        %v3572 = vadd.f32 %v3165, %v3419
        %v3573 = vadd.f32 %v3166, %v3422
        %v3574 = vadd.f32 %v3167, %v3427
        %v3575 = vadd.f32 %v3168, %v3430
        %v3576 = vadd.f32 %v3169, %v3435
        %v3577 = vadd.f32 %v3170, %v3438
        %v3578 = vadd.f32 %v3171, %v3443
        %v3579 = vadd.f32 %v3172, %v3446
        %v3580 = vadd.f32 %v3173, %v3451
        %v3581 = vadd.f32 %v3174, %v3454
        %v3582 = vadd.f32 %v3175, %v3459
        %v3583 = vadd.f32 %v3176, %v3462
        %v3584 = vadd.f32 %v3177, %v3467
        %v3585 = vadd.f32 %v3178, %v3470
        %v3586 = vadd.f32 %v3179, %v3475
        %v3587 = vadd.f32 %v3180, %v3478
        %v3588 = vadd.f32 %v3181, %v3483
        %v3589 = vadd.f32 %v3182, %v3486
        %v3590 = vadd.f32 %v3183, %v3491
        %v3591 = vadd.f32 %v3184, %v3494
        %v3592 = vadd.f32 %v3185, %v3499
        %v3593 = vadd.f32 %v3186, %v3502
        %v3594 = vadd.f32 %v3187, %v3507
        %v3595 = vadd.f32 %v3188, %v3510
        %v3596 = vadd.f32 %v3189, %v3515
        %v3597 = vadd.f32 %v3190, %v3518
        %v3598 = vadd.f32 %v3191, %v3523
        %v3599 = vadd.f32 %v3192, %v3526
        %v3600 = vadd.f32 %v3193, %v3531
        %v3601 = vadd.f32 %v3194, %v3534
        %v3602 = vadd.f32 %v3195, %v3539
        %v3603 = vadd.f32 %v3196, %v3542
        %v3604 = vadd.f32 %v3197, %v3547
        %v3605 = vadd.f32 %v3198, %v3550
        %v3606 = vadd.f32 %v3199, %v3555
        %v3607 = vld [vmem:[#allocation3 + $0x26] sm:$0xff]
        %v3608 = vld [vmem:[#allocation3 + $0x2e] sm:$0xff]
        %v3609 = vld [vmem:[#allocation3 + $0x36] sm:$0xff]
        %v3610 = vld [vmem:[#allocation3 + $0x3e] sm:$0xff]
        %v3611 = vld [vmem:[#allocation3 + $0x46] sm:$0xff]
        %v3612 = vld [vmem:[#allocation3 + $0x4e] sm:$0xff]
        %v3613 = vld [vmem:[#allocation3 + $0x56] sm:$0xff]
        %v3614 = vld [vmem:[#allocation3 + $0x5e] sm:$0xff]
        %v3615 = vld [vmem:[#allocation3 + $0x66] sm:$0xff]
        %v3616 = vld [vmem:[#allocation3 + $0x6e] sm:$0xff]
        %v3617 = vld [vmem:[#allocation3 + $0x76] sm:$0xff]
        %v3618 = vld [vmem:[#allocation3 + $0x7e] sm:$0xff]
        %v3619 = vld [vmem:[#allocation3 + $0x86] sm:$0xff]
        %v3620 = vld [vmem:[#allocation3 + $0x8e] sm:$0xff]
        %v3621 = vld [vmem:[#allocation3 + $0x96] sm:$0xff]
        %v3622 = vld [vmem:[#allocation3 + $0x9e] sm:$0xff]
        %v3623 = vld [vmem:[#allocation3 + $0xa6] sm:$0xff]
        %v3624 = vld [vmem:[#allocation3 + $0xae] sm:$0xff]
        %v3625 = vld [vmem:[#allocation3 + $0xb6] sm:$0xff]
        %v3626 = vld [vmem:[#allocation3 + $0xbe] sm:$0xff]
        %v3627 = vld [vmem:[#allocation3 + $0xc6] sm:$0xff]
        %v3628 = vld [vmem:[#allocation3 + $0xce] sm:$0xff]
        %v3629 = vld [vmem:[#allocation3 + $0xd6] sm:$0xff]
        %v3630 = vld [vmem:[#allocation3 + $0xde] sm:$0xff]
        %v3631 = vld [vmem:[#allocation3 + $0xe6] sm:$0xff]
        %v3632 = vld [vmem:[#allocation3 + $0xee] sm:$0xff]
        %v3633 = vld [vmem:[#allocation3 + $0xf6] sm:$0xff]
        %v3634 = vld [vmem:[#allocation3 + $0xfe] sm:$0xff]
        %v3635 = vld [vmem:[#allocation3 + $0x106] sm:$0xff]
        %v3636 = vld [vmem:[#allocation3 + $0x10e] sm:$0xff]
        %v3637 = vld [vmem:[#allocation3 + $0x116] sm:$0xff]
        %v3638 = vld [vmem:[#allocation3 + $0x11e] sm:$0xff]
        %v3639 = vld [vmem:[#allocation3 + $0x126] sm:$0xff]
        %v3640 = vld [vmem:[#allocation3 + $0x12e] sm:$0xff]
        %v3641 = vld [vmem:[#allocation3 + $0x136] sm:$0xff]
        %v3642 = vld [vmem:[#allocation3 + $0x13e] sm:$0xff]
        %v3643 = vld [vmem:[#allocation3 + $0x146] sm:$0xff]
        %v3644 = vld [vmem:[#allocation3 + $0x14e] sm:$0xff]
        %v3645 = vld [vmem:[#allocation3 + $0x156] sm:$0xff]
        %v3646 = vld [vmem:[#allocation3 + $0x15e] sm:$0xff]
        %v3647 = vld [vmem:[#allocation3 + $0x166] sm:$0xff]
        %v3648 = vld [vmem:[#allocation3 + $0x16e] sm:$0xff]
        %v3649 = vld [vmem:[#allocation3 + $0x176] sm:$0xff]
        %v3650 = vld [vmem:[#allocation3 + $0x17e] sm:$0xff]
        %v3651 = vld [vmem:[#allocation3 + $0x186] sm:$0xff]
        %v3652 = vld [vmem:[#allocation3 + $0x18e] sm:$0xff]
        %v3653 = vld [vmem:[#allocation3 + $0x196] sm:$0x3f]
        %v3654 = vpack.c.bf16 %v3608, %v3607
        %v3655 = vpack.c.bf16 %v3610, %v3609
        %v3656 = vpack.c.bf16 %v3612, %v3611
        %v3657 = vpack.c.bf16 %v3614, %v3613
        %v3658 = vpack.c.bf16 %v3616, %v3615
        %v3659 = vpack.c.bf16 %v3618, %v3617
        %v3660 = vpack.c.bf16 %v3620, %v3619
        %v3661 = vpack.c.bf16 %v3622, %v3621
        %v3662 = vpack.c.bf16 %v3624, %v3623
        %v3663 = vpack.c.bf16 %v3626, %v3625
        %v3664 = vpack.c.bf16 %v3628, %v3627
        %v3665 = vpack.c.bf16 %v3630, %v3629
        %v3666 = vpack.c.bf16 %v3632, %v3631
        %v3667 = vpack.c.bf16 %v3634, %v3633
        %v3668 = vpack.c.bf16 %v3636, %v3635
        %v3669 = vpack.c.bf16 %v3638, %v3637
        %v3670 = vpack.c.bf16 %v3640, %v3639
        %v3671 = vpack.c.bf16 %v3642, %v3641
        %v3672 = vpack.c.bf16 %v3644, %v3643
        %v3673 = vpack.c.bf16 %v3646, %v3645
        %v3674 = vpack.c.bf16 %v3648, %v3647
        %v3675 = vpack.c.bf16 %v3650, %v3649
        %v3676 = vpack.c.bf16 %v3652, %v3651
        %v3677 = vpack.c.bf16 %v3653, %v3653
        %s3678 = scalar_lea.vmem [#allocation6], 512
        %v3679 = vld [vmem:[%s3678] sm:$0xf]
        %v3680 = vld [vmem:[%s3678 + $0x4] sm:$0xf]
        %v3681 = vld [vmem:[%s3678 + $0x8] sm:$0xf]
        %v3682 = vld [vmem:[%s3678 + $0xc] sm:$0xf]
        %v3683 = vld [vmem:[%s3678 + $0x10] sm:$0xf]
        %v3684 = vld [vmem:[%s3678 + $0x14] sm:$0xf]
        %v3685 = vld [vmem:[%s3678 + $0x18] sm:$0xf]
        %v3686 = vld [vmem:[%s3678 + $0x1c] sm:$0xf]
        %v3687 = vld [vmem:[%s3678 + $0x20] sm:$0xf]
        %v3688 = vld [vmem:[%s3678 + $0x24] sm:$0xf]
        %v3689 = vld [vmem:[%s3678 + $0x28] sm:$0xf]
        %v3690 = vld [vmem:[%s3678 + $0x2c] sm:$0xf]
        %v3691 = vld [vmem:[%s3678 + $0x30] sm:$0xf]
        %v3692 = vld [vmem:[%s3678 + $0x34] sm:$0xf]
        %v3693 = vld [vmem:[%s3678 + $0x38] sm:$0xf]
        %v3694 = vld [vmem:[%s3678 + $0x3c] sm:$0xf]
        %v3711 = vunpack.c.l.b16 %v3679
        %v3712 = vunpack.c.l.b16 %v3680
        %v3713 = vunpack.c.l.b16 %v3681
        %v3714 = vunpack.c.l.b16 %v3682
        %v3715 = vunpack.c.l.b16 %v3683
        %v3716 = vunpack.c.l.b16 %v3684
        %v3717 = vunpack.c.l.b16 %v3685
        %v3718 = vunpack.c.l.b16 %v3686
        %v3719 = vunpack.c.l.b16 %v3687
        %v3720 = vunpack.c.l.b16 %v3688
        %v3721 = vunpack.c.l.b16 %v3689
        %v3722 = vunpack.c.l.b16 %v3690
        %v3723 = vunpack.c.l.b16 %v3691
        %v3724 = vunpack.c.l.b16 %v3692
        %v3725 = vunpack.c.l.b16 %v3693
        %v3726 = vunpack.c.l.b16 %v3694
        %v3727 = vpack.c.b16 %v3712, %v3711
        %v3728 = vpack.c.b16 %v3714, %v3713
        %v3729 = vpack.c.b16 %v3716, %v3715
        %v3730 = vpack.c.b16 %v3718, %v3717
        %v3731 = vpack.c.b16 %v3720, %v3719
        %v3732 = vpack.c.b16 %v3722, %v3721
        %v3733 = vpack.c.b16 %v3724, %v3723
        %v3734 = vpack.c.b16 %v3726, %v3725
        %3743 = vmatprep.subr.bf16.mxu0 0
        %3744 = vmatpush1.bf16.msra.mxu0 %v3727
        %3745 = vmatprep.subr.bf16.mxu0 0
        %3746 = vmatpush1.bf16.msra.mxu0 %v3728
        %3747 = vmatprep.subr.bf16.mxu0 0
        %3748 = vmatpush1.bf16.msra.mxu0 %v3729
        %3749 = vmatprep.subr.bf16.mxu0 0
        %3750 = vmatpush1.bf16.msra.mxu0 %v3730
        %3751 = vmatprep.subr.bf16.mxu0 0
        %3752 = vmatpush1.bf16.msra.mxu0 %v3731
        %3753 = vmatprep.subr.bf16.mxu0 0
        %3754 = vmatpush1.bf16.msra.mxu0 %v3732
        %3755 = vmatprep.subr.bf16.mxu0 0
        %3756 = vmatpush1.bf16.msra.mxu0 %v3733
        %3757 = vmatprep.subr.bf16.mxu0 0
        %3758 = vmatpush1.bf16.msra.mxu0 %v3734
        %3759 = vmatprep.subr.bf16.mxu0 0
        %3760 = vmatpush1.bf16.msra.mxu0 0
        %3761 = vmatprep.subr.bf16.mxu0 0
        %3762 = vmatpush1.bf16.msra.mxu0 0
        %3763 = vmatprep.subr.bf16.mxu0 0
        %3764 = vmatpush1.bf16.msra.mxu0 0
        %3765 = vmatprep.subr.bf16.mxu0 0
        %3766 = vmatpush1.bf16.msra.mxu0 0
        %3767 = vmatprep.subr.bf16.mxu0 0
        %3768 = vmatpush1.bf16.msra.mxu0 0
        %3769 = vmatprep.subr.bf16.mxu0 0
        %3770 = vmatpush1.bf16.msra.mxu0 0
        %3771 = vmatprep.subr.bf16.mxu0 0
        %3772 = vmatpush1.bf16.msra.mxu0 0
        %3773 = vmatprep.subr.bf16.mxu0 0
        %3774 = vmatpush1.bf16.msra.mxu0 0
        %3775 = vmatprep.mubr.bf16.mxu0 0
        %3776 = vmatmul.mubr.bf16.gmra.mrb[0].mxu0 %v3654
        %v3777 = vpop.f32.mrb[0].mxu0
        %v3778 = vadd.f32 0.0, %v3777
        %v3779 = vpop.f32.mrb[0].mxu0
        %v3780 = vpop.f32.mrb[0].mxu0
        %v3781 = vadd.f32 0.0, %v3780
        %v3782 = vpop.f32.mrb[0].mxu0
        %3783 = vmatprep.mubr.bf16.mxu0 0
        %3784 = vmatmul.mubr.bf16.gmra.mrb[0].mxu0 %v3655
        %v3785 = vpop.f32.mrb[0].mxu0
        %v3786 = vadd.f32 0.0, %v3785
        %v3787 = vpop.f32.mrb[0].mxu0
        %v3788 = vpop.f32.mrb[0].mxu0
        %v3789 = vadd.f32 0.0, %v3788
        %v3790 = vpop.f32.mrb[0].mxu0
        %3791 = vmatprep.mubr.bf16.mxu0 0
        %3792 = vmatmul.mubr.bf16.gmra.mrb[0].mxu0 %v3656
        %v3793 = vpop.f32.mrb[0].mxu0
        %v3794 = vadd.f32 0.0, %v3793
        %v3795 = vpop.f32.mrb[0].mxu0
        %v3796 = vpop.f32.mrb[0].mxu0
        %v3797 = vadd.f32 0.0, %v3796
        %v3798 = vpop.f32.mrb[0].mxu0
        %3799 = vmatprep.mubr.bf16.mxu0 0
        %3800 = vmatmul.mubr.bf16.gmra.mrb[0].mxu0 %v3657
        %v3801 = vpop.f32.mrb[0].mxu0
        %v3802 = vadd.f32 0.0, %v3801
        %v3803 = vpop.f32.mrb[0].mxu0
        %v3804 = vpop.f32.mrb[0].mxu0
        %v3805 = vadd.f32 0.0, %v3804
        %v3806 = vpop.f32.mrb[0].mxu0
        %3807 = vmatprep.mubr.bf16.mxu0 0
        %3808 = vmatmul.mubr.bf16.gmra.mrb[0].mxu0 %v3658
        %v3809 = vpop.f32.mrb[0].mxu0
        %v3810 = vadd.f32 0.0, %v3809
        %v3811 = vpop.f32.mrb[0].mxu0
        %v3812 = vpop.f32.mrb[0].mxu0
        %v3813 = vadd.f32 0.0, %v3812
        %v3814 = vpop.f32.mrb[0].mxu0
        %3815 = vmatprep.mubr.bf16.mxu0 0
        %3816 = vmatmul.mubr.bf16.gmra.mrb[0].mxu0 %v3659
        %v3817 = vpop.f32.mrb[0].mxu0
        %v3818 = vadd.f32 0.0, %v3817
        %v3819 = vpop.f32.mrb[0].mxu0
        %v3820 = vpop.f32.mrb[0].mxu0
        %v3821 = vadd.f32 0.0, %v3820
        %v3822 = vpop.f32.mrb[0].mxu0
        %3823 = vmatprep.mubr.bf16.mxu0 0
        %3824 = vmatmul.mubr.bf16.gmra.mrb[0].mxu0 %v3660
        %v3825 = vpop.f32.mrb[0].mxu0
        %v3826 = vadd.f32 0.0, %v3825
        %v3827 = vpop.f32.mrb[0].mxu0
        %v3828 = vpop.f32.mrb[0].mxu0
        %v3829 = vadd.f32 0.0, %v3828
        %v3830 = vpop.f32.mrb[0].mxu0
        %3831 = vmatprep.mubr.bf16.mxu0 0
        %3832 = vmatmul.mubr.bf16.gmra.mrb[0].mxu0 %v3661
        %v3833 = vpop.f32.mrb[0].mxu0
        %v3834 = vadd.f32 0.0, %v3833
        %v3835 = vpop.f32.mrb[0].mxu0
        %v3836 = vpop.f32.mrb[0].mxu0
        %v3837 = vadd.f32 0.0, %v3836
        %v3838 = vpop.f32.mrb[0].mxu0
        %3839 = vmatprep.mubr.bf16.mxu0 0
        %3840 = vmatmul.mubr.bf16.gmra.mrb[0].mxu0 %v3662
        %v3841 = vpop.f32.mrb[0].mxu0
        %v3842 = vadd.f32 0.0, %v3841
        %v3843 = vpop.f32.mrb[0].mxu0
        %v3844 = vpop.f32.mrb[0].mxu0
        %v3845 = vadd.f32 0.0, %v3844
        %v3846 = vpop.f32.mrb[0].mxu0
        %3847 = vmatprep.mubr.bf16.mxu0 0
        %3848 = vmatmul.mubr.bf16.gmra.mrb[0].mxu0 %v3663
        %v3849 = vpop.f32.mrb[0].mxu0
        %v3850 = vadd.f32 0.0, %v3849
        %v3851 = vpop.f32.mrb[0].mxu0
        %v3852 = vpop.f32.mrb[0].mxu0
        %v3853 = vadd.f32 0.0, %v3852
        %v3854 = vpop.f32.mrb[0].mxu0
        %3855 = vmatprep.mubr.bf16.mxu0 0
        %3856 = vmatmul.mubr.bf16.gmra.mrb[0].mxu0 %v3664
        %v3857 = vpop.f32.mrb[0].mxu0
        %v3858 = vadd.f32 0.0, %v3857
        %v3859 = vpop.f32.mrb[0].mxu0
        %v3860 = vpop.f32.mrb[0].mxu0
        %v3861 = vadd.f32 0.0, %v3860
        %v3862 = vpop.f32.mrb[0].mxu0
        %3863 = vmatprep.mubr.bf16.mxu0 0
        %3864 = vmatmul.mubr.bf16.gmra.mrb[0].mxu0 %v3665
        %v3865 = vpop.f32.mrb[0].mxu0
        %v3866 = vadd.f32 0.0, %v3865
        %v3867 = vpop.f32.mrb[0].mxu0
        %v3868 = vpop.f32.mrb[0].mxu0
        %v3869 = vadd.f32 0.0, %v3868
        %v3870 = vpop.f32.mrb[0].mxu0
        %3871 = vmatprep.mubr.bf16.mxu0 0
        %3872 = vmatmul.mubr.bf16.gmra.mrb[0].mxu0 %v3666
        %v3873 = vpop.f32.mrb[0].mxu0
        %v3874 = vadd.f32 0.0, %v3873
        %v3875 = vpop.f32.mrb[0].mxu0
        %v3876 = vpop.f32.mrb[0].mxu0
        %v3877 = vadd.f32 0.0, %v3876
        %v3878 = vpop.f32.mrb[0].mxu0
        %3879 = vmatprep.mubr.bf16.mxu0 0
        %3880 = vmatmul.mubr.bf16.gmra.mrb[0].mxu0 %v3667
        %v3881 = vpop.f32.mrb[0].mxu0
        %v3882 = vadd.f32 0.0, %v3881
        %v3883 = vpop.f32.mrb[0].mxu0
        %v3884 = vpop.f32.mrb[0].mxu0
        %v3885 = vadd.f32 0.0, %v3884
        %v3886 = vpop.f32.mrb[0].mxu0
        %3887 = vmatprep.mubr.bf16.mxu0 0
        %3888 = vmatmul.mubr.bf16.gmra.mrb[0].mxu0 %v3668
        %v3889 = vpop.f32.mrb[0].mxu0
        %v3890 = vadd.f32 0.0, %v3889
        %v3891 = vpop.f32.mrb[0].mxu0
        %v3892 = vpop.f32.mrb[0].mxu0
        %v3893 = vadd.f32 0.0, %v3892
        %v3894 = vpop.f32.mrb[0].mxu0
        %3895 = vmatprep.mubr.bf16.mxu0 0
        %3896 = vmatmul.mubr.bf16.gmra.mrb[0].mxu0 %v3669
        %v3897 = vpop.f32.mrb[0].mxu0
        %v3898 = vadd.f32 0.0, %v3897
        %v3899 = vpop.f32.mrb[0].mxu0
        %v3900 = vpop.f32.mrb[0].mxu0
        %v3901 = vadd.f32 0.0, %v3900
        %v3902 = vpop.f32.mrb[0].mxu0
        %3903 = vmatprep.mubr.bf16.mxu0 0
        %3904 = vmatmul.mubr.bf16.gmra.mrb[0].mxu0 %v3670
        %v3905 = vpop.f32.mrb[0].mxu0
        %v3906 = vadd.f32 0.0, %v3905
        %v3907 = vpop.f32.mrb[0].mxu0
        %v3908 = vpop.f32.mrb[0].mxu0
        %v3909 = vadd.f32 0.0, %v3908
        %v3910 = vpop.f32.mrb[0].mxu0
        %3911 = vmatprep.mubr.bf16.mxu0 0
        %3912 = vmatmul.mubr.bf16.gmra.mrb[0].mxu0 %v3671
        %v3913 = vpop.f32.mrb[0].mxu0
        %v3914 = vadd.f32 0.0, %v3913
        %v3915 = vpop.f32.mrb[0].mxu0
        %v3916 = vpop.f32.mrb[0].mxu0
        %v3917 = vadd.f32 0.0, %v3916
        %v3918 = vpop.f32.mrb[0].mxu0
        %3919 = vmatprep.mubr.bf16.mxu0 0
        %3920 = vmatmul.mubr.bf16.gmra.mrb[0].mxu0 %v3672
        %v3921 = vpop.f32.mrb[0].mxu0
        %v3922 = vadd.f32 0.0, %v3921
        %v3923 = vpop.f32.mrb[0].mxu0
        %v3924 = vpop.f32.mrb[0].mxu0
        %v3925 = vadd.f32 0.0, %v3924
        %v3926 = vpop.f32.mrb[0].mxu0
        %3927 = vmatprep.mubr.bf16.mxu0 0
        %3928 = vmatmul.mubr.bf16.gmra.mrb[0].mxu0 %v3673
        %v3929 = vpop.f32.mrb[0].mxu0
        %v3930 = vadd.f32 0.0, %v3929
        %v3931 = vpop.f32.mrb[0].mxu0
        %v3932 = vpop.f32.mrb[0].mxu0
        %v3933 = vadd.f32 0.0, %v3932
        %v3934 = vpop.f32.mrb[0].mxu0
        %3935 = vmatprep.mubr.bf16.mxu0 0
        %3936 = vmatmul.mubr.bf16.gmra.mrb[0].mxu0 %v3674
        %v3937 = vpop.f32.mrb[0].mxu0
        %v3938 = vadd.f32 0.0, %v3937
        %v3939 = vpop.f32.mrb[0].mxu0
        %v3940 = vpop.f32.mrb[0].mxu0
        %v3941 = vadd.f32 0.0, %v3940
        %v3942 = vpop.f32.mrb[0].mxu0
        %3943 = vmatprep.mubr.bf16.mxu0 0
        %3944 = vmatmul.mubr.bf16.gmra.mrb[0].mxu0 %v3675
        %v3945 = vpop.f32.mrb[0].mxu0
        %v3946 = vadd.f32 0.0, %v3945
        %v3947 = vpop.f32.mrb[0].mxu0
        %v3948 = vpop.f32.mrb[0].mxu0
        %v3949 = vadd.f32 0.0, %v3948
        %v3950 = vpop.f32.mrb[0].mxu0
        %3951 = vmatprep.mubr.bf16.mxu0 0
        %3952 = vmatmul.mubr.bf16.gmra.mrb[0].mxu0 %v3676
        %v3953 = vpop.f32.mrb[0].mxu0
        %v3954 = vadd.f32 0.0, %v3953
        %v3955 = vpop.f32.mrb[0].mxu0
        %v3956 = vpop.f32.mrb[0].mxu0
        %v3957 = vadd.f32 0.0, %v3956
        %v3958 = vpop.f32.mrb[0].mxu0
        %3959 = vmatprep.mubr.bf16.mxu0 0
        %3960 = vmatmul.mubr.bf16.gmra.mrb[0].mxu0 %v3677
        %v3961 = vpop.f32.mrb[0].mxu0
        %v3962 = vadd.f32 0.0, %v3961
        %v3963 = vpop.f32.mrb[0].mxu0
        %v3964 = vpop.f32.mrb[0].mxu0
        %v3965 = vpop.f32.mrb[0].mxu0
        %3966 = vdwg.mxu0
        %v3967 = vadd.f32 %v3560, %v3778
        %v3968 = vadd.f32 %v3561, %v3781
        %v3969 = vadd.f32 %v3562, %v3786
        %v3970 = vadd.f32 %v3563, %v3789
        %v3971 = vadd.f32 %v3564, %v3794
        %v3972 = vadd.f32 %v3565, %v3797
        %v3973 = vadd.f32 %v3566, %v3802
        %v3974 = vadd.f32 %v3567, %v3805
        %v3975 = vadd.f32 %v3568, %v3810
        %v3976 = vadd.f32 %v3569, %v3813
        %v3977 = vadd.f32 %v3570, %v3818
        %v3978 = vadd.f32 %v3571, %v3821
        %v3979 = vadd.f32 %v3572, %v3826
        %v3980 = vadd.f32 %v3573, %v3829
        %v3981 = vadd.f32 %v3574, %v3834
        %v3982 = vadd.f32 %v3575, %v3837
        %v3983 = vadd.f32 %v3576, %v3842
        %v3984 = vadd.f32 %v3577, %v3845
        %v3985 = vadd.f32 %v3578, %v3850
        %v3986 = vadd.f32 %v3579, %v3853
        %v3987 = vadd.f32 %v3580, %v3858
        %v3988 = vadd.f32 %v3581, %v3861
        %v3989 = vadd.f32 %v3582, %v3866
        %v3990 = vadd.f32 %v3583, %v3869
        %v3991 = vadd.f32 %v3584, %v3874
        %v3992 = vadd.f32 %v3585, %v3877
        %v3993 = vadd.f32 %v3586, %v3882
        %v3994 = vadd.f32 %v3587, %v3885
        %v3995 = vadd.f32 %v3588, %v3890
        %v3996 = vadd.f32 %v3589, %v3893
        %v3997 = vadd.f32 %v3590, %v3898
        %v3998 = vadd.f32 %v3591, %v3901
        %v3999 = vadd.f32 %v3592, %v3906
        %v4000 = vadd.f32 %v3593, %v3909
        %v4001 = vadd.f32 %v3594, %v3914
        %v4002 = vadd.f32 %v3595, %v3917
        %v4003 = vadd.f32 %v3596, %v3922
        %v4004 = vadd.f32 %v3597, %v3925
        %v4005 = vadd.f32 %v3598, %v3930
        %v4006 = vadd.f32 %v3599, %v3933
        %v4007 = vadd.f32 %v3600, %v3938
        %v4008 = vadd.f32 %v3601, %v3941
        %v4009 = vadd.f32 %v3602, %v3946
        %v4010 = vadd.f32 %v3603, %v3949
        %v4011 = vadd.f32 %v3604, %v3954
        %v4012 = vadd.f32 %v3605, %v3957
        %v4013 = vadd.f32 %v3606, %v3962
        %v4014 = vld [vmem:[#allocation9] sm:$0x1]
        %v4016 = vlaneseq
        %v4017 = vshrl.u32 %v4016, 7
        %v4018 = vsub.s32 0, %v4017
        %v4019 = vrot.slane %v4014, %v4018
        %v4021 = vadd.f32 %v3967, %v4019
        %v4022 = vadd.f32 %v3968, %v4019
        %v4023 = vadd.f32 %v3969, %v4019
        %v4024 = vadd.f32 %v3970, %v4019
        %v4025 = vadd.f32 %v3971, %v4019
        %v4026 = vadd.f32 %v3972, %v4019
        %v4027 = vadd.f32 %v3973, %v4019
        %v4028 = vadd.f32 %v3974, %v4019
        %v4029 = vadd.f32 %v3975, %v4019
        %v4030 = vadd.f32 %v3976, %v4019
        %v4031 = vadd.f32 %v3977, %v4019
        %v4032 = vadd.f32 %v3978, %v4019
        %v4033 = vadd.f32 %v3979, %v4019
        %v4034 = vadd.f32 %v3980, %v4019
        %v4035 = vadd.f32 %v3981, %v4019
        %v4036 = vadd.f32 %v3982, %v4019
        %v4037 = vadd.f32 %v3983, %v4019
        %v4038 = vadd.f32 %v3984, %v4019
        %v4039 = vadd.f32 %v3985, %v4019
        %v4040 = vadd.f32 %v3986, %v4019
        %v4041 = vadd.f32 %v3987, %v4019
        %v4042 = vadd.f32 %v3988, %v4019
        %v4043 = vadd.f32 %v3989, %v4019
        %v4044 = vadd.f32 %v3990, %v4019
        %v4045 = vadd.f32 %v3991, %v4019
        %v4046 = vadd.f32 %v3992, %v4019
        %v4047 = vadd.f32 %v3993, %v4019
        %v4048 = vadd.f32 %v3994, %v4019
        %v4049 = vadd.f32 %v3995, %v4019
        %v4050 = vadd.f32 %v3996, %v4019
        %v4051 = vadd.f32 %v3997, %v4019
        %v4052 = vadd.f32 %v3998, %v4019
        %v4053 = vadd.f32 %v3999, %v4019
        %v4054 = vadd.f32 %v4000, %v4019
        %v4055 = vadd.f32 %v4001, %v4019
        %v4056 = vadd.f32 %v4002, %v4019
        %v4057 = vadd.f32 %v4003, %v4019
        %v4058 = vadd.f32 %v4004, %v4019
        %v4059 = vadd.f32 %v4005, %v4019
        %v4060 = vadd.f32 %v4006, %v4019
        %v4061 = vadd.f32 %v4007, %v4019
        %v4062 = vadd.f32 %v4008, %v4019
        %v4063 = vadd.f32 %v4009, %v4019
        %v4064 = vadd.f32 %v4010, %v4019
        %v4065 = vadd.f32 %v4011, %v4019
        %v4066 = vadd.f32 %v4012, %v4019
        %v4067 = vadd.f32 %v4013, %v4019
        %v4068 = vsub.f32 0.0, %v4021
        %v4069 = vsub.f32 0.0, %v4022
        %v4070 = vsub.f32 0.0, %v4023
        %v4071 = vsub.f32 0.0, %v4024
        %v4072 = vsub.f32 0.0, %v4025
        %v4073 = vsub.f32 0.0, %v4026
        %v4074 = vsub.f32 0.0, %v4027
        %v4075 = vsub.f32 0.0, %v4028
        %v4076 = vsub.f32 0.0, %v4029
        %v4077 = vsub.f32 0.0, %v4030
        %v4078 = vsub.f32 0.0, %v4031
        %v4079 = vsub.f32 0.0, %v4032
        %v4080 = vsub.f32 0.0, %v4033
        %v4081 = vsub.f32 0.0, %v4034
        %v4082 = vsub.f32 0.0, %v4035
        %v4083 = vsub.f32 0.0, %v4036
        %v4084 = vsub.f32 0.0, %v4037
        %v4085 = vsub.f32 0.0, %v4038
        %v4086 = vsub.f32 0.0, %v4039
        %v4087 = vsub.f32 0.0, %v4040
        %v4088 = vsub.f32 0.0, %v4041
        %v4089 = vsub.f32 0.0, %v4042
        %v4090 = vsub.f32 0.0, %v4043
        %v4091 = vsub.f32 0.0, %v4044
        %v4092 = vsub.f32 0.0, %v4045
        %v4093 = vsub.f32 0.0, %v4046
        %v4094 = vsub.f32 0.0, %v4047
        %v4095 = vsub.f32 0.0, %v4048
        %v4096 = vsub.f32 0.0, %v4049
        %v4097 = vsub.f32 0.0, %v4050
        %v4098 = vsub.f32 0.0, %v4051
        %v4099 = vsub.f32 0.0, %v4052
        %v4100 = vsub.f32 0.0, %v4053
        %v4101 = vsub.f32 0.0, %v4054
        %v4102 = vsub.f32 0.0, %v4055
        %v4103 = vsub.f32 0.0, %v4056
        %v4104 = vsub.f32 0.0, %v4057
        %v4105 = vsub.f32 0.0, %v4058
        %v4106 = vsub.f32 0.0, %v4059
        %v4107 = vsub.f32 0.0, %v4060
        %v4108 = vsub.f32 0.0, %v4061
        %v4109 = vsub.f32 0.0, %v4062
        %v4110 = vsub.f32 0.0, %v4063
        %v4111 = vsub.f32 0.0, %v4064
        %v4112 = vsub.f32 0.0, %v4065
        %v4113 = vsub.f32 0.0, %v4066
        %v4114 = vsub.f32 0.0, %v4067
        %v4115 = vmul.f32 %v4068, 1.442695
        %v4116 = vpow.pop %v4115
        %v4117 = vmul.f32 %v4069, 1.442695
        %v4118 = vpow.pop %v4117
        %v4119 = vmul.f32 %v4070, 1.442695
        %v4120 = vpow.pop %v4119
        %v4121 = vmul.f32 %v4071, 1.442695
        %v4122 = vpow.pop %v4121
        %v4123 = vmul.f32 %v4072, 1.442695
        %v4124 = vpow.pop %v4123
        %v4125 = vmul.f32 %v4073, 1.442695
        %v4126 = vpow.pop %v4125
        %v4127 = vmul.f32 %v4074, 1.442695
        %v4128 = vpow.pop %v4127
        %v4129 = vmul.f32 %v4075, 1.442695
        %v4130 = vpow.pop %v4129
        %v4131 = vmul.f32 %v4076, 1.442695
        %v4132 = vpow.pop %v4131
        %v4133 = vmul.f32 %v4077, 1.442695
        %v4134 = vpow.pop %v4133
        %v4135 = vmul.f32 %v4078, 1.442695
        %v4136 = vpow.pop %v4135
        %v4137 = vmul.f32 %v4079, 1.442695
        %v4138 = vpow.pop %v4137
        %v4139 = vmul.f32 %v4080, 1.442695
        %v4140 = vpow.pop %v4139
        %v4141 = vmul.f32 %v4081, 1.442695
        %v4142 = vpow.pop %v4141
        %v4143 = vmul.f32 %v4082, 1.442695
        %v4144 = vpow.pop %v4143
        %v4145 = vmul.f32 %v4083, 1.442695
        %v4146 = vpow.pop %v4145
        %v4147 = vmul.f32 %v4084, 1.442695
        %v4148 = vpow.pop %v4147
        %v4149 = vmul.f32 %v4085, 1.442695
        %v4150 = vpow.pop %v4149
        %v4151 = vmul.f32 %v4086, 1.442695
        %v4152 = vpow.pop %v4151
        %v4153 = vmul.f32 %v4087, 1.442695
        %v4154 = vpow.pop %v4153
        %v4155 = vmul.f32 %v4088, 1.442695
        %v4156 = vpow.pop %v4155
        %v4157 = vmul.f32 %v4089, 1.442695
        %v4158 = vpow.pop %v4157
        %v4159 = vmul.f32 %v4090, 1.442695
        %v4160 = vpow.pop %v4159
        %v4161 = vmul.f32 %v4091, 1.442695
        %v4162 = vpow.pop %v4161
        %v4163 = vmul.f32 %v4092, 1.442695
        %v4164 = vpow.pop %v4163
        %v4165 = vmul.f32 %v4093, 1.442695
        %v4166 = vpow.pop %v4165
        %v4167 = vmul.f32 %v4094, 1.442695
        %v4168 = vpow.pop %v4167
        %v4169 = vmul.f32 %v4095, 1.442695
        %v4170 = vpow.pop %v4169
        %v4171 = vmul.f32 %v4096, 1.442695
        %v4172 = vpow.pop %v4171
        %v4173 = vmul.f32 %v4097, 1.442695
        %v4174 = vpow.pop %v4173
        %v4175 = vmul.f32 %v4098, 1.442695
        %v4176 = vpow.pop %v4175
        %v4177 = vmul.f32 %v4099, 1.442695
        %v4178 = vpow.pop %v4177
        %v4179 = vmul.f32 %v4100, 1.442695
        %v4180 = vpow.pop %v4179
        %v4181 = vmul.f32 %v4101, 1.442695
        %v4182 = vpow.pop %v4181
        %v4183 = vmul.f32 %v4102, 1.442695
        %v4184 = vpow.pop %v4183
        %v4185 = vmul.f32 %v4103, 1.442695
        %v4186 = vpow.pop %v4185
        %v4187 = vmul.f32 %v4104, 1.442695
        %v4188 = vpow.pop %v4187
        %v4189 = vmul.f32 %v4105, 1.442695
        %v4190 = vpow.pop %v4189
        %v4191 = vmul.f32 %v4106, 1.442695
        %v4192 = vpow.pop %v4191
        %v4193 = vmul.f32 %v4107, 1.442695
        %v4194 = vpow.pop %v4193
        %v4195 = vmul.f32 %v4108, 1.442695
        %v4196 = vpow.pop %v4195
        %v4197 = vmul.f32 %v4109, 1.442695
        %v4198 = vpow.pop %v4197
        %v4199 = vmul.f32 %v4110, 1.442695
        %v4200 = vpow.pop %v4199
        %v4201 = vmul.f32 %v4111, 1.442695
        %v4202 = vpow.pop %v4201
        %v4203 = vmul.f32 %v4112, 1.442695
        %v4204 = vpow.pop %v4203
        %v4205 = vmul.f32 %v4113, 1.442695
        %v4206 = vpow.pop %v4205
        %v4207 = vmul.f32 %v4114, 1.442695
        %v4208 = vpow.pop %v4207
        %v4209 = vadd.f32 %v4116, 1.0
        %v4210 = vadd.f32 %v4118, 1.0
        %v4211 = vadd.f32 %v4120, 1.0
        %v4212 = vadd.f32 %v4122, 1.0
        %v4213 = vadd.f32 %v4124, 1.0
        %v4214 = vadd.f32 %v4126, 1.0
        %v4215 = vadd.f32 %v4128, 1.0
        %v4216 = vadd.f32 %v4130, 1.0
        %v4217 = vadd.f32 %v4132, 1.0
        %v4218 = vadd.f32 %v4134, 1.0
        %v4219 = vadd.f32 %v4136, 1.0
        %v4220 = vadd.f32 %v4138, 1.0
        %v4221 = vadd.f32 %v4140, 1.0
        %v4222 = vadd.f32 %v4142, 1.0
        %v4223 = vadd.f32 %v4144, 1.0
        %v4224 = vadd.f32 %v4146, 1.0
        %v4225 = vadd.f32 %v4148, 1.0
        %v4226 = vadd.f32 %v4150, 1.0
        %v4227 = vadd.f32 %v4152, 1.0
        %v4228 = vadd.f32 %v4154, 1.0
        %v4229 = vadd.f32 %v4156, 1.0
        %v4230 = vadd.f32 %v4158, 1.0
        %v4231 = vadd.f32 %v4160, 1.0
        %v4232 = vadd.f32 %v4162, 1.0
        %v4233 = vadd.f32 %v4164, 1.0
        %v4234 = vadd.f32 %v4166, 1.0
        %v4235 = vadd.f32 %v4168, 1.0
        %v4236 = vadd.f32 %v4170, 1.0
        %v4237 = vadd.f32 %v4172, 1.0
        %v4238 = vadd.f32 %v4174, 1.0
        %v4239 = vadd.f32 %v4176, 1.0
        %v4240 = vadd.f32 %v4178, 1.0
        %v4241 = vadd.f32 %v4180, 1.0
        %v4242 = vadd.f32 %v4182, 1.0
        %v4243 = vadd.f32 %v4184, 1.0
        %v4244 = vadd.f32 %v4186, 1.0
        %v4245 = vadd.f32 %v4188, 1.0
        %v4246 = vadd.f32 %v4190, 1.0
        %v4247 = vadd.f32 %v4192, 1.0
        %v4248 = vadd.f32 %v4194, 1.0
        %v4249 = vadd.f32 %v4196, 1.0
        %v4250 = vadd.f32 %v4198, 1.0
        %v4251 = vadd.f32 %v4200, 1.0
        %v4252 = vadd.f32 %v4202, 1.0
        %v4253 = vadd.f32 %v4204, 1.0
        %v4254 = vadd.f32 %v4206, 1.0
        %v4255 = vadd.f32 %v4208, 1.0
        %v4256 = vrcp.pop %v4209
        %v4257 = vrcp.pop %v4210
        %v4258 = vrcp.pop %v4211
        %v4259 = vrcp.pop %v4212
        %v4260 = vrcp.pop %v4213
        %v4261 = vrcp.pop %v4214
        %v4262 = vrcp.pop %v4215
        %v4263 = vrcp.pop %v4216
        %v4264 = vrcp.pop %v4217
        %v4265 = vrcp.pop %v4218
        %v4266 = vrcp.pop %v4219
        %v4267 = vrcp.pop %v4220
        %v4268 = vrcp.pop %v4221
        %v4269 = vrcp.pop %v4222
        %v4270 = vrcp.pop %v4223
        %v4271 = vrcp.pop %v4224
        %v4272 = vrcp.pop %v4225
        %v4273 = vrcp.pop %v4226
        %v4274 = vrcp.pop %v4227
        %v4275 = vrcp.pop %v4228
        %v4276 = vrcp.pop %v4229
        %v4277 = vrcp.pop %v4230
        %v4278 = vrcp.pop %v4231
        %v4279 = vrcp.pop %v4232
        %v4280 = vrcp.pop %v4233
        %v4281 = vrcp.pop %v4234
        %v4282 = vrcp.pop %v4235
        %v4283 = vrcp.pop %v4236
        %v4284 = vrcp.pop %v4237
        %v4285 = vrcp.pop %v4238
        %v4286 = vrcp.pop %v4239
        %v4287 = vrcp.pop %v4240
        %v4288 = vrcp.pop %v4241
        %v4289 = vrcp.pop %v4242
        %v4290 = vrcp.pop %v4243
        %v4291 = vrcp.pop %v4244
        %v4292 = vrcp.pop %v4245
        %v4293 = vrcp.pop %v4246
        %v4294 = vrcp.pop %v4247
        %v4295 = vrcp.pop %v4248
        %v4296 = vrcp.pop %v4249
        %v4297 = vrcp.pop %v4250
        %v4298 = vrcp.pop %v4251
        %v4299 = vrcp.pop %v4252
        %v4300 = vrcp.pop %v4253
        %v4301 = vrcp.pop %v4254
        %v4302 = vrcp.pop %v4255
        %v4303 = vmul.f32 %v4021, %v4256
        %v4304 = vmul.f32 %v4022, %v4257
        %v4305 = vmul.f32 %v4023, %v4258
        %v4306 = vmul.f32 %v4024, %v4259
        %v4307 = vmul.f32 %v4025, %v4260
        %v4308 = vmul.f32 %v4026, %v4261
        %v4309 = vmul.f32 %v4027, %v4262
        %v4310 = vmul.f32 %v4028, %v4263
        %v4311 = vmul.f32 %v4029, %v4264
        %v4312 = vmul.f32 %v4030, %v4265
        %v4313 = vmul.f32 %v4031, %v4266
        %v4314 = vmul.f32 %v4032, %v4267
        %v4315 = vmul.f32 %v4033, %v4268
        %v4316 = vmul.f32 %v4034, %v4269
        %v4317 = vmul.f32 %v4035, %v4270
        %v4318 = vmul.f32 %v4036, %v4271
        %v4319 = vmul.f32 %v4037, %v4272
        %v4320 = vmul.f32 %v4038, %v4273
        %v4321 = vmul.f32 %v4039, %v4274
        %v4322 = vmul.f32 %v4040, %v4275
        %v4323 = vmul.f32 %v4041, %v4276
        %v4324 = vmul.f32 %v4042, %v4277
        %v4325 = vmul.f32 %v4043, %v4278
        %v4326 = vmul.f32 %v4044, %v4279
        %v4327 = vmul.f32 %v4045, %v4280
        %v4328 = vmul.f32 %v4046, %v4281
        %v4329 = vmul.f32 %v4047, %v4282
        %v4330 = vmul.f32 %v4048, %v4283
        %v4331 = vmul.f32 %v4049, %v4284
        %v4332 = vmul.f32 %v4050, %v4285
        %v4333 = vmul.f32 %v4051, %v4286
        %v4334 = vmul.f32 %v4052, %v4287
        %v4335 = vmul.f32 %v4053, %v4288
        %v4336 = vmul.f32 %v4054, %v4289
        %v4337 = vmul.f32 %v4055, %v4290
        %v4338 = vmul.f32 %v4056, %v4291
        %v4339 = vmul.f32 %v4057, %v4292
        %v4340 = vmul.f32 %v4058, %v4293
        %v4341 = vmul.f32 %v4059, %v4294
        %v4342 = vmul.f32 %v4060, %v4295
        %v4343 = vmul.f32 %v4061, %v4296
        %v4344 = vmul.f32 %v4062, %v4297
        %v4345 = vmul.f32 %v4063, %v4298
        %v4346 = vmul.f32 %v4064, %v4299
        %v4347 = vmul.f32 %v4065, %v4300
        %v4348 = vmul.f32 %v4066, %v4301
        %v4349 = vmul.f32 %v4067, %v4302
        %v4350 = vlaneseq
        %v4351 = vshrl.u32 %v4350, 7
        %v4352 = vadd.s32 %v4351, 8
        %v4353 = vadd.s32 %v4351, 16
        %v4354 = vadd.s32 %v4351, 24
        %v4355 = vadd.s32 %v4351, 32
        %v4356 = vadd.s32 %v4351, 40
        %v4357 = vadd.s32 %v4351, 48
        %v4358 = vadd.s32 %v4351, 56
        %v4359 = vadd.s32 %v4351, 64
        %v4360 = vadd.s32 %v4351, 72
        %v4361 = vadd.s32 %v4351, 80
        %v4362 = vadd.s32 %v4351, 88
        %v4363 = vadd.s32 %v4351, 96
        %v4364 = vadd.s32 %v4351, 104
        %v4365 = vadd.s32 %v4351, 112
        %v4366 = vadd.s32 %v4351, 120
        %v4367 = vadd.s32 %v4351, 128
        %v4368 = vadd.s32 %v4351, 136
        %v4369 = vadd.s32 %v4351, 144
        %v4370 = vadd.s32 %v4351, 152
        %v4371 = vadd.s32 %v4351, 160
        %v4372 = vadd.s32 %v4351, 168
        %v4373 = vadd.s32 %v4351, 176
        %v4374 = vadd.s32 %v4351, 184
        %v4375 = vadd.s32 %v4351, 192
        %v4376 = vadd.s32 %v4351, 200
        %v4377 = vadd.s32 %v4351, 208
        %v4378 = vadd.s32 %v4351, 216
        %v4379 = vadd.s32 %v4351, 224
        %v4380 = vadd.s32 %v4351, 232
        %v4381 = vadd.s32 %v4351, 240
        %v4382 = vadd.s32 %v4351, 248
        %v4383 = vadd.s32 %v4351, 256
        %v4384 = vadd.s32 %v4351, 264
        %v4385 = vadd.s32 %v4351, 272
        %v4386 = vadd.s32 %v4351, 280
        %v4387 = vadd.s32 %v4351, 288
        %v4388 = vadd.s32 %v4351, 296
        %v4389 = vadd.s32 %v4351, 304
        %v4390 = vadd.s32 %v4351, 312
        %v4391 = vadd.s32 %v4351, 320
        %v4392 = vadd.s32 %v4351, 328
        %v4393 = vadd.s32 %v4351, 336
        %v4394 = vadd.s32 %v4351, 344
        %v4395 = vadd.s32 %v4351, 352
        %v4396 = vadd.s32 %v4351, 360
        %v4397 = vadd.s32 %v4351, 368
        %v4398 = vstv %s279
        %v4399 = vadd.s32 %v4398, %v4351
        %v4400 = vadd.s32 %v4398, %v4352
        %v4401 = vadd.s32 %v4398, %v4353
        %v4402 = vadd.s32 %v4398, %v4354
        %v4403 = vadd.s32 %v4398, %v4355
        %v4404 = vadd.s32 %v4398, %v4356
        %v4405 = vadd.s32 %v4398, %v4357
        %v4406 = vadd.s32 %v4398, %v4358
        %v4407 = vadd.s32 %v4398, %v4359
        %v4408 = vadd.s32 %v4398, %v4360
        %v4409 = vadd.s32 %v4398, %v4361
        %v4410 = vadd.s32 %v4398, %v4362
        %v4411 = vadd.s32 %v4398, %v4363
        %v4412 = vadd.s32 %v4398, %v4364
        %v4413 = vadd.s32 %v4398, %v4365
        %v4414 = vadd.s32 %v4398, %v4366
        %v4415 = vadd.s32 %v4398, %v4367
        %v4416 = vadd.s32 %v4398, %v4368
        %v4417 = vadd.s32 %v4398, %v4369
        %v4418 = vadd.s32 %v4398, %v4370
        %v4419 = vadd.s32 %v4398, %v4371
        %v4420 = vadd.s32 %v4398, %v4372
        %v4421 = vadd.s32 %v4398, %v4373
        %v4422 = vadd.s32 %v4398, %v4374
        %v4423 = vadd.s32 %v4398, %v4375
        %v4424 = vadd.s32 %v4398, %v4376
        %v4425 = vadd.s32 %v4398, %v4377
        %v4426 = vadd.s32 %v4398, %v4378
        %v4427 = vadd.s32 %v4398, %v4379
        %v4428 = vadd.s32 %v4398, %v4380
        %v4429 = vadd.s32 %v4398, %v4381
        %v4430 = vadd.s32 %v4398, %v4382
        %v4431 = vadd.s32 %v4398, %v4383
        %v4432 = vadd.s32 %v4398, %v4384
        %v4433 = vadd.s32 %v4398, %v4385
        %v4434 = vadd.s32 %v4398, %v4386
        %v4435 = vadd.s32 %v4398, %v4387
        %v4436 = vadd.s32 %v4398, %v4388
        %v4437 = vadd.s32 %v4398, %v4389
        %v4438 = vadd.s32 %v4398, %v4390
        %v4439 = vadd.s32 %v4398, %v4391
        %v4440 = vadd.s32 %v4398, %v4392
        %v4441 = vadd.s32 %v4398, %v4393
        %v4442 = vadd.s32 %v4398, %v4394
        %v4443 = vadd.s32 %v4398, %v4395
        %v4444 = vadd.s32 %v4398, %v4396
        %v4445 = vadd.s32 %v4398, %v4397
        %v4446 = vsub.s32 %v4399, 19
        %v4447 = vsub.s32 %v4400, 19
        %v4448 = vsub.s32 %v4401, 19
        %v4449 = vsub.s32 %v4402, 19
        %v4450 = vsub.s32 %v4403, 19
        %v4451 = vsub.s32 %v4404, 19
        %v4452 = vsub.s32 %v4405, 19
        %v4453 = vsub.s32 %v4406, 19
        %v4454 = vsub.s32 %v4407, 19
        %v4455 = vsub.s32 %v4408, 19
        %v4456 = vsub.s32 %v4409, 19
        %v4457 = vsub.s32 %v4410, 19
        %v4458 = vsub.s32 %v4411, 19
        %v4459 = vsub.s32 %v4412, 19
        %v4460 = vsub.s32 %v4413, 19
        %v4461 = vsub.s32 %v4414, 19
        %v4462 = vsub.s32 %v4415, 19
        %v4463 = vsub.s32 %v4416, 19
        %v4464 = vsub.s32 %v4417, 19
        %v4465 = vsub.s32 %v4418, 19
        %v4466 = vsub.s32 %v4419, 19
        %v4467 = vsub.s32 %v4420, 19
        %v4468 = vsub.s32 %v4421, 19
        %v4469 = vsub.s32 %v4422, 19
        %v4470 = vsub.s32 %v4423, 19
        %v4471 = vsub.s32 %v4424, 19
        %v4472 = vsub.s32 %v4425, 19
        %v4473 = vsub.s32 %v4426, 19
        %v4474 = vsub.s32 %v4427, 19
        %v4475 = vsub.s32 %v4428, 19
        %v4476 = vsub.s32 %v4429, 19
        %v4477 = vsub.s32 %v4430, 19
        %v4478 = vsub.s32 %v4431, 19
        %v4479 = vsub.s32 %v4432, 19
        %v4480 = vsub.s32 %v4433, 19
        %v4481 = vsub.s32 %v4434, 19
        %v4482 = vsub.s32 %v4435, 19
        %v4483 = vsub.s32 %v4436, 19
        %v4484 = vsub.s32 %v4437, 19
        %v4485 = vsub.s32 %v4438, 19
        %v4486 = vsub.s32 %v4439, 19
        %v4487 = vsub.s32 %v4440, 19
        %v4488 = vsub.s32 %v4441, 19
        %v4489 = vsub.s32 %v4442, 19
        %v4490 = vsub.s32 %v4443, 19
        %v4491 = vsub.s32 %v4444, 19
        %v4492 = vsub.s32 %v4445, 19
        %vm4493 = vcmp.ge.s32.totalorder %v4446, 18
        %vm4494 = vcmp.ge.s32.totalorder %v4447, 18
        %vm4495 = vcmp.ge.s32.totalorder %v4448, 18
        %vm4496 = vcmp.ge.s32.totalorder %v4449, 18
        %vm4497 = vcmp.ge.s32.totalorder %v4450, 18
        %vm4498 = vcmp.ge.s32.totalorder %v4451, 18
        %vm4499 = vcmp.ge.s32.totalorder %v4452, 18
        %vm4500 = vcmp.ge.s32.totalorder %v4453, 18
        %vm4501 = vcmp.ge.s32.totalorder %v4454, 18
        %vm4502 = vcmp.ge.s32.totalorder %v4455, 18
        %vm4503 = vcmp.ge.s32.totalorder %v4456, 18
        %vm4504 = vcmp.ge.s32.totalorder %v4457, 18
        %vm4505 = vcmp.ge.s32.totalorder %v4458, 18
        %vm4506 = vcmp.ge.s32.totalorder %v4459, 18
        %vm4507 = vcmp.ge.s32.totalorder %v4460, 18
        %vm4508 = vcmp.ge.s32.totalorder %v4461, 18
        %vm4509 = vcmp.ge.s32.totalorder %v4462, 18
        %vm4510 = vcmp.ge.s32.totalorder %v4463, 18
        %vm4511 = vcmp.ge.s32.totalorder %v4464, 18
        %vm4512 = vcmp.ge.s32.totalorder %v4465, 18
        %vm4513 = vcmp.ge.s32.totalorder %v4466, 18
        %vm4514 = vcmp.ge.s32.totalorder %v4467, 18
        %vm4515 = vcmp.ge.s32.totalorder %v4468, 18
        %vm4516 = vcmp.ge.s32.totalorder %v4469, 18
        %vm4517 = vcmp.ge.s32.totalorder %v4470, 18
        %vm4518 = vcmp.ge.s32.totalorder %v4471, 18
        %vm4519 = vcmp.ge.s32.totalorder %v4472, 18
        %vm4520 = vcmp.ge.s32.totalorder %v4473, 18
        %vm4521 = vcmp.ge.s32.totalorder %v4474, 18
        %vm4522 = vcmp.ge.s32.totalorder %v4475, 18
        %vm4523 = vcmp.ge.s32.totalorder %v4476, 18
        %vm4524 = vcmp.ge.s32.totalorder %v4477, 18
        %vm4525 = vcmp.ge.s32.totalorder %v4478, 18
        %vm4526 = vcmp.ge.s32.totalorder %v4479, 18
        %vm4527 = vcmp.ge.s32.totalorder %v4480, 18
        %vm4528 = vcmp.ge.s32.totalorder %v4481, 18
        %vm4529 = vcmp.ge.s32.totalorder %v4482, 18
        %vm4530 = vcmp.ge.s32.totalorder %v4483, 18
        %vm4531 = vcmp.ge.s32.totalorder %v4484, 18
        %vm4532 = vcmp.ge.s32.totalorder %v4485, 18
        %vm4533 = vcmp.ge.s32.totalorder %v4486, 18
        %vm4534 = vcmp.ge.s32.totalorder %v4487, 18
        %vm4535 = vcmp.ge.s32.totalorder %v4488, 18
        %vm4536 = vcmp.ge.s32.totalorder %v4489, 18
        %vm4537 = vcmp.ge.s32.totalorder %v4490, 18
        %vm4538 = vcmp.ge.s32.totalorder %v4491, 18
        %vm4539 = vcmp.ge.s32.totalorder %v4492, 18
        %vm4540 = vcmp.lt.s32.totalorder %v4446, 306
        %vm4541 = vcmp.lt.s32.totalorder %v4447, 306
        %vm4542 = vcmp.lt.s32.totalorder %v4448, 306
        %vm4543 = vcmp.lt.s32.totalorder %v4449, 306
        %vm4544 = vcmp.lt.s32.totalorder %v4450, 306
        %vm4545 = vcmp.lt.s32.totalorder %v4451, 306
        %vm4546 = vcmp.lt.s32.totalorder %v4452, 306
        %vm4547 = vcmp.lt.s32.totalorder %v4453, 306
        %vm4548 = vcmp.lt.s32.totalorder %v4454, 306
        %vm4549 = vcmp.lt.s32.totalorder %v4455, 306
        %vm4550 = vcmp.lt.s32.totalorder %v4456, 306
        %vm4551 = vcmp.lt.s32.totalorder %v4457, 306
        %vm4552 = vcmp.lt.s32.totalorder %v4458, 306
        %vm4553 = vcmp.lt.s32.totalorder %v4459, 306
        %vm4554 = vcmp.lt.s32.totalorder %v4460, 306
        %vm4555 = vcmp.lt.s32.totalorder %v4461, 306
        %vm4556 = vcmp.lt.s32.totalorder %v4462, 306
        %vm4557 = vcmp.lt.s32.totalorder %v4463, 306
        %vm4558 = vcmp.lt.s32.totalorder %v4464, 306
        %vm4559 = vcmp.lt.s32.totalorder %v4465, 306
        %vm4560 = vcmp.lt.s32.totalorder %v4466, 306
        %vm4561 = vcmp.lt.s32.totalorder %v4467, 306
        %vm4562 = vcmp.lt.s32.totalorder %v4468, 306
        %vm4563 = vcmp.lt.s32.totalorder %v4469, 306
        %vm4564 = vcmp.lt.s32.totalorder %v4470, 306
        %vm4565 = vcmp.lt.s32.totalorder %v4471, 306
        %vm4566 = vcmp.lt.s32.totalorder %v4472, 306
        %vm4567 = vcmp.lt.s32.totalorder %v4473, 306
        %vm4568 = vcmp.lt.s32.totalorder %v4474, 306
        %vm4569 = vcmp.lt.s32.totalorder %v4475, 306
        %vm4570 = vcmp.lt.s32.totalorder %v4476, 306
        %vm4571 = vcmp.lt.s32.totalorder %v4477, 306
        %vm4572 = vcmp.lt.s32.totalorder %v4478, 306
        %vm4573 = vcmp.lt.s32.totalorder %v4479, 306
        %vm4574 = vcmp.lt.s32.totalorder %v4480, 306
        %vm4575 = vcmp.lt.s32.totalorder %v4481, 306
        %vm4576 = vcmp.lt.s32.totalorder %v4482, 306
        %vm4577 = vcmp.lt.s32.totalorder %v4483, 306
        %vm4578 = vcmp.lt.s32.totalorder %v4484, 306
        %vm4579 = vcmp.lt.s32.totalorder %v4485, 306
        %vm4580 = vcmp.lt.s32.totalorder %v4486, 306
        %vm4581 = vcmp.lt.s32.totalorder %v4487, 306
        %vm4582 = vcmp.lt.s32.totalorder %v4488, 306
        %vm4583 = vcmp.lt.s32.totalorder %v4489, 306
        %vm4584 = vcmp.lt.s32.totalorder %v4490, 306
        %vm4585 = vcmp.lt.s32.totalorder %v4491, 306
        %vm4586 = vcmp.lt.s32.totalorder %v4492, 306
        %vm4587 = vmand %vm4493, %vm4540
        %vm4588 = vmand %vm4494, %vm4541
        %vm4589 = vmand %vm4495, %vm4542
        %vm4590 = vmand %vm4496, %vm4543
        %vm4591 = vmand %vm4497, %vm4544
        %vm4592 = vmand %vm4498, %vm4545
        %vm4593 = vmand %vm4499, %vm4546
        %vm4594 = vmand %vm4500, %vm4547
        %vm4595 = vmand %vm4501, %vm4548
        %vm4596 = vmand %vm4502, %vm4549
        %vm4597 = vmand %vm4503, %vm4550
        %vm4598 = vmand %vm4504, %vm4551
        %vm4599 = vmand %vm4505, %vm4552
        %vm4600 = vmand %vm4506, %vm4553
        %vm4601 = vmand %vm4507, %vm4554
        %vm4602 = vmand %vm4508, %vm4555
        %vm4603 = vmand %vm4509, %vm4556
        %vm4604 = vmand %vm4510, %vm4557
        %vm4605 = vmand %vm4511, %vm4558
        %vm4606 = vmand %vm4512, %vm4559
        %vm4607 = vmand %vm4513, %vm4560
        %vm4608 = vmand %vm4514, %vm4561
        %vm4609 = vmand %vm4515, %vm4562
        %vm4610 = vmand %vm4516, %vm4563
        %vm4611 = vmand %vm4517, %vm4564
        %vm4612 = vmand %vm4518, %vm4565
        %vm4613 = vmand %vm4519, %vm4566
        %vm4614 = vmand %vm4520, %vm4567
        %vm4615 = vmand %vm4521, %vm4568
        %vm4616 = vmand %vm4522, %vm4569
        %vm4617 = vmand %vm4523, %vm4570
        %vm4618 = vmand %vm4524, %vm4571
        %vm4619 = vmand %vm4525, %vm4572
        %vm4620 = vmand %vm4526, %vm4573
        %vm4621 = vmand %vm4527, %vm4574
        %vm4622 = vmand %vm4528, %vm4575
        %vm4623 = vmand %vm4529, %vm4576
        %vm4624 = vmand %vm4530, %vm4577
        %vm4625 = vmand %vm4531, %vm4578
        %vm4626 = vmand %vm4532, %vm4579
        %vm4627 = vmand %vm4533, %vm4580
        %vm4628 = vmand %vm4534, %vm4581
        %vm4629 = vmand %vm4535, %vm4582
        %vm4630 = vmand %vm4536, %vm4583
        %vm4631 = vmand %vm4537, %vm4584
        %vm4632 = vmand %vm4538, %vm4585
        %vm4633 = vmand %vm4539, %vm4586
        %v4634 = vcvt.s32.f32 %v4446
        %v4635 = vcvt.s32.f32 %v4447
        %v4636 = vcvt.s32.f32 %v4448
        %v4637 = vcvt.s32.f32 %v4449
        %v4638 = vcvt.s32.f32 %v4450
        %v4639 = vcvt.s32.f32 %v4451
        %v4640 = vcvt.s32.f32 %v4452
        %v4641 = vcvt.s32.f32 %v4453
        %v4642 = vcvt.s32.f32 %v4454
        %v4643 = vcvt.s32.f32 %v4455
        %v4644 = vcvt.s32.f32 %v4456
        %v4645 = vcvt.s32.f32 %v4457
        %v4646 = vcvt.s32.f32 %v4458
        %v4647 = vcvt.s32.f32 %v4459
        %v4648 = vcvt.s32.f32 %v4460
        %v4649 = vcvt.s32.f32 %v4461
        %v4650 = vcvt.s32.f32 %v4462
        %v4651 = vcvt.s32.f32 %v4463
        %v4652 = vcvt.s32.f32 %v4464
        %v4653 = vcvt.s32.f32 %v4465
        %v4654 = vcvt.s32.f32 %v4466
        %v4655 = vcvt.s32.f32 %v4467
        %v4656 = vcvt.s32.f32 %v4468
        %v4657 = vcvt.s32.f32 %v4469
        %v4658 = vcvt.s32.f32 %v4470
        %v4659 = vcvt.s32.f32 %v4471
        %v4660 = vcvt.s32.f32 %v4472
        %v4661 = vcvt.s32.f32 %v4473
        %v4662 = vcvt.s32.f32 %v4474
        %v4663 = vcvt.s32.f32 %v4475
        %v4664 = vcvt.s32.f32 %v4476
        %v4665 = vcvt.s32.f32 %v4477
        %v4666 = vcvt.s32.f32 %v4478
        %v4667 = vcvt.s32.f32 %v4479
        %v4668 = vcvt.s32.f32 %v4480
        %v4669 = vcvt.s32.f32 %v4481
        %v4670 = vcvt.s32.f32 %v4482
        %v4671 = vcvt.s32.f32 %v4483
        %v4672 = vcvt.s32.f32 %v4484
        %v4673 = vcvt.s32.f32 %v4485
        %v4674 = vcvt.s32.f32 %v4486
        %v4675 = vcvt.s32.f32 %v4487
        %v4676 = vcvt.s32.f32 %v4488
        %v4677 = vcvt.s32.f32 %v4489
        %v4678 = vcvt.s32.f32 %v4490
        %v4679 = vcvt.s32.f32 %v4491
        %v4680 = vcvt.s32.f32 %v4492
        %v4681 = vadd.f32 %v4634, 0.5
        %v4682 = vadd.f32 %v4635, 0.5
        %v4683 = vadd.f32 %v4636, 0.5
        %v4684 = vadd.f32 %v4637, 0.5
        %v4685 = vadd.f32 %v4638, 0.5
        %v4686 = vadd.f32 %v4639, 0.5
        %v4687 = vadd.f32 %v4640, 0.5
        %v4688 = vadd.f32 %v4641, 0.5
        %v4689 = vadd.f32 %v4642, 0.5
        %v4690 = vadd.f32 %v4643, 0.5
        %v4691 = vadd.f32 %v4644, 0.5
        %v4692 = vadd.f32 %v4645, 0.5
        %v4693 = vadd.f32 %v4646, 0.5
        %v4694 = vadd.f32 %v4647, 0.5
        %v4695 = vadd.f32 %v4648, 0.5
        %v4696 = vadd.f32 %v4649, 0.5
        %v4697 = vadd.f32 %v4650, 0.5
        %v4698 = vadd.f32 %v4651, 0.5
        %v4699 = vadd.f32 %v4652, 0.5
        %v4700 = vadd.f32 %v4653, 0.5
        %v4701 = vadd.f32 %v4654, 0.5
        %v4702 = vadd.f32 %v4655, 0.5
        %v4703 = vadd.f32 %v4656, 0.5
        %v4704 = vadd.f32 %v4657, 0.5
        %v4705 = vadd.f32 %v4658, 0.5
        %v4706 = vadd.f32 %v4659, 0.5
        %v4707 = vadd.f32 %v4660, 0.5
        %v4708 = vadd.f32 %v4661, 0.5
        %v4709 = vadd.f32 %v4662, 0.5
        %v4710 = vadd.f32 %v4663, 0.5
        %v4711 = vadd.f32 %v4664, 0.5
        %v4712 = vadd.f32 %v4665, 0.5
        %v4713 = vadd.f32 %v4666, 0.5
        %v4714 = vadd.f32 %v4667, 0.5
        %v4715 = vadd.f32 %v4668, 0.5
        %v4716 = vadd.f32 %v4669, 0.5
        %v4717 = vadd.f32 %v4670, 0.5
        %v4718 = vadd.f32 %v4671, 0.5
        %v4719 = vadd.f32 %v4672, 0.5
        %v4720 = vadd.f32 %v4673, 0.5
        %v4721 = vadd.f32 %v4674, 0.5
        %v4722 = vadd.f32 %v4675, 0.5
        %v4723 = vadd.f32 %v4676, 0.5
        %v4724 = vadd.f32 %v4677, 0.5
        %v4725 = vadd.f32 %v4678, 0.5
        %v4726 = vadd.f32 %v4679, 0.5
        %v4727 = vadd.f32 %v4680, 0.5
        %v4728 = vmul.f32 %v4681, 0.055555556
        %v4729 = vmul.f32 %v4682, 0.055555556
        %v4730 = vmul.f32 %v4683, 0.055555556
        %v4731 = vmul.f32 %v4684, 0.055555556
        %v4732 = vmul.f32 %v4685, 0.055555556
        %v4733 = vmul.f32 %v4686, 0.055555556
        %v4734 = vmul.f32 %v4687, 0.055555556
        %v4735 = vmul.f32 %v4688, 0.055555556
        %v4736 = vmul.f32 %v4689, 0.055555556
        %v4737 = vmul.f32 %v4690, 0.055555556
        %v4738 = vmul.f32 %v4691, 0.055555556
        %v4739 = vmul.f32 %v4692, 0.055555556
        %v4740 = vmul.f32 %v4693, 0.055555556
        %v4741 = vmul.f32 %v4694, 0.055555556
        %v4742 = vmul.f32 %v4695, 0.055555556
        %v4743 = vmul.f32 %v4696, 0.055555556
        %v4744 = vmul.f32 %v4697, 0.055555556
        %v4745 = vmul.f32 %v4698, 0.055555556
        %v4746 = vmul.f32 %v4699, 0.055555556
        %v4747 = vmul.f32 %v4700, 0.055555556
        %v4748 = vmul.f32 %v4701, 0.055555556
        %v4749 = vmul.f32 %v4702, 0.055555556
        %v4750 = vmul.f32 %v4703, 0.055555556
        %v4751 = vmul.f32 %v4704, 0.055555556
        %v4752 = vmul.f32 %v4705, 0.055555556
        %v4753 = vmul.f32 %v4706, 0.055555556
        %v4754 = vmul.f32 %v4707, 0.055555556
        %v4755 = vmul.f32 %v4708, 0.055555556
        %v4756 = vmul.f32 %v4709, 0.055555556
        %v4757 = vmul.f32 %v4710, 0.055555556
        %v4758 = vmul.f32 %v4711, 0.055555556
        %v4759 = vmul.f32 %v4712, 0.055555556
        %v4760 = vmul.f32 %v4713, 0.055555556
        %v4761 = vmul.f32 %v4714, 0.055555556
        %v4762 = vmul.f32 %v4715, 0.055555556
        %v4763 = vmul.f32 %v4716, 0.055555556
        %v4764 = vmul.f32 %v4717, 0.055555556
        %v4765 = vmul.f32 %v4718, 0.055555556
        %v4766 = vmul.f32 %v4719, 0.055555556
        %v4767 = vmul.f32 %v4720, 0.055555556
        %v4768 = vmul.f32 %v4721, 0.055555556
        %v4769 = vmul.f32 %v4722, 0.055555556
        %v4770 = vmul.f32 %v4723, 0.055555556
        %v4771 = vmul.f32 %v4724, 0.055555556
        %v4772 = vmul.f32 %v4725, 0.055555556
        %v4773 = vmul.f32 %v4726, 0.055555556
        %v4774 = vmul.f32 %v4727, 0.055555556
        %v4775 = vfloor.f32 %v4728
        %v4776 = vfloor.f32 %v4729
        %v4777 = vfloor.f32 %v4730
        %v4778 = vfloor.f32 %v4731
        %v4779 = vfloor.f32 %v4732
        %v4780 = vfloor.f32 %v4733
        %v4781 = vfloor.f32 %v4734
        %v4782 = vfloor.f32 %v4735
        %v4783 = vfloor.f32 %v4736
        %v4784 = vfloor.f32 %v4737
        %v4785 = vfloor.f32 %v4738
        %v4786 = vfloor.f32 %v4739
        %v4787 = vfloor.f32 %v4740
        %v4788 = vfloor.f32 %v4741
        %v4789 = vfloor.f32 %v4742
        %v4790 = vfloor.f32 %v4743
        %v4791 = vfloor.f32 %v4744
        %v4792 = vfloor.f32 %v4745
        %v4793 = vfloor.f32 %v4746
        %v4794 = vfloor.f32 %v4747
        %v4795 = vfloor.f32 %v4748
        %v4796 = vfloor.f32 %v4749
        %v4797 = vfloor.f32 %v4750
        %v4798 = vfloor.f32 %v4751
        %v4799 = vfloor.f32 %v4752
        %v4800 = vfloor.f32 %v4753
        %v4801 = vfloor.f32 %v4754
        %v4802 = vfloor.f32 %v4755
        %v4803 = vfloor.f32 %v4756
        %v4804 = vfloor.f32 %v4757
        %v4805 = vfloor.f32 %v4758
        %v4806 = vfloor.f32 %v4759
        %v4807 = vfloor.f32 %v4760
        %v4808 = vfloor.f32 %v4761
        %v4809 = vfloor.f32 %v4762
        %v4810 = vfloor.f32 %v4763
        %v4811 = vfloor.f32 %v4764
        %v4812 = vfloor.f32 %v4765
        %v4813 = vfloor.f32 %v4766
        %v4814 = vfloor.f32 %v4767
        %v4815 = vfloor.f32 %v4768
        %v4816 = vfloor.f32 %v4769
        %v4817 = vfloor.f32 %v4770
        %v4818 = vfloor.f32 %v4771
        %v4819 = vfloor.f32 %v4772
        %v4820 = vfloor.f32 %v4773
        %v4821 = vfloor.f32 %v4774
        %v4822 = vmul.f32 %v4775, 18.0
        %v4823 = vmul.f32 %v4776, 18.0
        %v4824 = vmul.f32 %v4777, 18.0
        %v4825 = vmul.f32 %v4778, 18.0
        %v4826 = vmul.f32 %v4779, 18.0
        %v4827 = vmul.f32 %v4780, 18.0
        %v4828 = vmul.f32 %v4781, 18.0
        %v4829 = vmul.f32 %v4782, 18.0
        %v4830 = vmul.f32 %v4783, 18.0
        %v4831 = vmul.f32 %v4784, 18.0
        %v4832 = vmul.f32 %v4785, 18.0
        %v4833 = vmul.f32 %v4786, 18.0
        %v4834 = vmul.f32 %v4787, 18.0
        %v4835 = vmul.f32 %v4788, 18.0
        %v4836 = vmul.f32 %v4789, 18.0
        %v4837 = vmul.f32 %v4790, 18.0
        %v4838 = vmul.f32 %v4791, 18.0
        %v4839 = vmul.f32 %v4792, 18.0
        %v4840 = vmul.f32 %v4793, 18.0
        %v4841 = vmul.f32 %v4794, 18.0
        %v4842 = vmul.f32 %v4795, 18.0
        %v4843 = vmul.f32 %v4796, 18.0
        %v4844 = vmul.f32 %v4797, 18.0
        %v4845 = vmul.f32 %v4798, 18.0
        %v4846 = vmul.f32 %v4799, 18.0
        %v4847 = vmul.f32 %v4800, 18.0
        %v4848 = vmul.f32 %v4801, 18.0
        %v4849 = vmul.f32 %v4802, 18.0
        %v4850 = vmul.f32 %v4803, 18.0
        %v4851 = vmul.f32 %v4804, 18.0
        %v4852 = vmul.f32 %v4805, 18.0
        %v4853 = vmul.f32 %v4806, 18.0
        %v4854 = vmul.f32 %v4807, 18.0
        %v4855 = vmul.f32 %v4808, 18.0
        %v4856 = vmul.f32 %v4809, 18.0
        %v4857 = vmul.f32 %v4810, 18.0
        %v4858 = vmul.f32 %v4811, 18.0
        %v4859 = vmul.f32 %v4812, 18.0
        %v4860 = vmul.f32 %v4813, 18.0
        %v4861 = vmul.f32 %v4814, 18.0
        %v4862 = vmul.f32 %v4815, 18.0
        %v4863 = vmul.f32 %v4816, 18.0
        %v4864 = vmul.f32 %v4817, 18.0
        %v4865 = vmul.f32 %v4818, 18.0
        %v4866 = vmul.f32 %v4819, 18.0
        %v4867 = vmul.f32 %v4820, 18.0
        %v4868 = vmul.f32 %v4821, 18.0
        %v4869 = vsub.f32 %v4634, %v4822
        %v4870 = vsub.f32 %v4635, %v4823
        %v4871 = vsub.f32 %v4636, %v4824
        %v4872 = vsub.f32 %v4637, %v4825
        %v4873 = vsub.f32 %v4638, %v4826
        %v4874 = vsub.f32 %v4639, %v4827
        %v4875 = vsub.f32 %v4640, %v4828
        %v4876 = vsub.f32 %v4641, %v4829
        %v4877 = vsub.f32 %v4642, %v4830
        %v4878 = vsub.f32 %v4643, %v4831
        %v4879 = vsub.f32 %v4644, %v4832
        %v4880 = vsub.f32 %v4645, %v4833
        %v4881 = vsub.f32 %v4646, %v4834
        %v4882 = vsub.f32 %v4647, %v4835
        %v4883 = vsub.f32 %v4648, %v4836
        %v4884 = vsub.f32 %v4649, %v4837
        %v4885 = vsub.f32 %v4650, %v4838
        %v4886 = vsub.f32 %v4651, %v4839
        %v4887 = vsub.f32 %v4652, %v4840
        %v4888 = vsub.f32 %v4653, %v4841
        %v4889 = vsub.f32 %v4654, %v4842
        %v4890 = vsub.f32 %v4655, %v4843
        %v4891 = vsub.f32 %v4656, %v4844
        %v4892 = vsub.f32 %v4657, %v4845
        %v4893 = vsub.f32 %v4658, %v4846
        %v4894 = vsub.f32 %v4659, %v4847
        %v4895 = vsub.f32 %v4660, %v4848
        %v4896 = vsub.f32 %v4661, %v4849
        %v4897 = vsub.f32 %v4662, %v4850
        %v4898 = vsub.f32 %v4663, %v4851
        %v4899 = vsub.f32 %v4664, %v4852
        %v4900 = vsub.f32 %v4665, %v4853
        %v4901 = vsub.f32 %v4666, %v4854
        %v4902 = vsub.f32 %v4667, %v4855
        %v4903 = vsub.f32 %v4668, %v4856
        %v4904 = vsub.f32 %v4669, %v4857
        %v4905 = vsub.f32 %v4670, %v4858
        %v4906 = vsub.f32 %v4671, %v4859
        %v4907 = vsub.f32 %v4672, %v4860
        %v4908 = vsub.f32 %v4673, %v4861
        %v4909 = vsub.f32 %v4674, %v4862
        %v4910 = vsub.f32 %v4675, %v4863
        %v4911 = vsub.f32 %v4676, %v4864
        %v4912 = vsub.f32 %v4677, %v4865
        %v4913 = vsub.f32 %v4678, %v4866
        %v4914 = vsub.f32 %v4679, %v4867
        %v4915 = vsub.f32 %v4680, %v4868
        %vm4916 = vcmp.gt.f32.partialorder %v4869, 0.5
        %vm4917 = vcmp.gt.f32.partialorder %v4870, 0.5
        %vm4918 = vcmp.gt.f32.partialorder %v4871, 0.5
        %vm4919 = vcmp.gt.f32.partialorder %v4872, 0.5
        %vm4920 = vcmp.gt.f32.partialorder %v4873, 0.5
        %vm4921 = vcmp.gt.f32.partialorder %v4874, 0.5
        %vm4922 = vcmp.gt.f32.partialorder %v4875, 0.5
        %vm4923 = vcmp.gt.f32.partialorder %v4876, 0.5
        %vm4924 = vcmp.gt.f32.partialorder %v4877, 0.5
        %vm4925 = vcmp.gt.f32.partialorder %v4878, 0.5
        %vm4926 = vcmp.gt.f32.partialorder %v4879, 0.5
        %vm4927 = vcmp.gt.f32.partialorder %v4880, 0.5
        %vm4928 = vcmp.gt.f32.partialorder %v4881, 0.5
        %vm4929 = vcmp.gt.f32.partialorder %v4882, 0.5
        %vm4930 = vcmp.gt.f32.partialorder %v4883, 0.5
        %vm4931 = vcmp.gt.f32.partialorder %v4884, 0.5
        %vm4932 = vcmp.gt.f32.partialorder %v4885, 0.5
        %vm4933 = vcmp.gt.f32.partialorder %v4886, 0.5
        %vm4934 = vcmp.gt.f32.partialorder %v4887, 0.5
        %vm4935 = vcmp.gt.f32.partialorder %v4888, 0.5
        %vm4936 = vcmp.gt.f32.partialorder %v4889, 0.5
        %vm4937 = vcmp.gt.f32.partialorder %v4890, 0.5
        %vm4938 = vcmp.gt.f32.partialorder %v4891, 0.5
        %vm4939 = vcmp.gt.f32.partialorder %v4892, 0.5
        %vm4940 = vcmp.gt.f32.partialorder %v4893, 0.5
        %vm4941 = vcmp.gt.f32.partialorder %v4894, 0.5
        %vm4942 = vcmp.gt.f32.partialorder %v4895, 0.5
        %vm4943 = vcmp.gt.f32.partialorder %v4896, 0.5
        %vm4944 = vcmp.gt.f32.partialorder %v4897, 0.5
        %vm4945 = vcmp.gt.f32.partialorder %v4898, 0.5
        %vm4946 = vcmp.gt.f32.partialorder %v4899, 0.5
        %vm4947 = vcmp.gt.f32.partialorder %v4900, 0.5
        %vm4948 = vcmp.gt.f32.partialorder %v4901, 0.5
        %vm4949 = vcmp.gt.f32.partialorder %v4902, 0.5
        %vm4950 = vcmp.gt.f32.partialorder %v4903, 0.5
        %vm4951 = vcmp.gt.f32.partialorder %v4904, 0.5
        %vm4952 = vcmp.gt.f32.partialorder %v4905, 0.5
        %vm4953 = vcmp.gt.f32.partialorder %v4906, 0.5
        %vm4954 = vcmp.gt.f32.partialorder %v4907, 0.5
        %vm4955 = vcmp.gt.f32.partialorder %v4908, 0.5
        %vm4956 = vcmp.gt.f32.partialorder %v4909, 0.5
        %vm4957 = vcmp.gt.f32.partialorder %v4910, 0.5
        %vm4958 = vcmp.gt.f32.partialorder %v4911, 0.5
        %vm4959 = vcmp.gt.f32.partialorder %v4912, 0.5
        %vm4960 = vcmp.gt.f32.partialorder %v4913, 0.5
        %vm4961 = vcmp.gt.f32.partialorder %v4914, 0.5
        %vm4962 = vcmp.gt.f32.partialorder %v4915, 0.5
        %vm4963 = vcmp.lt.f32.partialorder %v4869, 16.5
        %vm4964 = vcmp.lt.f32.partialorder %v4870, 16.5
        %vm4965 = vcmp.lt.f32.partialorder %v4871, 16.5
        %vm4966 = vcmp.lt.f32.partialorder %v4872, 16.5
        %vm4967 = vcmp.lt.f32.partialorder %v4873, 16.5
        %vm4968 = vcmp.lt.f32.partialorder %v4874, 16.5
        %vm4969 = vcmp.lt.f32.partialorder %v4875, 16.5
        %vm4970 = vcmp.lt.f32.partialorder %v4876, 16.5
        %vm4971 = vcmp.lt.f32.partialorder %v4877, 16.5
        %vm4972 = vcmp.lt.f32.partialorder %v4878, 16.5
        %vm4973 = vcmp.lt.f32.partialorder %v4879, 16.5
        %vm4974 = vcmp.lt.f32.partialorder %v4880, 16.5
        %vm4975 = vcmp.lt.f32.partialorder %v4881, 16.5
        %vm4976 = vcmp.lt.f32.partialorder %v4882, 16.5
        %vm4977 = vcmp.lt.f32.partialorder %v4883, 16.5
        %vm4978 = vcmp.lt.f32.partialorder %v4884, 16.5
        %vm4979 = vcmp.lt.f32.partialorder %v4885, 16.5
        %vm4980 = vcmp.lt.f32.partialorder %v4886, 16.5
        %vm4981 = vcmp.lt.f32.partialorder %v4887, 16.5
        %vm4982 = vcmp.lt.f32.partialorder %v4888, 16.5
        %vm4983 = vcmp.lt.f32.partialorder %v4889, 16.5
        %vm4984 = vcmp.lt.f32.partialorder %v4890, 16.5
        %vm4985 = vcmp.lt.f32.partialorder %v4891, 16.5
        %vm4986 = vcmp.lt.f32.partialorder %v4892, 16.5
        %vm4987 = vcmp.lt.f32.partialorder %v4893, 16.5
        %vm4988 = vcmp.lt.f32.partialorder %v4894, 16.5
        %vm4989 = vcmp.lt.f32.partialorder %v4895, 16.5
        %vm4990 = vcmp.lt.f32.partialorder %v4896, 16.5
        %vm4991 = vcmp.lt.f32.partialorder %v4897, 16.5
        %vm4992 = vcmp.lt.f32.partialorder %v4898, 16.5
        %vm4993 = vcmp.lt.f32.partialorder %v4899, 16.5
        %vm4994 = vcmp.lt.f32.partialorder %v4900, 16.5
        %vm4995 = vcmp.lt.f32.partialorder %v4901, 16.5
        %vm4996 = vcmp.lt.f32.partialorder %v4902, 16.5
        %vm4997 = vcmp.lt.f32.partialorder %v4903, 16.5
        %vm4998 = vcmp.lt.f32.partialorder %v4904, 16.5
        %vm4999 = vcmp.lt.f32.partialorder %v4905, 16.5
        %vm5000 = vcmp.lt.f32.partialorder %v4906, 16.5
        %vm5001 = vcmp.lt.f32.partialorder %v4907, 16.5
        %vm5002 = vcmp.lt.f32.partialorder %v4908, 16.5
        %vm5003 = vcmp.lt.f32.partialorder %v4909, 16.5
        %vm5004 = vcmp.lt.f32.partialorder %v4910, 16.5
        %vm5005 = vcmp.lt.f32.partialorder %v4911, 16.5
        %vm5006 = vcmp.lt.f32.partialorder %v4912, 16.5
        %vm5007 = vcmp.lt.f32.partialorder %v4913, 16.5
        %vm5008 = vcmp.lt.f32.partialorder %v4914, 16.5
        %vm5009 = vcmp.lt.f32.partialorder %v4915, 16.5
        %vm5010 = vmand %vm4916, %vm4963
        %vm5011 = vmand %vm4917, %vm4964
        %vm5012 = vmand %vm4918, %vm4965
        %vm5013 = vmand %vm4919, %vm4966
        %vm5014 = vmand %vm4920, %vm4967
        %vm5015 = vmand %vm4921, %vm4968
        %vm5016 = vmand %vm4922, %vm4969
        %vm5017 = vmand %vm4923, %vm4970
        %vm5018 = vmand %vm4924, %vm4971
        %vm5019 = vmand %vm4925, %vm4972
        %vm5020 = vmand %vm4926, %vm4973
        %vm5021 = vmand %vm4927, %vm4974
        %vm5022 = vmand %vm4928, %vm4975
        %vm5023 = vmand %vm4929, %vm4976
        %vm5024 = vmand %vm4930, %vm4977
        %vm5025 = vmand %vm4931, %vm4978
        %vm5026 = vmand %vm4932, %vm4979
        %vm5027 = vmand %vm4933, %vm4980
        %vm5028 = vmand %vm4934, %vm4981
        %vm5029 = vmand %vm4935, %vm4982
        %vm5030 = vmand %vm4936, %vm4983
        %vm5031 = vmand %vm4937, %vm4984
        %vm5032 = vmand %vm4938, %vm4985
        %vm5033 = vmand %vm4939, %vm4986
        %vm5034 = vmand %vm4940, %vm4987
        %vm5035 = vmand %vm4941, %vm4988
        %vm5036 = vmand %vm4942, %vm4989
        %vm5037 = vmand %vm4943, %vm4990
        %vm5038 = vmand %vm4944, %vm4991
        %vm5039 = vmand %vm4945, %vm4992
        %vm5040 = vmand %vm4946, %vm4993
        %vm5041 = vmand %vm4947, %vm4994
        %vm5042 = vmand %vm4948, %vm4995
        %vm5043 = vmand %vm4949, %vm4996
        %vm5044 = vmand %vm4950, %vm4997
        %vm5045 = vmand %vm4951, %vm4998
        %vm5046 = vmand %vm4952, %vm4999
        %vm5047 = vmand %vm4953, %vm5000
        %vm5048 = vmand %vm4954, %vm5001
        %vm5049 = vmand %vm4955, %vm5002
        %vm5050 = vmand %vm4956, %vm5003
        %vm5051 = vmand %vm4957, %vm5004
        %vm5052 = vmand %vm4958, %vm5005
        %vm5053 = vmand %vm4959, %vm5006
        %vm5054 = vmand %vm4960, %vm5007
        %vm5055 = vmand %vm4961, %vm5008
        %vm5056 = vmand %vm4962, %vm5009
        %vm5057 = vmand %vm4587, %vm5010
        %vm5058 = vmand %vm4588, %vm5011
        %vm5059 = vmand %vm4589, %vm5012
        %vm5060 = vmand %vm4590, %vm5013
        %vm5061 = vmand %vm4591, %vm5014
        %vm5062 = vmand %vm4592, %vm5015
        %vm5063 = vmand %vm4593, %vm5016
        %vm5064 = vmand %vm4594, %vm5017
        %vm5065 = vmand %vm4595, %vm5018
        %vm5066 = vmand %vm4596, %vm5019
        %vm5067 = vmand %vm4597, %vm5020
        %vm5068 = vmand %vm4598, %vm5021
        %vm5069 = vmand %vm4599, %vm5022
        %vm5070 = vmand %vm4600, %vm5023
        %vm5071 = vmand %vm4601, %vm5024
        %vm5072 = vmand %vm4602, %vm5025
        %vm5073 = vmand %vm4603, %vm5026
        %vm5074 = vmand %vm4604, %vm5027
        %vm5075 = vmand %vm4605, %vm5028
        %vm5076 = vmand %vm4606, %vm5029
        %vm5077 = vmand %vm4607, %vm5030
        %vm5078 = vmand %vm4608, %vm5031
        %vm5079 = vmand %vm4609, %vm5032
        %vm5080 = vmand %vm4610, %vm5033
        %vm5081 = vmand %vm4611, %vm5034
        %vm5082 = vmand %vm4612, %vm5035
        %vm5083 = vmand %vm4613, %vm5036
        %vm5084 = vmand %vm4614, %vm5037
        %vm5085 = vmand %vm4615, %vm5038
        %vm5086 = vmand %vm4616, %vm5039
        %vm5087 = vmand %vm4617, %vm5040
        %vm5088 = vmand %vm4618, %vm5041
        %vm5089 = vmand %vm4619, %vm5042
        %vm5090 = vmand %vm4620, %vm5043
        %vm5091 = vmand %vm4621, %vm5044
        %vm5092 = vmand %vm4622, %vm5045
        %vm5093 = vmand %vm4623, %vm5046
        %vm5094 = vmand %vm4624, %vm5047
        %vm5095 = vmand %vm4625, %vm5048
        %vm5096 = vmand %vm4626, %vm5049
        %vm5097 = vmand %vm4627, %vm5050
        %vm5098 = vmand %vm4628, %vm5051
        %vm5099 = vmand %vm4629, %vm5052
        %vm5100 = vmand %vm4630, %vm5053
        %vm5101 = vmand %vm4631, %vm5054
        %vm5102 = vmand %vm4632, %vm5055
        %vm5103 = vmand %vm4633, %vm5056
        %v5104 = vsel %vm5057, 1, 0
        %v5105 = vsel %vm5058, 1, 0
        %v5106 = vsel %vm5059, 1, 0
        %v5107 = vsel %vm5060, 1, 0
        %v5108 = vsel %vm5061, 1, 0
        %v5109 = vsel %vm5062, 1, 0
        %v5110 = vsel %vm5063, 1, 0
        %v5111 = vsel %vm5064, 1, 0
        %v5112 = vsel %vm5065, 1, 0
        %v5113 = vsel %vm5066, 1, 0
        %v5114 = vsel %vm5067, 1, 0
        %v5115 = vsel %vm5068, 1, 0
        %v5116 = vsel %vm5069, 1, 0
        %v5117 = vsel %vm5070, 1, 0
        %v5118 = vsel %vm5071, 1, 0
        %v5119 = vsel %vm5072, 1, 0
        %v5120 = vsel %vm5073, 1, 0
        %v5121 = vsel %vm5074, 1, 0
        %v5122 = vsel %vm5075, 1, 0
        %v5123 = vsel %vm5076, 1, 0
        %v5124 = vsel %vm5077, 1, 0
        %v5125 = vsel %vm5078, 1, 0
        %v5126 = vsel %vm5079, 1, 0
        %v5127 = vsel %vm5080, 1, 0
        %v5128 = vsel %vm5081, 1, 0
        %v5129 = vsel %vm5082, 1, 0
        %v5130 = vsel %vm5083, 1, 0
        %v5131 = vsel %vm5084, 1, 0
        %v5132 = vsel %vm5085, 1, 0
        %v5133 = vsel %vm5086, 1, 0
        %v5134 = vsel %vm5087, 1, 0
        %v5135 = vsel %vm5088, 1, 0
        %v5136 = vsel %vm5089, 1, 0
        %v5137 = vsel %vm5090, 1, 0
        %v5138 = vsel %vm5091, 1, 0
        %v5139 = vsel %vm5092, 1, 0
        %v5140 = vsel %vm5093, 1, 0
        %v5141 = vsel %vm5094, 1, 0
        %v5142 = vsel %vm5095, 1, 0
        %v5143 = vsel %vm5096, 1, 0
        %v5144 = vsel %vm5097, 1, 0
        %v5145 = vsel %vm5098, 1, 0
        %v5146 = vsel %vm5099, 1, 0
        %v5147 = vsel %vm5100, 1, 0
        %v5148 = vsel %vm5101, 1, 0
        %v5149 = vsel %vm5102, 1, 0
        %v5150 = vsel %vm5103, 1, 0
        %vm5151 = vcmp.eq.s32.totalorder %v5104, 1
        %vm5152 = vcmp.eq.s32.totalorder %v5105, 1
        %vm5153 = vcmp.eq.s32.totalorder %v5106, 1
        %vm5154 = vcmp.eq.s32.totalorder %v5107, 1
        %vm5155 = vcmp.eq.s32.totalorder %v5108, 1
        %vm5156 = vcmp.eq.s32.totalorder %v5109, 1
        %vm5157 = vcmp.eq.s32.totalorder %v5110, 1
        %vm5158 = vcmp.eq.s32.totalorder %v5111, 1
        %vm5159 = vcmp.eq.s32.totalorder %v5112, 1
        %vm5160 = vcmp.eq.s32.totalorder %v5113, 1
        %vm5161 = vcmp.eq.s32.totalorder %v5114, 1
        %vm5162 = vcmp.eq.s32.totalorder %v5115, 1
        %vm5163 = vcmp.eq.s32.totalorder %v5116, 1
        %vm5164 = vcmp.eq.s32.totalorder %v5117, 1
        %vm5165 = vcmp.eq.s32.totalorder %v5118, 1
        %vm5166 = vcmp.eq.s32.totalorder %v5119, 1
        %vm5167 = vcmp.eq.s32.totalorder %v5120, 1
        %vm5168 = vcmp.eq.s32.totalorder %v5121, 1
        %vm5169 = vcmp.eq.s32.totalorder %v5122, 1
        %vm5170 = vcmp.eq.s32.totalorder %v5123, 1
        %vm5171 = vcmp.eq.s32.totalorder %v5124, 1
        %vm5172 = vcmp.eq.s32.totalorder %v5125, 1
        %vm5173 = vcmp.eq.s32.totalorder %v5126, 1
        %vm5174 = vcmp.eq.s32.totalorder %v5127, 1
        %vm5175 = vcmp.eq.s32.totalorder %v5128, 1
        %vm5176 = vcmp.eq.s32.totalorder %v5129, 1
        %vm5177 = vcmp.eq.s32.totalorder %v5130, 1
        %vm5178 = vcmp.eq.s32.totalorder %v5131, 1
        %vm5179 = vcmp.eq.s32.totalorder %v5132, 1
        %vm5180 = vcmp.eq.s32.totalorder %v5133, 1
        %vm5181 = vcmp.eq.s32.totalorder %v5134, 1
        %vm5182 = vcmp.eq.s32.totalorder %v5135, 1
        %vm5183 = vcmp.eq.s32.totalorder %v5136, 1
        %vm5184 = vcmp.eq.s32.totalorder %v5137, 1
        %vm5185 = vcmp.eq.s32.totalorder %v5138, 1
        %vm5186 = vcmp.eq.s32.totalorder %v5139, 1
        %vm5187 = vcmp.eq.s32.totalorder %v5140, 1
        %vm5188 = vcmp.eq.s32.totalorder %v5141, 1
        %vm5189 = vcmp.eq.s32.totalorder %v5142, 1
        %vm5190 = vcmp.eq.s32.totalorder %v5143, 1
        %vm5191 = vcmp.eq.s32.totalorder %v5144, 1
        %vm5192 = vcmp.eq.s32.totalorder %v5145, 1
        %vm5193 = vcmp.eq.s32.totalorder %v5146, 1
        %vm5194 = vcmp.eq.s32.totalorder %v5147, 1
        %vm5195 = vcmp.eq.s32.totalorder %v5148, 1
        %vm5196 = vcmp.eq.s32.totalorder %v5149, 1
        %vm5197 = vcmp.eq.s32.totalorder %v5150, 1
        %v5198 = vsel %vm5151, %v4303, 0.0
        %v5199 = vsel %vm5152, %v4304, 0.0
        %v5200 = vsel %vm5153, %v4305, 0.0
        %v5201 = vsel %vm5154, %v4306, 0.0
        %v5202 = vsel %vm5155, %v4307, 0.0
        %v5203 = vsel %vm5156, %v4308, 0.0
        %v5204 = vsel %vm5157, %v4309, 0.0
        %v5205 = vsel %vm5158, %v4310, 0.0
        %v5206 = vsel %vm5159, %v4311, 0.0
        %v5207 = vsel %vm5160, %v4312, 0.0
        %v5208 = vsel %vm5161, %v4313, 0.0
        %v5209 = vsel %vm5162, %v4314, 0.0
        %v5210 = vsel %vm5163, %v4315, 0.0
        %v5211 = vsel %vm5164, %v4316, 0.0
        %v5212 = vsel %vm5165, %v4317, 0.0
        %v5213 = vsel %vm5166, %v4318, 0.0
        %v5214 = vsel %vm5167, %v4319, 0.0
        %v5215 = vsel %vm5168, %v4320, 0.0
        %v5216 = vsel %vm5169, %v4321, 0.0
        %v5217 = vsel %vm5170, %v4322, 0.0
        %v5218 = vsel %vm5171, %v4323, 0.0
        %v5219 = vsel %vm5172, %v4324, 0.0
        %v5220 = vsel %vm5173, %v4325, 0.0
        %v5221 = vsel %vm5174, %v4326, 0.0
        %v5222 = vsel %vm5175, %v4327, 0.0
        %v5223 = vsel %vm5176, %v4328, 0.0
        %v5224 = vsel %vm5177, %v4329, 0.0
        %v5225 = vsel %vm5178, %v4330, 0.0
        %v5226 = vsel %vm5179, %v4331, 0.0
        %v5227 = vsel %vm5180, %v4332, 0.0
        %v5228 = vsel %vm5181, %v4333, 0.0
        %v5229 = vsel %vm5182, %v4334, 0.0
        %v5230 = vsel %vm5183, %v4335, 0.0
        %v5231 = vsel %vm5184, %v4336, 0.0
        %v5232 = vsel %vm5185, %v4337, 0.0
        %v5233 = vsel %vm5186, %v4338, 0.0
        %v5234 = vsel %vm5187, %v4339, 0.0
        %v5235 = vsel %vm5188, %v4340, 0.0
        %v5236 = vsel %vm5189, %v4341, 0.0
        %v5237 = vsel %vm5190, %v4342, 0.0
        %v5238 = vsel %vm5191, %v4343, 0.0
        %v5239 = vsel %vm5192, %v4344, 0.0
        %v5240 = vsel %vm5193, %v4345, 0.0
        %v5241 = vsel %vm5194, %v4346, 0.0
        %v5242 = vsel %vm5195, %v4347, 0.0
        %v5243 = vsel %vm5196, %v4348, 0.0
        %v5244 = vsel %vm5197, %v4349, 0.0
        %5245 = vst [vmem:[#allocation4] sm:$0xff] %v5198
        %5246 = vst [vmem:[#allocation4 + $0x8] sm:$0xff] %v5199
        %5247 = vst [vmem:[#allocation4 + $0x10] sm:$0xff] %v5200
        %5248 = vst [vmem:[#allocation4 + $0x18] sm:$0xff] %v5201
        %5249 = vst [vmem:[#allocation4 + $0x20] sm:$0xff] %v5202
        %5250 = vst [vmem:[#allocation4 + $0x28] sm:$0xff] %v5203
        %5251 = vst [vmem:[#allocation4 + $0x30] sm:$0xff] %v5204
        %5252 = vst [vmem:[#allocation4 + $0x38] sm:$0xff] %v5205
        %5253 = vst [vmem:[#allocation4 + $0x40] sm:$0xff] %v5206
        %5254 = vst [vmem:[#allocation4 + $0x48] sm:$0xff] %v5207
        %5255 = vst [vmem:[#allocation4 + $0x50] sm:$0xff] %v5208
        %5256 = vst [vmem:[#allocation4 + $0x58] sm:$0xff] %v5209
        %5257 = vst [vmem:[#allocation4 + $0x60] sm:$0xff] %v5210
        %5258 = vst [vmem:[#allocation4 + $0x68] sm:$0xff] %v5211
        %5259 = vst [vmem:[#allocation4 + $0x70] sm:$0xff] %v5212
        %5260 = vst [vmem:[#allocation4 + $0x78] sm:$0xff] %v5213
        %5261 = vst [vmem:[#allocation4 + $0x80] sm:$0xff] %v5214
        %5262 = vst [vmem:[#allocation4 + $0x88] sm:$0xff] %v5215
        %5263 = vst [vmem:[#allocation4 + $0x90] sm:$0xff] %v5216
        %5264 = vst [vmem:[#allocation4 + $0x98] sm:$0xff] %v5217
        %5265 = vst [vmem:[#allocation4 + $0xa0] sm:$0xff] %v5218
        %5266 = vst [vmem:[#allocation4 + $0xa8] sm:$0xff] %v5219
        %5267 = vst [vmem:[#allocation4 + $0xb0] sm:$0xff] %v5220
        %5268 = vst [vmem:[#allocation4 + $0xb8] sm:$0xff] %v5221
        %5269 = vst [vmem:[#allocation4 + $0xc0] sm:$0xff] %v5222
        %5270 = vst [vmem:[#allocation4 + $0xc8] sm:$0xff] %v5223
        %5271 = vst [vmem:[#allocation4 + $0xd0] sm:$0xff] %v5224
        %5272 = vst [vmem:[#allocation4 + $0xd8] sm:$0xff] %v5225
        %5273 = vst [vmem:[#allocation4 + $0xe0] sm:$0xff] %v5226
        %5274 = vst [vmem:[#allocation4 + $0xe8] sm:$0xff] %v5227
        %5275 = vst [vmem:[#allocation4 + $0xf0] sm:$0xff] %v5228
        %5276 = vst [vmem:[#allocation4 + $0xf8] sm:$0xff] %v5229
        %5277 = vst [vmem:[#allocation4 + $0x100] sm:$0xff] %v5230
        %5278 = vst [vmem:[#allocation4 + $0x108] sm:$0xff] %v5231
        %5279 = vst [vmem:[#allocation4 + $0x110] sm:$0xff] %v5232
        %5280 = vst [vmem:[#allocation4 + $0x118] sm:$0xff] %v5233
        %5281 = vst [vmem:[#allocation4 + $0x120] sm:$0xff] %v5234
        %5282 = vst [vmem:[#allocation4 + $0x128] sm:$0xff] %v5235
        %5283 = vst [vmem:[#allocation4 + $0x130] sm:$0xff] %v5236
        %5284 = vst [vmem:[#allocation4 + $0x138] sm:$0xff] %v5237
        %5285 = vst [vmem:[#allocation4 + $0x140] sm:$0xff] %v5238
        %5286 = vst [vmem:[#allocation4 + $0x148] sm:$0xff] %v5239
        %5287 = vst [vmem:[#allocation4 + $0x150] sm:$0xff] %v5240
        %5288 = vst [vmem:[#allocation4 + $0x158] sm:$0xff] %v5241
        %5289 = vst [vmem:[#allocation4 + $0x160] sm:$0xff] %v5242
        %5290 = vst [vmem:[#allocation4 + $0x168] sm:$0xff] %v5243
        %5291 = vst [vmem:[#allocation4 + $0x170] sm:$0x3f] %v5244
        %v5292 = vld [vmem:[#allocation4] sm:$0xff]
        %v5293 = vld [vmem:[#allocation4 + $0x8] sm:$0xff]
        %v5294 = vld [vmem:[#allocation4 + $0x10] sm:$0xff]
        %v5295 = vld [vmem:[#allocation4 + $0x18] sm:$0xff]
        %v5296 = vld [vmem:[#allocation4 + $0x20] sm:$0xff]
        %v5297 = vld [vmem:[#allocation4 + $0x28] sm:$0xff]
        %v5298 = vld [vmem:[#allocation4 + $0x30] sm:$0xff]
        %v5299 = vld [vmem:[#allocation4 + $0x38] sm:$0xff]
        %v5300 = vld [vmem:[#allocation4 + $0x40] sm:$0xff]
        %v5301 = vld [vmem:[#allocation4 + $0x48] sm:$0xff]
        %v5302 = vld [vmem:[#allocation4 + $0x50] sm:$0xff]
        %v5303 = vld [vmem:[#allocation4 + $0x58] sm:$0xff]
        %v5304 = vld [vmem:[#allocation4 + $0x60] sm:$0xff]
        %v5305 = vld [vmem:[#allocation4 + $0x68] sm:$0xff]
        %v5306 = vld [vmem:[#allocation4 + $0x70] sm:$0xff]
        %v5307 = vld [vmem:[#allocation4 + $0x78] sm:$0xff]
        %v5308 = vld [vmem:[#allocation4 + $0x80] sm:$0xff]
        %v5309 = vld [vmem:[#allocation4 + $0x88] sm:$0xff]
        %v5310 = vld [vmem:[#allocation4 + $0x90] sm:$0xff]
        %v5311 = vld [vmem:[#allocation4 + $0x98] sm:$0xff]
        %v5312 = vld [vmem:[#allocation4 + $0xa0] sm:$0xff]
        %v5313 = vld [vmem:[#allocation4 + $0xa8] sm:$0xff]
        %v5314 = vld [vmem:[#allocation4 + $0xb0] sm:$0xff]
        %v5315 = vld [vmem:[#allocation4 + $0xb8] sm:$0xff]
        %v5316 = vld [vmem:[#allocation4 + $0xc0] sm:$0xff]
        %v5317 = vld [vmem:[#allocation4 + $0xc8] sm:$0xff]
        %v5318 = vld [vmem:[#allocation4 + $0xd0] sm:$0xff]
        %v5319 = vld [vmem:[#allocation4 + $0xd8] sm:$0xff]
        %v5320 = vld [vmem:[#allocation4 + $0xe0] sm:$0xff]
        %v5321 = vld [vmem:[#allocation4 + $0xe8] sm:$0xff]
        %v5322 = vld [vmem:[#allocation4 + $0xf0] sm:$0xff]
        %v5323 = vld [vmem:[#allocation4 + $0xf8] sm:$0xff]
        %v5324 = vld [vmem:[#allocation4 + $0x100] sm:$0xff]
        %v5325 = vld [vmem:[#allocation4 + $0x108] sm:$0xff]
        %v5326 = vld [vmem:[#allocation4 + $0x110] sm:$0xff]
        %v5327 = vld [vmem:[#allocation4 + $0x118] sm:$0xff]
        %v5328 = vld [vmem:[#allocation4 + $0x120] sm:$0xff]
        %v5329 = vld [vmem:[#allocation4 + $0x128] sm:$0xff]
        %v5330 = vld [vmem:[#allocation4 + $0x130] sm:$0xff]
        %v5331 = vld [vmem:[#allocation4 + $0x138] sm:$0xff]
        %v5332 = vld [vmem:[#allocation4 + $0x140] sm:$0xff]
        %v5333 = vld [vmem:[#allocation4 + $0x148] sm:$0xff]
        %v5334 = vpack.c.bf16 %v5293, %v5292
        %v5335 = vpack.c.bf16 %v5295, %v5294
        %v5336 = vpack.c.bf16 %v5297, %v5296
        %v5337 = vpack.c.bf16 %v5299, %v5298
        %v5338 = vpack.c.bf16 %v5301, %v5300
        %v5339 = vpack.c.bf16 %v5303, %v5302
        %v5340 = vpack.c.bf16 %v5305, %v5304
        %v5341 = vpack.c.bf16 %v5307, %v5306
        %v5342 = vpack.c.bf16 %v5309, %v5308
        %v5343 = vpack.c.bf16 %v5311, %v5310
        %v5344 = vpack.c.bf16 %v5313, %v5312
        %v5345 = vpack.c.bf16 %v5315, %v5314
        %v5346 = vpack.c.bf16 %v5317, %v5316
        %v5347 = vpack.c.bf16 %v5319, %v5318
        %v5348 = vpack.c.bf16 %v5321, %v5320
        %v5349 = vpack.c.bf16 %v5323, %v5322
        %v5350 = vpack.c.bf16 %v5325, %v5324
        %v5351 = vpack.c.bf16 %v5327, %v5326
        %v5352 = vpack.c.bf16 %v5329, %v5328
        %v5353 = vpack.c.bf16 %v5331, %v5330
        %v5354 = vpack.c.bf16 %v5333, %v5332
        %v5355 = vld [vmem:[#allocation11] sm:$0xf]
        %v5356 = vld [vmem:[#allocation11 + $0x4] sm:$0xf]
        %v5357 = vld [vmem:[#allocation11 + $0x8] sm:$0xf]
        %v5358 = vld [vmem:[#allocation11 + $0xc] sm:$0xf]
        %v5359 = vld [vmem:[#allocation11 + $0x10] sm:$0xf]
        %v5360 = vld [vmem:[#allocation11 + $0x14] sm:$0xf]
        %v5361 = vld [vmem:[#allocation11 + $0x18] sm:$0xf]
        %v5362 = vld [vmem:[#allocation11 + $0x1c] sm:$0xf]
        %v5363 = vld [vmem:[#allocation11 + $0x20] sm:$0xf]
        %v5364 = vld [vmem:[#allocation11 + $0x24] sm:$0xf]
        %v5365 = vld [vmem:[#allocation11 + $0x28] sm:$0xf]
        %v5366 = vld [vmem:[#allocation11 + $0x2c] sm:$0xf]
        %v5367 = vld [vmem:[#allocation11 + $0x30] sm:$0xf]
        %v5368 = vld [vmem:[#allocation11 + $0x34] sm:$0xf]
        %v5369 = vld [vmem:[#allocation11 + $0x38] sm:$0xf]
        %v5370 = vld [vmem:[#allocation11 + $0x3c] sm:$0xf]
        %v5371 = vld [vmem:[#allocation4 + $0x1] sm:$0xff]
        %v5372 = vld [vmem:[#allocation4 + $0x9] sm:$0xff]
        %v5373 = vld [vmem:[#allocation4 + $0x11] sm:$0xff]
        %v5374 = vld [vmem:[#allocation4 + $0x19] sm:$0xff]
        %v5375 = vld [vmem:[#allocation4 + $0x21] sm:$0xff]
        %v5376 = vld [vmem:[#allocation4 + $0x29] sm:$0xff]
        %v5377 = vld [vmem:[#allocation4 + $0x31] sm:$0xff]
        %v5378 = vld [vmem:[#allocation4 + $0x39] sm:$0xff]
        %v5379 = vld [vmem:[#allocation4 + $0x41] sm:$0xff]
        %v5380 = vld [vmem:[#allocation4 + $0x49] sm:$0xff]
        %v5381 = vld [vmem:[#allocation4 + $0x51] sm:$0xff]
        %v5382 = vld [vmem:[#allocation4 + $0x59] sm:$0xff]
        %v5383 = vld [vmem:[#allocation4 + $0x61] sm:$0xff]
        %v5384 = vld [vmem:[#allocation4 + $0x69] sm:$0xff]
        %v5385 = vld [vmem:[#allocation4 + $0x71] sm:$0xff]
        %v5386 = vld [vmem:[#allocation4 + $0x79] sm:$0xff]
        %v5387 = vld [vmem:[#allocation4 + $0x81] sm:$0xff]
        %v5388 = vld [vmem:[#allocation4 + $0x89] sm:$0xff]
        %v5389 = vld [vmem:[#allocation4 + $0x91] sm:$0xff]
        %v5390 = vld [vmem:[#allocation4 + $0x99] sm:$0xff]
        %v5391 = vld [vmem:[#allocation4 + $0xa1] sm:$0xff]
        %v5392 = vld [vmem:[#allocation4 + $0xa9] sm:$0xff]
        %v5393 = vld [vmem:[#allocation4 + $0xb1] sm:$0xff]
        %v5394 = vld [vmem:[#allocation4 + $0xb9] sm:$0xff]
        %v5395 = vld [vmem:[#allocation4 + $0xc1] sm:$0xff]
        %v5396 = vld [vmem:[#allocation4 + $0xc9] sm:$0xff]
        %v5397 = vld [vmem:[#allocation4 + $0xd1] sm:$0xff]
        %v5398 = vld [vmem:[#allocation4 + $0xd9] sm:$0xff]
        %v5399 = vld [vmem:[#allocation4 + $0xe1] sm:$0xff]
        %v5400 = vld [vmem:[#allocation4 + $0xe9] sm:$0xff]
        %v5401 = vld [vmem:[#allocation4 + $0xf1] sm:$0xff]
        %v5402 = vld [vmem:[#allocation4 + $0xf9] sm:$0xff]
        %v5403 = vld [vmem:[#allocation4 + $0x101] sm:$0xff]
        %v5404 = vld [vmem:[#allocation4 + $0x109] sm:$0xff]
        %v5405 = vld [vmem:[#allocation4 + $0x111] sm:$0xff]
        %v5406 = vld [vmem:[#allocation4 + $0x119] sm:$0xff]
        %v5407 = vld [vmem:[#allocation4 + $0x121] sm:$0xff]
        %v5408 = vld [vmem:[#allocation4 + $0x129] sm:$0xff]
        %v5409 = vld [vmem:[#allocation4 + $0x131] sm:$0xff]
        %v5410 = vld [vmem:[#allocation4 + $0x139] sm:$0xff]
        %v5411 = vld [vmem:[#allocation4 + $0x141] sm:$0xff]
        %v5412 = vld [vmem:[#allocation4 + $0x149] sm:$0xff]
        %v5413 = vpack.c.bf16 %v5372, %v5371
        %v5414 = vpack.c.bf16 %v5374, %v5373
        %v5415 = vpack.c.bf16 %v5376, %v5375
        %v5416 = vpack.c.bf16 %v5378, %v5377
        %v5417 = vpack.c.bf16 %v5380, %v5379
        %v5418 = vpack.c.bf16 %v5382, %v5381
        %v5419 = vpack.c.bf16 %v5384, %v5383
        %v5420 = vpack.c.bf16 %v5386, %v5385
        %v5421 = vpack.c.bf16 %v5388, %v5387
        %v5422 = vpack.c.bf16 %v5390, %v5389
        %v5423 = vpack.c.bf16 %v5392, %v5391
        %v5424 = vpack.c.bf16 %v5394, %v5393
        %v5425 = vpack.c.bf16 %v5396, %v5395
        %v5426 = vpack.c.bf16 %v5398, %v5397
        %v5427 = vpack.c.bf16 %v5400, %v5399
        %v5428 = vpack.c.bf16 %v5402, %v5401
        %v5429 = vpack.c.bf16 %v5404, %v5403
        %v5430 = vpack.c.bf16 %v5406, %v5405
        %v5431 = vpack.c.bf16 %v5408, %v5407
        %v5432 = vpack.c.bf16 %v5410, %v5409
        %v5433 = vpack.c.bf16 %v5412, %v5411
        %s5434 = scalar_lea.vmem [#allocation11], 64
        %v5435 = vld [vmem:[%s5434] sm:$0xf]
        %v5436 = vld [vmem:[%s5434 + $0x4] sm:$0xf]
        %v5437 = vld [vmem:[%s5434 + $0x8] sm:$0xf]
        %v5438 = vld [vmem:[%s5434 + $0xc] sm:$0xf]
        %v5439 = vld [vmem:[%s5434 + $0x10] sm:$0xf]
        %v5440 = vld [vmem:[%s5434 + $0x14] sm:$0xf]
        %v5441 = vld [vmem:[%s5434 + $0x18] sm:$0xf]
        %v5442 = vld [vmem:[%s5434 + $0x1c] sm:$0xf]
        %v5443 = vld [vmem:[%s5434 + $0x20] sm:$0xf]
        %v5444 = vld [vmem:[%s5434 + $0x24] sm:$0xf]
        %v5445 = vld [vmem:[%s5434 + $0x28] sm:$0xf]
        %v5446 = vld [vmem:[%s5434 + $0x2c] sm:$0xf]
        %v5447 = vld [vmem:[%s5434 + $0x30] sm:$0xf]
        %v5448 = vld [vmem:[%s5434 + $0x34] sm:$0xf]
        %v5449 = vld [vmem:[%s5434 + $0x38] sm:$0xf]
        %v5450 = vld [vmem:[%s5434 + $0x3c] sm:$0xf]
        %v5467 = vunpack.c.l.b16 %v5435
        %v5468 = vunpack.c.l.b16 %v5436
        %v5469 = vunpack.c.l.b16 %v5437
        %v5470 = vunpack.c.l.b16 %v5438
        %v5471 = vunpack.c.l.b16 %v5439
        %v5472 = vunpack.c.l.b16 %v5440
        %v5473 = vunpack.c.l.b16 %v5441
        %v5474 = vunpack.c.l.b16 %v5442
        %v5475 = vunpack.c.l.b16 %v5443
        %v5476 = vunpack.c.l.b16 %v5444
        %v5477 = vunpack.c.l.b16 %v5445
        %v5478 = vunpack.c.l.b16 %v5446
        %v5479 = vunpack.c.l.b16 %v5447
        %v5480 = vunpack.c.l.b16 %v5448
        %v5481 = vunpack.c.l.b16 %v5449
        %v5482 = vunpack.c.l.b16 %v5450
        %v5483 = vpack.c.b16 %v5468, %v5467
        %v5484 = vpack.c.b16 %v5470, %v5469
        %v5485 = vpack.c.b16 %v5472, %v5471
        %v5486 = vpack.c.b16 %v5474, %v5473
        %v5487 = vpack.c.b16 %v5476, %v5475
        %v5488 = vpack.c.b16 %v5478, %v5477
        %v5489 = vpack.c.b16 %v5480, %v5479
        %v5490 = vpack.c.b16 %v5482, %v5481
        %5499 = vmatprep.subr.bf16.mxu0 0
        %5500 = vmatpush1.bf16.msra.mxu0 %v5483
        %5501 = vmatprep.subr.bf16.mxu0 0
        %5502 = vmatpush1.bf16.msra.mxu0 %v5484
        %5503 = vmatprep.subr.bf16.mxu0 0
        %5504 = vmatpush1.bf16.msra.mxu0 %v5485
        %5505 = vmatprep.subr.bf16.mxu0 0
        %5506 = vmatpush1.bf16.msra.mxu0 %v5486
        %5507 = vmatprep.subr.bf16.mxu0 0
        %5508 = vmatpush1.bf16.msra.mxu0 %v5487
        %5509 = vmatprep.subr.bf16.mxu0 0
        %5510 = vmatpush1.bf16.msra.mxu0 %v5488
        %5511 = vmatprep.subr.bf16.mxu0 0
        %5512 = vmatpush1.bf16.msra.mxu0 %v5489
        %5513 = vmatprep.subr.bf16.mxu0 0
        %5514 = vmatpush1.bf16.msra.mxu0 %v5490
        %5515 = vmatprep.subr.bf16.mxu0 0
        %5516 = vmatpush1.bf16.msra.mxu0 0
        %5517 = vmatprep.subr.bf16.mxu0 0
        %5518 = vmatpush1.bf16.msra.mxu0 0
        %5519 = vmatprep.subr.bf16.mxu0 0
        %5520 = vmatpush1.bf16.msra.mxu0 0
        %5521 = vmatprep.subr.bf16.mxu0 0
        %5522 = vmatpush1.bf16.msra.mxu0 0
        %5523 = vmatprep.subr.bf16.mxu0 0
        %5524 = vmatpush1.bf16.msra.mxu0 0
        %5525 = vmatprep.subr.bf16.mxu0 0
        %5526 = vmatpush1.bf16.msra.mxu0 0
        %5527 = vmatprep.subr.bf16.mxu0 0
        %5528 = vmatpush1.bf16.msra.mxu0 0
        %5529 = vmatprep.subr.bf16.mxu0 0
        %5530 = vmatpush1.bf16.msra.mxu0 0
        %5531 = vmatprep.mubr.bf16.mxu0 0
        %5532 = vmatmul.mubr.bf16.gmra.mrb[0].mxu0 %v5413
        %v5533 = vpop.f32.mrb[0].mxu0
        %v5534 = vadd.f32 0.0, %v5533
        %v5535 = vpop.f32.mrb[0].mxu0
        %v5536 = vpop.f32.mrb[0].mxu0
        %v5537 = vadd.f32 0.0, %v5536
        %v5538 = vpop.f32.mrb[0].mxu0
        %5539 = vmatprep.mubr.bf16.mxu0 0
        %5540 = vmatmul.mubr.bf16.gmra.mrb[0].mxu0 %v5414
        %v5541 = vpop.f32.mrb[0].mxu0
        %v5542 = vadd.f32 0.0, %v5541
        %v5543 = vpop.f32.mrb[0].mxu0
        %v5544 = vpop.f32.mrb[0].mxu0
        %v5545 = vadd.f32 0.0, %v5544
        %v5546 = vpop.f32.mrb[0].mxu0
        %5547 = vmatprep.mubr.bf16.mxu0 0
        %5548 = vmatmul.mubr.bf16.gmra.mrb[0].mxu0 %v5415
        %v5549 = vpop.f32.mrb[0].mxu0
        %v5550 = vadd.f32 0.0, %v5549
        %v5551 = vpop.f32.mrb[0].mxu0
        %v5552 = vpop.f32.mrb[0].mxu0
        %v5553 = vadd.f32 0.0, %v5552
        %v5554 = vpop.f32.mrb[0].mxu0
        %5555 = vmatprep.mubr.bf16.mxu0 0
        %5556 = vmatmul.mubr.bf16.gmra.mrb[0].mxu0 %v5416
        %v5557 = vpop.f32.mrb[0].mxu0
        %v5558 = vadd.f32 0.0, %v5557
        %v5559 = vpop.f32.mrb[0].mxu0
        %v5560 = vpop.f32.mrb[0].mxu0
        %v5561 = vadd.f32 0.0, %v5560
        %v5562 = vpop.f32.mrb[0].mxu0
        %5563 = vmatprep.mubr.bf16.mxu0 0
        %5564 = vmatmul.mubr.bf16.gmra.mrb[0].mxu0 %v5417
        %v5565 = vpop.f32.mrb[0].mxu0
        %v5566 = vadd.f32 0.0, %v5565
        %v5567 = vpop.f32.mrb[0].mxu0
        %v5568 = vpop.f32.mrb[0].mxu0
        %v5569 = vadd.f32 0.0, %v5568
        %v5570 = vpop.f32.mrb[0].mxu0
        %5571 = vmatprep.mubr.bf16.mxu0 0
        %5572 = vmatmul.mubr.bf16.gmra.mrb[0].mxu0 %v5418
        %v5573 = vpop.f32.mrb[0].mxu0
        %v5574 = vadd.f32 0.0, %v5573
        %v5575 = vpop.f32.mrb[0].mxu0
        %v5576 = vpop.f32.mrb[0].mxu0
        %v5577 = vadd.f32 0.0, %v5576
        %v5578 = vpop.f32.mrb[0].mxu0
        %5579 = vmatprep.mubr.bf16.mxu0 0
        %5580 = vmatmul.mubr.bf16.gmra.mrb[0].mxu0 %v5419
        %v5581 = vpop.f32.mrb[0].mxu0
        %v5582 = vadd.f32 0.0, %v5581
        %v5583 = vpop.f32.mrb[0].mxu0
        %v5584 = vpop.f32.mrb[0].mxu0
        %v5585 = vadd.f32 0.0, %v5584
        %v5586 = vpop.f32.mrb[0].mxu0
        %5587 = vmatprep.mubr.bf16.mxu0 0
        %5588 = vmatmul.mubr.bf16.gmra.mrb[0].mxu0 %v5420
        %v5589 = vpop.f32.mrb[0].mxu0
        %v5590 = vadd.f32 0.0, %v5589
        %v5591 = vpop.f32.mrb[0].mxu0
        %v5592 = vpop.f32.mrb[0].mxu0
        %v5593 = vadd.f32 0.0, %v5592
        %v5594 = vpop.f32.mrb[0].mxu0
        %5595 = vmatprep.mubr.bf16.mxu0 0
        %5596 = vmatmul.mubr.bf16.gmra.mrb[0].mxu0 %v5421
        %v5597 = vpop.f32.mrb[0].mxu0
        %v5598 = vadd.f32 0.0, %v5597
        %v5599 = vpop.f32.mrb[0].mxu0
        %v5600 = vpop.f32.mrb[0].mxu0
        %v5601 = vadd.f32 0.0, %v5600
        %v5602 = vpop.f32.mrb[0].mxu0
        %5603 = vmatprep.mubr.bf16.mxu0 0
        %5604 = vmatmul.mubr.bf16.gmra.mrb[0].mxu0 %v5422
        %v5605 = vpop.f32.mrb[0].mxu0
        %v5606 = vadd.f32 0.0, %v5605
        %v5607 = vpop.f32.mrb[0].mxu0
        %v5608 = vpop.f32.mrb[0].mxu0
        %v5609 = vadd.f32 0.0, %v5608
        %v5610 = vpop.f32.mrb[0].mxu0
        %5611 = vmatprep.mubr.bf16.mxu0 0
        %5612 = vmatmul.mubr.bf16.gmra.mrb[0].mxu0 %v5423
        %v5613 = vpop.f32.mrb[0].mxu0
        %v5614 = vadd.f32 0.0, %v5613
        %v5615 = vpop.f32.mrb[0].mxu0
        %v5616 = vpop.f32.mrb[0].mxu0
        %v5617 = vadd.f32 0.0, %v5616
        %v5618 = vpop.f32.mrb[0].mxu0
        %5619 = vmatprep.mubr.bf16.mxu0 0
        %5620 = vmatmul.mubr.bf16.gmra.mrb[0].mxu0 %v5424
        %v5621 = vpop.f32.mrb[0].mxu0
        %v5622 = vadd.f32 0.0, %v5621
        %v5623 = vpop.f32.mrb[0].mxu0
        %v5624 = vpop.f32.mrb[0].mxu0
        %v5625 = vadd.f32 0.0, %v5624
        %v5626 = vpop.f32.mrb[0].mxu0
        %5627 = vmatprep.mubr.bf16.mxu0 0
        %5628 = vmatmul.mubr.bf16.gmra.mrb[0].mxu0 %v5425
        %v5629 = vpop.f32.mrb[0].mxu0
        %v5630 = vadd.f32 0.0, %v5629
        %v5631 = vpop.f32.mrb[0].mxu0
        %v5632 = vpop.f32.mrb[0].mxu0
        %v5633 = vadd.f32 0.0, %v5632
        %v5634 = vpop.f32.mrb[0].mxu0
        %5635 = vmatprep.mubr.bf16.mxu0 0
        %5636 = vmatmul.mubr.bf16.gmra.mrb[0].mxu0 %v5426
        %v5637 = vpop.f32.mrb[0].mxu0
        %v5638 = vadd.f32 0.0, %v5637
        %v5639 = vpop.f32.mrb[0].mxu0
        %v5640 = vpop.f32.mrb[0].mxu0
        %v5641 = vadd.f32 0.0, %v5640
        %v5642 = vpop.f32.mrb[0].mxu0
        %5643 = vmatprep.mubr.bf16.mxu0 0
        %5644 = vmatmul.mubr.bf16.gmra.mrb[0].mxu0 %v5427
        %v5645 = vpop.f32.mrb[0].mxu0
        %v5646 = vadd.f32 0.0, %v5645
        %v5647 = vpop.f32.mrb[0].mxu0
        %v5648 = vpop.f32.mrb[0].mxu0
        %v5649 = vadd.f32 0.0, %v5648
        %v5650 = vpop.f32.mrb[0].mxu0
        %5651 = vmatprep.mubr.bf16.mxu0 0
        %5652 = vmatmul.mubr.bf16.gmra.mrb[0].mxu0 %v5428
        %v5653 = vpop.f32.mrb[0].mxu0
        %v5654 = vadd.f32 0.0, %v5653
        %v5655 = vpop.f32.mrb[0].mxu0
        %v5656 = vpop.f32.mrb[0].mxu0
        %v5657 = vadd.f32 0.0, %v5656
        %v5658 = vpop.f32.mrb[0].mxu0
        %5659 = vmatprep.mubr.bf16.mxu0 0
        %5660 = vmatmul.mubr.bf16.gmra.mrb[0].mxu0 %v5429
        %v5661 = vpop.f32.mrb[0].mxu0
        %v5662 = vadd.f32 0.0, %v5661
        %v5663 = vpop.f32.mrb[0].mxu0
        %v5664 = vpop.f32.mrb[0].mxu0
        %v5665 = vadd.f32 0.0, %v5664
        %v5666 = vpop.f32.mrb[0].mxu0
        %5667 = vmatprep.mubr.bf16.mxu0 0
        %5668 = vmatmul.mubr.bf16.gmra.mrb[0].mxu0 %v5430
        %v5669 = vpop.f32.mrb[0].mxu0
        %v5670 = vadd.f32 0.0, %v5669
        %v5671 = vpop.f32.mrb[0].mxu0
        %v5672 = vpop.f32.mrb[0].mxu0
        %v5673 = vadd.f32 0.0, %v5672
        %v5674 = vpop.f32.mrb[0].mxu0
        %5675 = vmatprep.mubr.bf16.mxu0 0
        %5676 = vmatmul.mubr.bf16.gmra.mrb[0].mxu0 %v5431
        %v5677 = vpop.f32.mrb[0].mxu0
        %v5678 = vadd.f32 0.0, %v5677
        %v5679 = vpop.f32.mrb[0].mxu0
        %v5680 = vpop.f32.mrb[0].mxu0
        %v5681 = vadd.f32 0.0, %v5680
        %v5682 = vpop.f32.mrb[0].mxu0
        %5683 = vmatprep.mubr.bf16.mxu0 0
        %5684 = vmatmul.mubr.bf16.gmra.mrb[0].mxu0 %v5432
        %v5685 = vpop.f32.mrb[0].mxu0
        %v5686 = vadd.f32 0.0, %v5685
        %v5687 = vpop.f32.mrb[0].mxu0
        %v5688 = vpop.f32.mrb[0].mxu0
        %v5689 = vadd.f32 0.0, %v5688
        %v5690 = vpop.f32.mrb[0].mxu0
        %5691 = vmatprep.mubr.bf16.mxu0 0
        %5692 = vmatmul.mubr.bf16.gmra.mrb[0].mxu0 %v5433
        %v5693 = vpop.f32.mrb[0].mxu0
        %v5694 = vadd.f32 0.0, %v5693
        %v5695 = vpop.f32.mrb[0].mxu0
        %v5696 = vpop.f32.mrb[0].mxu0
        %v5697 = vadd.f32 0.0, %v5696
        %v5698 = vpop.f32.mrb[0].mxu0
        %5699 = vdwg.mxu0
        %v5716 = vunpack.c.l.b16 %v5355
        %v5717 = vunpack.c.l.b16 %v5356
        %v5718 = vunpack.c.l.b16 %v5357
        %v5719 = vunpack.c.l.b16 %v5358
        %v5720 = vunpack.c.l.b16 %v5359
        %v5721 = vunpack.c.l.b16 %v5360
        %v5722 = vunpack.c.l.b16 %v5361
        %v5723 = vunpack.c.l.b16 %v5362
        %v5724 = vunpack.c.l.b16 %v5363
        %v5725 = vunpack.c.l.b16 %v5364
        %v5726 = vunpack.c.l.b16 %v5365
        %v5727 = vunpack.c.l.b16 %v5366
        %v5728 = vunpack.c.l.b16 %v5367
        %v5729 = vunpack.c.l.b16 %v5368
        %v5730 = vunpack.c.l.b16 %v5369
        %v5731 = vunpack.c.l.b16 %v5370
        %v5732 = vpack.c.b16 %v5717, %v5716
        %v5733 = vpack.c.b16 %v5719, %v5718
        %v5734 = vpack.c.b16 %v5721, %v5720
        %v5735 = vpack.c.b16 %v5723, %v5722
        %v5736 = vpack.c.b16 %v5725, %v5724
        %v5737 = vpack.c.b16 %v5727, %v5726
        %v5738 = vpack.c.b16 %v5729, %v5728
        %v5739 = vpack.c.b16 %v5731, %v5730
        %5748 = vmatprep.subr.bf16.mxu0 0
        %5749 = vmatpush1.bf16.msra.mxu0 %v5732
        %5750 = vmatprep.subr.bf16.mxu0 0
        %5751 = vmatpush1.bf16.msra.mxu0 %v5733
        %5752 = vmatprep.subr.bf16.mxu0 0
        %5753 = vmatpush1.bf16.msra.mxu0 %v5734
        %5754 = vmatprep.subr.bf16.mxu0 0
        %5755 = vmatpush1.bf16.msra.mxu0 %v5735
        %5756 = vmatprep.subr.bf16.mxu0 0
        %5757 = vmatpush1.bf16.msra.mxu0 %v5736
        %5758 = vmatprep.subr.bf16.mxu0 0
        %5759 = vmatpush1.bf16.msra.mxu0 %v5737
        %5760 = vmatprep.subr.bf16.mxu0 0
        %5761 = vmatpush1.bf16.msra.mxu0 %v5738
        %5762 = vmatprep.subr.bf16.mxu0 0
        %5763 = vmatpush1.bf16.msra.mxu0 %v5739
        %5764 = vmatprep.subr.bf16.mxu0 0
        %5765 = vmatpush1.bf16.msra.mxu0 0
        %5766 = vmatprep.subr.bf16.mxu0 0
        %5767 = vmatpush1.bf16.msra.mxu0 0
        %5768 = vmatprep.subr.bf16.mxu0 0
        %5769 = vmatpush1.bf16.msra.mxu0 0
        %5770 = vmatprep.subr.bf16.mxu0 0
        %5771 = vmatpush1.bf16.msra.mxu0 0
        %5772 = vmatprep.subr.bf16.mxu0 0
        %5773 = vmatpush1.bf16.msra.mxu0 0
        %5774 = vmatprep.subr.bf16.mxu0 0
        %5775 = vmatpush1.bf16.msra.mxu0 0
        %5776 = vmatprep.subr.bf16.mxu0 0
        %5777 = vmatpush1.bf16.msra.mxu0 0
        %5778 = vmatprep.subr.bf16.mxu0 0
        %5779 = vmatpush1.bf16.msra.mxu0 0
        %5780 = vmatprep.mubr.bf16.mxu0 0
        %5781 = vmatmul.mubr.bf16.gmra.mrb[0].mxu0 %v5334
        %v5782 = vpop.f32.mrb[0].mxu0
        %v5783 = vadd.f32 %v5534, %v5782
        %v5784 = vpop.f32.mrb[0].mxu0
        %v5785 = vpop.f32.mrb[0].mxu0
        %v5786 = vadd.f32 %v5537, %v5785
        %v5787 = vpop.f32.mrb[0].mxu0
        %5788 = vmatprep.mubr.bf16.mxu0 0
        %5789 = vmatmul.mubr.bf16.gmra.mrb[0].mxu0 %v5335
        %v5790 = vpop.f32.mrb[0].mxu0
        %v5791 = vadd.f32 %v5542, %v5790
        %v5792 = vpop.f32.mrb[0].mxu0
        %v5793 = vpop.f32.mrb[0].mxu0
        %v5794 = vadd.f32 %v5545, %v5793
        %v5795 = vpop.f32.mrb[0].mxu0
        %5796 = vmatprep.mubr.bf16.mxu0 0
        %5797 = vmatmul.mubr.bf16.gmra.mrb[0].mxu0 %v5336
        %v5798 = vpop.f32.mrb[0].mxu0
        %v5799 = vadd.f32 %v5550, %v5798
        %v5800 = vpop.f32.mrb[0].mxu0
        %v5801 = vpop.f32.mrb[0].mxu0
        %v5802 = vadd.f32 %v5553, %v5801
        %v5803 = vpop.f32.mrb[0].mxu0
        %5804 = vmatprep.mubr.bf16.mxu0 0
        %5805 = vmatmul.mubr.bf16.gmra.mrb[0].mxu0 %v5337
        %v5806 = vpop.f32.mrb[0].mxu0
        %v5807 = vadd.f32 %v5558, %v5806
        %v5808 = vpop.f32.mrb[0].mxu0
        %v5809 = vpop.f32.mrb[0].mxu0
        %v5810 = vadd.f32 %v5561, %v5809
        %v5811 = vpop.f32.mrb[0].mxu0
        %5812 = vmatprep.mubr.bf16.mxu0 0
        %5813 = vmatmul.mubr.bf16.gmra.mrb[0].mxu0 %v5338
        %v5814 = vpop.f32.mrb[0].mxu0
        %v5815 = vadd.f32 %v5566, %v5814
        %v5816 = vpop.f32.mrb[0].mxu0
        %v5817 = vpop.f32.mrb[0].mxu0
        %v5818 = vadd.f32 %v5569, %v5817
        %v5819 = vpop.f32.mrb[0].mxu0
        %5820 = vmatprep.mubr.bf16.mxu0 0
        %5821 = vmatmul.mubr.bf16.gmra.mrb[0].mxu0 %v5339
        %v5822 = vpop.f32.mrb[0].mxu0
        %v5823 = vadd.f32 %v5574, %v5822
        %v5824 = vpop.f32.mrb[0].mxu0
        %v5825 = vpop.f32.mrb[0].mxu0
        %v5826 = vadd.f32 %v5577, %v5825
        %v5827 = vpop.f32.mrb[0].mxu0
        %5828 = vmatprep.mubr.bf16.mxu0 0
        %5829 = vmatmul.mubr.bf16.gmra.mrb[0].mxu0 %v5340
        %v5830 = vpop.f32.mrb[0].mxu0
        %v5831 = vadd.f32 %v5582, %v5830
        %v5832 = vpop.f32.mrb[0].mxu0
        %v5833 = vpop.f32.mrb[0].mxu0
        %v5834 = vadd.f32 %v5585, %v5833
        %v5835 = vpop.f32.mrb[0].mxu0
        %5836 = vmatprep.mubr.bf16.mxu0 0
        %5837 = vmatmul.mubr.bf16.gmra.mrb[0].mxu0 %v5341
        %v5838 = vpop.f32.mrb[0].mxu0
        %v5839 = vadd.f32 %v5590, %v5838
        %v5840 = vpop.f32.mrb[0].mxu0
        %v5841 = vpop.f32.mrb[0].mxu0
        %v5842 = vadd.f32 %v5593, %v5841
        %v5843 = vpop.f32.mrb[0].mxu0
        %5844 = vmatprep.mubr.bf16.mxu0 0
        %5845 = vmatmul.mubr.bf16.gmra.mrb[0].mxu0 %v5342
        %v5846 = vpop.f32.mrb[0].mxu0
        %v5847 = vadd.f32 %v5598, %v5846
        %v5848 = vpop.f32.mrb[0].mxu0
        %v5849 = vpop.f32.mrb[0].mxu0
        %v5850 = vadd.f32 %v5601, %v5849
        %v5851 = vpop.f32.mrb[0].mxu0
        %5852 = vmatprep.mubr.bf16.mxu0 0
        %5853 = vmatmul.mubr.bf16.gmra.mrb[0].mxu0 %v5343
        %v5854 = vpop.f32.mrb[0].mxu0
        %v5855 = vadd.f32 %v5606, %v5854
        %v5856 = vpop.f32.mrb[0].mxu0
        %v5857 = vpop.f32.mrb[0].mxu0
        %v5858 = vadd.f32 %v5609, %v5857
        %v5859 = vpop.f32.mrb[0].mxu0
        %5860 = vmatprep.mubr.bf16.mxu0 0
        %5861 = vmatmul.mubr.bf16.gmra.mrb[0].mxu0 %v5344
        %v5862 = vpop.f32.mrb[0].mxu0
        %v5863 = vadd.f32 %v5614, %v5862
        %v5864 = vpop.f32.mrb[0].mxu0
        %v5865 = vpop.f32.mrb[0].mxu0
        %v5866 = vadd.f32 %v5617, %v5865
        %v5867 = vpop.f32.mrb[0].mxu0
        %5868 = vmatprep.mubr.bf16.mxu0 0
        %5869 = vmatmul.mubr.bf16.gmra.mrb[0].mxu0 %v5345
        %v5870 = vpop.f32.mrb[0].mxu0
        %v5871 = vadd.f32 %v5622, %v5870
        %v5872 = vpop.f32.mrb[0].mxu0
        %v5873 = vpop.f32.mrb[0].mxu0
        %v5874 = vadd.f32 %v5625, %v5873
        %v5875 = vpop.f32.mrb[0].mxu0
        %5876 = vmatprep.mubr.bf16.mxu0 0
        %5877 = vmatmul.mubr.bf16.gmra.mrb[0].mxu0 %v5346
        %v5878 = vpop.f32.mrb[0].mxu0
        %v5879 = vadd.f32 %v5630, %v5878
        %v5880 = vpop.f32.mrb[0].mxu0
        %v5881 = vpop.f32.mrb[0].mxu0
        %v5882 = vadd.f32 %v5633, %v5881
        %v5883 = vpop.f32.mrb[0].mxu0
        %5884 = vmatprep.mubr.bf16.mxu0 0
        %5885 = vmatmul.mubr.bf16.gmra.mrb[0].mxu0 %v5347
        %v5886 = vpop.f32.mrb[0].mxu0
        %v5887 = vadd.f32 %v5638, %v5886
        %v5888 = vpop.f32.mrb[0].mxu0
        %v5889 = vpop.f32.mrb[0].mxu0
        %v5890 = vadd.f32 %v5641, %v5889
        %v5891 = vpop.f32.mrb[0].mxu0
        %5892 = vmatprep.mubr.bf16.mxu0 0
        %5893 = vmatmul.mubr.bf16.gmra.mrb[0].mxu0 %v5348
        %v5894 = vpop.f32.mrb[0].mxu0
        %v5895 = vadd.f32 %v5646, %v5894
        %v5896 = vpop.f32.mrb[0].mxu0
        %v5897 = vpop.f32.mrb[0].mxu0
        %v5898 = vadd.f32 %v5649, %v5897
        %v5899 = vpop.f32.mrb[0].mxu0
        %5900 = vmatprep.mubr.bf16.mxu0 0
        %5901 = vmatmul.mubr.bf16.gmra.mrb[0].mxu0 %v5349
        %v5902 = vpop.f32.mrb[0].mxu0
        %v5903 = vadd.f32 %v5654, %v5902
        %v5904 = vpop.f32.mrb[0].mxu0
        %v5905 = vpop.f32.mrb[0].mxu0
        %v5906 = vadd.f32 %v5657, %v5905
        %v5907 = vpop.f32.mrb[0].mxu0
        %5908 = vmatprep.mubr.bf16.mxu0 0
        %5909 = vmatmul.mubr.bf16.gmra.mrb[0].mxu0 %v5350
        %v5910 = vpop.f32.mrb[0].mxu0
        %v5911 = vadd.f32 %v5662, %v5910
        %v5912 = vpop.f32.mrb[0].mxu0
        %v5913 = vpop.f32.mrb[0].mxu0
        %v5914 = vadd.f32 %v5665, %v5913
        %v5915 = vpop.f32.mrb[0].mxu0
        %5916 = vmatprep.mubr.bf16.mxu0 0
        %5917 = vmatmul.mubr.bf16.gmra.mrb[0].mxu0 %v5351
        %v5918 = vpop.f32.mrb[0].mxu0
        %v5919 = vadd.f32 %v5670, %v5918
        %v5920 = vpop.f32.mrb[0].mxu0
        %v5921 = vpop.f32.mrb[0].mxu0
        %v5922 = vadd.f32 %v5673, %v5921
        %v5923 = vpop.f32.mrb[0].mxu0
        %5924 = vmatprep.mubr.bf16.mxu0 0
        %5925 = vmatmul.mubr.bf16.gmra.mrb[0].mxu0 %v5352
        %v5926 = vpop.f32.mrb[0].mxu0
        %v5927 = vadd.f32 %v5678, %v5926
        %v5928 = vpop.f32.mrb[0].mxu0
        %v5929 = vpop.f32.mrb[0].mxu0
        %v5930 = vadd.f32 %v5681, %v5929
        %v5931 = vpop.f32.mrb[0].mxu0
        %5932 = vmatprep.mubr.bf16.mxu0 0
        %5933 = vmatmul.mubr.bf16.gmra.mrb[0].mxu0 %v5353
        %v5934 = vpop.f32.mrb[0].mxu0
        %v5935 = vadd.f32 %v5686, %v5934
        %v5936 = vpop.f32.mrb[0].mxu0
        %v5937 = vpop.f32.mrb[0].mxu0
        %v5938 = vadd.f32 %v5689, %v5937
        %v5939 = vpop.f32.mrb[0].mxu0
        %5940 = vmatprep.mubr.bf16.mxu0 0
        %5941 = vmatmul.mubr.bf16.gmra.mrb[0].mxu0 %v5354
        %v5942 = vpop.f32.mrb[0].mxu0
        %v5943 = vadd.f32 %v5694, %v5942
        %v5944 = vpop.f32.mrb[0].mxu0
        %v5945 = vpop.f32.mrb[0].mxu0
        %v5946 = vadd.f32 %v5697, %v5945
        %v5947 = vpop.f32.mrb[0].mxu0
        %5948 = vdwg.mxu0
        %v5949 = vld [vmem:[#allocation4 + $0x2] sm:$0xff]
        %v5950 = vld [vmem:[#allocation4 + $0xa] sm:$0xff]
        %v5951 = vld [vmem:[#allocation4 + $0x12] sm:$0xff]
        %v5952 = vld [vmem:[#allocation4 + $0x1a] sm:$0xff]
        %v5953 = vld [vmem:[#allocation4 + $0x22] sm:$0xff]
        %v5954 = vld [vmem:[#allocation4 + $0x2a] sm:$0xff]
        %v5955 = vld [vmem:[#allocation4 + $0x32] sm:$0xff]
        %v5956 = vld [vmem:[#allocation4 + $0x3a] sm:$0xff]
        %v5957 = vld [vmem:[#allocation4 + $0x42] sm:$0xff]
        %v5958 = vld [vmem:[#allocation4 + $0x4a] sm:$0xff]
        %v5959 = vld [vmem:[#allocation4 + $0x52] sm:$0xff]
        %v5960 = vld [vmem:[#allocation4 + $0x5a] sm:$0xff]
        %v5961 = vld [vmem:[#allocation4 + $0x62] sm:$0xff]
        %v5962 = vld [vmem:[#allocation4 + $0x6a] sm:$0xff]
        %v5963 = vld [vmem:[#allocation4 + $0x72] sm:$0xff]
        %v5964 = vld [vmem:[#allocation4 + $0x7a] sm:$0xff]
        %v5965 = vld [vmem:[#allocation4 + $0x82] sm:$0xff]
        %v5966 = vld [vmem:[#allocation4 + $0x8a] sm:$0xff]
        %v5967 = vld [vmem:[#allocation4 + $0x92] sm:$0xff]
        %v5968 = vld [vmem:[#allocation4 + $0x9a] sm:$0xff]
        %v5969 = vld [vmem:[#allocation4 + $0xa2] sm:$0xff]
        %v5970 = vld [vmem:[#allocation4 + $0xaa] sm:$0xff]
        %v5971 = vld [vmem:[#allocation4 + $0xb2] sm:$0xff]
        %v5972 = vld [vmem:[#allocation4 + $0xba] sm:$0xff]
        %v5973 = vld [vmem:[#allocation4 + $0xc2] sm:$0xff]
        %v5974 = vld [vmem:[#allocation4 + $0xca] sm:$0xff]
        %v5975 = vld [vmem:[#allocation4 + $0xd2] sm:$0xff]
        %v5976 = vld [vmem:[#allocation4 + $0xda] sm:$0xff]
        %v5977 = vld [vmem:[#allocation4 + $0xe2] sm:$0xff]
        %v5978 = vld [vmem:[#allocation4 + $0xea] sm:$0xff]
        %v5979 = vld [vmem:[#allocation4 + $0xf2] sm:$0xff]
        %v5980 = vld [vmem:[#allocation4 + $0xfa] sm:$0xff]
        %v5981 = vld [vmem:[#allocation4 + $0x102] sm:$0xff]
        %v5982 = vld [vmem:[#allocation4 + $0x10a] sm:$0xff]
        %v5983 = vld [vmem:[#allocation4 + $0x112] sm:$0xff]
        %v5984 = vld [vmem:[#allocation4 + $0x11a] sm:$0xff]
        %v5985 = vld [vmem:[#allocation4 + $0x122] sm:$0xff]
        %v5986 = vld [vmem:[#allocation4 + $0x12a] sm:$0xff]
        %v5987 = vld [vmem:[#allocation4 + $0x132] sm:$0xff]
        %v5988 = vld [vmem:[#allocation4 + $0x13a] sm:$0xff]
        %v5989 = vld [vmem:[#allocation4 + $0x142] sm:$0xff]
        %v5990 = vld [vmem:[#allocation4 + $0x14a] sm:$0xff]
        %v5991 = vpack.c.bf16 %v5950, %v5949
        %v5992 = vpack.c.bf16 %v5952, %v5951
        %v5993 = vpack.c.bf16 %v5954, %v5953
        %v5994 = vpack.c.bf16 %v5956, %v5955
        %v5995 = vpack.c.bf16 %v5958, %v5957
        %v5996 = vpack.c.bf16 %v5960, %v5959
        %v5997 = vpack.c.bf16 %v5962, %v5961
        %v5998 = vpack.c.bf16 %v5964, %v5963
        %v5999 = vpack.c.bf16 %v5966, %v5965
        %v6000 = vpack.c.bf16 %v5968, %v5967
        %v6001 = vpack.c.bf16 %v5970, %v5969
        %v6002 = vpack.c.bf16 %v5972, %v5971
        %v6003 = vpack.c.bf16 %v5974, %v5973
        %v6004 = vpack.c.bf16 %v5976, %v5975
        %v6005 = vpack.c.bf16 %v5978, %v5977
        %v6006 = vpack.c.bf16 %v5980, %v5979
        %v6007 = vpack.c.bf16 %v5982, %v5981
        %v6008 = vpack.c.bf16 %v5984, %v5983
        %v6009 = vpack.c.bf16 %v5986, %v5985
        %v6010 = vpack.c.bf16 %v5988, %v5987
        %v6011 = vpack.c.bf16 %v5990, %v5989
        %s6012 = scalar_lea.vmem [#allocation11], 128
        %v6013 = vld [vmem:[%s6012] sm:$0xf]
        %v6014 = vld [vmem:[%s6012 + $0x4] sm:$0xf]
        %v6015 = vld [vmem:[%s6012 + $0x8] sm:$0xf]
        %v6016 = vld [vmem:[%s6012 + $0xc] sm:$0xf]
        %v6017 = vld [vmem:[%s6012 + $0x10] sm:$0xf]
        %v6018 = vld [vmem:[%s6012 + $0x14] sm:$0xf]
        %v6019 = vld [vmem:[%s6012 + $0x18] sm:$0xf]
        %v6020 = vld [vmem:[%s6012 + $0x1c] sm:$0xf]
        %v6021 = vld [vmem:[%s6012 + $0x20] sm:$0xf]
        %v6022 = vld [vmem:[%s6012 + $0x24] sm:$0xf]
        %v6023 = vld [vmem:[%s6012 + $0x28] sm:$0xf]
        %v6024 = vld [vmem:[%s6012 + $0x2c] sm:$0xf]
        %v6025 = vld [vmem:[%s6012 + $0x30] sm:$0xf]
        %v6026 = vld [vmem:[%s6012 + $0x34] sm:$0xf]
        %v6027 = vld [vmem:[%s6012 + $0x38] sm:$0xf]
        %v6028 = vld [vmem:[%s6012 + $0x3c] sm:$0xf]
        %v6045 = vunpack.c.l.b16 %v6013
        %v6046 = vunpack.c.l.b16 %v6014
        %v6047 = vunpack.c.l.b16 %v6015
        %v6048 = vunpack.c.l.b16 %v6016
        %v6049 = vunpack.c.l.b16 %v6017
        %v6050 = vunpack.c.l.b16 %v6018
        %v6051 = vunpack.c.l.b16 %v6019
        %v6052 = vunpack.c.l.b16 %v6020
        %v6053 = vunpack.c.l.b16 %v6021
        %v6054 = vunpack.c.l.b16 %v6022
        %v6055 = vunpack.c.l.b16 %v6023
        %v6056 = vunpack.c.l.b16 %v6024
        %v6057 = vunpack.c.l.b16 %v6025
        %v6058 = vunpack.c.l.b16 %v6026
        %v6059 = vunpack.c.l.b16 %v6027
        %v6060 = vunpack.c.l.b16 %v6028
        %v6061 = vpack.c.b16 %v6046, %v6045
        %v6062 = vpack.c.b16 %v6048, %v6047
        %v6063 = vpack.c.b16 %v6050, %v6049
        %v6064 = vpack.c.b16 %v6052, %v6051
        %v6065 = vpack.c.b16 %v6054, %v6053
        %v6066 = vpack.c.b16 %v6056, %v6055
        %v6067 = vpack.c.b16 %v6058, %v6057
        %v6068 = vpack.c.b16 %v6060, %v6059
        %6077 = vmatprep.subr.bf16.mxu0 0
        %6078 = vmatpush1.bf16.msra.mxu0 %v6061
        %6079 = vmatprep.subr.bf16.mxu0 0
        %6080 = vmatpush1.bf16.msra.mxu0 %v6062
        %6081 = vmatprep.subr.bf16.mxu0 0
        %6082 = vmatpush1.bf16.msra.mxu0 %v6063
        %6083 = vmatprep.subr.bf16.mxu0 0
        %6084 = vmatpush1.bf16.msra.mxu0 %v6064
        %6085 = vmatprep.subr.bf16.mxu0 0
        %6086 = vmatpush1.bf16.msra.mxu0 %v6065
        %6087 = vmatprep.subr.bf16.mxu0 0
        %6088 = vmatpush1.bf16.msra.mxu0 %v6066
        %6089 = vmatprep.subr.bf16.mxu0 0
        %6090 = vmatpush1.bf16.msra.mxu0 %v6067
        %6091 = vmatprep.subr.bf16.mxu0 0
        %6092 = vmatpush1.bf16.msra.mxu0 %v6068
        %6093 = vmatprep.subr.bf16.mxu0 0
        %6094 = vmatpush1.bf16.msra.mxu0 0
        %6095 = vmatprep.subr.bf16.mxu0 0
        %6096 = vmatpush1.bf16.msra.mxu0 0
        %6097 = vmatprep.subr.bf16.mxu0 0
        %6098 = vmatpush1.bf16.msra.mxu0 0
        %6099 = vmatprep.subr.bf16.mxu0 0
        %6100 = vmatpush1.bf16.msra.mxu0 0
        %6101 = vmatprep.subr.bf16.mxu0 0
        %6102 = vmatpush1.bf16.msra.mxu0 0
        %6103 = vmatprep.subr.bf16.mxu0 0
        %6104 = vmatpush1.bf16.msra.mxu0 0
        %6105 = vmatprep.subr.bf16.mxu0 0
        %6106 = vmatpush1.bf16.msra.mxu0 0
        %6107 = vmatprep.subr.bf16.mxu0 0
        %6108 = vmatpush1.bf16.msra.mxu0 0
        %6109 = vmatprep.mubr.bf16.mxu0 0
        %6110 = vmatmul.mubr.bf16.gmra.mrb[0].mxu0 %v5991
        %v6111 = vpop.f32.mrb[0].mxu0
        %v6112 = vadd.f32 0.0, %v6111
        %v6113 = vpop.f32.mrb[0].mxu0
        %v6114 = vpop.f32.mrb[0].mxu0
        %v6115 = vadd.f32 0.0, %v6114
        %v6116 = vpop.f32.mrb[0].mxu0
        %6117 = vmatprep.mubr.bf16.mxu0 0
        %6118 = vmatmul.mubr.bf16.gmra.mrb[0].mxu0 %v5992
        %v6119 = vpop.f32.mrb[0].mxu0
        %v6120 = vadd.f32 0.0, %v6119
        %v6121 = vpop.f32.mrb[0].mxu0
        %v6122 = vpop.f32.mrb[0].mxu0
        %v6123 = vadd.f32 0.0, %v6122
        %v6124 = vpop.f32.mrb[0].mxu0
        %6125 = vmatprep.mubr.bf16.mxu0 0
        %6126 = vmatmul.mubr.bf16.gmra.mrb[0].mxu0 %v5993
        %v6127 = vpop.f32.mrb[0].mxu0
        %v6128 = vadd.f32 0.0, %v6127
        %v6129 = vpop.f32.mrb[0].mxu0
        %v6130 = vpop.f32.mrb[0].mxu0
        %v6131 = vadd.f32 0.0, %v6130
        %v6132 = vpop.f32.mrb[0].mxu0
        %6133 = vmatprep.mubr.bf16.mxu0 0
        %6134 = vmatmul.mubr.bf16.gmra.mrb[0].mxu0 %v5994
        %v6135 = vpop.f32.mrb[0].mxu0
        %v6136 = vadd.f32 0.0, %v6135
        %v6137 = vpop.f32.mrb[0].mxu0
        %v6138 = vpop.f32.mrb[0].mxu0
        %v6139 = vadd.f32 0.0, %v6138
        %v6140 = vpop.f32.mrb[0].mxu0
        %6141 = vmatprep.mubr.bf16.mxu0 0
        %6142 = vmatmul.mubr.bf16.gmra.mrb[0].mxu0 %v5995
        %v6143 = vpop.f32.mrb[0].mxu0
        %v6144 = vadd.f32 0.0, %v6143
        %v6145 = vpop.f32.mrb[0].mxu0
        %v6146 = vpop.f32.mrb[0].mxu0
        %v6147 = vadd.f32 0.0, %v6146
        %v6148 = vpop.f32.mrb[0].mxu0
        %6149 = vmatprep.mubr.bf16.mxu0 0
        %6150 = vmatmul.mubr.bf16.gmra.mrb[0].mxu0 %v5996
        %v6151 = vpop.f32.mrb[0].mxu0
        %v6152 = vadd.f32 0.0, %v6151
        %v6153 = vpop.f32.mrb[0].mxu0
        %v6154 = vpop.f32.mrb[0].mxu0
        %v6155 = vadd.f32 0.0, %v6154
        %v6156 = vpop.f32.mrb[0].mxu0
        %6157 = vmatprep.mubr.bf16.mxu0 0
        %6158 = vmatmul.mubr.bf16.gmra.mrb[0].mxu0 %v5997
        %v6159 = vpop.f32.mrb[0].mxu0
        %v6160 = vadd.f32 0.0, %v6159
        %v6161 = vpop.f32.mrb[0].mxu0
        %v6162 = vpop.f32.mrb[0].mxu0
        %v6163 = vadd.f32 0.0, %v6162
        %v6164 = vpop.f32.mrb[0].mxu0
        %6165 = vmatprep.mubr.bf16.mxu0 0
        %6166 = vmatmul.mubr.bf16.gmra.mrb[0].mxu0 %v5998
        %v6167 = vpop.f32.mrb[0].mxu0
        %v6168 = vadd.f32 0.0, %v6167
        %v6169 = vpop.f32.mrb[0].mxu0
        %v6170 = vpop.f32.mrb[0].mxu0
        %v6171 = vadd.f32 0.0, %v6170
        %v6172 = vpop.f32.mrb[0].mxu0
        %6173 = vmatprep.mubr.bf16.mxu0 0
        %6174 = vmatmul.mubr.bf16.gmra.mrb[0].mxu0 %v5999
        %v6175 = vpop.f32.mrb[0].mxu0
        %v6176 = vadd.f32 0.0, %v6175
        %v6177 = vpop.f32.mrb[0].mxu0
        %v6178 = vpop.f32.mrb[0].mxu0
        %v6179 = vadd.f32 0.0, %v6178
        %v6180 = vpop.f32.mrb[0].mxu0
        %6181 = vmatprep.mubr.bf16.mxu0 0
        %6182 = vmatmul.mubr.bf16.gmra.mrb[0].mxu0 %v6000
        %v6183 = vpop.f32.mrb[0].mxu0
        %v6184 = vadd.f32 0.0, %v6183
        %v6185 = vpop.f32.mrb[0].mxu0
        %v6186 = vpop.f32.mrb[0].mxu0
        %v6187 = vadd.f32 0.0, %v6186
        %v6188 = vpop.f32.mrb[0].mxu0
        %6189 = vmatprep.mubr.bf16.mxu0 0
        %6190 = vmatmul.mubr.bf16.gmra.mrb[0].mxu0 %v6001
        %v6191 = vpop.f32.mrb[0].mxu0
        %v6192 = vadd.f32 0.0, %v6191
        %v6193 = vpop.f32.mrb[0].mxu0
        %v6194 = vpop.f32.mrb[0].mxu0
        %v6195 = vadd.f32 0.0, %v6194
        %v6196 = vpop.f32.mrb[0].mxu0
        %6197 = vmatprep.mubr.bf16.mxu0 0
        %6198 = vmatmul.mubr.bf16.gmra.mrb[0].mxu0 %v6002
        %v6199 = vpop.f32.mrb[0].mxu0
        %v6200 = vadd.f32 0.0, %v6199
        %v6201 = vpop.f32.mrb[0].mxu0
        %v6202 = vpop.f32.mrb[0].mxu0
        %v6203 = vadd.f32 0.0, %v6202
        %v6204 = vpop.f32.mrb[0].mxu0
        %6205 = vmatprep.mubr.bf16.mxu0 0
        %6206 = vmatmul.mubr.bf16.gmra.mrb[0].mxu0 %v6003
        %v6207 = vpop.f32.mrb[0].mxu0
        %v6208 = vadd.f32 0.0, %v6207
        %v6209 = vpop.f32.mrb[0].mxu0
        %v6210 = vpop.f32.mrb[0].mxu0
        %v6211 = vadd.f32 0.0, %v6210
        %v6212 = vpop.f32.mrb[0].mxu0
        %6213 = vmatprep.mubr.bf16.mxu0 0
        %6214 = vmatmul.mubr.bf16.gmra.mrb[0].mxu0 %v6004
        %v6215 = vpop.f32.mrb[0].mxu0
        %v6216 = vadd.f32 0.0, %v6215
        %v6217 = vpop.f32.mrb[0].mxu0
        %v6218 = vpop.f32.mrb[0].mxu0
        %v6219 = vadd.f32 0.0, %v6218
        %v6220 = vpop.f32.mrb[0].mxu0
        %6221 = vmatprep.mubr.bf16.mxu0 0
        %6222 = vmatmul.mubr.bf16.gmra.mrb[0].mxu0 %v6005
        %v6223 = vpop.f32.mrb[0].mxu0
        %v6224 = vadd.f32 0.0, %v6223
        %v6225 = vpop.f32.mrb[0].mxu0
        %v6226 = vpop.f32.mrb[0].mxu0
        %v6227 = vadd.f32 0.0, %v6226
        %v6228 = vpop.f32.mrb[0].mxu0
        %6229 = vmatprep.mubr.bf16.mxu0 0
        %6230 = vmatmul.mubr.bf16.gmra.mrb[0].mxu0 %v6006
        %v6231 = vpop.f32.mrb[0].mxu0
        %v6232 = vadd.f32 0.0, %v6231
        %v6233 = vpop.f32.mrb[0].mxu0
        %v6234 = vpop.f32.mrb[0].mxu0
        %v6235 = vadd.f32 0.0, %v6234
        %v6236 = vpop.f32.mrb[0].mxu0
        %6237 = vmatprep.mubr.bf16.mxu0 0
        %6238 = vmatmul.mubr.bf16.gmra.mrb[0].mxu0 %v6007
        %v6239 = vpop.f32.mrb[0].mxu0
        %v6240 = vadd.f32 0.0, %v6239
        %v6241 = vpop.f32.mrb[0].mxu0
        %v6242 = vpop.f32.mrb[0].mxu0
        %v6243 = vadd.f32 0.0, %v6242
        %v6244 = vpop.f32.mrb[0].mxu0
        %6245 = vmatprep.mubr.bf16.mxu0 0
        %6246 = vmatmul.mubr.bf16.gmra.mrb[0].mxu0 %v6008
        %v6247 = vpop.f32.mrb[0].mxu0
        %v6248 = vadd.f32 0.0, %v6247
        %v6249 = vpop.f32.mrb[0].mxu0
        %v6250 = vpop.f32.mrb[0].mxu0
        %v6251 = vadd.f32 0.0, %v6250
        %v6252 = vpop.f32.mrb[0].mxu0
        %6253 = vmatprep.mubr.bf16.mxu0 0
        %6254 = vmatmul.mubr.bf16.gmra.mrb[0].mxu0 %v6009
        %v6255 = vpop.f32.mrb[0].mxu0
        %v6256 = vadd.f32 0.0, %v6255
        %v6257 = vpop.f32.mrb[0].mxu0
        %v6258 = vpop.f32.mrb[0].mxu0
        %v6259 = vadd.f32 0.0, %v6258
        %v6260 = vpop.f32.mrb[0].mxu0
        %6261 = vmatprep.mubr.bf16.mxu0 0
        %6262 = vmatmul.mubr.bf16.gmra.mrb[0].mxu0 %v6010
        %v6263 = vpop.f32.mrb[0].mxu0
        %v6264 = vadd.f32 0.0, %v6263
        %v6265 = vpop.f32.mrb[0].mxu0
        %v6266 = vpop.f32.mrb[0].mxu0
        %v6267 = vadd.f32 0.0, %v6266
        %v6268 = vpop.f32.mrb[0].mxu0
        %6269 = vmatprep.mubr.bf16.mxu0 0
        %6270 = vmatmul.mubr.bf16.gmra.mrb[0].mxu0 %v6011
        %v6271 = vpop.f32.mrb[0].mxu0
        %v6272 = vadd.f32 0.0, %v6271
        %v6273 = vpop.f32.mrb[0].mxu0
        %v6274 = vpop.f32.mrb[0].mxu0
        %v6275 = vadd.f32 0.0, %v6274
        %v6276 = vpop.f32.mrb[0].mxu0
        %6277 = vdwg.mxu0
        %v6278 = vadd.f32 %v5783, %v6112
        %v6279 = vadd.f32 %v5786, %v6115
        %v6280 = vadd.f32 %v5791, %v6120
        %v6281 = vadd.f32 %v5794, %v6123
        %v6282 = vadd.f32 %v5799, %v6128
        %v6283 = vadd.f32 %v5802, %v6131
        %v6284 = vadd.f32 %v5807, %v6136
        %v6285 = vadd.f32 %v5810, %v6139
        %v6286 = vadd.f32 %v5815, %v6144
        %v6287 = vadd.f32 %v5818, %v6147
        %v6288 = vadd.f32 %v5823, %v6152
        %v6289 = vadd.f32 %v5826, %v6155
        %v6290 = vadd.f32 %v5831, %v6160
        %v6291 = vadd.f32 %v5834, %v6163
        %v6292 = vadd.f32 %v5839, %v6168
        %v6293 = vadd.f32 %v5842, %v6171
        %v6294 = vadd.f32 %v5847, %v6176
        %v6295 = vadd.f32 %v5850, %v6179
        %v6296 = vadd.f32 %v5855, %v6184
        %v6297 = vadd.f32 %v5858, %v6187
        %v6298 = vadd.f32 %v5863, %v6192
        %v6299 = vadd.f32 %v5866, %v6195
        %v6300 = vadd.f32 %v5871, %v6200
        %v6301 = vadd.f32 %v5874, %v6203
        %v6302 = vadd.f32 %v5879, %v6208
        %v6303 = vadd.f32 %v5882, %v6211
        %v6304 = vadd.f32 %v5887, %v6216
        %v6305 = vadd.f32 %v5890, %v6219
        %v6306 = vadd.f32 %v5895, %v6224
        %v6307 = vadd.f32 %v5898, %v6227
        %v6308 = vadd.f32 %v5903, %v6232
        %v6309 = vadd.f32 %v5906, %v6235
        %v6310 = vadd.f32 %v5911, %v6240
        %v6311 = vadd.f32 %v5914, %v6243
        %v6312 = vadd.f32 %v5919, %v6248
        %v6313 = vadd.f32 %v5922, %v6251
        %v6314 = vadd.f32 %v5927, %v6256
        %v6315 = vadd.f32 %v5930, %v6259
        %v6316 = vadd.f32 %v5935, %v6264
        %v6317 = vadd.f32 %v5938, %v6267
        %v6318 = vadd.f32 %v5943, %v6272
        %v6319 = vadd.f32 %v5946, %v6275
        %v6320 = vld [vmem:[#allocation4 + $0x12] sm:$0xff]
        %v6321 = vld [vmem:[#allocation4 + $0x1a] sm:$0xff]
        %v6322 = vld [vmem:[#allocation4 + $0x22] sm:$0xff]
        %v6323 = vld [vmem:[#allocation4 + $0x2a] sm:$0xff]
        %v6324 = vld [vmem:[#allocation4 + $0x32] sm:$0xff]
        %v6325 = vld [vmem:[#allocation4 + $0x3a] sm:$0xff]
        %v6326 = vld [vmem:[#allocation4 + $0x42] sm:$0xff]
        %v6327 = vld [vmem:[#allocation4 + $0x4a] sm:$0xff]
        %v6328 = vld [vmem:[#allocation4 + $0x52] sm:$0xff]
        %v6329 = vld [vmem:[#allocation4 + $0x5a] sm:$0xff]
        %v6330 = vld [vmem:[#allocation4 + $0x62] sm:$0xff]
        %v6331 = vld [vmem:[#allocation4 + $0x6a] sm:$0xff]
        %v6332 = vld [vmem:[#allocation4 + $0x72] sm:$0xff]
        %v6333 = vld [vmem:[#allocation4 + $0x7a] sm:$0xff]
        %v6334 = vld [vmem:[#allocation4 + $0x82] sm:$0xff]
        %v6335 = vld [vmem:[#allocation4 + $0x8a] sm:$0xff]
        %v6336 = vld [vmem:[#allocation4 + $0x92] sm:$0xff]
        %v6337 = vld [vmem:[#allocation4 + $0x9a] sm:$0xff]
        %v6338 = vld [vmem:[#allocation4 + $0xa2] sm:$0xff]
        %v6339 = vld [vmem:[#allocation4 + $0xaa] sm:$0xff]
        %v6340 = vld [vmem:[#allocation4 + $0xb2] sm:$0xff]
        %v6341 = vld [vmem:[#allocation4 + $0xba] sm:$0xff]
        %v6342 = vld [vmem:[#allocation4 + $0xc2] sm:$0xff]
        %v6343 = vld [vmem:[#allocation4 + $0xca] sm:$0xff]
        %v6344 = vld [vmem:[#allocation4 + $0xd2] sm:$0xff]
        %v6345 = vld [vmem:[#allocation4 + $0xda] sm:$0xff]
        %v6346 = vld [vmem:[#allocation4 + $0xe2] sm:$0xff]
        %v6347 = vld [vmem:[#allocation4 + $0xea] sm:$0xff]
        %v6348 = vld [vmem:[#allocation4 + $0xf2] sm:$0xff]
        %v6349 = vld [vmem:[#allocation4 + $0xfa] sm:$0xff]
        %v6350 = vld [vmem:[#allocation4 + $0x102] sm:$0xff]
        %v6351 = vld [vmem:[#allocation4 + $0x10a] sm:$0xff]
        %v6352 = vld [vmem:[#allocation4 + $0x112] sm:$0xff]
        %v6353 = vld [vmem:[#allocation4 + $0x11a] sm:$0xff]
        %v6354 = vld [vmem:[#allocation4 + $0x122] sm:$0xff]
        %v6355 = vld [vmem:[#allocation4 + $0x12a] sm:$0xff]
        %v6356 = vld [vmem:[#allocation4 + $0x132] sm:$0xff]
        %v6357 = vld [vmem:[#allocation4 + $0x13a] sm:$0xff]
        %v6358 = vld [vmem:[#allocation4 + $0x142] sm:$0xff]
        %v6359 = vld [vmem:[#allocation4 + $0x14a] sm:$0xff]
        %v6360 = vld [vmem:[#allocation4 + $0x152] sm:$0xff]
        %v6361 = vld [vmem:[#allocation4 + $0x15a] sm:$0xff]
        %v6362 = vpack.c.bf16 %v6321, %v6320
        %v6363 = vpack.c.bf16 %v6323, %v6322
        %v6364 = vpack.c.bf16 %v6325, %v6324
        %v6365 = vpack.c.bf16 %v6327, %v6326
        %v6366 = vpack.c.bf16 %v6329, %v6328
        %v6367 = vpack.c.bf16 %v6331, %v6330
        %v6368 = vpack.c.bf16 %v6333, %v6332
        %v6369 = vpack.c.bf16 %v6335, %v6334
        %v6370 = vpack.c.bf16 %v6337, %v6336
        %v6371 = vpack.c.bf16 %v6339, %v6338
        %v6372 = vpack.c.bf16 %v6341, %v6340
        %v6373 = vpack.c.bf16 %v6343, %v6342
        %v6374 = vpack.c.bf16 %v6345, %v6344
        %v6375 = vpack.c.bf16 %v6347, %v6346
        %v6376 = vpack.c.bf16 %v6349, %v6348
        %v6377 = vpack.c.bf16 %v6351, %v6350
        %v6378 = vpack.c.bf16 %v6353, %v6352
        %v6379 = vpack.c.bf16 %v6355, %v6354
        %v6380 = vpack.c.bf16 %v6357, %v6356
        %v6381 = vpack.c.bf16 %v6359, %v6358
        %v6382 = vpack.c.bf16 %v6361, %v6360
        %s6383 = scalar_lea.vmem [#allocation11], 192
        %v6384 = vld [vmem:[%s6383] sm:$0xf]
        %v6385 = vld [vmem:[%s6383 + $0x4] sm:$0xf]
        %v6386 = vld [vmem:[%s6383 + $0x8] sm:$0xf]
        %v6387 = vld [vmem:[%s6383 + $0xc] sm:$0xf]
        %v6388 = vld [vmem:[%s6383 + $0x10] sm:$0xf]
        %v6389 = vld [vmem:[%s6383 + $0x14] sm:$0xf]
        %v6390 = vld [vmem:[%s6383 + $0x18] sm:$0xf]
        %v6391 = vld [vmem:[%s6383 + $0x1c] sm:$0xf]
        %v6392 = vld [vmem:[%s6383 + $0x20] sm:$0xf]
        %v6393 = vld [vmem:[%s6383 + $0x24] sm:$0xf]
        %v6394 = vld [vmem:[%s6383 + $0x28] sm:$0xf]
        %v6395 = vld [vmem:[%s6383 + $0x2c] sm:$0xf]
        %v6396 = vld [vmem:[%s6383 + $0x30] sm:$0xf]
        %v6397 = vld [vmem:[%s6383 + $0x34] sm:$0xf]
        %v6398 = vld [vmem:[%s6383 + $0x38] sm:$0xf]
        %v6399 = vld [vmem:[%s6383 + $0x3c] sm:$0xf]
        %v6416 = vunpack.c.l.b16 %v6384
        %v6417 = vunpack.c.l.b16 %v6385
        %v6418 = vunpack.c.l.b16 %v6386
        %v6419 = vunpack.c.l.b16 %v6387
        %v6420 = vunpack.c.l.b16 %v6388
        %v6421 = vunpack.c.l.b16 %v6389
        %v6422 = vunpack.c.l.b16 %v6390
        %v6423 = vunpack.c.l.b16 %v6391
        %v6424 = vunpack.c.l.b16 %v6392
        %v6425 = vunpack.c.l.b16 %v6393
        %v6426 = vunpack.c.l.b16 %v6394
        %v6427 = vunpack.c.l.b16 %v6395
        %v6428 = vunpack.c.l.b16 %v6396
        %v6429 = vunpack.c.l.b16 %v6397
        %v6430 = vunpack.c.l.b16 %v6398
        %v6431 = vunpack.c.l.b16 %v6399
        %v6432 = vpack.c.b16 %v6417, %v6416
        %v6433 = vpack.c.b16 %v6419, %v6418
        %v6434 = vpack.c.b16 %v6421, %v6420
        %v6435 = vpack.c.b16 %v6423, %v6422
        %v6436 = vpack.c.b16 %v6425, %v6424
        %v6437 = vpack.c.b16 %v6427, %v6426
        %v6438 = vpack.c.b16 %v6429, %v6428
        %v6439 = vpack.c.b16 %v6431, %v6430
        %6448 = vmatprep.subr.bf16.mxu0 0
        %6449 = vmatpush1.bf16.msra.mxu0 %v6432
        %6450 = vmatprep.subr.bf16.mxu0 0
        %6451 = vmatpush1.bf16.msra.mxu0 %v6433
        %6452 = vmatprep.subr.bf16.mxu0 0
        %6453 = vmatpush1.bf16.msra.mxu0 %v6434
        %6454 = vmatprep.subr.bf16.mxu0 0
        %6455 = vmatpush1.bf16.msra.mxu0 %v6435
        %6456 = vmatprep.subr.bf16.mxu0 0
        %6457 = vmatpush1.bf16.msra.mxu0 %v6436
        %6458 = vmatprep.subr.bf16.mxu0 0
        %6459 = vmatpush1.bf16.msra.mxu0 %v6437
        %6460 = vmatprep.subr.bf16.mxu0 0
        %6461 = vmatpush1.bf16.msra.mxu0 %v6438
        %6462 = vmatprep.subr.bf16.mxu0 0
        %6463 = vmatpush1.bf16.msra.mxu0 %v6439
        %6464 = vmatprep.subr.bf16.mxu0 0
        %6465 = vmatpush1.bf16.msra.mxu0 0
        %6466 = vmatprep.subr.bf16.mxu0 0
        %6467 = vmatpush1.bf16.msra.mxu0 0
        %6468 = vmatprep.subr.bf16.mxu0 0
        %6469 = vmatpush1.bf16.msra.mxu0 0
        %6470 = vmatprep.subr.bf16.mxu0 0
        %6471 = vmatpush1.bf16.msra.mxu0 0
        %6472 = vmatprep.subr.bf16.mxu0 0
        %6473 = vmatpush1.bf16.msra.mxu0 0
        %6474 = vmatprep.subr.bf16.mxu0 0
        %6475 = vmatpush1.bf16.msra.mxu0 0
        %6476 = vmatprep.subr.bf16.mxu0 0
        %6477 = vmatpush1.bf16.msra.mxu0 0
        %6478 = vmatprep.subr.bf16.mxu0 0
        %6479 = vmatpush1.bf16.msra.mxu0 0
        %6480 = vmatprep.mubr.bf16.mxu0 0
        %6481 = vmatmul.mubr.bf16.gmra.mrb[0].mxu0 %v6362
        %v6482 = vpop.f32.mrb[0].mxu0
        %v6483 = vadd.f32 0.0, %v6482
        %v6484 = vpop.f32.mrb[0].mxu0
        %v6485 = vpop.f32.mrb[0].mxu0
        %v6486 = vadd.f32 0.0, %v6485
        %v6487 = vpop.f32.mrb[0].mxu0
        %6488 = vmatprep.mubr.bf16.mxu0 0
        %6489 = vmatmul.mubr.bf16.gmra.mrb[0].mxu0 %v6363
        %v6490 = vpop.f32.mrb[0].mxu0
        %v6491 = vadd.f32 0.0, %v6490
        %v6492 = vpop.f32.mrb[0].mxu0
        %v6493 = vpop.f32.mrb[0].mxu0
        %v6494 = vadd.f32 0.0, %v6493
        %v6495 = vpop.f32.mrb[0].mxu0
        %6496 = vmatprep.mubr.bf16.mxu0 0
        %6497 = vmatmul.mubr.bf16.gmra.mrb[0].mxu0 %v6364
        %v6498 = vpop.f32.mrb[0].mxu0
        %v6499 = vadd.f32 0.0, %v6498
        %v6500 = vpop.f32.mrb[0].mxu0
        %v6501 = vpop.f32.mrb[0].mxu0
        %v6502 = vadd.f32 0.0, %v6501
        %v6503 = vpop.f32.mrb[0].mxu0
        %6504 = vmatprep.mubr.bf16.mxu0 0
        %6505 = vmatmul.mubr.bf16.gmra.mrb[0].mxu0 %v6365
        %v6506 = vpop.f32.mrb[0].mxu0
        %v6507 = vadd.f32 0.0, %v6506
        %v6508 = vpop.f32.mrb[0].mxu0
        %v6509 = vpop.f32.mrb[0].mxu0
        %v6510 = vadd.f32 0.0, %v6509
        %v6511 = vpop.f32.mrb[0].mxu0
        %6512 = vmatprep.mubr.bf16.mxu0 0
        %6513 = vmatmul.mubr.bf16.gmra.mrb[0].mxu0 %v6366
        %v6514 = vpop.f32.mrb[0].mxu0
        %v6515 = vadd.f32 0.0, %v6514
        %v6516 = vpop.f32.mrb[0].mxu0
        %v6517 = vpop.f32.mrb[0].mxu0
        %v6518 = vadd.f32 0.0, %v6517
        %v6519 = vpop.f32.mrb[0].mxu0
        %6520 = vmatprep.mubr.bf16.mxu0 0
        %6521 = vmatmul.mubr.bf16.gmra.mrb[0].mxu0 %v6367
        %v6522 = vpop.f32.mrb[0].mxu0
        %v6523 = vadd.f32 0.0, %v6522
        %v6524 = vpop.f32.mrb[0].mxu0
        %v6525 = vpop.f32.mrb[0].mxu0
        %v6526 = vadd.f32 0.0, %v6525
        %v6527 = vpop.f32.mrb[0].mxu0
        %6528 = vmatprep.mubr.bf16.mxu0 0
        %6529 = vmatmul.mubr.bf16.gmra.mrb[0].mxu0 %v6368
        %v6530 = vpop.f32.mrb[0].mxu0
        %v6531 = vadd.f32 0.0, %v6530
        %v6532 = vpop.f32.mrb[0].mxu0
        %v6533 = vpop.f32.mrb[0].mxu0
        %v6534 = vadd.f32 0.0, %v6533
        %v6535 = vpop.f32.mrb[0].mxu0
        %6536 = vmatprep.mubr.bf16.mxu0 0
        %6537 = vmatmul.mubr.bf16.gmra.mrb[0].mxu0 %v6369
        %v6538 = vpop.f32.mrb[0].mxu0
        %v6539 = vadd.f32 0.0, %v6538
        %v6540 = vpop.f32.mrb[0].mxu0
        %v6541 = vpop.f32.mrb[0].mxu0
        %v6542 = vadd.f32 0.0, %v6541
        %v6543 = vpop.f32.mrb[0].mxu0
        %6544 = vmatprep.mubr.bf16.mxu0 0
        %6545 = vmatmul.mubr.bf16.gmra.mrb[0].mxu0 %v6370
        %v6546 = vpop.f32.mrb[0].mxu0
        %v6547 = vadd.f32 0.0, %v6546
        %v6548 = vpop.f32.mrb[0].mxu0
        %v6549 = vpop.f32.mrb[0].mxu0
        %v6550 = vadd.f32 0.0, %v6549
        %v6551 = vpop.f32.mrb[0].mxu0
        %6552 = vmatprep.mubr.bf16.mxu0 0
        %6553 = vmatmul.mubr.bf16.gmra.mrb[0].mxu0 %v6371
        %v6554 = vpop.f32.mrb[0].mxu0
        %v6555 = vadd.f32 0.0, %v6554
        %v6556 = vpop.f32.mrb[0].mxu0
        %v6557 = vpop.f32.mrb[0].mxu0
        %v6558 = vadd.f32 0.0, %v6557
        %v6559 = vpop.f32.mrb[0].mxu0
        %6560 = vmatprep.mubr.bf16.mxu0 0
        %6561 = vmatmul.mubr.bf16.gmra.mrb[0].mxu0 %v6372
        %v6562 = vpop.f32.mrb[0].mxu0
        %v6563 = vadd.f32 0.0, %v6562
        %v6564 = vpop.f32.mrb[0].mxu0
        %v6565 = vpop.f32.mrb[0].mxu0
        %v6566 = vadd.f32 0.0, %v6565
        %v6567 = vpop.f32.mrb[0].mxu0
        %6568 = vmatprep.mubr.bf16.mxu0 0
        %6569 = vmatmul.mubr.bf16.gmra.mrb[0].mxu0 %v6373
        %v6570 = vpop.f32.mrb[0].mxu0
        %v6571 = vadd.f32 0.0, %v6570
        %v6572 = vpop.f32.mrb[0].mxu0
        %v6573 = vpop.f32.mrb[0].mxu0
        %v6574 = vadd.f32 0.0, %v6573
        %v6575 = vpop.f32.mrb[0].mxu0
        %6576 = vmatprep.mubr.bf16.mxu0 0
        %6577 = vmatmul.mubr.bf16.gmra.mrb[0].mxu0 %v6374
        %v6578 = vpop.f32.mrb[0].mxu0
        %v6579 = vadd.f32 0.0, %v6578
        %v6580 = vpop.f32.mrb[0].mxu0
        %v6581 = vpop.f32.mrb[0].mxu0
        %v6582 = vadd.f32 0.0, %v6581
        %v6583 = vpop.f32.mrb[0].mxu0
        %6584 = vmatprep.mubr.bf16.mxu0 0
        %6585 = vmatmul.mubr.bf16.gmra.mrb[0].mxu0 %v6375
        %v6586 = vpop.f32.mrb[0].mxu0
        %v6587 = vadd.f32 0.0, %v6586
        %v6588 = vpop.f32.mrb[0].mxu0
        %v6589 = vpop.f32.mrb[0].mxu0
        %v6590 = vadd.f32 0.0, %v6589
        %v6591 = vpop.f32.mrb[0].mxu0
        %6592 = vmatprep.mubr.bf16.mxu0 0
        %6593 = vmatmul.mubr.bf16.gmra.mrb[0].mxu0 %v6376
        %v6594 = vpop.f32.mrb[0].mxu0
        %v6595 = vadd.f32 0.0, %v6594
        %v6596 = vpop.f32.mrb[0].mxu0
        %v6597 = vpop.f32.mrb[0].mxu0
        %v6598 = vadd.f32 0.0, %v6597
        %v6599 = vpop.f32.mrb[0].mxu0
        %6600 = vmatprep.mubr.bf16.mxu0 0
        %6601 = vmatmul.mubr.bf16.gmra.mrb[0].mxu0 %v6377
        %v6602 = vpop.f32.mrb[0].mxu0
        %v6603 = vadd.f32 0.0, %v6602
        %v6604 = vpop.f32.mrb[0].mxu0
        %v6605 = vpop.f32.mrb[0].mxu0
        %v6606 = vadd.f32 0.0, %v6605
        %v6607 = vpop.f32.mrb[0].mxu0
        %6608 = vmatprep.mubr.bf16.mxu0 0
        %6609 = vmatmul.mubr.bf16.gmra.mrb[0].mxu0 %v6378
        %v6610 = vpop.f32.mrb[0].mxu0
        %v6611 = vadd.f32 0.0, %v6610
        %v6612 = vpop.f32.mrb[0].mxu0
        %v6613 = vpop.f32.mrb[0].mxu0
        %v6614 = vadd.f32 0.0, %v6613
        %v6615 = vpop.f32.mrb[0].mxu0
        %6616 = vmatprep.mubr.bf16.mxu0 0
        %6617 = vmatmul.mubr.bf16.gmra.mrb[0].mxu0 %v6379
        %v6618 = vpop.f32.mrb[0].mxu0
        %v6619 = vadd.f32 0.0, %v6618
        %v6620 = vpop.f32.mrb[0].mxu0
        %v6621 = vpop.f32.mrb[0].mxu0
        %v6622 = vadd.f32 0.0, %v6621
        %v6623 = vpop.f32.mrb[0].mxu0
        %6624 = vmatprep.mubr.bf16.mxu0 0
        %6625 = vmatmul.mubr.bf16.gmra.mrb[0].mxu0 %v6380
        %v6626 = vpop.f32.mrb[0].mxu0
        %v6627 = vadd.f32 0.0, %v6626
        %v6628 = vpop.f32.mrb[0].mxu0
        %v6629 = vpop.f32.mrb[0].mxu0
        %v6630 = vadd.f32 0.0, %v6629
        %v6631 = vpop.f32.mrb[0].mxu0
        %6632 = vmatprep.mubr.bf16.mxu0 0
        %6633 = vmatmul.mubr.bf16.gmra.mrb[0].mxu0 %v6381
        %v6634 = vpop.f32.mrb[0].mxu0
        %v6635 = vadd.f32 0.0, %v6634
        %v6636 = vpop.f32.mrb[0].mxu0
        %v6637 = vpop.f32.mrb[0].mxu0
        %v6638 = vadd.f32 0.0, %v6637
        %v6639 = vpop.f32.mrb[0].mxu0
        %6640 = vmatprep.mubr.bf16.mxu0 0
        %6641 = vmatmul.mubr.bf16.gmra.mrb[0].mxu0 %v6382
        %v6642 = vpop.f32.mrb[0].mxu0
        %v6643 = vadd.f32 0.0, %v6642
        %v6644 = vpop.f32.mrb[0].mxu0
        %v6645 = vpop.f32.mrb[0].mxu0
        %v6646 = vadd.f32 0.0, %v6645
        %v6647 = vpop.f32.mrb[0].mxu0
        %6648 = vdwg.mxu0
        %v6649 = vadd.f32 %v6278, %v6483
        %v6650 = vadd.f32 %v6279, %v6486
        %v6651 = vadd.f32 %v6280, %v6491
        %v6652 = vadd.f32 %v6281, %v6494
        %v6653 = vadd.f32 %v6282, %v6499
        %v6654 = vadd.f32 %v6283, %v6502
        %v6655 = vadd.f32 %v6284, %v6507
        %v6656 = vadd.f32 %v6285, %v6510
        %v6657 = vadd.f32 %v6286, %v6515
        %v6658 = vadd.f32 %v6287, %v6518
        %v6659 = vadd.f32 %v6288, %v6523
        %v6660 = vadd.f32 %v6289, %v6526
        %v6661 = vadd.f32 %v6290, %v6531
        %v6662 = vadd.f32 %v6291, %v6534
        %v6663 = vadd.f32 %v6292, %v6539
        %v6664 = vadd.f32 %v6293, %v6542
        %v6665 = vadd.f32 %v6294, %v6547
        %v6666 = vadd.f32 %v6295, %v6550
        %v6667 = vadd.f32 %v6296, %v6555
        %v6668 = vadd.f32 %v6297, %v6558
        %v6669 = vadd.f32 %v6298, %v6563
        %v6670 = vadd.f32 %v6299, %v6566
        %v6671 = vadd.f32 %v6300, %v6571
        %v6672 = vadd.f32 %v6301, %v6574
        %v6673 = vadd.f32 %v6302, %v6579
        %v6674 = vadd.f32 %v6303, %v6582
        %v6675 = vadd.f32 %v6304, %v6587
        %v6676 = vadd.f32 %v6305, %v6590
        %v6677 = vadd.f32 %v6306, %v6595
        %v6678 = vadd.f32 %v6307, %v6598
        %v6679 = vadd.f32 %v6308, %v6603
        %v6680 = vadd.f32 %v6309, %v6606
        %v6681 = vadd.f32 %v6310, %v6611
        %v6682 = vadd.f32 %v6311, %v6614
        %v6683 = vadd.f32 %v6312, %v6619
        %v6684 = vadd.f32 %v6313, %v6622
        %v6685 = vadd.f32 %v6314, %v6627
        %v6686 = vadd.f32 %v6315, %v6630
        %v6687 = vadd.f32 %v6316, %v6635
        %v6688 = vadd.f32 %v6317, %v6638
        %v6689 = vadd.f32 %v6318, %v6643
        %v6690 = vadd.f32 %v6319, %v6646
        %v6691 = vld [vmem:[#allocation4 + $0x13] sm:$0xff]
        %v6692 = vld [vmem:[#allocation4 + $0x1b] sm:$0xff]
        %v6693 = vld [vmem:[#allocation4 + $0x23] sm:$0xff]
        %v6694 = vld [vmem:[#allocation4 + $0x2b] sm:$0xff]
        %v6695 = vld [vmem:[#allocation4 + $0x33] sm:$0xff]
        %v6696 = vld [vmem:[#allocation4 + $0x3b] sm:$0xff]
        %v6697 = vld [vmem:[#allocation4 + $0x43] sm:$0xff]
        %v6698 = vld [vmem:[#allocation4 + $0x4b] sm:$0xff]
        %v6699 = vld [vmem:[#allocation4 + $0x53] sm:$0xff]
        %v6700 = vld [vmem:[#allocation4 + $0x5b] sm:$0xff]
        %v6701 = vld [vmem:[#allocation4 + $0x63] sm:$0xff]
        %v6702 = vld [vmem:[#allocation4 + $0x6b] sm:$0xff]
        %v6703 = vld [vmem:[#allocation4 + $0x73] sm:$0xff]
        %v6704 = vld [vmem:[#allocation4 + $0x7b] sm:$0xff]
        %v6705 = vld [vmem:[#allocation4 + $0x83] sm:$0xff]
        %v6706 = vld [vmem:[#allocation4 + $0x8b] sm:$0xff]
        %v6707 = vld [vmem:[#allocation4 + $0x93] sm:$0xff]
        %v6708 = vld [vmem:[#allocation4 + $0x9b] sm:$0xff]
        %v6709 = vld [vmem:[#allocation4 + $0xa3] sm:$0xff]
        %v6710 = vld [vmem:[#allocation4 + $0xab] sm:$0xff]
        %v6711 = vld [vmem:[#allocation4 + $0xb3] sm:$0xff]
        %v6712 = vld [vmem:[#allocation4 + $0xbb] sm:$0xff]
        %v6713 = vld [vmem:[#allocation4 + $0xc3] sm:$0xff]
        %v6714 = vld [vmem:[#allocation4 + $0xcb] sm:$0xff]
        %v6715 = vld [vmem:[#allocation4 + $0xd3] sm:$0xff]
        %v6716 = vld [vmem:[#allocation4 + $0xdb] sm:$0xff]
        %v6717 = vld [vmem:[#allocation4 + $0xe3] sm:$0xff]
        %v6718 = vld [vmem:[#allocation4 + $0xeb] sm:$0xff]
        %v6719 = vld [vmem:[#allocation4 + $0xf3] sm:$0xff]
        %v6720 = vld [vmem:[#allocation4 + $0xfb] sm:$0xff]
        %v6721 = vld [vmem:[#allocation4 + $0x103] sm:$0xff]
        %v6722 = vld [vmem:[#allocation4 + $0x10b] sm:$0xff]
        %v6723 = vld [vmem:[#allocation4 + $0x113] sm:$0xff]
        %v6724 = vld [vmem:[#allocation4 + $0x11b] sm:$0xff]
        %v6725 = vld [vmem:[#allocation4 + $0x123] sm:$0xff]
        %v6726 = vld [vmem:[#allocation4 + $0x12b] sm:$0xff]
        %v6727 = vld [vmem:[#allocation4 + $0x133] sm:$0xff]
        %v6728 = vld [vmem:[#allocation4 + $0x13b] sm:$0xff]
        %v6729 = vld [vmem:[#allocation4 + $0x143] sm:$0xff]
        %v6730 = vld [vmem:[#allocation4 + $0x14b] sm:$0xff]
        %v6731 = vld [vmem:[#allocation4 + $0x153] sm:$0xff]
        %v6732 = vld [vmem:[#allocation4 + $0x15b] sm:$0xff]
        %v6733 = vpack.c.bf16 %v6692, %v6691
        %v6734 = vpack.c.bf16 %v6694, %v6693
        %v6735 = vpack.c.bf16 %v6696, %v6695
        %v6736 = vpack.c.bf16 %v6698, %v6697
        %v6737 = vpack.c.bf16 %v6700, %v6699
        %v6738 = vpack.c.bf16 %v6702, %v6701
        %v6739 = vpack.c.bf16 %v6704, %v6703
        %v6740 = vpack.c.bf16 %v6706, %v6705
        %v6741 = vpack.c.bf16 %v6708, %v6707
        %v6742 = vpack.c.bf16 %v6710, %v6709
        %v6743 = vpack.c.bf16 %v6712, %v6711
        %v6744 = vpack.c.bf16 %v6714, %v6713
        %v6745 = vpack.c.bf16 %v6716, %v6715
        %v6746 = vpack.c.bf16 %v6718, %v6717
        %v6747 = vpack.c.bf16 %v6720, %v6719
        %v6748 = vpack.c.bf16 %v6722, %v6721
        %v6749 = vpack.c.bf16 %v6724, %v6723
        %v6750 = vpack.c.bf16 %v6726, %v6725
        %v6751 = vpack.c.bf16 %v6728, %v6727
        %v6752 = vpack.c.bf16 %v6730, %v6729
        %v6753 = vpack.c.bf16 %v6732, %v6731
        %s6754 = scalar_lea.vmem [#allocation11], 256
        %v6755 = vld [vmem:[%s6754] sm:$0xf]
        %v6756 = vld [vmem:[%s6754 + $0x4] sm:$0xf]
        %v6757 = vld [vmem:[%s6754 + $0x8] sm:$0xf]
        %v6758 = vld [vmem:[%s6754 + $0xc] sm:$0xf]
        %v6759 = vld [vmem:[%s6754 + $0x10] sm:$0xf]
        %v6760 = vld [vmem:[%s6754 + $0x14] sm:$0xf]
        %v6761 = vld [vmem:[%s6754 + $0x18] sm:$0xf]
        %v6762 = vld [vmem:[%s6754 + $0x1c] sm:$0xf]
        %v6763 = vld [vmem:[%s6754 + $0x20] sm:$0xf]
        %v6764 = vld [vmem:[%s6754 + $0x24] sm:$0xf]
        %v6765 = vld [vmem:[%s6754 + $0x28] sm:$0xf]
        %v6766 = vld [vmem:[%s6754 + $0x2c] sm:$0xf]
        %v6767 = vld [vmem:[%s6754 + $0x30] sm:$0xf]
        %v6768 = vld [vmem:[%s6754 + $0x34] sm:$0xf]
        %v6769 = vld [vmem:[%s6754 + $0x38] sm:$0xf]
        %v6770 = vld [vmem:[%s6754 + $0x3c] sm:$0xf]
        %v6787 = vunpack.c.l.b16 %v6755
        %v6788 = vunpack.c.l.b16 %v6756
        %v6789 = vunpack.c.l.b16 %v6757
        %v6790 = vunpack.c.l.b16 %v6758
        %v6791 = vunpack.c.l.b16 %v6759
        %v6792 = vunpack.c.l.b16 %v6760
        %v6793 = vunpack.c.l.b16 %v6761
        %v6794 = vunpack.c.l.b16 %v6762
        %v6795 = vunpack.c.l.b16 %v6763
        %v6796 = vunpack.c.l.b16 %v6764
        %v6797 = vunpack.c.l.b16 %v6765
        %v6798 = vunpack.c.l.b16 %v6766
        %v6799 = vunpack.c.l.b16 %v6767
        %v6800 = vunpack.c.l.b16 %v6768
        %v6801 = vunpack.c.l.b16 %v6769
        %v6802 = vunpack.c.l.b16 %v6770
        %v6803 = vpack.c.b16 %v6788, %v6787
        %v6804 = vpack.c.b16 %v6790, %v6789
        %v6805 = vpack.c.b16 %v6792, %v6791
        %v6806 = vpack.c.b16 %v6794, %v6793
        %v6807 = vpack.c.b16 %v6796, %v6795
        %v6808 = vpack.c.b16 %v6798, %v6797
        %v6809 = vpack.c.b16 %v6800, %v6799
        %v6810 = vpack.c.b16 %v6802, %v6801
        %6819 = vmatprep.subr.bf16.mxu0 0
        %6820 = vmatpush1.bf16.msra.mxu0 %v6803
        %6821 = vmatprep.subr.bf16.mxu0 0
        %6822 = vmatpush1.bf16.msra.mxu0 %v6804
        %6823 = vmatprep.subr.bf16.mxu0 0
        %6824 = vmatpush1.bf16.msra.mxu0 %v6805
        %6825 = vmatprep.subr.bf16.mxu0 0
        %6826 = vmatpush1.bf16.msra.mxu0 %v6806
        %6827 = vmatprep.subr.bf16.mxu0 0
        %6828 = vmatpush1.bf16.msra.mxu0 %v6807
        %6829 = vmatprep.subr.bf16.mxu0 0
        %6830 = vmatpush1.bf16.msra.mxu0 %v6808
        %6831 = vmatprep.subr.bf16.mxu0 0
        %6832 = vmatpush1.bf16.msra.mxu0 %v6809
        %6833 = vmatprep.subr.bf16.mxu0 0
        %6834 = vmatpush1.bf16.msra.mxu0 %v6810
        %6835 = vmatprep.subr.bf16.mxu0 0
        %6836 = vmatpush1.bf16.msra.mxu0 0
        %6837 = vmatprep.subr.bf16.mxu0 0
        %6838 = vmatpush1.bf16.msra.mxu0 0
        %6839 = vmatprep.subr.bf16.mxu0 0
        %6840 = vmatpush1.bf16.msra.mxu0 0
        %6841 = vmatprep.subr.bf16.mxu0 0
        %6842 = vmatpush1.bf16.msra.mxu0 0
        %6843 = vmatprep.subr.bf16.mxu0 0
        %6844 = vmatpush1.bf16.msra.mxu0 0
        %6845 = vmatprep.subr.bf16.mxu0 0
        %6846 = vmatpush1.bf16.msra.mxu0 0
        %6847 = vmatprep.subr.bf16.mxu0 0
        %6848 = vmatpush1.bf16.msra.mxu0 0
        %6849 = vmatprep.subr.bf16.mxu0 0
        %6850 = vmatpush1.bf16.msra.mxu0 0
        %6851 = vmatprep.mubr.bf16.mxu0 0
        %6852 = vmatmul.mubr.bf16.gmra.mrb[0].mxu0 %v6733
        %v6853 = vpop.f32.mrb[0].mxu0
        %v6854 = vadd.f32 0.0, %v6853
        %v6855 = vpop.f32.mrb[0].mxu0
        %v6856 = vpop.f32.mrb[0].mxu0
        %v6857 = vadd.f32 0.0, %v6856
        %v6858 = vpop.f32.mrb[0].mxu0
        %6859 = vmatprep.mubr.bf16.mxu0 0
        %6860 = vmatmul.mubr.bf16.gmra.mrb[0].mxu0 %v6734
        %v6861 = vpop.f32.mrb[0].mxu0
        %v6862 = vadd.f32 0.0, %v6861
        %v6863 = vpop.f32.mrb[0].mxu0
        %v6864 = vpop.f32.mrb[0].mxu0
        %v6865 = vadd.f32 0.0, %v6864
        %v6866 = vpop.f32.mrb[0].mxu0
        %6867 = vmatprep.mubr.bf16.mxu0 0
        %6868 = vmatmul.mubr.bf16.gmra.mrb[0].mxu0 %v6735
        %v6869 = vpop.f32.mrb[0].mxu0
        %v6870 = vadd.f32 0.0, %v6869
        %v6871 = vpop.f32.mrb[0].mxu0
        %v6872 = vpop.f32.mrb[0].mxu0
        %v6873 = vadd.f32 0.0, %v6872
        %v6874 = vpop.f32.mrb[0].mxu0
        %6875 = vmatprep.mubr.bf16.mxu0 0
        %6876 = vmatmul.mubr.bf16.gmra.mrb[0].mxu0 %v6736
        %v6877 = vpop.f32.mrb[0].mxu0
        %v6878 = vadd.f32 0.0, %v6877
        %v6879 = vpop.f32.mrb[0].mxu0
        %v6880 = vpop.f32.mrb[0].mxu0
        %v6881 = vadd.f32 0.0, %v6880
        %v6882 = vpop.f32.mrb[0].mxu0
        %6883 = vmatprep.mubr.bf16.mxu0 0
        %6884 = vmatmul.mubr.bf16.gmra.mrb[0].mxu0 %v6737
        %v6885 = vpop.f32.mrb[0].mxu0
        %v6886 = vadd.f32 0.0, %v6885
        %v6887 = vpop.f32.mrb[0].mxu0
        %v6888 = vpop.f32.mrb[0].mxu0
        %v6889 = vadd.f32 0.0, %v6888
        %v6890 = vpop.f32.mrb[0].mxu0
        %6891 = vmatprep.mubr.bf16.mxu0 0
        %6892 = vmatmul.mubr.bf16.gmra.mrb[0].mxu0 %v6738
        %v6893 = vpop.f32.mrb[0].mxu0
        %v6894 = vadd.f32 0.0, %v6893
        %v6895 = vpop.f32.mrb[0].mxu0
        %v6896 = vpop.f32.mrb[0].mxu0
        %v6897 = vadd.f32 0.0, %v6896
        %v6898 = vpop.f32.mrb[0].mxu0
        %6899 = vmatprep.mubr.bf16.mxu0 0
        %6900 = vmatmul.mubr.bf16.gmra.mrb[0].mxu0 %v6739
        %v6901 = vpop.f32.mrb[0].mxu0
        %v6902 = vadd.f32 0.0, %v6901
        %v6903 = vpop.f32.mrb[0].mxu0
        %v6904 = vpop.f32.mrb[0].mxu0
        %v6905 = vadd.f32 0.0, %v6904
        %v6906 = vpop.f32.mrb[0].mxu0
        %6907 = vmatprep.mubr.bf16.mxu0 0
        %6908 = vmatmul.mubr.bf16.gmra.mrb[0].mxu0 %v6740
        %v6909 = vpop.f32.mrb[0].mxu0
        %v6910 = vadd.f32 0.0, %v6909
        %v6911 = vpop.f32.mrb[0].mxu0
        %v6912 = vpop.f32.mrb[0].mxu0
        %v6913 = vadd.f32 0.0, %v6912
        %v6914 = vpop.f32.mrb[0].mxu0
        %6915 = vmatprep.mubr.bf16.mxu0 0
        %6916 = vmatmul.mubr.bf16.gmra.mrb[0].mxu0 %v6741
        %v6917 = vpop.f32.mrb[0].mxu0
        %v6918 = vadd.f32 0.0, %v6917
        %v6919 = vpop.f32.mrb[0].mxu0
        %v6920 = vpop.f32.mrb[0].mxu0
        %v6921 = vadd.f32 0.0, %v6920
        %v6922 = vpop.f32.mrb[0].mxu0
        %6923 = vmatprep.mubr.bf16.mxu0 0
        %6924 = vmatmul.mubr.bf16.gmra.mrb[0].mxu0 %v6742
        %v6925 = vpop.f32.mrb[0].mxu0
        %v6926 = vadd.f32 0.0, %v6925
        %v6927 = vpop.f32.mrb[0].mxu0
        %v6928 = vpop.f32.mrb[0].mxu0
        %v6929 = vadd.f32 0.0, %v6928
        %v6930 = vpop.f32.mrb[0].mxu0
        %6931 = vmatprep.mubr.bf16.mxu0 0
        %6932 = vmatmul.mubr.bf16.gmra.mrb[0].mxu0 %v6743
        %v6933 = vpop.f32.mrb[0].mxu0
        %v6934 = vadd.f32 0.0, %v6933
        %v6935 = vpop.f32.mrb[0].mxu0
        %v6936 = vpop.f32.mrb[0].mxu0
        %v6937 = vadd.f32 0.0, %v6936
        %v6938 = vpop.f32.mrb[0].mxu0
        %6939 = vmatprep.mubr.bf16.mxu0 0
        %6940 = vmatmul.mubr.bf16.gmra.mrb[0].mxu0 %v6744
        %v6941 = vpop.f32.mrb[0].mxu0
        %v6942 = vadd.f32 0.0, %v6941
        %v6943 = vpop.f32.mrb[0].mxu0
        %v6944 = vpop.f32.mrb[0].mxu0
        %v6945 = vadd.f32 0.0, %v6944
        %v6946 = vpop.f32.mrb[0].mxu0
        %6947 = vmatprep.mubr.bf16.mxu0 0
        %6948 = vmatmul.mubr.bf16.gmra.mrb[0].mxu0 %v6745
        %v6949 = vpop.f32.mrb[0].mxu0
        %v6950 = vadd.f32 0.0, %v6949
        %v6951 = vpop.f32.mrb[0].mxu0
        %v6952 = vpop.f32.mrb[0].mxu0
        %v6953 = vadd.f32 0.0, %v6952
        %v6954 = vpop.f32.mrb[0].mxu0
        %6955 = vmatprep.mubr.bf16.mxu0 0
        %6956 = vmatmul.mubr.bf16.gmra.mrb[0].mxu0 %v6746
        %v6957 = vpop.f32.mrb[0].mxu0
        %v6958 = vadd.f32 0.0, %v6957
        %v6959 = vpop.f32.mrb[0].mxu0
        %v6960 = vpop.f32.mrb[0].mxu0
        %v6961 = vadd.f32 0.0, %v6960
        %v6962 = vpop.f32.mrb[0].mxu0
        %6963 = vmatprep.mubr.bf16.mxu0 0
        %6964 = vmatmul.mubr.bf16.gmra.mrb[0].mxu0 %v6747
        %v6965 = vpop.f32.mrb[0].mxu0
        %v6966 = vadd.f32 0.0, %v6965
        %v6967 = vpop.f32.mrb[0].mxu0
        %v6968 = vpop.f32.mrb[0].mxu0
        %v6969 = vadd.f32 0.0, %v6968
        %v6970 = vpop.f32.mrb[0].mxu0
        %6971 = vmatprep.mubr.bf16.mxu0 0
        %6972 = vmatmul.mubr.bf16.gmra.mrb[0].mxu0 %v6748
        %v6973 = vpop.f32.mrb[0].mxu0
        %v6974 = vadd.f32 0.0, %v6973
        %v6975 = vpop.f32.mrb[0].mxu0
        %v6976 = vpop.f32.mrb[0].mxu0
        %v6977 = vadd.f32 0.0, %v6976
        %v6978 = vpop.f32.mrb[0].mxu0
        %6979 = vmatprep.mubr.bf16.mxu0 0
        %6980 = vmatmul.mubr.bf16.gmra.mrb[0].mxu0 %v6749
        %v6981 = vpop.f32.mrb[0].mxu0
        %v6982 = vadd.f32 0.0, %v6981
        %v6983 = vpop.f32.mrb[0].mxu0
        %v6984 = vpop.f32.mrb[0].mxu0
        %v6985 = vadd.f32 0.0, %v6984
        %v6986 = vpop.f32.mrb[0].mxu0
        %6987 = vmatprep.mubr.bf16.mxu0 0
        %6988 = vmatmul.mubr.bf16.gmra.mrb[0].mxu0 %v6750
        %v6989 = vpop.f32.mrb[0].mxu0
        %v6990 = vadd.f32 0.0, %v6989
        %v6991 = vpop.f32.mrb[0].mxu0
        %v6992 = vpop.f32.mrb[0].mxu0
        %v6993 = vadd.f32 0.0, %v6992
        %v6994 = vpop.f32.mrb[0].mxu0
        %6995 = vmatprep.mubr.bf16.mxu0 0
        %6996 = vmatmul.mubr.bf16.gmra.mrb[0].mxu0 %v6751
        %v6997 = vpop.f32.mrb[0].mxu0
        %v6998 = vadd.f32 0.0, %v6997
        %v6999 = vpop.f32.mrb[0].mxu0
        %v7000 = vpop.f32.mrb[0].mxu0
        %v7001 = vadd.f32 0.0, %v7000
        %v7002 = vpop.f32.mrb[0].mxu0
        %7003 = vmatprep.mubr.bf16.mxu0 0
        %7004 = vmatmul.mubr.bf16.gmra.mrb[0].mxu0 %v6752
        %v7005 = vpop.f32.mrb[0].mxu0
        %v7006 = vadd.f32 0.0, %v7005
        %v7007 = vpop.f32.mrb[0].mxu0
        %v7008 = vpop.f32.mrb[0].mxu0
        %v7009 = vadd.f32 0.0, %v7008
        %v7010 = vpop.f32.mrb[0].mxu0
        %7011 = vmatprep.mubr.bf16.mxu0 0
        %7012 = vmatmul.mubr.bf16.gmra.mrb[0].mxu0 %v6753
        %v7013 = vpop.f32.mrb[0].mxu0
        %v7014 = vadd.f32 0.0, %v7013
        %v7015 = vpop.f32.mrb[0].mxu0
        %v7016 = vpop.f32.mrb[0].mxu0
        %v7017 = vadd.f32 0.0, %v7016
        %v7018 = vpop.f32.mrb[0].mxu0
        %7019 = vdwg.mxu0
        %v7020 = vadd.f32 %v6649, %v6854
        %v7021 = vadd.f32 %v6650, %v6857
        %v7022 = vadd.f32 %v6651, %v6862
        %v7023 = vadd.f32 %v6652, %v6865
        %v7024 = vadd.f32 %v6653, %v6870
        %v7025 = vadd.f32 %v6654, %v6873
        %v7026 = vadd.f32 %v6655, %v6878
        %v7027 = vadd.f32 %v6656, %v6881
        %v7028 = vadd.f32 %v6657, %v6886
        %v7029 = vadd.f32 %v6658, %v6889
        %v7030 = vadd.f32 %v6659, %v6894
        %v7031 = vadd.f32 %v6660, %v6897
        %v7032 = vadd.f32 %v6661, %v6902
        %v7033 = vadd.f32 %v6662, %v6905
        %v7034 = vadd.f32 %v6663, %v6910
        %v7035 = vadd.f32 %v6664, %v6913
        %v7036 = vadd.f32 %v6665, %v6918
        %v7037 = vadd.f32 %v6666, %v6921
        %v7038 = vadd.f32 %v6667, %v6926
        %v7039 = vadd.f32 %v6668, %v6929
        %v7040 = vadd.f32 %v6669, %v6934
        %v7041 = vadd.f32 %v6670, %v6937
        %v7042 = vadd.f32 %v6671, %v6942
        %v7043 = vadd.f32 %v6672, %v6945
        %v7044 = vadd.f32 %v6673, %v6950
        %v7045 = vadd.f32 %v6674, %v6953
        %v7046 = vadd.f32 %v6675, %v6958
        %v7047 = vadd.f32 %v6676, %v6961
        %v7048 = vadd.f32 %v6677, %v6966
        %v7049 = vadd.f32 %v6678, %v6969
        %v7050 = vadd.f32 %v6679, %v6974
        %v7051 = vadd.f32 %v6680, %v6977
        %v7052 = vadd.f32 %v6681, %v6982
        %v7053 = vadd.f32 %v6682, %v6985
        %v7054 = vadd.f32 %v6683, %v6990
        %v7055 = vadd.f32 %v6684, %v6993
        %v7056 = vadd.f32 %v6685, %v6998
        %v7057 = vadd.f32 %v6686, %v7001
        %v7058 = vadd.f32 %v6687, %v7006
        %v7059 = vadd.f32 %v6688, %v7009
        %v7060 = vadd.f32 %v6689, %v7014
        %v7061 = vadd.f32 %v6690, %v7017
        %v7062 = vld [vmem:[#allocation4 + $0x14] sm:$0xff]
        %v7063 = vld [vmem:[#allocation4 + $0x1c] sm:$0xff]
        %v7064 = vld [vmem:[#allocation4 + $0x24] sm:$0xff]
        %v7065 = vld [vmem:[#allocation4 + $0x2c] sm:$0xff]
        %v7066 = vld [vmem:[#allocation4 + $0x34] sm:$0xff]
        %v7067 = vld [vmem:[#allocation4 + $0x3c] sm:$0xff]
        %v7068 = vld [vmem:[#allocation4 + $0x44] sm:$0xff]
        %v7069 = vld [vmem:[#allocation4 + $0x4c] sm:$0xff]
        %v7070 = vld [vmem:[#allocation4 + $0x54] sm:$0xff]
        %v7071 = vld [vmem:[#allocation4 + $0x5c] sm:$0xff]
        %v7072 = vld [vmem:[#allocation4 + $0x64] sm:$0xff]
        %v7073 = vld [vmem:[#allocation4 + $0x6c] sm:$0xff]
        %v7074 = vld [vmem:[#allocation4 + $0x74] sm:$0xff]
        %v7075 = vld [vmem:[#allocation4 + $0x7c] sm:$0xff]
        %v7076 = vld [vmem:[#allocation4 + $0x84] sm:$0xff]
        %v7077 = vld [vmem:[#allocation4 + $0x8c] sm:$0xff]
        %v7078 = vld [vmem:[#allocation4 + $0x94] sm:$0xff]
        %v7079 = vld [vmem:[#allocation4 + $0x9c] sm:$0xff]
        %v7080 = vld [vmem:[#allocation4 + $0xa4] sm:$0xff]
        %v7081 = vld [vmem:[#allocation4 + $0xac] sm:$0xff]
        %v7082 = vld [vmem:[#allocation4 + $0xb4] sm:$0xff]
        %v7083 = vld [vmem:[#allocation4 + $0xbc] sm:$0xff]
        %v7084 = vld [vmem:[#allocation4 + $0xc4] sm:$0xff]
        %v7085 = vld [vmem:[#allocation4 + $0xcc] sm:$0xff]
        %v7086 = vld [vmem:[#allocation4 + $0xd4] sm:$0xff]
        %v7087 = vld [vmem:[#allocation4 + $0xdc] sm:$0xff]
        %v7088 = vld [vmem:[#allocation4 + $0xe4] sm:$0xff]
        %v7089 = vld [vmem:[#allocation4 + $0xec] sm:$0xff]
        %v7090 = vld [vmem:[#allocation4 + $0xf4] sm:$0xff]
        %v7091 = vld [vmem:[#allocation4 + $0xfc] sm:$0xff]
        %v7092 = vld [vmem:[#allocation4 + $0x104] sm:$0xff]
        %v7093 = vld [vmem:[#allocation4 + $0x10c] sm:$0xff]
        %v7094 = vld [vmem:[#allocation4 + $0x114] sm:$0xff]
        %v7095 = vld [vmem:[#allocation4 + $0x11c] sm:$0xff]
        %v7096 = vld [vmem:[#allocation4 + $0x124] sm:$0xff]
        %v7097 = vld [vmem:[#allocation4 + $0x12c] sm:$0xff]
        %v7098 = vld [vmem:[#allocation4 + $0x134] sm:$0xff]
        %v7099 = vld [vmem:[#allocation4 + $0x13c] sm:$0xff]
        %v7100 = vld [vmem:[#allocation4 + $0x144] sm:$0xff]
        %v7101 = vld [vmem:[#allocation4 + $0x14c] sm:$0xff]
        %v7102 = vld [vmem:[#allocation4 + $0x154] sm:$0xff]
        %v7103 = vld [vmem:[#allocation4 + $0x15c] sm:$0xff]
        %v7104 = vpack.c.bf16 %v7063, %v7062
        %v7105 = vpack.c.bf16 %v7065, %v7064
        %v7106 = vpack.c.bf16 %v7067, %v7066
        %v7107 = vpack.c.bf16 %v7069, %v7068
        %v7108 = vpack.c.bf16 %v7071, %v7070
        %v7109 = vpack.c.bf16 %v7073, %v7072
        %v7110 = vpack.c.bf16 %v7075, %v7074
        %v7111 = vpack.c.bf16 %v7077, %v7076
        %v7112 = vpack.c.bf16 %v7079, %v7078
        %v7113 = vpack.c.bf16 %v7081, %v7080
        %v7114 = vpack.c.bf16 %v7083, %v7082
        %v7115 = vpack.c.bf16 %v7085, %v7084
        %v7116 = vpack.c.bf16 %v7087, %v7086
        %v7117 = vpack.c.bf16 %v7089, %v7088
        %v7118 = vpack.c.bf16 %v7091, %v7090
        %v7119 = vpack.c.bf16 %v7093, %v7092
        %v7120 = vpack.c.bf16 %v7095, %v7094
        %v7121 = vpack.c.bf16 %v7097, %v7096
        %v7122 = vpack.c.bf16 %v7099, %v7098
        %v7123 = vpack.c.bf16 %v7101, %v7100
        %v7124 = vpack.c.bf16 %v7103, %v7102
        %s7125 = scalar_lea.vmem [#allocation11], 320
        %v7126 = vld [vmem:[%s7125] sm:$0xf]
        %v7127 = vld [vmem:[%s7125 + $0x4] sm:$0xf]
        %v7128 = vld [vmem:[%s7125 + $0x8] sm:$0xf]
        %v7129 = vld [vmem:[%s7125 + $0xc] sm:$0xf]
        %v7130 = vld [vmem:[%s7125 + $0x10] sm:$0xf]
        %v7131 = vld [vmem:[%s7125 + $0x14] sm:$0xf]
        %v7132 = vld [vmem:[%s7125 + $0x18] sm:$0xf]
        %v7133 = vld [vmem:[%s7125 + $0x1c] sm:$0xf]
        %v7134 = vld [vmem:[%s7125 + $0x20] sm:$0xf]
        %v7135 = vld [vmem:[%s7125 + $0x24] sm:$0xf]
        %v7136 = vld [vmem:[%s7125 + $0x28] sm:$0xf]
        %v7137 = vld [vmem:[%s7125 + $0x2c] sm:$0xf]
        %v7138 = vld [vmem:[%s7125 + $0x30] sm:$0xf]
        %v7139 = vld [vmem:[%s7125 + $0x34] sm:$0xf]
        %v7140 = vld [vmem:[%s7125 + $0x38] sm:$0xf]
        %v7141 = vld [vmem:[%s7125 + $0x3c] sm:$0xf]
        %v7158 = vunpack.c.l.b16 %v7126
        %v7159 = vunpack.c.l.b16 %v7127
        %v7160 = vunpack.c.l.b16 %v7128
        %v7161 = vunpack.c.l.b16 %v7129
        %v7162 = vunpack.c.l.b16 %v7130
        %v7163 = vunpack.c.l.b16 %v7131
        %v7164 = vunpack.c.l.b16 %v7132
        %v7165 = vunpack.c.l.b16 %v7133
        %v7166 = vunpack.c.l.b16 %v7134
        %v7167 = vunpack.c.l.b16 %v7135
        %v7168 = vunpack.c.l.b16 %v7136
        %v7169 = vunpack.c.l.b16 %v7137
        %v7170 = vunpack.c.l.b16 %v7138
        %v7171 = vunpack.c.l.b16 %v7139
        %v7172 = vunpack.c.l.b16 %v7140
        %v7173 = vunpack.c.l.b16 %v7141
        %v7174 = vpack.c.b16 %v7159, %v7158
        %v7175 = vpack.c.b16 %v7161, %v7160
        %v7176 = vpack.c.b16 %v7163, %v7162
        %v7177 = vpack.c.b16 %v7165, %v7164
        %v7178 = vpack.c.b16 %v7167, %v7166
        %v7179 = vpack.c.b16 %v7169, %v7168
        %v7180 = vpack.c.b16 %v7171, %v7170
        %v7181 = vpack.c.b16 %v7173, %v7172
        %7190 = vmatprep.subr.bf16.mxu0 0
        %7191 = vmatpush1.bf16.msra.mxu0 %v7174
        %7192 = vmatprep.subr.bf16.mxu0 0
        %7193 = vmatpush1.bf16.msra.mxu0 %v7175
        %7194 = vmatprep.subr.bf16.mxu0 0
        %7195 = vmatpush1.bf16.msra.mxu0 %v7176
        %7196 = vmatprep.subr.bf16.mxu0 0
        %7197 = vmatpush1.bf16.msra.mxu0 %v7177
        %7198 = vmatprep.subr.bf16.mxu0 0
        %7199 = vmatpush1.bf16.msra.mxu0 %v7178
        %7200 = vmatprep.subr.bf16.mxu0 0
        %7201 = vmatpush1.bf16.msra.mxu0 %v7179
        %7202 = vmatprep.subr.bf16.mxu0 0
        %7203 = vmatpush1.bf16.msra.mxu0 %v7180
        %7204 = vmatprep.subr.bf16.mxu0 0
        %7205 = vmatpush1.bf16.msra.mxu0 %v7181
        %7206 = vmatprep.subr.bf16.mxu0 0
        %7207 = vmatpush1.bf16.msra.mxu0 0
        %7208 = vmatprep.subr.bf16.mxu0 0
        %7209 = vmatpush1.bf16.msra.mxu0 0
        %7210 = vmatprep.subr.bf16.mxu0 0
        %7211 = vmatpush1.bf16.msra.mxu0 0
        %7212 = vmatprep.subr.bf16.mxu0 0
        %7213 = vmatpush1.bf16.msra.mxu0 0
        %7214 = vmatprep.subr.bf16.mxu0 0
        %7215 = vmatpush1.bf16.msra.mxu0 0
        %7216 = vmatprep.subr.bf16.mxu0 0
        %7217 = vmatpush1.bf16.msra.mxu0 0
        %7218 = vmatprep.subr.bf16.mxu0 0
        %7219 = vmatpush1.bf16.msra.mxu0 0
        %7220 = vmatprep.subr.bf16.mxu0 0
        %7221 = vmatpush1.bf16.msra.mxu0 0
        %7222 = vmatprep.mubr.bf16.mxu0 0
        %7223 = vmatmul.mubr.bf16.gmra.mrb[0].mxu0 %v7104
        %v7224 = vpop.f32.mrb[0].mxu0
        %v7225 = vadd.f32 0.0, %v7224
        %v7226 = vpop.f32.mrb[0].mxu0
        %v7227 = vpop.f32.mrb[0].mxu0
        %v7228 = vadd.f32 0.0, %v7227
        %v7229 = vpop.f32.mrb[0].mxu0
        %7230 = vmatprep.mubr.bf16.mxu0 0
        %7231 = vmatmul.mubr.bf16.gmra.mrb[0].mxu0 %v7105
        %v7232 = vpop.f32.mrb[0].mxu0
        %v7233 = vadd.f32 0.0, %v7232
        %v7234 = vpop.f32.mrb[0].mxu0
        %v7235 = vpop.f32.mrb[0].mxu0
        %v7236 = vadd.f32 0.0, %v7235
        %v7237 = vpop.f32.mrb[0].mxu0
        %7238 = vmatprep.mubr.bf16.mxu0 0
        %7239 = vmatmul.mubr.bf16.gmra.mrb[0].mxu0 %v7106
        %v7240 = vpop.f32.mrb[0].mxu0
        %v7241 = vadd.f32 0.0, %v7240
        %v7242 = vpop.f32.mrb[0].mxu0
        %v7243 = vpop.f32.mrb[0].mxu0
        %v7244 = vadd.f32 0.0, %v7243
        %v7245 = vpop.f32.mrb[0].mxu0
        %7246 = vmatprep.mubr.bf16.mxu0 0
        %7247 = vmatmul.mubr.bf16.gmra.mrb[0].mxu0 %v7107
        %v7248 = vpop.f32.mrb[0].mxu0
        %v7249 = vadd.f32 0.0, %v7248
        %v7250 = vpop.f32.mrb[0].mxu0
        %v7251 = vpop.f32.mrb[0].mxu0
        %v7252 = vadd.f32 0.0, %v7251
        %v7253 = vpop.f32.mrb[0].mxu0
        %7254 = vmatprep.mubr.bf16.mxu0 0
        %7255 = vmatmul.mubr.bf16.gmra.mrb[0].mxu0 %v7108
        %v7256 = vpop.f32.mrb[0].mxu0
        %v7257 = vadd.f32 0.0, %v7256
        %v7258 = vpop.f32.mrb[0].mxu0
        %v7259 = vpop.f32.mrb[0].mxu0
        %v7260 = vadd.f32 0.0, %v7259
        %v7261 = vpop.f32.mrb[0].mxu0
        %7262 = vmatprep.mubr.bf16.mxu0 0
        %7263 = vmatmul.mubr.bf16.gmra.mrb[0].mxu0 %v7109
        %v7264 = vpop.f32.mrb[0].mxu0
        %v7265 = vadd.f32 0.0, %v7264
        %v7266 = vpop.f32.mrb[0].mxu0
        %v7267 = vpop.f32.mrb[0].mxu0
        %v7268 = vadd.f32 0.0, %v7267
        %v7269 = vpop.f32.mrb[0].mxu0
        %7270 = vmatprep.mubr.bf16.mxu0 0
        %7271 = vmatmul.mubr.bf16.gmra.mrb[0].mxu0 %v7110
        %v7272 = vpop.f32.mrb[0].mxu0
        %v7273 = vadd.f32 0.0, %v7272
        %v7274 = vpop.f32.mrb[0].mxu0
        %v7275 = vpop.f32.mrb[0].mxu0
        %v7276 = vadd.f32 0.0, %v7275
        %v7277 = vpop.f32.mrb[0].mxu0
        %7278 = vmatprep.mubr.bf16.mxu0 0
        %7279 = vmatmul.mubr.bf16.gmra.mrb[0].mxu0 %v7111
        %v7280 = vpop.f32.mrb[0].mxu0
        %v7281 = vadd.f32 0.0, %v7280
        %v7282 = vpop.f32.mrb[0].mxu0
        %v7283 = vpop.f32.mrb[0].mxu0
        %v7284 = vadd.f32 0.0, %v7283
        %v7285 = vpop.f32.mrb[0].mxu0
        %7286 = vmatprep.mubr.bf16.mxu0 0
        %7287 = vmatmul.mubr.bf16.gmra.mrb[0].mxu0 %v7112
        %v7288 = vpop.f32.mrb[0].mxu0
        %v7289 = vadd.f32 0.0, %v7288
        %v7290 = vpop.f32.mrb[0].mxu0
        %v7291 = vpop.f32.mrb[0].mxu0
        %v7292 = vadd.f32 0.0, %v7291
        %v7293 = vpop.f32.mrb[0].mxu0
        %7294 = vmatprep.mubr.bf16.mxu0 0
        %7295 = vmatmul.mubr.bf16.gmra.mrb[0].mxu0 %v7113
        %v7296 = vpop.f32.mrb[0].mxu0
        %v7297 = vadd.f32 0.0, %v7296
        %v7298 = vpop.f32.mrb[0].mxu0
        %v7299 = vpop.f32.mrb[0].mxu0
        %v7300 = vadd.f32 0.0, %v7299
        %v7301 = vpop.f32.mrb[0].mxu0
        %7302 = vmatprep.mubr.bf16.mxu0 0
        %7303 = vmatmul.mubr.bf16.gmra.mrb[0].mxu0 %v7114
        %v7304 = vpop.f32.mrb[0].mxu0
        %v7305 = vadd.f32 0.0, %v7304
        %v7306 = vpop.f32.mrb[0].mxu0
        %v7307 = vpop.f32.mrb[0].mxu0
        %v7308 = vadd.f32 0.0, %v7307
        %v7309 = vpop.f32.mrb[0].mxu0
        %7310 = vmatprep.mubr.bf16.mxu0 0
        %7311 = vmatmul.mubr.bf16.gmra.mrb[0].mxu0 %v7115
        %v7312 = vpop.f32.mrb[0].mxu0
        %v7313 = vadd.f32 0.0, %v7312
        %v7314 = vpop.f32.mrb[0].mxu0
        %v7315 = vpop.f32.mrb[0].mxu0
        %v7316 = vadd.f32 0.0, %v7315
        %v7317 = vpop.f32.mrb[0].mxu0
        %7318 = vmatprep.mubr.bf16.mxu0 0
        %7319 = vmatmul.mubr.bf16.gmra.mrb[0].mxu0 %v7116
        %v7320 = vpop.f32.mrb[0].mxu0
        %v7321 = vadd.f32 0.0, %v7320
        %v7322 = vpop.f32.mrb[0].mxu0
        %v7323 = vpop.f32.mrb[0].mxu0
        %v7324 = vadd.f32 0.0, %v7323
        %v7325 = vpop.f32.mrb[0].mxu0
        %7326 = vmatprep.mubr.bf16.mxu0 0
        %7327 = vmatmul.mubr.bf16.gmra.mrb[0].mxu0 %v7117
        %v7328 = vpop.f32.mrb[0].mxu0
        %v7329 = vadd.f32 0.0, %v7328
        %v7330 = vpop.f32.mrb[0].mxu0
        %v7331 = vpop.f32.mrb[0].mxu0
        %v7332 = vadd.f32 0.0, %v7331
        %v7333 = vpop.f32.mrb[0].mxu0
        %7334 = vmatprep.mubr.bf16.mxu0 0
        %7335 = vmatmul.mubr.bf16.gmra.mrb[0].mxu0 %v7118
        %v7336 = vpop.f32.mrb[0].mxu0
        %v7337 = vadd.f32 0.0, %v7336
        %v7338 = vpop.f32.mrb[0].mxu0
        %v7339 = vpop.f32.mrb[0].mxu0
        %v7340 = vadd.f32 0.0, %v7339
        %v7341 = vpop.f32.mrb[0].mxu0
        %7342 = vmatprep.mubr.bf16.mxu0 0
        %7343 = vmatmul.mubr.bf16.gmra.mrb[0].mxu0 %v7119
        %v7344 = vpop.f32.mrb[0].mxu0
        %v7345 = vadd.f32 0.0, %v7344
        %v7346 = vpop.f32.mrb[0].mxu0
        %v7347 = vpop.f32.mrb[0].mxu0
        %v7348 = vadd.f32 0.0, %v7347
        %v7349 = vpop.f32.mrb[0].mxu0
        %7350 = vmatprep.mubr.bf16.mxu0 0
        %7351 = vmatmul.mubr.bf16.gmra.mrb[0].mxu0 %v7120
        %v7352 = vpop.f32.mrb[0].mxu0
        %v7353 = vadd.f32 0.0, %v7352
        %v7354 = vpop.f32.mrb[0].mxu0
        %v7355 = vpop.f32.mrb[0].mxu0
        %v7356 = vadd.f32 0.0, %v7355
        %v7357 = vpop.f32.mrb[0].mxu0
        %7358 = vmatprep.mubr.bf16.mxu0 0
        %7359 = vmatmul.mubr.bf16.gmra.mrb[0].mxu0 %v7121
        %v7360 = vpop.f32.mrb[0].mxu0
        %v7361 = vadd.f32 0.0, %v7360
        %v7362 = vpop.f32.mrb[0].mxu0
        %v7363 = vpop.f32.mrb[0].mxu0
        %v7364 = vadd.f32 0.0, %v7363
        %v7365 = vpop.f32.mrb[0].mxu0
        %7366 = vmatprep.mubr.bf16.mxu0 0
        %7367 = vmatmul.mubr.bf16.gmra.mrb[0].mxu0 %v7122
        %v7368 = vpop.f32.mrb[0].mxu0
        %v7369 = vadd.f32 0.0, %v7368
        %v7370 = vpop.f32.mrb[0].mxu0
        %v7371 = vpop.f32.mrb[0].mxu0
        %v7372 = vadd.f32 0.0, %v7371
        %v7373 = vpop.f32.mrb[0].mxu0
        %7374 = vmatprep.mubr.bf16.mxu0 0
        %7375 = vmatmul.mubr.bf16.gmra.mrb[0].mxu0 %v7123
        %v7376 = vpop.f32.mrb[0].mxu0
        %v7377 = vadd.f32 0.0, %v7376
        %v7378 = vpop.f32.mrb[0].mxu0
        %v7379 = vpop.f32.mrb[0].mxu0
        %v7380 = vadd.f32 0.0, %v7379
        %v7381 = vpop.f32.mrb[0].mxu0
        %7382 = vmatprep.mubr.bf16.mxu0 0
        %7383 = vmatmul.mubr.bf16.gmra.mrb[0].mxu0 %v7124
        %v7384 = vpop.f32.mrb[0].mxu0
        %v7385 = vadd.f32 0.0, %v7384
        %v7386 = vpop.f32.mrb[0].mxu0
        %v7387 = vpop.f32.mrb[0].mxu0
        %v7388 = vadd.f32 0.0, %v7387
        %v7389 = vpop.f32.mrb[0].mxu0
        %7390 = vdwg.mxu0
        %v7391 = vadd.f32 %v7020, %v7225
        %v7392 = vadd.f32 %v7021, %v7228
        %v7393 = vadd.f32 %v7022, %v7233
        %v7394 = vadd.f32 %v7023, %v7236
        %v7395 = vadd.f32 %v7024, %v7241
        %v7396 = vadd.f32 %v7025, %v7244
        %v7397 = vadd.f32 %v7026, %v7249
        %v7398 = vadd.f32 %v7027, %v7252
        %v7399 = vadd.f32 %v7028, %v7257
        %v7400 = vadd.f32 %v7029, %v7260
        %v7401 = vadd.f32 %v7030, %v7265
        %v7402 = vadd.f32 %v7031, %v7268
        %v7403 = vadd.f32 %v7032, %v7273
        %v7404 = vadd.f32 %v7033, %v7276
        %v7405 = vadd.f32 %v7034, %v7281
        %v7406 = vadd.f32 %v7035, %v7284
        %v7407 = vadd.f32 %v7036, %v7289
        %v7408 = vadd.f32 %v7037, %v7292
        %v7409 = vadd.f32 %v7038, %v7297
        %v7410 = vadd.f32 %v7039, %v7300
        %v7411 = vadd.f32 %v7040, %v7305
        %v7412 = vadd.f32 %v7041, %v7308
        %v7413 = vadd.f32 %v7042, %v7313
        %v7414 = vadd.f32 %v7043, %v7316
        %v7415 = vadd.f32 %v7044, %v7321
        %v7416 = vadd.f32 %v7045, %v7324
        %v7417 = vadd.f32 %v7046, %v7329
        %v7418 = vadd.f32 %v7047, %v7332
        %v7419 = vadd.f32 %v7048, %v7337
        %v7420 = vadd.f32 %v7049, %v7340
        %v7421 = vadd.f32 %v7050, %v7345
        %v7422 = vadd.f32 %v7051, %v7348
        %v7423 = vadd.f32 %v7052, %v7353
        %v7424 = vadd.f32 %v7053, %v7356
        %v7425 = vadd.f32 %v7054, %v7361
        %v7426 = vadd.f32 %v7055, %v7364
        %v7427 = vadd.f32 %v7056, %v7369
        %v7428 = vadd.f32 %v7057, %v7372
        %v7429 = vadd.f32 %v7058, %v7377
        %v7430 = vadd.f32 %v7059, %v7380
        %v7431 = vadd.f32 %v7060, %v7385
        %v7432 = vadd.f32 %v7061, %v7388
        %v7433 = vld [vmem:[#allocation4 + $0x24] sm:$0xff]
        %v7434 = vld [vmem:[#allocation4 + $0x2c] sm:$0xff]
        %v7435 = vld [vmem:[#allocation4 + $0x34] sm:$0xff]
        %v7436 = vld [vmem:[#allocation4 + $0x3c] sm:$0xff]
        %v7437 = vld [vmem:[#allocation4 + $0x44] sm:$0xff]
        %v7438 = vld [vmem:[#allocation4 + $0x4c] sm:$0xff]
        %v7439 = vld [vmem:[#allocation4 + $0x54] sm:$0xff]
        %v7440 = vld [vmem:[#allocation4 + $0x5c] sm:$0xff]
        %v7441 = vld [vmem:[#allocation4 + $0x64] sm:$0xff]
        %v7442 = vld [vmem:[#allocation4 + $0x6c] sm:$0xff]
        %v7443 = vld [vmem:[#allocation4 + $0x74] sm:$0xff]
        %v7444 = vld [vmem:[#allocation4 + $0x7c] sm:$0xff]
        %v7445 = vld [vmem:[#allocation4 + $0x84] sm:$0xff]
        %v7446 = vld [vmem:[#allocation4 + $0x8c] sm:$0xff]
        %v7447 = vld [vmem:[#allocation4 + $0x94] sm:$0xff]
        %v7448 = vld [vmem:[#allocation4 + $0x9c] sm:$0xff]
        %v7449 = vld [vmem:[#allocation4 + $0xa4] sm:$0xff]
        %v7450 = vld [vmem:[#allocation4 + $0xac] sm:$0xff]
        %v7451 = vld [vmem:[#allocation4 + $0xb4] sm:$0xff]
        %v7452 = vld [vmem:[#allocation4 + $0xbc] sm:$0xff]
        %v7453 = vld [vmem:[#allocation4 + $0xc4] sm:$0xff]
        %v7454 = vld [vmem:[#allocation4 + $0xcc] sm:$0xff]
        %v7455 = vld [vmem:[#allocation4 + $0xd4] sm:$0xff]
        %v7456 = vld [vmem:[#allocation4 + $0xdc] sm:$0xff]
        %v7457 = vld [vmem:[#allocation4 + $0xe4] sm:$0xff]
        %v7458 = vld [vmem:[#allocation4 + $0xec] sm:$0xff]
        %v7459 = vld [vmem:[#allocation4 + $0xf4] sm:$0xff]
        %v7460 = vld [vmem:[#allocation4 + $0xfc] sm:$0xff]
        %v7461 = vld [vmem:[#allocation4 + $0x104] sm:$0xff]
        %v7462 = vld [vmem:[#allocation4 + $0x10c] sm:$0xff]
        %v7463 = vld [vmem:[#allocation4 + $0x114] sm:$0xff]
        %v7464 = vld [vmem:[#allocation4 + $0x11c] sm:$0xff]
        %v7465 = vld [vmem:[#allocation4 + $0x124] sm:$0xff]
        %v7466 = vld [vmem:[#allocation4 + $0x12c] sm:$0xff]
        %v7467 = vld [vmem:[#allocation4 + $0x134] sm:$0xff]
        %v7468 = vld [vmem:[#allocation4 + $0x13c] sm:$0xff]
        %v7469 = vld [vmem:[#allocation4 + $0x144] sm:$0xff]
        %v7470 = vld [vmem:[#allocation4 + $0x14c] sm:$0xff]
        %v7471 = vld [vmem:[#allocation4 + $0x154] sm:$0xff]
        %v7472 = vld [vmem:[#allocation4 + $0x15c] sm:$0xff]
        %v7473 = vld [vmem:[#allocation4 + $0x164] sm:$0xff]
        %v7474 = vld [vmem:[#allocation4 + $0x16c] sm:$0xff]
        %v7475 = vpack.c.bf16 %v7434, %v7433
        %v7476 = vpack.c.bf16 %v7436, %v7435
        %v7477 = vpack.c.bf16 %v7438, %v7437
        %v7478 = vpack.c.bf16 %v7440, %v7439
        %v7479 = vpack.c.bf16 %v7442, %v7441
        %v7480 = vpack.c.bf16 %v7444, %v7443
        %v7481 = vpack.c.bf16 %v7446, %v7445
        %v7482 = vpack.c.bf16 %v7448, %v7447
        %v7483 = vpack.c.bf16 %v7450, %v7449
        %v7484 = vpack.c.bf16 %v7452, %v7451
        %v7485 = vpack.c.bf16 %v7454, %v7453
        %v7486 = vpack.c.bf16 %v7456, %v7455
        %v7487 = vpack.c.bf16 %v7458, %v7457
        %v7488 = vpack.c.bf16 %v7460, %v7459
        %v7489 = vpack.c.bf16 %v7462, %v7461
        %v7490 = vpack.c.bf16 %v7464, %v7463
        %v7491 = vpack.c.bf16 %v7466, %v7465
        %v7492 = vpack.c.bf16 %v7468, %v7467
        %v7493 = vpack.c.bf16 %v7470, %v7469
        %v7494 = vpack.c.bf16 %v7472, %v7471
        %v7495 = vpack.c.bf16 %v7474, %v7473
        %s7496 = scalar_lea.vmem [#allocation11], 384
        %v7497 = vld [vmem:[%s7496] sm:$0xf]
        %v7498 = vld [vmem:[%s7496 + $0x4] sm:$0xf]
        %v7499 = vld [vmem:[%s7496 + $0x8] sm:$0xf]
        %v7500 = vld [vmem:[%s7496 + $0xc] sm:$0xf]
        %v7501 = vld [vmem:[%s7496 + $0x10] sm:$0xf]
        %v7502 = vld [vmem:[%s7496 + $0x14] sm:$0xf]
        %v7503 = vld [vmem:[%s7496 + $0x18] sm:$0xf]
        %v7504 = vld [vmem:[%s7496 + $0x1c] sm:$0xf]
        %v7505 = vld [vmem:[%s7496 + $0x20] sm:$0xf]
        %v7506 = vld [vmem:[%s7496 + $0x24] sm:$0xf]
        %v7507 = vld [vmem:[%s7496 + $0x28] sm:$0xf]
        %v7508 = vld [vmem:[%s7496 + $0x2c] sm:$0xf]
        %v7509 = vld [vmem:[%s7496 + $0x30] sm:$0xf]
        %v7510 = vld [vmem:[%s7496 + $0x34] sm:$0xf]
        %v7511 = vld [vmem:[%s7496 + $0x38] sm:$0xf]
        %v7512 = vld [vmem:[%s7496 + $0x3c] sm:$0xf]
        %v7529 = vunpack.c.l.b16 %v7497
        %v7530 = vunpack.c.l.b16 %v7498
        %v7531 = vunpack.c.l.b16 %v7499
        %v7532 = vunpack.c.l.b16 %v7500
        %v7533 = vunpack.c.l.b16 %v7501
        %v7534 = vunpack.c.l.b16 %v7502
        %v7535 = vunpack.c.l.b16 %v7503
        %v7536 = vunpack.c.l.b16 %v7504
        %v7537 = vunpack.c.l.b16 %v7505
        %v7538 = vunpack.c.l.b16 %v7506
        %v7539 = vunpack.c.l.b16 %v7507
        %v7540 = vunpack.c.l.b16 %v7508
        %v7541 = vunpack.c.l.b16 %v7509
        %v7542 = vunpack.c.l.b16 %v7510
        %v7543 = vunpack.c.l.b16 %v7511
        %v7544 = vunpack.c.l.b16 %v7512
        %v7545 = vpack.c.b16 %v7530, %v7529
        %v7546 = vpack.c.b16 %v7532, %v7531
        %v7547 = vpack.c.b16 %v7534, %v7533
        %v7548 = vpack.c.b16 %v7536, %v7535
        %v7549 = vpack.c.b16 %v7538, %v7537
        %v7550 = vpack.c.b16 %v7540, %v7539
        %v7551 = vpack.c.b16 %v7542, %v7541
        %v7552 = vpack.c.b16 %v7544, %v7543
        %7561 = vmatprep.subr.bf16.mxu0 0
        %7562 = vmatpush1.bf16.msra.mxu0 %v7545
        %7563 = vmatprep.subr.bf16.mxu0 0
        %7564 = vmatpush1.bf16.msra.mxu0 %v7546
        %7565 = vmatprep.subr.bf16.mxu0 0
        %7566 = vmatpush1.bf16.msra.mxu0 %v7547
        %7567 = vmatprep.subr.bf16.mxu0 0
        %7568 = vmatpush1.bf16.msra.mxu0 %v7548
        %7569 = vmatprep.subr.bf16.mxu0 0
        %7570 = vmatpush1.bf16.msra.mxu0 %v7549
        %7571 = vmatprep.subr.bf16.mxu0 0
        %7572 = vmatpush1.bf16.msra.mxu0 %v7550
        %7573 = vmatprep.subr.bf16.mxu0 0
        %7574 = vmatpush1.bf16.msra.mxu0 %v7551
        %7575 = vmatprep.subr.bf16.mxu0 0
        %7576 = vmatpush1.bf16.msra.mxu0 %v7552
        %7577 = vmatprep.subr.bf16.mxu0 0
        %7578 = vmatpush1.bf16.msra.mxu0 0
        %7579 = vmatprep.subr.bf16.mxu0 0
        %7580 = vmatpush1.bf16.msra.mxu0 0
        %7581 = vmatprep.subr.bf16.mxu0 0
        %7582 = vmatpush1.bf16.msra.mxu0 0
        %7583 = vmatprep.subr.bf16.mxu0 0
        %7584 = vmatpush1.bf16.msra.mxu0 0
        %7585 = vmatprep.subr.bf16.mxu0 0
        %7586 = vmatpush1.bf16.msra.mxu0 0
        %7587 = vmatprep.subr.bf16.mxu0 0
        %7588 = vmatpush1.bf16.msra.mxu0 0
        %7589 = vmatprep.subr.bf16.mxu0 0
        %7590 = vmatpush1.bf16.msra.mxu0 0
        %7591 = vmatprep.subr.bf16.mxu0 0
        %7592 = vmatpush1.bf16.msra.mxu0 0
        %7593 = vmatprep.mubr.bf16.mxu0 0
        %7594 = vmatmul.mubr.bf16.gmra.mrb[0].mxu0 %v7475
        %v7595 = vpop.f32.mrb[0].mxu0
        %v7596 = vadd.f32 0.0, %v7595
        %v7597 = vpop.f32.mrb[0].mxu0
        %v7598 = vpop.f32.mrb[0].mxu0
        %v7599 = vadd.f32 0.0, %v7598
        %v7600 = vpop.f32.mrb[0].mxu0
        %7601 = vmatprep.mubr.bf16.mxu0 0
        %7602 = vmatmul.mubr.bf16.gmra.mrb[0].mxu0 %v7476
        %v7603 = vpop.f32.mrb[0].mxu0
        %v7604 = vadd.f32 0.0, %v7603
        %v7605 = vpop.f32.mrb[0].mxu0
        %v7606 = vpop.f32.mrb[0].mxu0
        %v7607 = vadd.f32 0.0, %v7606
        %v7608 = vpop.f32.mrb[0].mxu0
        %7609 = vmatprep.mubr.bf16.mxu0 0
        %7610 = vmatmul.mubr.bf16.gmra.mrb[0].mxu0 %v7477
        %v7611 = vpop.f32.mrb[0].mxu0
        %v7612 = vadd.f32 0.0, %v7611
        %v7613 = vpop.f32.mrb[0].mxu0
        %v7614 = vpop.f32.mrb[0].mxu0
        %v7615 = vadd.f32 0.0, %v7614
        %v7616 = vpop.f32.mrb[0].mxu0
        %7617 = vmatprep.mubr.bf16.mxu0 0
        %7618 = vmatmul.mubr.bf16.gmra.mrb[0].mxu0 %v7478
        %v7619 = vpop.f32.mrb[0].mxu0
        %v7620 = vadd.f32 0.0, %v7619
        %v7621 = vpop.f32.mrb[0].mxu0
        %v7622 = vpop.f32.mrb[0].mxu0
        %v7623 = vadd.f32 0.0, %v7622
        %v7624 = vpop.f32.mrb[0].mxu0
        %7625 = vmatprep.mubr.bf16.mxu0 0
        %7626 = vmatmul.mubr.bf16.gmra.mrb[0].mxu0 %v7479
        %v7627 = vpop.f32.mrb[0].mxu0
        %v7628 = vadd.f32 0.0, %v7627
        %v7629 = vpop.f32.mrb[0].mxu0
        %v7630 = vpop.f32.mrb[0].mxu0
        %v7631 = vadd.f32 0.0, %v7630
        %v7632 = vpop.f32.mrb[0].mxu0
        %7633 = vmatprep.mubr.bf16.mxu0 0
        %7634 = vmatmul.mubr.bf16.gmra.mrb[0].mxu0 %v7480
        %v7635 = vpop.f32.mrb[0].mxu0
        %v7636 = vadd.f32 0.0, %v7635
        %v7637 = vpop.f32.mrb[0].mxu0
        %v7638 = vpop.f32.mrb[0].mxu0
        %v7639 = vadd.f32 0.0, %v7638
        %v7640 = vpop.f32.mrb[0].mxu0
        %7641 = vmatprep.mubr.bf16.mxu0 0
        %7642 = vmatmul.mubr.bf16.gmra.mrb[0].mxu0 %v7481
        %v7643 = vpop.f32.mrb[0].mxu0
        %v7644 = vadd.f32 0.0, %v7643
        %v7645 = vpop.f32.mrb[0].mxu0
        %v7646 = vpop.f32.mrb[0].mxu0
        %v7647 = vadd.f32 0.0, %v7646
        %v7648 = vpop.f32.mrb[0].mxu0
        %7649 = vmatprep.mubr.bf16.mxu0 0
        %7650 = vmatmul.mubr.bf16.gmra.mrb[0].mxu0 %v7482
        %v7651 = vpop.f32.mrb[0].mxu0
        %v7652 = vadd.f32 0.0, %v7651
        %v7653 = vpop.f32.mrb[0].mxu0
        %v7654 = vpop.f32.mrb[0].mxu0
        %v7655 = vadd.f32 0.0, %v7654
        %v7656 = vpop.f32.mrb[0].mxu0
        %7657 = vmatprep.mubr.bf16.mxu0 0
        %7658 = vmatmul.mubr.bf16.gmra.mrb[0].mxu0 %v7483
        %v7659 = vpop.f32.mrb[0].mxu0
        %v7660 = vadd.f32 0.0, %v7659
        %v7661 = vpop.f32.mrb[0].mxu0
        %v7662 = vpop.f32.mrb[0].mxu0
        %v7663 = vadd.f32 0.0, %v7662
        %v7664 = vpop.f32.mrb[0].mxu0
        %7665 = vmatprep.mubr.bf16.mxu0 0
        %7666 = vmatmul.mubr.bf16.gmra.mrb[0].mxu0 %v7484
        %v7667 = vpop.f32.mrb[0].mxu0
        %v7668 = vadd.f32 0.0, %v7667
        %v7669 = vpop.f32.mrb[0].mxu0
        %v7670 = vpop.f32.mrb[0].mxu0
        %v7671 = vadd.f32 0.0, %v7670
        %v7672 = vpop.f32.mrb[0].mxu0
        %7673 = vmatprep.mubr.bf16.mxu0 0
        %7674 = vmatmul.mubr.bf16.gmra.mrb[0].mxu0 %v7485
        %v7675 = vpop.f32.mrb[0].mxu0
        %v7676 = vadd.f32 0.0, %v7675
        %v7677 = vpop.f32.mrb[0].mxu0
        %v7678 = vpop.f32.mrb[0].mxu0
        %v7679 = vadd.f32 0.0, %v7678
        %v7680 = vpop.f32.mrb[0].mxu0
        %7681 = vmatprep.mubr.bf16.mxu0 0
        %7682 = vmatmul.mubr.bf16.gmra.mrb[0].mxu0 %v7486
        %v7683 = vpop.f32.mrb[0].mxu0
        %v7684 = vadd.f32 0.0, %v7683
        %v7685 = vpop.f32.mrb[0].mxu0
        %v7686 = vpop.f32.mrb[0].mxu0
        %v7687 = vadd.f32 0.0, %v7686
        %v7688 = vpop.f32.mrb[0].mxu0
        %7689 = vmatprep.mubr.bf16.mxu0 0
        %7690 = vmatmul.mubr.bf16.gmra.mrb[0].mxu0 %v7487
        %v7691 = vpop.f32.mrb[0].mxu0
        %v7692 = vadd.f32 0.0, %v7691
        %v7693 = vpop.f32.mrb[0].mxu0
        %v7694 = vpop.f32.mrb[0].mxu0
        %v7695 = vadd.f32 0.0, %v7694
        %v7696 = vpop.f32.mrb[0].mxu0
        %7697 = vmatprep.mubr.bf16.mxu0 0
        %7698 = vmatmul.mubr.bf16.gmra.mrb[0].mxu0 %v7488
        %v7699 = vpop.f32.mrb[0].mxu0
        %v7700 = vadd.f32 0.0, %v7699
        %v7701 = vpop.f32.mrb[0].mxu0
        %v7702 = vpop.f32.mrb[0].mxu0
        %v7703 = vadd.f32 0.0, %v7702
        %v7704 = vpop.f32.mrb[0].mxu0
        %7705 = vmatprep.mubr.bf16.mxu0 0
        %7706 = vmatmul.mubr.bf16.gmra.mrb[0].mxu0 %v7489
        %v7707 = vpop.f32.mrb[0].mxu0
        %v7708 = vadd.f32 0.0, %v7707
        %v7709 = vpop.f32.mrb[0].mxu0
        %v7710 = vpop.f32.mrb[0].mxu0
        %v7711 = vadd.f32 0.0, %v7710
        %v7712 = vpop.f32.mrb[0].mxu0
        %7713 = vmatprep.mubr.bf16.mxu0 0
        %7714 = vmatmul.mubr.bf16.gmra.mrb[0].mxu0 %v7490
        %v7715 = vpop.f32.mrb[0].mxu0
        %v7716 = vadd.f32 0.0, %v7715
        %v7717 = vpop.f32.mrb[0].mxu0
        %v7718 = vpop.f32.mrb[0].mxu0
        %v7719 = vadd.f32 0.0, %v7718
        %v7720 = vpop.f32.mrb[0].mxu0
        %7721 = vmatprep.mubr.bf16.mxu0 0
        %7722 = vmatmul.mubr.bf16.gmra.mrb[0].mxu0 %v7491
        %v7723 = vpop.f32.mrb[0].mxu0
        %v7724 = vadd.f32 0.0, %v7723
        %v7725 = vpop.f32.mrb[0].mxu0
        %v7726 = vpop.f32.mrb[0].mxu0
        %v7727 = vadd.f32 0.0, %v7726
        %v7728 = vpop.f32.mrb[0].mxu0
        %7729 = vmatprep.mubr.bf16.mxu0 0
        %7730 = vmatmul.mubr.bf16.gmra.mrb[0].mxu0 %v7492
        %v7731 = vpop.f32.mrb[0].mxu0
        %v7732 = vadd.f32 0.0, %v7731
        %v7733 = vpop.f32.mrb[0].mxu0
        %v7734 = vpop.f32.mrb[0].mxu0
        %v7735 = vadd.f32 0.0, %v7734
        %v7736 = vpop.f32.mrb[0].mxu0
        %7737 = vmatprep.mubr.bf16.mxu0 0
        %7738 = vmatmul.mubr.bf16.gmra.mrb[0].mxu0 %v7493
        %v7739 = vpop.f32.mrb[0].mxu0
        %v7740 = vadd.f32 0.0, %v7739
        %v7741 = vpop.f32.mrb[0].mxu0
        %v7742 = vpop.f32.mrb[0].mxu0
        %v7743 = vadd.f32 0.0, %v7742
        %v7744 = vpop.f32.mrb[0].mxu0
        %7745 = vmatprep.mubr.bf16.mxu0 0
        %7746 = vmatmul.mubr.bf16.gmra.mrb[0].mxu0 %v7494
        %v7747 = vpop.f32.mrb[0].mxu0
        %v7748 = vadd.f32 0.0, %v7747
        %v7749 = vpop.f32.mrb[0].mxu0
        %v7750 = vpop.f32.mrb[0].mxu0
        %v7751 = vadd.f32 0.0, %v7750
        %v7752 = vpop.f32.mrb[0].mxu0
        %7753 = vmatprep.mubr.bf16.mxu0 0
        %7754 = vmatmul.mubr.bf16.gmra.mrb[0].mxu0 %v7495
        %v7755 = vpop.f32.mrb[0].mxu0
        %v7756 = vadd.f32 0.0, %v7755
        %v7757 = vpop.f32.mrb[0].mxu0
        %v7758 = vpop.f32.mrb[0].mxu0
        %v7759 = vadd.f32 0.0, %v7758
        %v7760 = vpop.f32.mrb[0].mxu0
        %7761 = vdwg.mxu0
        %v7762 = vadd.f32 %v7391, %v7596
        %v7763 = vadd.f32 %v7392, %v7599
        %v7764 = vadd.f32 %v7393, %v7604
        %v7765 = vadd.f32 %v7394, %v7607
        %v7766 = vadd.f32 %v7395, %v7612
        %v7767 = vadd.f32 %v7396, %v7615
        %v7768 = vadd.f32 %v7397, %v7620
        %v7769 = vadd.f32 %v7398, %v7623
        %v7770 = vadd.f32 %v7399, %v7628
        %v7771 = vadd.f32 %v7400, %v7631
        %v7772 = vadd.f32 %v7401, %v7636
        %v7773 = vadd.f32 %v7402, %v7639
        %v7774 = vadd.f32 %v7403, %v7644
        %v7775 = vadd.f32 %v7404, %v7647
        %v7776 = vadd.f32 %v7405, %v7652
        %v7777 = vadd.f32 %v7406, %v7655
        %v7778 = vadd.f32 %v7407, %v7660
        %v7779 = vadd.f32 %v7408, %v7663
        %v7780 = vadd.f32 %v7409, %v7668
        %v7781 = vadd.f32 %v7410, %v7671
        %v7782 = vadd.f32 %v7411, %v7676
        %v7783 = vadd.f32 %v7412, %v7679
        %v7784 = vadd.f32 %v7413, %v7684
        %v7785 = vadd.f32 %v7414, %v7687
        %v7786 = vadd.f32 %v7415, %v7692
        %v7787 = vadd.f32 %v7416, %v7695
        %v7788 = vadd.f32 %v7417, %v7700
        %v7789 = vadd.f32 %v7418, %v7703
        %v7790 = vadd.f32 %v7419, %v7708
        %v7791 = vadd.f32 %v7420, %v7711
        %v7792 = vadd.f32 %v7421, %v7716
        %v7793 = vadd.f32 %v7422, %v7719
        %v7794 = vadd.f32 %v7423, %v7724
        %v7795 = vadd.f32 %v7424, %v7727
        %v7796 = vadd.f32 %v7425, %v7732
        %v7797 = vadd.f32 %v7426, %v7735
        %v7798 = vadd.f32 %v7427, %v7740
        %v7799 = vadd.f32 %v7428, %v7743
        %v7800 = vadd.f32 %v7429, %v7748
        %v7801 = vadd.f32 %v7430, %v7751
        %v7802 = vadd.f32 %v7431, %v7756
        %v7803 = vadd.f32 %v7432, %v7759
        %v7804 = vld [vmem:[#allocation4 + $0x25] sm:$0xff]
        %v7805 = vld [vmem:[#allocation4 + $0x2d] sm:$0xff]
        %v7806 = vld [vmem:[#allocation4 + $0x35] sm:$0xff]
        %v7807 = vld [vmem:[#allocation4 + $0x3d] sm:$0xff]
        %v7808 = vld [vmem:[#allocation4 + $0x45] sm:$0xff]
        %v7809 = vld [vmem:[#allocation4 + $0x4d] sm:$0xff]
        %v7810 = vld [vmem:[#allocation4 + $0x55] sm:$0xff]
        %v7811 = vld [vmem:[#allocation4 + $0x5d] sm:$0xff]
        %v7812 = vld [vmem:[#allocation4 + $0x65] sm:$0xff]
        %v7813 = vld [vmem:[#allocation4 + $0x6d] sm:$0xff]
        %v7814 = vld [vmem:[#allocation4 + $0x75] sm:$0xff]
        %v7815 = vld [vmem:[#allocation4 + $0x7d] sm:$0xff]
        %v7816 = vld [vmem:[#allocation4 + $0x85] sm:$0xff]
        %v7817 = vld [vmem:[#allocation4 + $0x8d] sm:$0xff]
        %v7818 = vld [vmem:[#allocation4 + $0x95] sm:$0xff]
        %v7819 = vld [vmem:[#allocation4 + $0x9d] sm:$0xff]
        %v7820 = vld [vmem:[#allocation4 + $0xa5] sm:$0xff]
        %v7821 = vld [vmem:[#allocation4 + $0xad] sm:$0xff]
        %v7822 = vld [vmem:[#allocation4 + $0xb5] sm:$0xff]
        %v7823 = vld [vmem:[#allocation4 + $0xbd] sm:$0xff]
        %v7824 = vld [vmem:[#allocation4 + $0xc5] sm:$0xff]
        %v7825 = vld [vmem:[#allocation4 + $0xcd] sm:$0xff]
        %v7826 = vld [vmem:[#allocation4 + $0xd5] sm:$0xff]
        %v7827 = vld [vmem:[#allocation4 + $0xdd] sm:$0xff]
        %v7828 = vld [vmem:[#allocation4 + $0xe5] sm:$0xff]
        %v7829 = vld [vmem:[#allocation4 + $0xed] sm:$0xff]
        %v7830 = vld [vmem:[#allocation4 + $0xf5] sm:$0xff]
        %v7831 = vld [vmem:[#allocation4 + $0xfd] sm:$0xff]
        %v7832 = vld [vmem:[#allocation4 + $0x105] sm:$0xff]
        %v7833 = vld [vmem:[#allocation4 + $0x10d] sm:$0xff]
        %v7834 = vld [vmem:[#allocation4 + $0x115] sm:$0xff]
        %v7835 = vld [vmem:[#allocation4 + $0x11d] sm:$0xff]
        %v7836 = vld [vmem:[#allocation4 + $0x125] sm:$0xff]
        %v7837 = vld [vmem:[#allocation4 + $0x12d] sm:$0xff]
        %v7838 = vld [vmem:[#allocation4 + $0x135] sm:$0xff]
        %v7839 = vld [vmem:[#allocation4 + $0x13d] sm:$0xff]
        %v7840 = vld [vmem:[#allocation4 + $0x145] sm:$0xff]
        %v7841 = vld [vmem:[#allocation4 + $0x14d] sm:$0xff]
        %v7842 = vld [vmem:[#allocation4 + $0x155] sm:$0xff]
        %v7843 = vld [vmem:[#allocation4 + $0x15d] sm:$0xff]
        %v7844 = vld [vmem:[#allocation4 + $0x165] sm:$0xff]
        %v7845 = vld [vmem:[#allocation4 + $0x16d] sm:$0xff]
        %v7846 = vpack.c.bf16 %v7805, %v7804
        %v7847 = vpack.c.bf16 %v7807, %v7806
        %v7848 = vpack.c.bf16 %v7809, %v7808
        %v7849 = vpack.c.bf16 %v7811, %v7810
        %v7850 = vpack.c.bf16 %v7813, %v7812
        %v7851 = vpack.c.bf16 %v7815, %v7814
        %v7852 = vpack.c.bf16 %v7817, %v7816
        %v7853 = vpack.c.bf16 %v7819, %v7818
        %v7854 = vpack.c.bf16 %v7821, %v7820
        %v7855 = vpack.c.bf16 %v7823, %v7822
        %v7856 = vpack.c.bf16 %v7825, %v7824
        %v7857 = vpack.c.bf16 %v7827, %v7826
        %v7858 = vpack.c.bf16 %v7829, %v7828
        %v7859 = vpack.c.bf16 %v7831, %v7830
        %v7860 = vpack.c.bf16 %v7833, %v7832
        %v7861 = vpack.c.bf16 %v7835, %v7834
        %v7862 = vpack.c.bf16 %v7837, %v7836
        %v7863 = vpack.c.bf16 %v7839, %v7838
        %v7864 = vpack.c.bf16 %v7841, %v7840
        %v7865 = vpack.c.bf16 %v7843, %v7842
        %v7866 = vpack.c.bf16 %v7845, %v7844
        %s7867 = scalar_lea.vmem [#allocation11], 448
        %v7868 = vld [vmem:[%s7867] sm:$0xf]
        %v7869 = vld [vmem:[%s7867 + $0x4] sm:$0xf]
        %v7870 = vld [vmem:[%s7867 + $0x8] sm:$0xf]
        %v7871 = vld [vmem:[%s7867 + $0xc] sm:$0xf]
        %v7872 = vld [vmem:[%s7867 + $0x10] sm:$0xf]
        %v7873 = vld [vmem:[%s7867 + $0x14] sm:$0xf]
        %v7874 = vld [vmem:[%s7867 + $0x18] sm:$0xf]
        %v7875 = vld [vmem:[%s7867 + $0x1c] sm:$0xf]
        %v7876 = vld [vmem:[%s7867 + $0x20] sm:$0xf]
        %v7877 = vld [vmem:[%s7867 + $0x24] sm:$0xf]
        %v7878 = vld [vmem:[%s7867 + $0x28] sm:$0xf]
        %v7879 = vld [vmem:[%s7867 + $0x2c] sm:$0xf]
        %v7880 = vld [vmem:[%s7867 + $0x30] sm:$0xf]
        %v7881 = vld [vmem:[%s7867 + $0x34] sm:$0xf]
        %v7882 = vld [vmem:[%s7867 + $0x38] sm:$0xf]
        %v7883 = vld [vmem:[%s7867 + $0x3c] sm:$0xf]
        %v7900 = vunpack.c.l.b16 %v7868
        %v7901 = vunpack.c.l.b16 %v7869
        %v7902 = vunpack.c.l.b16 %v7870
        %v7903 = vunpack.c.l.b16 %v7871
        %v7904 = vunpack.c.l.b16 %v7872
        %v7905 = vunpack.c.l.b16 %v7873
        %v7906 = vunpack.c.l.b16 %v7874
        %v7907 = vunpack.c.l.b16 %v7875
        %v7908 = vunpack.c.l.b16 %v7876
        %v7909 = vunpack.c.l.b16 %v7877
        %v7910 = vunpack.c.l.b16 %v7878
        %v7911 = vunpack.c.l.b16 %v7879
        %v7912 = vunpack.c.l.b16 %v7880
        %v7913 = vunpack.c.l.b16 %v7881
        %v7914 = vunpack.c.l.b16 %v7882
        %v7915 = vunpack.c.l.b16 %v7883
        %v7916 = vpack.c.b16 %v7901, %v7900
        %v7917 = vpack.c.b16 %v7903, %v7902
        %v7918 = vpack.c.b16 %v7905, %v7904
        %v7919 = vpack.c.b16 %v7907, %v7906
        %v7920 = vpack.c.b16 %v7909, %v7908
        %v7921 = vpack.c.b16 %v7911, %v7910
        %v7922 = vpack.c.b16 %v7913, %v7912
        %v7923 = vpack.c.b16 %v7915, %v7914
        %7932 = vmatprep.subr.bf16.mxu0 0
        %7933 = vmatpush1.bf16.msra.mxu0 %v7916
        %7934 = vmatprep.subr.bf16.mxu0 0
        %7935 = vmatpush1.bf16.msra.mxu0 %v7917
        %7936 = vmatprep.subr.bf16.mxu0 0
        %7937 = vmatpush1.bf16.msra.mxu0 %v7918
        %7938 = vmatprep.subr.bf16.mxu0 0
        %7939 = vmatpush1.bf16.msra.mxu0 %v7919
        %7940 = vmatprep.subr.bf16.mxu0 0
        %7941 = vmatpush1.bf16.msra.mxu0 %v7920
        %7942 = vmatprep.subr.bf16.mxu0 0
        %7943 = vmatpush1.bf16.msra.mxu0 %v7921
        %7944 = vmatprep.subr.bf16.mxu0 0
        %7945 = vmatpush1.bf16.msra.mxu0 %v7922
        %7946 = vmatprep.subr.bf16.mxu0 0
        %7947 = vmatpush1.bf16.msra.mxu0 %v7923
        %7948 = vmatprep.subr.bf16.mxu0 0
        %7949 = vmatpush1.bf16.msra.mxu0 0
        %7950 = vmatprep.subr.bf16.mxu0 0
        %7951 = vmatpush1.bf16.msra.mxu0 0
        %7952 = vmatprep.subr.bf16.mxu0 0
        %7953 = vmatpush1.bf16.msra.mxu0 0
        %7954 = vmatprep.subr.bf16.mxu0 0
        %7955 = vmatpush1.bf16.msra.mxu0 0
        %7956 = vmatprep.subr.bf16.mxu0 0
        %7957 = vmatpush1.bf16.msra.mxu0 0
        %7958 = vmatprep.subr.bf16.mxu0 0
        %7959 = vmatpush1.bf16.msra.mxu0 0
        %7960 = vmatprep.subr.bf16.mxu0 0
        %7961 = vmatpush1.bf16.msra.mxu0 0
        %7962 = vmatprep.subr.bf16.mxu0 0
        %7963 = vmatpush1.bf16.msra.mxu0 0
        %7964 = vmatprep.mubr.bf16.mxu0 0
        %7965 = vmatmul.mubr.bf16.gmra.mrb[0].mxu0 %v7846
        %v7966 = vpop.f32.mrb[0].mxu0
        %v7967 = vadd.f32 0.0, %v7966
        %v7968 = vpop.f32.mrb[0].mxu0
        %v7969 = vpop.f32.mrb[0].mxu0
        %v7970 = vadd.f32 0.0, %v7969
        %v7971 = vpop.f32.mrb[0].mxu0
        %7972 = vmatprep.mubr.bf16.mxu0 0
        %7973 = vmatmul.mubr.bf16.gmra.mrb[0].mxu0 %v7847
        %v7974 = vpop.f32.mrb[0].mxu0
        %v7975 = vadd.f32 0.0, %v7974
        %v7976 = vpop.f32.mrb[0].mxu0
        %v7977 = vpop.f32.mrb[0].mxu0
        %v7978 = vadd.f32 0.0, %v7977
        %v7979 = vpop.f32.mrb[0].mxu0
        %7980 = vmatprep.mubr.bf16.mxu0 0
        %7981 = vmatmul.mubr.bf16.gmra.mrb[0].mxu0 %v7848
        %v7982 = vpop.f32.mrb[0].mxu0
        %v7983 = vadd.f32 0.0, %v7982
        %v7984 = vpop.f32.mrb[0].mxu0
        %v7985 = vpop.f32.mrb[0].mxu0
        %v7986 = vadd.f32 0.0, %v7985
        %v7987 = vpop.f32.mrb[0].mxu0
        %7988 = vmatprep.mubr.bf16.mxu0 0
        %7989 = vmatmul.mubr.bf16.gmra.mrb[0].mxu0 %v7849
        %v7990 = vpop.f32.mrb[0].mxu0
        %v7991 = vadd.f32 0.0, %v7990
        %v7992 = vpop.f32.mrb[0].mxu0
        %v7993 = vpop.f32.mrb[0].mxu0
        %v7994 = vadd.f32 0.0, %v7993
        %v7995 = vpop.f32.mrb[0].mxu0
        %7996 = vmatprep.mubr.bf16.mxu0 0
        %7997 = vmatmul.mubr.bf16.gmra.mrb[0].mxu0 %v7850
        %v7998 = vpop.f32.mrb[0].mxu0
        %v7999 = vadd.f32 0.0, %v7998
        %v8000 = vpop.f32.mrb[0].mxu0
        %v8001 = vpop.f32.mrb[0].mxu0
        %v8002 = vadd.f32 0.0, %v8001
        %v8003 = vpop.f32.mrb[0].mxu0
        %8004 = vmatprep.mubr.bf16.mxu0 0
        %8005 = vmatmul.mubr.bf16.gmra.mrb[0].mxu0 %v7851
        %v8006 = vpop.f32.mrb[0].mxu0
        %v8007 = vadd.f32 0.0, %v8006
        %v8008 = vpop.f32.mrb[0].mxu0
        %v8009 = vpop.f32.mrb[0].mxu0
        %v8010 = vadd.f32 0.0, %v8009
        %v8011 = vpop.f32.mrb[0].mxu0
        %8012 = vmatprep.mubr.bf16.mxu0 0
        %8013 = vmatmul.mubr.bf16.gmra.mrb[0].mxu0 %v7852
        %v8014 = vpop.f32.mrb[0].mxu0
        %v8015 = vadd.f32 0.0, %v8014
        %v8016 = vpop.f32.mrb[0].mxu0
        %v8017 = vpop.f32.mrb[0].mxu0
        %v8018 = vadd.f32 0.0, %v8017
        %v8019 = vpop.f32.mrb[0].mxu0
        %8020 = vmatprep.mubr.bf16.mxu0 0
        %8021 = vmatmul.mubr.bf16.gmra.mrb[0].mxu0 %v7853
        %v8022 = vpop.f32.mrb[0].mxu0
        %v8023 = vadd.f32 0.0, %v8022
        %v8024 = vpop.f32.mrb[0].mxu0
        %v8025 = vpop.f32.mrb[0].mxu0
        %v8026 = vadd.f32 0.0, %v8025
        %v8027 = vpop.f32.mrb[0].mxu0
        %8028 = vmatprep.mubr.bf16.mxu0 0
        %8029 = vmatmul.mubr.bf16.gmra.mrb[0].mxu0 %v7854
        %v8030 = vpop.f32.mrb[0].mxu0
        %v8031 = vadd.f32 0.0, %v8030
        %v8032 = vpop.f32.mrb[0].mxu0
        %v8033 = vpop.f32.mrb[0].mxu0
        %v8034 = vadd.f32 0.0, %v8033
        %v8035 = vpop.f32.mrb[0].mxu0
        %8036 = vmatprep.mubr.bf16.mxu0 0
        %8037 = vmatmul.mubr.bf16.gmra.mrb[0].mxu0 %v7855
        %v8038 = vpop.f32.mrb[0].mxu0
        %v8039 = vadd.f32 0.0, %v8038
        %v8040 = vpop.f32.mrb[0].mxu0
        %v8041 = vpop.f32.mrb[0].mxu0
        %v8042 = vadd.f32 0.0, %v8041
        %v8043 = vpop.f32.mrb[0].mxu0
        %8044 = vmatprep.mubr.bf16.mxu0 0
        %8045 = vmatmul.mubr.bf16.gmra.mrb[0].mxu0 %v7856
        %v8046 = vpop.f32.mrb[0].mxu0
        %v8047 = vadd.f32 0.0, %v8046
        %v8048 = vpop.f32.mrb[0].mxu0
        %v8049 = vpop.f32.mrb[0].mxu0
        %v8050 = vadd.f32 0.0, %v8049
        %v8051 = vpop.f32.mrb[0].mxu0
        %8052 = vmatprep.mubr.bf16.mxu0 0
        %8053 = vmatmul.mubr.bf16.gmra.mrb[0].mxu0 %v7857
        %v8054 = vpop.f32.mrb[0].mxu0
        %v8055 = vadd.f32 0.0, %v8054
        %v8056 = vpop.f32.mrb[0].mxu0
        %v8057 = vpop.f32.mrb[0].mxu0
        %v8058 = vadd.f32 0.0, %v8057
        %v8059 = vpop.f32.mrb[0].mxu0
        %8060 = vmatprep.mubr.bf16.mxu0 0
        %8061 = vmatmul.mubr.bf16.gmra.mrb[0].mxu0 %v7858
        %v8062 = vpop.f32.mrb[0].mxu0
        %v8063 = vadd.f32 0.0, %v8062
        %v8064 = vpop.f32.mrb[0].mxu0
        %v8065 = vpop.f32.mrb[0].mxu0
        %v8066 = vadd.f32 0.0, %v8065
        %v8067 = vpop.f32.mrb[0].mxu0
        %8068 = vmatprep.mubr.bf16.mxu0 0
        %8069 = vmatmul.mubr.bf16.gmra.mrb[0].mxu0 %v7859
        %v8070 = vpop.f32.mrb[0].mxu0
        %v8071 = vadd.f32 0.0, %v8070
        %v8072 = vpop.f32.mrb[0].mxu0
        %v8073 = vpop.f32.mrb[0].mxu0
        %v8074 = vadd.f32 0.0, %v8073
        %v8075 = vpop.f32.mrb[0].mxu0
        %8076 = vmatprep.mubr.bf16.mxu0 0
        %8077 = vmatmul.mubr.bf16.gmra.mrb[0].mxu0 %v7860
        %v8078 = vpop.f32.mrb[0].mxu0
        %v8079 = vadd.f32 0.0, %v8078
        %v8080 = vpop.f32.mrb[0].mxu0
        %v8081 = vpop.f32.mrb[0].mxu0
        %v8082 = vadd.f32 0.0, %v8081
        %v8083 = vpop.f32.mrb[0].mxu0
        %8084 = vmatprep.mubr.bf16.mxu0 0
        %8085 = vmatmul.mubr.bf16.gmra.mrb[0].mxu0 %v7861
        %v8086 = vpop.f32.mrb[0].mxu0
        %v8087 = vadd.f32 0.0, %v8086
        %v8088 = vpop.f32.mrb[0].mxu0
        %v8089 = vpop.f32.mrb[0].mxu0
        %v8090 = vadd.f32 0.0, %v8089
        %v8091 = vpop.f32.mrb[0].mxu0
        %8092 = vmatprep.mubr.bf16.mxu0 0
        %8093 = vmatmul.mubr.bf16.gmra.mrb[0].mxu0 %v7862
        %v8094 = vpop.f32.mrb[0].mxu0
        %v8095 = vadd.f32 0.0, %v8094
        %v8096 = vpop.f32.mrb[0].mxu0
        %v8097 = vpop.f32.mrb[0].mxu0
        %v8098 = vadd.f32 0.0, %v8097
        %v8099 = vpop.f32.mrb[0].mxu0
        %8100 = vmatprep.mubr.bf16.mxu0 0
        %8101 = vmatmul.mubr.bf16.gmra.mrb[0].mxu0 %v7863
        %v8102 = vpop.f32.mrb[0].mxu0
        %v8103 = vadd.f32 0.0, %v8102
        %v8104 = vpop.f32.mrb[0].mxu0
        %v8105 = vpop.f32.mrb[0].mxu0
        %v8106 = vadd.f32 0.0, %v8105
        %v8107 = vpop.f32.mrb[0].mxu0
        %8108 = vmatprep.mubr.bf16.mxu0 0
        %8109 = vmatmul.mubr.bf16.gmra.mrb[0].mxu0 %v7864
        %v8110 = vpop.f32.mrb[0].mxu0
        %v8111 = vadd.f32 0.0, %v8110
        %v8112 = vpop.f32.mrb[0].mxu0
        %v8113 = vpop.f32.mrb[0].mxu0
        %v8114 = vadd.f32 0.0, %v8113
        %v8115 = vpop.f32.mrb[0].mxu0
        %8116 = vmatprep.mubr.bf16.mxu0 0
        %8117 = vmatmul.mubr.bf16.gmra.mrb[0].mxu0 %v7865
        %v8118 = vpop.f32.mrb[0].mxu0
        %v8119 = vadd.f32 0.0, %v8118
        %v8120 = vpop.f32.mrb[0].mxu0
        %v8121 = vpop.f32.mrb[0].mxu0
        %v8122 = vadd.f32 0.0, %v8121
        %v8123 = vpop.f32.mrb[0].mxu0
        %8124 = vmatprep.mubr.bf16.mxu0 0
        %8125 = vmatmul.mubr.bf16.gmra.mrb[0].mxu0 %v7866
        %v8126 = vpop.f32.mrb[0].mxu0
        %v8127 = vadd.f32 0.0, %v8126
        %v8128 = vpop.f32.mrb[0].mxu0
        %v8129 = vpop.f32.mrb[0].mxu0
        %v8130 = vadd.f32 0.0, %v8129
        %v8131 = vpop.f32.mrb[0].mxu0
        %8132 = vdwg.mxu0
        %v8133 = vadd.f32 %v7762, %v7967
        %v8134 = vadd.f32 %v7763, %v7970
        %v8135 = vadd.f32 %v7764, %v7975
        %v8136 = vadd.f32 %v7765, %v7978
        %v8137 = vadd.f32 %v7766, %v7983
        %v8138 = vadd.f32 %v7767, %v7986
        %v8139 = vadd.f32 %v7768, %v7991
        %v8140 = vadd.f32 %v7769, %v7994
        %v8141 = vadd.f32 %v7770, %v7999
        %v8142 = vadd.f32 %v7771, %v8002
        %v8143 = vadd.f32 %v7772, %v8007
        %v8144 = vadd.f32 %v7773, %v8010
        %v8145 = vadd.f32 %v7774, %v8015
        %v8146 = vadd.f32 %v7775, %v8018
        %v8147 = vadd.f32 %v7776, %v8023
        %v8148 = vadd.f32 %v7777, %v8026
        %v8149 = vadd.f32 %v7778, %v8031
        %v8150 = vadd.f32 %v7779, %v8034
        %v8151 = vadd.f32 %v7780, %v8039
        %v8152 = vadd.f32 %v7781, %v8042
        %v8153 = vadd.f32 %v7782, %v8047
        %v8154 = vadd.f32 %v7783, %v8050
        %v8155 = vadd.f32 %v7784, %v8055
        %v8156 = vadd.f32 %v7785, %v8058
        %v8157 = vadd.f32 %v7786, %v8063
        %v8158 = vadd.f32 %v7787, %v8066
        %v8159 = vadd.f32 %v7788, %v8071
        %v8160 = vadd.f32 %v7789, %v8074
        %v8161 = vadd.f32 %v7790, %v8079
        %v8162 = vadd.f32 %v7791, %v8082
        %v8163 = vadd.f32 %v7792, %v8087
        %v8164 = vadd.f32 %v7793, %v8090
        %v8165 = vadd.f32 %v7794, %v8095
        %v8166 = vadd.f32 %v7795, %v8098
        %v8167 = vadd.f32 %v7796, %v8103
        %v8168 = vadd.f32 %v7797, %v8106
        %v8169 = vadd.f32 %v7798, %v8111
        %v8170 = vadd.f32 %v7799, %v8114
        %v8171 = vadd.f32 %v7800, %v8119
        %v8172 = vadd.f32 %v7801, %v8122
        %v8173 = vadd.f32 %v7802, %v8127
        %v8174 = vadd.f32 %v7803, %v8130
        %v8175 = vld [vmem:[#allocation4 + $0x26] sm:$0xff]
        %v8176 = vld [vmem:[#allocation4 + $0x2e] sm:$0xff]
        %v8177 = vld [vmem:[#allocation4 + $0x36] sm:$0xff]
        %v8178 = vld [vmem:[#allocation4 + $0x3e] sm:$0xff]
        %v8179 = vld [vmem:[#allocation4 + $0x46] sm:$0xff]
        %v8180 = vld [vmem:[#allocation4 + $0x4e] sm:$0xff]
        %v8181 = vld [vmem:[#allocation4 + $0x56] sm:$0xff]
        %v8182 = vld [vmem:[#allocation4 + $0x5e] sm:$0xff]
        %v8183 = vld [vmem:[#allocation4 + $0x66] sm:$0xff]
        %v8184 = vld [vmem:[#allocation4 + $0x6e] sm:$0xff]
        %v8185 = vld [vmem:[#allocation4 + $0x76] sm:$0xff]
        %v8186 = vld [vmem:[#allocation4 + $0x7e] sm:$0xff]
        %v8187 = vld [vmem:[#allocation4 + $0x86] sm:$0xff]
        %v8188 = vld [vmem:[#allocation4 + $0x8e] sm:$0xff]
        %v8189 = vld [vmem:[#allocation4 + $0x96] sm:$0xff]
        %v8190 = vld [vmem:[#allocation4 + $0x9e] sm:$0xff]
        %v8191 = vld [vmem:[#allocation4 + $0xa6] sm:$0xff]
        %v8192 = vld [vmem:[#allocation4 + $0xae] sm:$0xff]
        %v8193 = vld [vmem:[#allocation4 + $0xb6] sm:$0xff]
        %v8194 = vld [vmem:[#allocation4 + $0xbe] sm:$0xff]
        %v8195 = vld [vmem:[#allocation4 + $0xc6] sm:$0xff]
        %v8196 = vld [vmem:[#allocation4 + $0xce] sm:$0xff]
        %v8197 = vld [vmem:[#allocation4 + $0xd6] sm:$0xff]
        %v8198 = vld [vmem:[#allocation4 + $0xde] sm:$0xff]
        %v8199 = vld [vmem:[#allocation4 + $0xe6] sm:$0xff]
        %v8200 = vld [vmem:[#allocation4 + $0xee] sm:$0xff]
        %v8201 = vld [vmem:[#allocation4 + $0xf6] sm:$0xff]
        %v8202 = vld [vmem:[#allocation4 + $0xfe] sm:$0xff]
        %v8203 = vld [vmem:[#allocation4 + $0x106] sm:$0xff]
        %v8204 = vld [vmem:[#allocation4 + $0x10e] sm:$0xff]
        %v8205 = vld [vmem:[#allocation4 + $0x116] sm:$0xff]
        %v8206 = vld [vmem:[#allocation4 + $0x11e] sm:$0xff]
        %v8207 = vld [vmem:[#allocation4 + $0x126] sm:$0xff]
        %v8208 = vld [vmem:[#allocation4 + $0x12e] sm:$0xff]
        %v8209 = vld [vmem:[#allocation4 + $0x136] sm:$0xff]
        %v8210 = vld [vmem:[#allocation4 + $0x13e] sm:$0xff]
        %v8211 = vld [vmem:[#allocation4 + $0x146] sm:$0xff]
        %v8212 = vld [vmem:[#allocation4 + $0x14e] sm:$0xff]
        %v8213 = vld [vmem:[#allocation4 + $0x156] sm:$0xff]
        %v8214 = vld [vmem:[#allocation4 + $0x15e] sm:$0xff]
        %v8215 = vld [vmem:[#allocation4 + $0x166] sm:$0xff]
        %v8216 = vld [vmem:[#allocation4 + $0x16e] sm:$0xff]
        %v8217 = vpack.c.bf16 %v8176, %v8175
        %v8218 = vpack.c.bf16 %v8178, %v8177
        %v8219 = vpack.c.bf16 %v8180, %v8179
        %v8220 = vpack.c.bf16 %v8182, %v8181
        %v8221 = vpack.c.bf16 %v8184, %v8183
        %v8222 = vpack.c.bf16 %v8186, %v8185
        %v8223 = vpack.c.bf16 %v8188, %v8187
        %v8224 = vpack.c.bf16 %v8190, %v8189
        %v8225 = vpack.c.bf16 %v8192, %v8191
        %v8226 = vpack.c.bf16 %v8194, %v8193
        %v8227 = vpack.c.bf16 %v8196, %v8195
        %v8228 = vpack.c.bf16 %v8198, %v8197
        %v8229 = vpack.c.bf16 %v8200, %v8199
        %v8230 = vpack.c.bf16 %v8202, %v8201
        %v8231 = vpack.c.bf16 %v8204, %v8203
        %v8232 = vpack.c.bf16 %v8206, %v8205
        %v8233 = vpack.c.bf16 %v8208, %v8207
        %v8234 = vpack.c.bf16 %v8210, %v8209
        %v8235 = vpack.c.bf16 %v8212, %v8211
        %v8236 = vpack.c.bf16 %v8214, %v8213
        %v8237 = vpack.c.bf16 %v8216, %v8215
        %s8238 = scalar_lea.vmem [#allocation11], 512
        %v8239 = vld [vmem:[%s8238] sm:$0xf]
        %v8240 = vld [vmem:[%s8238 + $0x4] sm:$0xf]
        %v8241 = vld [vmem:[%s8238 + $0x8] sm:$0xf]
        %v8242 = vld [vmem:[%s8238 + $0xc] sm:$0xf]
        %v8243 = vld [vmem:[%s8238 + $0x10] sm:$0xf]
        %v8244 = vld [vmem:[%s8238 + $0x14] sm:$0xf]
        %v8245 = vld [vmem:[%s8238 + $0x18] sm:$0xf]
        %v8246 = vld [vmem:[%s8238 + $0x1c] sm:$0xf]
        %v8247 = vld [vmem:[%s8238 + $0x20] sm:$0xf]
        %v8248 = vld [vmem:[%s8238 + $0x24] sm:$0xf]
        %v8249 = vld [vmem:[%s8238 + $0x28] sm:$0xf]
        %v8250 = vld [vmem:[%s8238 + $0x2c] sm:$0xf]
        %v8251 = vld [vmem:[%s8238 + $0x30] sm:$0xf]
        %v8252 = vld [vmem:[%s8238 + $0x34] sm:$0xf]
        %v8253 = vld [vmem:[%s8238 + $0x38] sm:$0xf]
        %v8254 = vld [vmem:[%s8238 + $0x3c] sm:$0xf]
        %v8271 = vunpack.c.l.b16 %v8239
        %v8272 = vunpack.c.l.b16 %v8240
        %v8273 = vunpack.c.l.b16 %v8241
        %v8274 = vunpack.c.l.b16 %v8242
        %v8275 = vunpack.c.l.b16 %v8243
        %v8276 = vunpack.c.l.b16 %v8244
        %v8277 = vunpack.c.l.b16 %v8245
        %v8278 = vunpack.c.l.b16 %v8246
        %v8279 = vunpack.c.l.b16 %v8247
        %v8280 = vunpack.c.l.b16 %v8248
        %v8281 = vunpack.c.l.b16 %v8249
        %v8282 = vunpack.c.l.b16 %v8250
        %v8283 = vunpack.c.l.b16 %v8251
        %v8284 = vunpack.c.l.b16 %v8252
        %v8285 = vunpack.c.l.b16 %v8253
        %v8286 = vunpack.c.l.b16 %v8254
        %v8287 = vpack.c.b16 %v8272, %v8271
        %v8288 = vpack.c.b16 %v8274, %v8273
        %v8289 = vpack.c.b16 %v8276, %v8275
        %v8290 = vpack.c.b16 %v8278, %v8277
        %v8291 = vpack.c.b16 %v8280, %v8279
        %v8292 = vpack.c.b16 %v8282, %v8281
        %v8293 = vpack.c.b16 %v8284, %v8283
        %v8294 = vpack.c.b16 %v8286, %v8285
        %8303 = vmatprep.subr.bf16.mxu0 0
        %8304 = vmatpush1.bf16.msra.mxu0 %v8287
        %8305 = vmatprep.subr.bf16.mxu0 0
        %8306 = vmatpush1.bf16.msra.mxu0 %v8288
        %8307 = vmatprep.subr.bf16.mxu0 0
        %8308 = vmatpush1.bf16.msra.mxu0 %v8289
        %8309 = vmatprep.subr.bf16.mxu0 0
        %8310 = vmatpush1.bf16.msra.mxu0 %v8290
        %8311 = vmatprep.subr.bf16.mxu0 0
        %8312 = vmatpush1.bf16.msra.mxu0 %v8291
        %8313 = vmatprep.subr.bf16.mxu0 0
        %8314 = vmatpush1.bf16.msra.mxu0 %v8292
        %8315 = vmatprep.subr.bf16.mxu0 0
        %8316 = vmatpush1.bf16.msra.mxu0 %v8293
        %8317 = vmatprep.subr.bf16.mxu0 0
        %8318 = vmatpush1.bf16.msra.mxu0 %v8294
        %8319 = vmatprep.subr.bf16.mxu0 0
        %8320 = vmatpush1.bf16.msra.mxu0 0
        %8321 = vmatprep.subr.bf16.mxu0 0
        %8322 = vmatpush1.bf16.msra.mxu0 0
        %8323 = vmatprep.subr.bf16.mxu0 0
        %8324 = vmatpush1.bf16.msra.mxu0 0
        %8325 = vmatprep.subr.bf16.mxu0 0
        %8326 = vmatpush1.bf16.msra.mxu0 0
        %8327 = vmatprep.subr.bf16.mxu0 0
        %8328 = vmatpush1.bf16.msra.mxu0 0
        %8329 = vmatprep.subr.bf16.mxu0 0
        %8330 = vmatpush1.bf16.msra.mxu0 0
        %8331 = vmatprep.subr.bf16.mxu0 0
        %8332 = vmatpush1.bf16.msra.mxu0 0
        %8333 = vmatprep.subr.bf16.mxu0 0
        %8334 = vmatpush1.bf16.msra.mxu0 0
        %8335 = vmatprep.mubr.bf16.mxu0 0
        %8336 = vmatmul.mubr.bf16.gmra.mrb[0].mxu0 %v8217
        %v8337 = vpop.f32.mrb[0].mxu0
        %v8338 = vadd.f32 0.0, %v8337
        %v8339 = vpop.f32.mrb[0].mxu0
        %v8340 = vpop.f32.mrb[0].mxu0
        %v8341 = vadd.f32 0.0, %v8340
        %v8342 = vpop.f32.mrb[0].mxu0
        %8343 = vmatprep.mubr.bf16.mxu0 0
        %8344 = vmatmul.mubr.bf16.gmra.mrb[0].mxu0 %v8218
        %v8345 = vpop.f32.mrb[0].mxu0
        %v8346 = vadd.f32 0.0, %v8345
        %v8347 = vpop.f32.mrb[0].mxu0
        %v8348 = vpop.f32.mrb[0].mxu0
        %v8349 = vadd.f32 0.0, %v8348
        %v8350 = vpop.f32.mrb[0].mxu0
        %8351 = vmatprep.mubr.bf16.mxu0 0
        %8352 = vmatmul.mubr.bf16.gmra.mrb[0].mxu0 %v8219
        %v8353 = vpop.f32.mrb[0].mxu0
        %v8354 = vadd.f32 0.0, %v8353
        %v8355 = vpop.f32.mrb[0].mxu0
        %v8356 = vpop.f32.mrb[0].mxu0
        %v8357 = vadd.f32 0.0, %v8356
        %v8358 = vpop.f32.mrb[0].mxu0
        %8359 = vmatprep.mubr.bf16.mxu0 0
        %8360 = vmatmul.mubr.bf16.gmra.mrb[0].mxu0 %v8220
        %v8361 = vpop.f32.mrb[0].mxu0
        %v8362 = vadd.f32 0.0, %v8361
        %v8363 = vpop.f32.mrb[0].mxu0
        %v8364 = vpop.f32.mrb[0].mxu0
        %v8365 = vadd.f32 0.0, %v8364
        %v8366 = vpop.f32.mrb[0].mxu0
        %8367 = vmatprep.mubr.bf16.mxu0 0
        %8368 = vmatmul.mubr.bf16.gmra.mrb[0].mxu0 %v8221
        %v8369 = vpop.f32.mrb[0].mxu0
        %v8370 = vadd.f32 0.0, %v8369
        %v8371 = vpop.f32.mrb[0].mxu0
        %v8372 = vpop.f32.mrb[0].mxu0
        %v8373 = vadd.f32 0.0, %v8372
        %v8374 = vpop.f32.mrb[0].mxu0
        %8375 = vmatprep.mubr.bf16.mxu0 0
        %8376 = vmatmul.mubr.bf16.gmra.mrb[0].mxu0 %v8222
        %v8377 = vpop.f32.mrb[0].mxu0
        %v8378 = vadd.f32 0.0, %v8377
        %v8379 = vpop.f32.mrb[0].mxu0
        %v8380 = vpop.f32.mrb[0].mxu0
        %v8381 = vadd.f32 0.0, %v8380
        %v8382 = vpop.f32.mrb[0].mxu0
        %8383 = vmatprep.mubr.bf16.mxu0 0
        %8384 = vmatmul.mubr.bf16.gmra.mrb[0].mxu0 %v8223
        %v8385 = vpop.f32.mrb[0].mxu0
        %v8386 = vadd.f32 0.0, %v8385
        %v8387 = vpop.f32.mrb[0].mxu0
        %v8388 = vpop.f32.mrb[0].mxu0
        %v8389 = vadd.f32 0.0, %v8388
        %v8390 = vpop.f32.mrb[0].mxu0
        %8391 = vmatprep.mubr.bf16.mxu0 0
        %8392 = vmatmul.mubr.bf16.gmra.mrb[0].mxu0 %v8224
        %v8393 = vpop.f32.mrb[0].mxu0
        %v8394 = vadd.f32 0.0, %v8393
        %v8395 = vpop.f32.mrb[0].mxu0
        %v8396 = vpop.f32.mrb[0].mxu0
        %v8397 = vadd.f32 0.0, %v8396
        %v8398 = vpop.f32.mrb[0].mxu0
        %8399 = vmatprep.mubr.bf16.mxu0 0
        %8400 = vmatmul.mubr.bf16.gmra.mrb[0].mxu0 %v8225
        %v8401 = vpop.f32.mrb[0].mxu0
        %v8402 = vadd.f32 0.0, %v8401
        %v8403 = vpop.f32.mrb[0].mxu0
        %v8404 = vpop.f32.mrb[0].mxu0
        %v8405 = vadd.f32 0.0, %v8404
        %v8406 = vpop.f32.mrb[0].mxu0
        %8407 = vmatprep.mubr.bf16.mxu0 0
        %8408 = vmatmul.mubr.bf16.gmra.mrb[0].mxu0 %v8226
        %v8409 = vpop.f32.mrb[0].mxu0
        %v8410 = vadd.f32 0.0, %v8409
        %v8411 = vpop.f32.mrb[0].mxu0
        %v8412 = vpop.f32.mrb[0].mxu0
        %v8413 = vadd.f32 0.0, %v8412
        %v8414 = vpop.f32.mrb[0].mxu0
        %8415 = vmatprep.mubr.bf16.mxu0 0
        %8416 = vmatmul.mubr.bf16.gmra.mrb[0].mxu0 %v8227
        %v8417 = vpop.f32.mrb[0].mxu0
        %v8418 = vadd.f32 0.0, %v8417
        %v8419 = vpop.f32.mrb[0].mxu0
        %v8420 = vpop.f32.mrb[0].mxu0
        %v8421 = vadd.f32 0.0, %v8420
        %v8422 = vpop.f32.mrb[0].mxu0
        %8423 = vmatprep.mubr.bf16.mxu0 0
        %8424 = vmatmul.mubr.bf16.gmra.mrb[0].mxu0 %v8228
        %v8425 = vpop.f32.mrb[0].mxu0
        %v8426 = vadd.f32 0.0, %v8425
        %v8427 = vpop.f32.mrb[0].mxu0
        %v8428 = vpop.f32.mrb[0].mxu0
        %v8429 = vadd.f32 0.0, %v8428
        %v8430 = vpop.f32.mrb[0].mxu0
        %8431 = vmatprep.mubr.bf16.mxu0 0
        %8432 = vmatmul.mubr.bf16.gmra.mrb[0].mxu0 %v8229
        %v8433 = vpop.f32.mrb[0].mxu0
        %v8434 = vadd.f32 0.0, %v8433
        %v8435 = vpop.f32.mrb[0].mxu0
        %v8436 = vpop.f32.mrb[0].mxu0
        %v8437 = vadd.f32 0.0, %v8436
        %v8438 = vpop.f32.mrb[0].mxu0
        %8439 = vmatprep.mubr.bf16.mxu0 0
        %8440 = vmatmul.mubr.bf16.gmra.mrb[0].mxu0 %v8230
        %v8441 = vpop.f32.mrb[0].mxu0
        %v8442 = vadd.f32 0.0, %v8441
        %v8443 = vpop.f32.mrb[0].mxu0
        %v8444 = vpop.f32.mrb[0].mxu0
        %v8445 = vadd.f32 0.0, %v8444
        %v8446 = vpop.f32.mrb[0].mxu0
        %8447 = vmatprep.mubr.bf16.mxu0 0
        %8448 = vmatmul.mubr.bf16.gmra.mrb[0].mxu0 %v8231
        %v8449 = vpop.f32.mrb[0].mxu0
        %v8450 = vadd.f32 0.0, %v8449
        %v8451 = vpop.f32.mrb[0].mxu0
        %v8452 = vpop.f32.mrb[0].mxu0
        %v8453 = vadd.f32 0.0, %v8452
        %v8454 = vpop.f32.mrb[0].mxu0
        %8455 = vmatprep.mubr.bf16.mxu0 0
        %8456 = vmatmul.mubr.bf16.gmra.mrb[0].mxu0 %v8232
        %v8457 = vpop.f32.mrb[0].mxu0
        %v8458 = vadd.f32 0.0, %v8457
        %v8459 = vpop.f32.mrb[0].mxu0
        %v8460 = vpop.f32.mrb[0].mxu0
        %v8461 = vadd.f32 0.0, %v8460
        %v8462 = vpop.f32.mrb[0].mxu0
        %8463 = vmatprep.mubr.bf16.mxu0 0
        %8464 = vmatmul.mubr.bf16.gmra.mrb[0].mxu0 %v8233
        %v8465 = vpop.f32.mrb[0].mxu0
        %v8466 = vadd.f32 0.0, %v8465
        %v8467 = vpop.f32.mrb[0].mxu0
        %v8468 = vpop.f32.mrb[0].mxu0
        %v8469 = vadd.f32 0.0, %v8468
        %v8470 = vpop.f32.mrb[0].mxu0
        %8471 = vmatprep.mubr.bf16.mxu0 0
        %8472 = vmatmul.mubr.bf16.gmra.mrb[0].mxu0 %v8234
        %v8473 = vpop.f32.mrb[0].mxu0
        %v8474 = vadd.f32 0.0, %v8473
        %v8475 = vpop.f32.mrb[0].mxu0
        %v8476 = vpop.f32.mrb[0].mxu0
        %v8477 = vadd.f32 0.0, %v8476
        %v8478 = vpop.f32.mrb[0].mxu0
        %8479 = vmatprep.mubr.bf16.mxu0 0
        %8480 = vmatmul.mubr.bf16.gmra.mrb[0].mxu0 %v8235
        %v8481 = vpop.f32.mrb[0].mxu0
        %v8482 = vadd.f32 0.0, %v8481
        %v8483 = vpop.f32.mrb[0].mxu0
        %v8484 = vpop.f32.mrb[0].mxu0
        %v8485 = vadd.f32 0.0, %v8484
        %v8486 = vpop.f32.mrb[0].mxu0
        %8487 = vmatprep.mubr.bf16.mxu0 0
        %8488 = vmatmul.mubr.bf16.gmra.mrb[0].mxu0 %v8236
        %v8489 = vpop.f32.mrb[0].mxu0
        %v8490 = vadd.f32 0.0, %v8489
        %v8491 = vpop.f32.mrb[0].mxu0
        %v8492 = vpop.f32.mrb[0].mxu0
        %v8493 = vadd.f32 0.0, %v8492
        %v8494 = vpop.f32.mrb[0].mxu0
        %8495 = vmatprep.mubr.bf16.mxu0 0
        %8496 = vmatmul.mubr.bf16.gmra.mrb[0].mxu0 %v8237
        %v8497 = vpop.f32.mrb[0].mxu0
        %v8498 = vadd.f32 0.0, %v8497
        %v8499 = vpop.f32.mrb[0].mxu0
        %v8500 = vpop.f32.mrb[0].mxu0
        %v8501 = vadd.f32 0.0, %v8500
        %v8502 = vpop.f32.mrb[0].mxu0
        %8503 = vdwg.mxu0
        %v8504 = vadd.f32 %v8133, %v8338
        %v8505 = vadd.f32 %v8134, %v8341
        %v8506 = vadd.f32 %v8135, %v8346
        %v8507 = vadd.f32 %v8136, %v8349
        %v8508 = vadd.f32 %v8137, %v8354
        %v8509 = vadd.f32 %v8138, %v8357
        %v8510 = vadd.f32 %v8139, %v8362
        %v8511 = vadd.f32 %v8140, %v8365
        %v8512 = vadd.f32 %v8141, %v8370
        %v8513 = vadd.f32 %v8142, %v8373
        %v8514 = vadd.f32 %v8143, %v8378
        %v8515 = vadd.f32 %v8144, %v8381
        %v8516 = vadd.f32 %v8145, %v8386
        %v8517 = vadd.f32 %v8146, %v8389
        %v8518 = vadd.f32 %v8147, %v8394
        %v8519 = vadd.f32 %v8148, %v8397
        %v8520 = vadd.f32 %v8149, %v8402
        %v8521 = vadd.f32 %v8150, %v8405
        %v8522 = vadd.f32 %v8151, %v8410
        %v8523 = vadd.f32 %v8152, %v8413
        %v8524 = vadd.f32 %v8153, %v8418
        %v8525 = vadd.f32 %v8154, %v8421
        %v8526 = vadd.f32 %v8155, %v8426
        %v8527 = vadd.f32 %v8156, %v8429
        %v8528 = vadd.f32 %v8157, %v8434
        %v8529 = vadd.f32 %v8158, %v8437
        %v8530 = vadd.f32 %v8159, %v8442
        %v8531 = vadd.f32 %v8160, %v8445
        %v8532 = vadd.f32 %v8161, %v8450
        %v8533 = vadd.f32 %v8162, %v8453
        %v8534 = vadd.f32 %v8163, %v8458
        %v8535 = vadd.f32 %v8164, %v8461
        %v8536 = vadd.f32 %v8165, %v8466
        %v8537 = vadd.f32 %v8166, %v8469
        %v8538 = vadd.f32 %v8167, %v8474
        %v8539 = vadd.f32 %v8168, %v8477
        %v8540 = vadd.f32 %v8169, %v8482
        %v8541 = vadd.f32 %v8170, %v8485
        %v8542 = vadd.f32 %v8171, %v8490
        %v8543 = vadd.f32 %v8172, %v8493
        %v8544 = vadd.f32 %v8173, %v8498
        %v8545 = vadd.f32 %v8174, %v8501
        %v8546 = vld [vmem:[#allocation12] sm:$0x1]
        %v8548 = vlaneseq
        %v8549 = vshrl.u32 %v8548, 7
        %v8550 = vsub.s32 0, %v8549
        %v8551 = vrot.slane %v8546, %v8550
        %v8553 = vadd.f32 %v8504, %v8551
        %v8554 = vadd.f32 %v8505, %v8551
        %v8555 = vadd.f32 %v8506, %v8551
        %v8556 = vadd.f32 %v8507, %v8551
        %v8557 = vadd.f32 %v8508, %v8551
        %v8558 = vadd.f32 %v8509, %v8551
        %v8559 = vadd.f32 %v8510, %v8551
        %v8560 = vadd.f32 %v8511, %v8551
        %v8561 = vadd.f32 %v8512, %v8551
        %v8562 = vadd.f32 %v8513, %v8551
        %v8563 = vadd.f32 %v8514, %v8551
        %v8564 = vadd.f32 %v8515, %v8551
        %v8565 = vadd.f32 %v8516, %v8551
        %v8566 = vadd.f32 %v8517, %v8551
        %v8567 = vadd.f32 %v8518, %v8551
        %v8568 = vadd.f32 %v8519, %v8551
        %v8569 = vadd.f32 %v8520, %v8551
        %v8570 = vadd.f32 %v8521, %v8551
        %v8571 = vadd.f32 %v8522, %v8551
        %v8572 = vadd.f32 %v8523, %v8551
        %v8573 = vadd.f32 %v8524, %v8551
        %v8574 = vadd.f32 %v8525, %v8551
        %v8575 = vadd.f32 %v8526, %v8551
        %v8576 = vadd.f32 %v8527, %v8551
        %v8577 = vadd.f32 %v8528, %v8551
        %v8578 = vadd.f32 %v8529, %v8551
        %v8579 = vadd.f32 %v8530, %v8551
        %v8580 = vadd.f32 %v8531, %v8551
        %v8581 = vadd.f32 %v8532, %v8551
        %v8582 = vadd.f32 %v8533, %v8551
        %v8583 = vadd.f32 %v8534, %v8551
        %v8584 = vadd.f32 %v8535, %v8551
        %v8585 = vadd.f32 %v8536, %v8551
        %v8586 = vadd.f32 %v8537, %v8551
        %v8587 = vadd.f32 %v8538, %v8551
        %v8588 = vadd.f32 %v8539, %v8551
        %v8589 = vadd.f32 %v8540, %v8551
        %v8590 = vadd.f32 %v8541, %v8551
        %v8591 = vadd.f32 %v8542, %v8551
        %v8592 = vadd.f32 %v8543, %v8551
        %v8593 = vadd.f32 %v8544, %v8551
        %v8594 = vadd.f32 %v8545, %v8551
        %v8595 = vsub.f32 0.0, %v8553
        %v8596 = vsub.f32 0.0, %v8554
        %v8597 = vsub.f32 0.0, %v8555
        %v8598 = vsub.f32 0.0, %v8556
        %v8599 = vsub.f32 0.0, %v8557
        %v8600 = vsub.f32 0.0, %v8558
        %v8601 = vsub.f32 0.0, %v8559
        %v8602 = vsub.f32 0.0, %v8560
        %v8603 = vsub.f32 0.0, %v8561
        %v8604 = vsub.f32 0.0, %v8562
        %v8605 = vsub.f32 0.0, %v8563
        %v8606 = vsub.f32 0.0, %v8564
        %v8607 = vsub.f32 0.0, %v8565
        %v8608 = vsub.f32 0.0, %v8566
        %v8609 = vsub.f32 0.0, %v8567
        %v8610 = vsub.f32 0.0, %v8568
        %v8611 = vsub.f32 0.0, %v8569
        %v8612 = vsub.f32 0.0, %v8570
        %v8613 = vsub.f32 0.0, %v8571
        %v8614 = vsub.f32 0.0, %v8572
        %v8615 = vsub.f32 0.0, %v8573
        %v8616 = vsub.f32 0.0, %v8574
        %v8617 = vsub.f32 0.0, %v8575
        %v8618 = vsub.f32 0.0, %v8576
        %v8619 = vsub.f32 0.0, %v8577
        %v8620 = vsub.f32 0.0, %v8578
        %v8621 = vsub.f32 0.0, %v8579
        %v8622 = vsub.f32 0.0, %v8580
        %v8623 = vsub.f32 0.0, %v8581
        %v8624 = vsub.f32 0.0, %v8582
        %v8625 = vsub.f32 0.0, %v8583
        %v8626 = vsub.f32 0.0, %v8584
        %v8627 = vsub.f32 0.0, %v8585
        %v8628 = vsub.f32 0.0, %v8586
        %v8629 = vsub.f32 0.0, %v8587
        %v8630 = vsub.f32 0.0, %v8588
        %v8631 = vsub.f32 0.0, %v8589
        %v8632 = vsub.f32 0.0, %v8590
        %v8633 = vsub.f32 0.0, %v8591
        %v8634 = vsub.f32 0.0, %v8592
        %v8635 = vsub.f32 0.0, %v8593
        %v8636 = vsub.f32 0.0, %v8594
        %v8637 = vmul.f32 %v8595, 1.442695
        %v8638 = vpow.pop %v8637
        %v8639 = vmul.f32 %v8596, 1.442695
        %v8640 = vpow.pop %v8639
        %v8641 = vmul.f32 %v8597, 1.442695
        %v8642 = vpow.pop %v8641
        %v8643 = vmul.f32 %v8598, 1.442695
        %v8644 = vpow.pop %v8643
        %v8645 = vmul.f32 %v8599, 1.442695
        %v8646 = vpow.pop %v8645
        %v8647 = vmul.f32 %v8600, 1.442695
        %v8648 = vpow.pop %v8647
        %v8649 = vmul.f32 %v8601, 1.442695
        %v8650 = vpow.pop %v8649
        %v8651 = vmul.f32 %v8602, 1.442695
        %v8652 = vpow.pop %v8651
        %v8653 = vmul.f32 %v8603, 1.442695
        %v8654 = vpow.pop %v8653
        %v8655 = vmul.f32 %v8604, 1.442695
        %v8656 = vpow.pop %v8655
        %v8657 = vmul.f32 %v8605, 1.442695
        %v8658 = vpow.pop %v8657
        %v8659 = vmul.f32 %v8606, 1.442695
        %v8660 = vpow.pop %v8659
        %v8661 = vmul.f32 %v8607, 1.442695
        %v8662 = vpow.pop %v8661
        %v8663 = vmul.f32 %v8608, 1.442695
        %v8664 = vpow.pop %v8663
        %v8665 = vmul.f32 %v8609, 1.442695
        %v8666 = vpow.pop %v8665
        %v8667 = vmul.f32 %v8610, 1.442695
        %v8668 = vpow.pop %v8667
        %v8669 = vmul.f32 %v8611, 1.442695
        %v8670 = vpow.pop %v8669
        %v8671 = vmul.f32 %v8612, 1.442695
        %v8672 = vpow.pop %v8671
        %v8673 = vmul.f32 %v8613, 1.442695
        %v8674 = vpow.pop %v8673
        %v8675 = vmul.f32 %v8614, 1.442695
        %v8676 = vpow.pop %v8675
        %v8677 = vmul.f32 %v8615, 1.442695
        %v8678 = vpow.pop %v8677
        %v8679 = vmul.f32 %v8616, 1.442695
        %v8680 = vpow.pop %v8679
        %v8681 = vmul.f32 %v8617, 1.442695
        %v8682 = vpow.pop %v8681
        %v8683 = vmul.f32 %v8618, 1.442695
        %v8684 = vpow.pop %v8683
        %v8685 = vmul.f32 %v8619, 1.442695
        %v8686 = vpow.pop %v8685
        %v8687 = vmul.f32 %v8620, 1.442695
        %v8688 = vpow.pop %v8687
        %v8689 = vmul.f32 %v8621, 1.442695
        %v8690 = vpow.pop %v8689
        %v8691 = vmul.f32 %v8622, 1.442695
        %v8692 = vpow.pop %v8691
        %v8693 = vmul.f32 %v8623, 1.442695
        %v8694 = vpow.pop %v8693
        %v8695 = vmul.f32 %v8624, 1.442695
        %v8696 = vpow.pop %v8695
        %v8697 = vmul.f32 %v8625, 1.442695
        %v8698 = vpow.pop %v8697
        %v8699 = vmul.f32 %v8626, 1.442695
        %v8700 = vpow.pop %v8699
        %v8701 = vmul.f32 %v8627, 1.442695
        %v8702 = vpow.pop %v8701
        %v8703 = vmul.f32 %v8628, 1.442695
        %v8704 = vpow.pop %v8703
        %v8705 = vmul.f32 %v8629, 1.442695
        %v8706 = vpow.pop %v8705
        %v8707 = vmul.f32 %v8630, 1.442695
        %v8708 = vpow.pop %v8707
        %v8709 = vmul.f32 %v8631, 1.442695
        %v8710 = vpow.pop %v8709
        %v8711 = vmul.f32 %v8632, 1.442695
        %v8712 = vpow.pop %v8711
        %v8713 = vmul.f32 %v8633, 1.442695
        %v8714 = vpow.pop %v8713
        %v8715 = vmul.f32 %v8634, 1.442695
        %v8716 = vpow.pop %v8715
        %v8717 = vmul.f32 %v8635, 1.442695
        %v8718 = vpow.pop %v8717
        %v8719 = vmul.f32 %v8636, 1.442695
        %v8720 = vpow.pop %v8719
        %v8721 = vadd.f32 %v8638, 1.0
        %v8722 = vadd.f32 %v8640, 1.0
        %v8723 = vadd.f32 %v8642, 1.0
        %v8724 = vadd.f32 %v8644, 1.0
        %v8725 = vadd.f32 %v8646, 1.0
        %v8726 = vadd.f32 %v8648, 1.0
        %v8727 = vadd.f32 %v8650, 1.0
        %v8728 = vadd.f32 %v8652, 1.0
        %v8729 = vadd.f32 %v8654, 1.0
        %v8730 = vadd.f32 %v8656, 1.0
        %v8731 = vadd.f32 %v8658, 1.0
        %v8732 = vadd.f32 %v8660, 1.0
        %v8733 = vadd.f32 %v8662, 1.0
        %v8734 = vadd.f32 %v8664, 1.0
        %v8735 = vadd.f32 %v8666, 1.0
        %v8736 = vadd.f32 %v8668, 1.0
        %v8737 = vadd.f32 %v8670, 1.0
        %v8738 = vadd.f32 %v8672, 1.0
        %v8739 = vadd.f32 %v8674, 1.0
        %v8740 = vadd.f32 %v8676, 1.0
        %v8741 = vadd.f32 %v8678, 1.0
        %v8742 = vadd.f32 %v8680, 1.0
        %v8743 = vadd.f32 %v8682, 1.0
        %v8744 = vadd.f32 %v8684, 1.0
        %v8745 = vadd.f32 %v8686, 1.0
        %v8746 = vadd.f32 %v8688, 1.0
        %v8747 = vadd.f32 %v8690, 1.0
        %v8748 = vadd.f32 %v8692, 1.0
        %v8749 = vadd.f32 %v8694, 1.0
        %v8750 = vadd.f32 %v8696, 1.0
        %v8751 = vadd.f32 %v8698, 1.0
        %v8752 = vadd.f32 %v8700, 1.0
        %v8753 = vadd.f32 %v8702, 1.0
        %v8754 = vadd.f32 %v8704, 1.0
        %v8755 = vadd.f32 %v8706, 1.0
        %v8756 = vadd.f32 %v8708, 1.0
        %v8757 = vadd.f32 %v8710, 1.0
        %v8758 = vadd.f32 %v8712, 1.0
        %v8759 = vadd.f32 %v8714, 1.0
        %v8760 = vadd.f32 %v8716, 1.0
        %v8761 = vadd.f32 %v8718, 1.0
        %v8762 = vadd.f32 %v8720, 1.0
        %v8763 = vrcp.pop %v8721
        %v8764 = vrcp.pop %v8722
        %v8765 = vrcp.pop %v8723
        %v8766 = vrcp.pop %v8724
        %v8767 = vrcp.pop %v8725
        %v8768 = vrcp.pop %v8726
        %v8769 = vrcp.pop %v8727
        %v8770 = vrcp.pop %v8728
        %v8771 = vrcp.pop %v8729
        %v8772 = vrcp.pop %v8730
        %v8773 = vrcp.pop %v8731
        %v8774 = vrcp.pop %v8732
        %v8775 = vrcp.pop %v8733
        %v8776 = vrcp.pop %v8734
        %v8777 = vrcp.pop %v8735
        %v8778 = vrcp.pop %v8736
        %v8779 = vrcp.pop %v8737
        %v8780 = vrcp.pop %v8738
        %v8781 = vrcp.pop %v8739
        %v8782 = vrcp.pop %v8740
        %v8783 = vrcp.pop %v8741
        %v8784 = vrcp.pop %v8742
        %v8785 = vrcp.pop %v8743
        %v8786 = vrcp.pop %v8744
        %v8787 = vrcp.pop %v8745
        %v8788 = vrcp.pop %v8746
        %v8789 = vrcp.pop %v8747
        %v8790 = vrcp.pop %v8748
        %v8791 = vrcp.pop %v8749
        %v8792 = vrcp.pop %v8750
        %v8793 = vrcp.pop %v8751
        %v8794 = vrcp.pop %v8752
        %v8795 = vrcp.pop %v8753
        %v8796 = vrcp.pop %v8754
        %v8797 = vrcp.pop %v8755
        %v8798 = vrcp.pop %v8756
        %v8799 = vrcp.pop %v8757
        %v8800 = vrcp.pop %v8758
        %v8801 = vrcp.pop %v8759
        %v8802 = vrcp.pop %v8760
        %v8803 = vrcp.pop %v8761
        %v8804 = vrcp.pop %v8762
        %v8805 = vmul.f32 %v8553, %v8763
        %v8806 = vmul.f32 %v8554, %v8764
        %v8807 = vmul.f32 %v8555, %v8765
        %v8808 = vmul.f32 %v8556, %v8766
        %v8809 = vmul.f32 %v8557, %v8767
        %v8810 = vmul.f32 %v8558, %v8768
        %v8811 = vmul.f32 %v8559, %v8769
        %v8812 = vmul.f32 %v8560, %v8770
        %v8813 = vmul.f32 %v8561, %v8771
        %v8814 = vmul.f32 %v8562, %v8772
        %v8815 = vmul.f32 %v8563, %v8773
        %v8816 = vmul.f32 %v8564, %v8774
        %v8817 = vmul.f32 %v8565, %v8775
        %v8818 = vmul.f32 %v8566, %v8776
        %v8819 = vmul.f32 %v8567, %v8777
        %v8820 = vmul.f32 %v8568, %v8778
        %v8821 = vmul.f32 %v8569, %v8779
        %v8822 = vmul.f32 %v8570, %v8780
        %v8823 = vmul.f32 %v8571, %v8781
        %v8824 = vmul.f32 %v8572, %v8782
        %v8825 = vmul.f32 %v8573, %v8783
        %v8826 = vmul.f32 %v8574, %v8784
        %v8827 = vmul.f32 %v8575, %v8785
        %v8828 = vmul.f32 %v8576, %v8786
        %v8829 = vmul.f32 %v8577, %v8787
        %v8830 = vmul.f32 %v8578, %v8788
        %v8831 = vmul.f32 %v8579, %v8789
        %v8832 = vmul.f32 %v8580, %v8790
        %v8833 = vmul.f32 %v8581, %v8791
        %v8834 = vmul.f32 %v8582, %v8792
        %v8835 = vmul.f32 %v8583, %v8793
        %v8836 = vmul.f32 %v8584, %v8794
        %v8837 = vmul.f32 %v8585, %v8795
        %v8838 = vmul.f32 %v8586, %v8796
        %v8839 = vmul.f32 %v8587, %v8797
        %v8840 = vmul.f32 %v8588, %v8798
        %v8841 = vmul.f32 %v8589, %v8799
        %v8842 = vmul.f32 %v8590, %v8800
        %v8843 = vmul.f32 %v8591, %v8801
        %v8844 = vmul.f32 %v8592, %v8802
        %v8845 = vmul.f32 %v8593, %v8803
        %v8846 = vmul.f32 %v8594, %v8804
        %v8847 = vld [vmem:[#allocation3 + $0x26] sm:$0xff]
        %v8848 = vld [vmem:[#allocation3 + $0x2e] sm:$0xff]
        %v8849 = vld [vmem:[#allocation3 + $0x36] sm:$0xff]
        %v8850 = vld [vmem:[#allocation3 + $0x3e] sm:$0xff]
        %v8851 = vld [vmem:[#allocation3 + $0x46] sm:$0xff]
        %v8852 = vld [vmem:[#allocation3 + $0x4e] sm:$0xff]
        %v8853 = vld [vmem:[#allocation3 + $0x56] sm:$0xff]
        %v8854 = vld [vmem:[#allocation3 + $0x5e] sm:$0xff]
        %v8855 = vld [vmem:[#allocation3 + $0x66] sm:$0xff]
        %v8856 = vld [vmem:[#allocation3 + $0x6e] sm:$0xff]
        %v8857 = vld [vmem:[#allocation3 + $0x76] sm:$0xff]
        %v8858 = vld [vmem:[#allocation3 + $0x7e] sm:$0xff]
        %v8859 = vld [vmem:[#allocation3 + $0x86] sm:$0xff]
        %v8860 = vld [vmem:[#allocation3 + $0x8e] sm:$0xff]
        %v8861 = vld [vmem:[#allocation3 + $0x96] sm:$0xff]
        %v8862 = vld [vmem:[#allocation3 + $0x9e] sm:$0xff]
        %v8863 = vld [vmem:[#allocation3 + $0xa6] sm:$0xff]
        %v8864 = vld [vmem:[#allocation3 + $0xae] sm:$0xff]
        %v8865 = vld [vmem:[#allocation3 + $0xb6] sm:$0xff]
        %v8866 = vld [vmem:[#allocation3 + $0xbe] sm:$0xff]
        %v8867 = vld [vmem:[#allocation3 + $0xc6] sm:$0xff]
        %v8868 = vld [vmem:[#allocation3 + $0xce] sm:$0xff]
        %v8869 = vld [vmem:[#allocation3 + $0xd6] sm:$0xff]
        %v8870 = vld [vmem:[#allocation3 + $0xde] sm:$0xff]
        %v8871 = vld [vmem:[#allocation3 + $0xe6] sm:$0xff]
        %v8872 = vld [vmem:[#allocation3 + $0xee] sm:$0xff]
        %v8873 = vld [vmem:[#allocation3 + $0xf6] sm:$0xff]
        %v8874 = vld [vmem:[#allocation3 + $0xfe] sm:$0xff]
        %v8875 = vld [vmem:[#allocation3 + $0x106] sm:$0xff]
        %v8876 = vld [vmem:[#allocation3 + $0x10e] sm:$0xff]
        %v8877 = vld [vmem:[#allocation3 + $0x116] sm:$0xff]
        %v8878 = vld [vmem:[#allocation3 + $0x11e] sm:$0xff]
        %v8879 = vld [vmem:[#allocation3 + $0x126] sm:$0xff]
        %v8880 = vld [vmem:[#allocation3 + $0x12e] sm:$0xff]
        %v8881 = vld [vmem:[#allocation3 + $0x136] sm:$0xff]
        %v8882 = vld [vmem:[#allocation3 + $0x13e] sm:$0xff]
        %v8883 = vld [vmem:[#allocation3 + $0x146] sm:$0xff]
        %v8884 = vld [vmem:[#allocation3 + $0x14e] sm:$0xff]
        %v8885 = vld [vmem:[#allocation3 + $0x156] sm:$0xff]
        %v8886 = vld [vmem:[#allocation3 + $0x15e] sm:$0xff]
        %v8887 = vld [vmem:[#allocation3 + $0x166] sm:$0xff]
        %v8888 = vld [vmem:[#allocation3 + $0x16e] sm:$0xff]
        %v8889 = vadd.f32 %v8805, %v8847
        %v8890 = vadd.f32 %v8806, %v8848
        %v8891 = vadd.f32 %v8807, %v8849
        %v8892 = vadd.f32 %v8808, %v8850
        %v8893 = vadd.f32 %v8809, %v8851
        %v8894 = vadd.f32 %v8810, %v8852
        %v8895 = vadd.f32 %v8811, %v8853
        %v8896 = vadd.f32 %v8812, %v8854
        %v8897 = vadd.f32 %v8813, %v8855
        %v8898 = vadd.f32 %v8814, %v8856
        %v8899 = vadd.f32 %v8815, %v8857
        %v8900 = vadd.f32 %v8816, %v8858
        %v8901 = vadd.f32 %v8817, %v8859
        %v8902 = vadd.f32 %v8818, %v8860
        %v8903 = vadd.f32 %v8819, %v8861
        %v8904 = vadd.f32 %v8820, %v8862
        %v8905 = vadd.f32 %v8821, %v8863
        %v8906 = vadd.f32 %v8822, %v8864
        %v8907 = vadd.f32 %v8823, %v8865
        %v8908 = vadd.f32 %v8824, %v8866
        %v8909 = vadd.f32 %v8825, %v8867
        %v8910 = vadd.f32 %v8826, %v8868
        %v8911 = vadd.f32 %v8827, %v8869
        %v8912 = vadd.f32 %v8828, %v8870
        %v8913 = vadd.f32 %v8829, %v8871
        %v8914 = vadd.f32 %v8830, %v8872
        %v8915 = vadd.f32 %v8831, %v8873
        %v8916 = vadd.f32 %v8832, %v8874
        %v8917 = vadd.f32 %v8833, %v8875
        %v8918 = vadd.f32 %v8834, %v8876
        %v8919 = vadd.f32 %v8835, %v8877
        %v8920 = vadd.f32 %v8836, %v8878
        %v8921 = vadd.f32 %v8837, %v8879
        %v8922 = vadd.f32 %v8838, %v8880
        %v8923 = vadd.f32 %v8839, %v8881
        %v8924 = vadd.f32 %v8840, %v8882
        %v8925 = vadd.f32 %v8841, %v8883
        %v8926 = vadd.f32 %v8842, %v8884
        %v8927 = vadd.f32 %v8843, %v8885
        %v8928 = vadd.f32 %v8844, %v8886
        %v8929 = vadd.f32 %v8845, %v8887
        %v8930 = vadd.f32 %v8846, %v8888
        %8931 = vst [vmem:[%s245] sm:$0xff] %v8889
        %8932 = vst [vmem:[%s245 + $0x8] sm:$0xff] %v8890
        %8933 = vst [vmem:[%s245 + $0x10] sm:$0xff] %v8891
        %8934 = vst [vmem:[%s245 + $0x18] sm:$0xff] %v8892
        %8935 = vst [vmem:[%s245 + $0x20] sm:$0xff] %v8893
        %8936 = vst [vmem:[%s245 + $0x28] sm:$0xff] %v8894
        %8937 = vst [vmem:[%s245 + $0x30] sm:$0xff] %v8895
        %8938 = vst [vmem:[%s245 + $0x38] sm:$0xff] %v8896
        %8939 = vst [vmem:[%s245 + $0x40] sm:$0xff] %v8897
        %8940 = vst [vmem:[%s245 + $0x48] sm:$0xff] %v8898
        %8941 = vst [vmem:[%s245 + $0x50] sm:$0xff] %v8899
        %8942 = vst [vmem:[%s245 + $0x58] sm:$0xff] %v8900
        %8943 = vst [vmem:[%s245 + $0x60] sm:$0xff] %v8901
        %8944 = vst [vmem:[%s245 + $0x68] sm:$0xff] %v8902
        %8945 = vst [vmem:[%s245 + $0x70] sm:$0xff] %v8903
        %8946 = vst [vmem:[%s245 + $0x78] sm:$0xff] %v8904
        %8947 = vst [vmem:[%s245 + $0x80] sm:$0xff] %v8905
        %8948 = vst [vmem:[%s245 + $0x88] sm:$0xff] %v8906
        %8949 = vst [vmem:[%s245 + $0x90] sm:$0xff] %v8907
        %8950 = vst [vmem:[%s245 + $0x98] sm:$0xff] %v8908
        %8951 = vst [vmem:[%s245 + $0xa0] sm:$0xff] %v8909
        %8952 = vst [vmem:[%s245 + $0xa8] sm:$0xff] %v8910
        %8953 = vst [vmem:[%s245 + $0xb0] sm:$0xff] %v8911
        %8954 = vst [vmem:[%s245 + $0xb8] sm:$0xff] %v8912
        %8955 = vst [vmem:[%s245 + $0xc0] sm:$0xff] %v8913
        %8956 = vst [vmem:[%s245 + $0xc8] sm:$0xff] %v8914
        %8957 = vst [vmem:[%s245 + $0xd0] sm:$0xff] %v8915
        %8958 = vst [vmem:[%s245 + $0xd8] sm:$0xff] %v8916
        %8959 = vst [vmem:[%s245 + $0xe0] sm:$0xff] %v8917
        %8960 = vst [vmem:[%s245 + $0xe8] sm:$0xff] %v8918
        %8961 = vst [vmem:[%s245 + $0xf0] sm:$0xff] %v8919
        %8962 = vst [vmem:[%s245 + $0xf8] sm:$0xff] %v8920
        %8963 = vst [vmem:[%s245 + $0x100] sm:$0xff] %v8921
        %8964 = vst [vmem:[%s245 + $0x108] sm:$0xff] %v8922
        %8965 = vst [vmem:[%s245 + $0x110] sm:$0xff] %v8923
        %8966 = vst [vmem:[%s245 + $0x118] sm:$0xff] %v8924
        %8967 = vst [vmem:[%s245 + $0x120] sm:$0xff] %v8925
        %8968 = vst [vmem:[%s245 + $0x128] sm:$0xff] %v8926
        %8969 = vst [vmem:[%s245 + $0x130] sm:$0xff] %v8927
        %8970 = vst [vmem:[%s245 + $0x138] sm:$0xff] %v8928
        %8971 = vst [vmem:[%s245 + $0x140] sm:$0xff] %v8929
        %8972 = vst [vmem:[%s245 + $0x148] sm:$0xff] %v8930
        %s8973 = sand.u32 %s128, 1
        %s8974 = scalar_lea.sflag [#allocation8], %s8973
        %s8975 = sand.u32 %s128, 1
        %s8976 = smul.addr %s8975, 336
        %s8977 = scalar_lea.vmem [#allocation14], %s8976
        // Predicated region
        $region69: #{bottleneck_forward.1} parent=35 // pred_check
          %p8978 = pneg %p138
        $region70: #{bottleneck_forward.1} parent=35 // pred_check_branch
          %8980 = sbr.rel (%p8978) target = $region72
        $region71: #{bottleneck_forward.1} parent=35 // pred_region
          %s8981 = smul.u32 42, %s27
          %s8983 = ssub.s32 5376, 5376
          %8984 = vsyncadd %s8974, %s8983
          %s8985 = smul.addr %s26, 42
          %s8986 = sadd.s32 %s8981, %s8985
          %s8987 = smul.addr %s8986, 128
          %s8988 = scalar_lea.hbm %s5, %s8987
          %s8989 = sshll.u32 %s8977, 4
          %s8990 = int_to_ptr.vmem [resolvable:$true] %s8989
          %8995 = dma.vmem_to_hbm [thread:$0]  %s8990, 5376, %s8988, %s8974, 128, 128, 8
        $region72: #{bottleneck_forward.1} parent=35 // pred_fallthru
          _
      $region36: #{bottleneck_forward.1} parent=5 // pred_fallthru
        _
      %p8996 = scmp.le.s32.totalorder 2, %s17
      // Predicated region
      $region73: #{bottleneck_forward.1} parent=5 // pred_check
        %p8997 = pneg %p8996
      $region74: #{bottleneck_forward.1} parent=5 // pred_check_branch
        %8999 = sbr.rel (%p8997) target = $region76
      $region75: #{bottleneck_forward.1} parent=5 // pred_region
        %s9000 = ssub.s32 %s17, 2
        // Predicated region
        $region77: #{bottleneck_forward.1} parent=75 // pred_check
          %p9001 = pneg %p144
        $region78: #{bottleneck_forward.1} parent=75 // pred_check_branch
          %9003 = sbr.rel (%p9001) target = $region80
        $region79: #{bottleneck_forward.1} parent=75 // pred_region
          %s9004 = sand.u32 %s129, 1
          %s9005 = scalar_lea.sflag [#allocation8], %s9004
          %s9006 = sand.u32 %s129, 1
          %s9007 = smul.addr %s9006, 336
          %s9008 = scalar_lea.vmem [#allocation14], %s9007
          %9009 = dma.done %s9005, 5376
        $region80: #{bottleneck_forward.1} parent=75 // pred_fallthru
          _
      $region76: #{bottleneck_forward.1} parent=5 // pred_fallthru
        _
    $region6: #{bottleneck_forward.1} parent=1 // loop_footer
      %s21 = sadd.s32 1, %s17
    $region7: #{bottleneck_forward.1} parent=1 // loop_footer_branch
      %16 = sbr.rel target = $region3
    $region8: #{bottleneck_forward.1} parent=1 // loop_exit
      _
    %9010 = vsyncpa [#allocation7], 1
    %s9011 = scalar_lea.sflag [#allocation7], 1
    %9012 = vsyncpa %s9011, 1
    %9013 = vsyncpa [#allocation10], 1
    %9014 = vsyncpa [#allocation13], 1
    %9015 = vsyncpa [#allocation8], 1
    %s9016 = scalar_lea.sflag [#allocation8], 1
    %9017 = vsyncpa %s9016, 1
  %9018 = vsyncmov [#allocation5]
  %s9019 = vpop.sfrf %9018
  %p9020 = scmp.eq.s32.totalorder %s9019, 0
  %p9021 = pneg %p9020
  %9023 = shalt.err (%p9021)
  %s9024 = scalar_lea.sflag [#allocation5], 1
  %9025 = vsyncmov %s9024
  %s9026 = vpop.sfrf %9025
  %p9027 = scmp.eq.s32.totalorder %s9026, 0
  %p9028 = pneg %p9027
  %9030 = shalt.err (%p9028)

</llo_original>
